<compile_context>
chip_gen: v7x
topology: tpu7x:2x2x1
jax: 0.10.0
libtpu: 0.0.40
codegen_flags: <defaults>
</compile_context>

<pallas_src>
import functools

import jax
import jax.numpy as jnp
from jax import lax
from jax.experimental import pallas as pl
from jax.experimental.pallas import tpu as pltpu


# ----------------------------------------------------------------------------
# helpers
# ----------------------------------------------------------------------------
def _gelu(x):
    # TODO(synk): torch nn.GELU defaults to the exact erf formulation; the tanh
    # approximation is used here (and in the reference) since erf lowering in
    # Mosaic is not guaranteed (max abs deviation ~1e-3).
    return jax.nn.gelu(x, approximate=True)


def _fit_tile(dim, pref, align):
    """Largest multiple of `align` that is <= pref and divides dim, else dim."""
    if dim <= pref:
        return dim
    t = (pref // align) * align
    while t >= align:
        if dim % t == 0:
            return t
        t -= align
    return dim


def window_partition(x, ws):
    b, h, w, c = x.shape
    x = x.reshape(b, h // ws, ws, w // ws, ws, c)
    return x.transpose(0, 1, 3, 2, 4, 5).reshape(-1, ws, ws, c)


def window_reverse(windows, ws, h, w):
    b = windows.shape[0] // ((h // ws) * (w // ws))
    x = windows.reshape(b, h // ws, w // ws, ws, ws, -1)
    return x.transpose(0, 1, 3, 2, 4, 5).reshape(b, h, w, -1)


def relative_position_index(ws):
    coords = jnp.stack(jnp.meshgrid(jnp.arange(ws), jnp.arange(ws), indexing="ij"))
    coords_flat = coords.reshape(2, -1)
    rel = coords_flat[:, :, None] - coords_flat[:, None, :]          # (2, n, n)
    rel = rel.transpose(1, 2, 0) + jnp.array([ws - 1, ws - 1])
    return (rel[..., 0] * (2 * ws - 1) + rel[..., 1]).astype(jnp.int32)


# ----------------------------------------------------------------------------
# LayerNorm kernel
# ----------------------------------------------------------------------------
def _layernorm_kernel(x_ref, g_ref, b_ref, o_ref, *, eps):
    x = x_ref[...].astype(jnp.float32)
    mu = jnp.mean(x, axis=-1, keepdims=True)
    xc = x - mu
    var = jnp.mean(xc * xc, axis=-1, keepdims=True)
    y = xc * lax.rsqrt(var + eps)
    o_ref[...] = (y * g_ref[...].astype(jnp.float32)
                  + b_ref[...].astype(jnp.float32)).astype(o_ref.dtype)


def layernorm(x2d, gamma, beta, eps=1e-5):
    m, c = x2d.shape
    tm = _fit_tile(m, 512, 8)
    return pl.pallas_call(
        functools.partial(_layernorm_kernel, eps=eps),
        out_shape=jax.ShapeDtypeStruct((m, c), x2d.dtype),
        grid_spec=pltpu.PrefetchScalarGridSpec(
            num_scalar_prefetch=0,
            grid=(m // tm,),
            in_specs=[pl.BlockSpec((tm, c), lambda i: (i, 0)),
                      pl.BlockSpec((1, c), lambda i: (0, 0)),
                      pl.BlockSpec((1, c), lambda i: (0, 0))],
            out_specs=pl.BlockSpec((tm, c), lambda i: (i, 0))),
        compiler_params=pltpu.CompilerParams(dimension_semantics=("parallel",)),
    )(x2d, gamma.reshape(1, c), beta.reshape(1, c))


# ----------------------------------------------------------------------------
# Tiled linear (matmul + bias + optional GELU)
# ----------------------------------------------------------------------------
def _linear_kernel(x_ref, w_ref, b_ref, o_ref, acc_ref, *, act):
    @pl.when(pl.program_id(2) == 0)
    def _():
        acc_ref[...] = jnp.zeros_like(acc_ref)

    acc_ref[...] += jnp.dot(x_ref[...].astype(jnp.float32),
                            w_ref[...].astype(jnp.float32),
                            preferred_element_type=jnp.float32)

    @pl.when(pl.program_id(2) == pl.num_programs(2) - 1)
    def _():
        r = acc_ref[...] + b_ref[...].astype(jnp.float32)
        if act == "gelu":
            r = _gelu(r)
        o_ref[...] = r.astype(o_ref.dtype)


def linear(x, w, b, act=None):
    m, k = x.shape
    k2, n = w.shape
    assert k == k2
    tm = _fit_tile(m, 256, 8)
    tn = _fit_tile(n, 256, 128)
    tk = _fit_tile(k, 512, 128)
    grid = (m // tm, n // tn, k // tk)
    return pl.pallas_call(
        functools.partial(_linear_kernel, act=act),
        out_shape=jax.ShapeDtypeStruct((m, n), x.dtype),
        grid_spec=pltpu.PrefetchScalarGridSpec(
            num_scalar_prefetch=0,
            grid=grid,
            in_specs=[pl.BlockSpec((tm, tk), lambda i, j, kk: (i, kk)),
                      pl.BlockSpec((tk, tn), lambda i, j, kk: (kk, j)),
                      pl.BlockSpec((1, tn), lambda i, j, kk: (0, j))],
            out_specs=pl.BlockSpec((tm, tn), lambda i, j, kk: (i, j)),
            scratch_shapes=[pltpu.VMEM((tm, tn), jnp.float32)]),
        compiler_params=pltpu.CompilerParams(
            dimension_semantics=("parallel", "parallel", "arbitrary")),
    )(x, w, b.reshape(1, n))


# ----------------------------------------------------------------------------
# Per-window multi-head attention kernel
# ----------------------------------------------------------------------------
def _window_attn_kernel(q_ref, k_ref, v_ref, bias_ref, mask_ref, o_ref, *, scale):
    q = q_ref[0].astype(jnp.float32) * scale                    # (nh, n, d)
    k = k_ref[0].astype(jnp.float32)
    v = v_ref[0].astype(jnp.float32)
    s = jnp.einsum("hnd,hmd->hnm", q, k, preferred_element_type=jnp.float32)
    s = s + bias_ref[...].astype(jnp.float32)
    s = s + mask_ref[0].astype(jnp.float32)[None, :, :]
    s_max = jnp.max(s, axis=-1, keepdims=True)
    p = jnp.exp(s - s_max)
    p = p / jnp.sum(p, axis=-1, keepdims=True)
    o = jnp.einsum("hnm,hmd->hnd", p, v, preferred_element_type=jnp.float32)
    o_ref[0] = o.astype(o_ref.dtype)


def window_attention_core(q, k, v, bias, mask, scale):
    b_, nh, n, d = q.shape
    nw = mask.shape[0]
    return pl.pallas_call(
        functools.partial(_window_attn_kernel, scale=scale),
        out_shape=jax.ShapeDtypeStruct((b_, nh, n, d), q.dtype),
        grid_spec=pltpu.PrefetchScalarGridSpec(
            num_scalar_prefetch=0,
            grid=(b_,),
            in_specs=[pl.BlockSpec((1, nh, n, d), lambda i: (i, 0, 0, 0)),
                      pl.BlockSpec((1, nh, n, d), lambda i: (i, 0, 0, 0)),
                      pl.BlockSpec((1, nh, n, d), lambda i: (i, 0, 0, 0)),
                      pl.BlockSpec((nh, n, n), lambda i: (0, 0, 0)),
                      pl.BlockSpec((1, n, n), lambda i: (i % nw, 0, 0))],
            out_specs=pl.BlockSpec((1, nh, n, d), lambda i: (i, 0, 0, 0))),
        compiler_params=pltpu.CompilerParams(dimension_semantics=("parallel",)),
    )(q, k, v, bias, mask)


# ----------------------------------------------------------------------------
# 3x3 conv kernel (NHWC, same padding) — 9 shifted MXU matmuls
# ----------------------------------------------------------------------------
def _conv3x3_kernel(xp_ref, w_ref, b_ref, o_ref, *, hh, ww, act):
    xp = xp_ref[0].astype(jnp.float32)                          # (H+2, W+2, Cin)
    cin = xp.shape[-1]
    cout = o_ref.shape[-1]
    acc = jnp.zeros((hh * ww, cout), jnp.float32)
    for ky in range(3):
        for kx in range(3):
            tap = xp[ky:ky + hh, kx:kx + ww, :].reshape(hh * ww, cin)
            acc = acc + jnp.dot(tap, w_ref[ky, kx].astype(jnp.float32),
                                preferred_element_type=jnp.float32)
    acc = acc + b_ref[...].astype(jnp.float32)
    if act == "gelu":
        acc = _gelu(acc)
    o_ref[0] = acc.reshape(hh, ww, cout).astype(o_ref.dtype)


def conv3x3(x_nhwc, w_hwio, b, act=None):
    bb, hh, ww, cin = x_nhwc.shape
    cout = w_hwio.shape[-1]
    xp = jnp.pad(x_nhwc, ((0, 0), (1, 1), (1, 1), (0, 0)))
    return pl.pallas_call(
        functools.partial(_conv3x3_kernel, hh=hh, ww=ww, act=act),
        out_shape=jax.ShapeDtypeStruct((bb, hh, ww, cout), x_nhwc.dtype),
        grid_spec=pltpu.PrefetchScalarGridSpec(
            num_scalar_prefetch=0,
            grid=(bb,),
            in_specs=[pl.BlockSpec((1, hh + 2, ww + 2, cin), lambda i: (i, 0, 0, 0)),
                      pl.BlockSpec((3, 3, cin, cout), lambda i: (0, 0, 0, 0)),
                      pl.BlockSpec((1, cout), lambda i: (0, 0))],
            out_specs=pl.BlockSpec((1, hh, ww, cout), lambda i: (i, 0, 0, 0))),
        compiler_params=pltpu.CompilerParams(dimension_semantics=("parallel",)),
    )(xp, w_hwio, b.reshape(1, cout))


# ----------------------------------------------------------------------------
# SACA conv attention (NHWC) — two kernels + a global-mean reduction
# ----------------------------------------------------------------------------
def _saca_att_kernel(yp_ref, att_ref, *, hh, ww):
    yp = yp_ref[0].astype(jnp.float32)                          # (H+2, W+2, C)
    y = yp[1:1 + hh, 1:1 + ww, :]
    box = jnp.zeros_like(y)
    for ky in range(3):
        for kx in range(3):
            box = box + yp[ky:ky + hh, kx:kx + ww, :]
    att_ref[0] = jnp.abs(9.0 * y - box).astype(att_ref.dtype)


def _saca_apply_kernel(inv_ref, y_ref, att_ref, o_ref):
    inv = inv_ref[0]                                            # scalar from SMEM
    y = y_ref[0].astype(jnp.float32)                            # (H, W, C)
    d = att_ref[0].astype(jnp.float32) * inv
    chan = jnp.mean(jnp.mean(d, axis=0), axis=0) + 1.0          # (C,)
    space = (jax.nn.sigmoid(d) + 1.0) * y
    o_ref[0] = (space * chan).astype(o_ref.dtype)


def saca_attention(y_nhwc, band_width=1.0):
    bb, hh, ww, cc = y_nhwc.shape
    yp = jnp.pad(y_nhwc, ((0, 0), (1, 1), (1, 1), (0, 0)))
    att = pl.pallas_call(
        functools.partial(_saca_att_kernel, hh=hh, ww=ww),
        out_shape=jax.ShapeDtypeStruct((bb, hh, ww, cc), jnp.float32),
        grid_spec=pltpu.PrefetchScalarGridSpec(
            num_scalar_prefetch=0,
            grid=(bb,),
            in_specs=[pl.BlockSpec((1, hh + 2, ww + 2, cc), lambda i: (i, 0, 0, 0))],
            out_specs=pl.BlockSpec((1, hh, ww, cc), lambda i: (i, 0, 0, 0))),
        compiler_params=pltpu.CompilerParams(dimension_semantics=("parallel",)),
    )(yp)
    # torch takes att.mean() over the WHOLE (b,c,h,w) tensor (cross-batch
    # coupling) — tiny XLA reduction, then fed back to the kernel via SMEM.
    inv = (1.0 / (jnp.mean(att) * 2.0 * (band_width ** 2))).reshape(1).astype(jnp.float32)
    return pl.pallas_call(
        _saca_apply_kernel,
        out_shape=jax.ShapeDtypeStruct((bb, hh, ww, cc), y_nhwc.dtype),
        grid_spec=pltpu.PrefetchScalarGridSpec(
            num_scalar_prefetch=0,
            grid=(bb,),
            in_specs=[pl.BlockSpec(memory_space=pltpu.MemorySpace.SMEM),
                      pl.BlockSpec((1, hh, ww, cc), lambda i: (i, 0, 0, 0)),
                      pl.BlockSpec((1, hh, ww, cc), lambda i: (i, 0, 0, 0))],
            out_specs=pl.BlockSpec((1, hh, ww, cc), lambda i: (i, 0, 0, 0))),
        compiler_params=pltpu.CompilerParams(dimension_semantics=("parallel",)),
    )(inv, y_nhwc, att)


# ----------------------------------------------------------------------------
# AFB module (inference mode: dropout / drop_path are identity)
# ----------------------------------------------------------------------------
class AFB:
    def __init__(self, dim, input_resolution, num_heads, window_size=7,
                 shift_size=0, compress_ratio=3, squeeze_factor=30,
                 conv_scale=0.01, mlp_ratio=4.0, qkv_bias=True, qk_scale=None,
                 band_width=1.0):
        self.dim = dim
        self.input_resolution = tuple(input_resolution)
        self.num_heads = num_heads
        self.window_size = window_size
        self.shift_size = shift_size
        self.mlp_ratio = mlp_ratio
        if min(self.input_resolution) <= self.window_size:
            self.shift_size = 0
            self.window_size = min(self.input_resolution)
        assert 0 <= self.shift_size < self.window_size
        head_dim = dim // num_heads
        self.scale = qk_scale or head_dim ** (-0.5)
        self.compress_ratio = compress_ratio
        self.squeeze_factor = squeeze_factor            # unused (parity with torch)
        # TODO(synk): torch mutates conv_scale with random.random() every
        # forward; kept fixed here for determinism.
        self.conv_scale = conv_scale
        self.mlp_hidden = int(dim * mlp_ratio)
        self.band_width = band_width

    def init_params(self, key):
        c, nh, ws = self.dim, self.num_heads, self.window_size
        cmid = c // self.compress_ratio
        hid = self.mlp_hidden
        ks = jax.random.split(key, 12)

        def nrm(k, shape, std=0.1):
            return (std * jax.random.normal(k, shape)).astype(jnp.float32)

        return {
            "norm1_g": 1.0 + nrm(ks[0], (c,), 0.05),
            "norm1_b": nrm(ks[1], (c,), 0.05),
            "qkv_w": nrm(ks[2], (c, 3 * c)),
            "qkv_b": nrm(ks[3], (3 * c,), 0.02),
            "proj_w": nrm(ks[4], (c, c)),
            "proj_b": nrm(ks[5], (c,), 0.02),
            "rpb_table": nrm(ks[6], ((2 * ws - 1) * (2 * ws - 1), nh), 0.02),
            "conv1_w": nrm(ks[7], (3, 3, c, cmid)),
            "conv1_b": nrm(ks[7], (cmid,), 0.02),
            "conv2_w": nrm(ks[8], (3, 3, cmid, c)),
            "conv2_b": nrm(ks[8], (c,), 0.02),
            "norm2_g": 1.0 + nrm(ks[9], (c,), 0.05),
            "norm2_b": nrm(ks[9], (c,), 0.05),
            "fc1_w": nrm(ks[10], (c, hid)),
            "fc1_b": nrm(ks[10], (hid,), 0.02),
            "fc2_w": nrm(ks[11], (hid, c)),
            "fc2_b": nrm(ks[11], (c,), 0.02),
        }

    def __call__(self, params, x, x_size, rpi_sa, attn_mask=None):
        h, w = x_size
        b, L, c = x.shape
        ws, nh, shift = self.window_size, self.num_heads, self.shift_size
        n = ws * ws
        nW = (h // ws) * (w // ws)

        shortcut = x
        xn = layernorm(x.reshape(b * L, c), params["norm1_g"], params["norm1_b"])
        x_img = xn.reshape(b, h, w, c)          # NHWC (same math as torch NCHW)

        # --- conv branch: Conv3x3 -> GELU -> Conv3x3 -> SACA attention ---
        t = conv3x3(x_img, params["conv1_w"], params["conv1_b"], act="gelu")
        t = conv3x3(t, params["conv2_w"], params["conv2_b"], act=None)
        conv_x = saca_attention(t, self.band_width).reshape(b, L, c)

        # --- (shifted) window attention branch ---
        if shift > 0:
            shifted = jnp.roll(x_img, (-shift, -shift), axis=(1, 2))
            mask = attn_mask.astype(jnp.float32)
        else:
            shifted = x_img
            mask = jnp.zeros((nW, n, n), jnp.float32)
        xw = window_partition(shifted, ws).reshape(-1, n, c)     # (b*nW, n, c)
        b_ = xw.shape[0]
        d = c // nh

        qkv = linear(xw.reshape(b_ * n, c), params["qkv_w"], params["qkv_b"])
        qkv = qkv.reshape(b_, n, 3, nh, d).transpose(2, 0, 3, 1, 4)
        q, k, v = qkv[0], qkv[1], qkv[2]
        bias = params["rpb_table"][rpi_sa.reshape(-1)]
        bias = bias.reshape(n, n, nh).transpose(2, 0, 1)          # (nh, n, n)
        o = window_attention_core(q, k, v, bias, mask, self.scale)
        o = o.transpose(0, 2, 1, 3).reshape(b_ * n, c)
        o = linear(o, params["proj_w"], params["proj_b"]).reshape(-1, ws, ws, c)
        shifted = window_reverse(o, ws, h, w)
        if shift > 0:
            attn_x = jnp.roll(shifted, (shift, shift), axis=(1, 2))
        else:
            attn_x = shifted
        attn_x = attn_x.reshape(b, L, c)

        # --- residual merge + MLP ---
        x1 = shortcut + attn_x + conv_x * self.conv_scale
        xn2 = layernorm(x1.reshape(b * L, c), params["norm2_g"], params["norm2_b"])
        m = linear(xn2, params["fc1_w"], params["fc1_b"], act="gelu")
        m = linear(m, params["fc2_w"], params["fc2_b"])
        return x1 + m.reshape(b, L, c)


# ----------------------------------------------------------------------------
# Pure-jnp reference (mirrors torch AFB.forward, eval mode)
# ----------------------------------------------------------------------------
def afb_reference(module, params, x, x_size, rpi_sa, attn_mask=None):
    h, w = x_size
    b, L, c = x.shape
    ws, nh, shift = module.window_size, module.num_heads, module.shift_size
    n = ws * ws
    nW = (h // ws) * (w // ws)

    def ln(z, g, be):
        mu = jnp.mean(z, -1, keepdims=True)
        var = jnp.mean((z - mu) ** 2, -1, keepdims=True)
        return (z - mu) / jnp.sqrt(var + 1e-5) * g + be

    def conv3(z, wgt, bia):
        return lax.conv_general_dilated(
            z, wgt, (1, 1), "SAME",
            dimension_numbers=("NHWC", "HWIO", "NHWC")) + bia

    shortcut = x
    xn = ln(x, params["norm1_g"], params["norm1_b"])
    x_img = xn.reshape(b, h, w, c)

    t = _gelu(conv3(x_img, params["conv1_w"], params["conv1_b"]))
    t = conv3(t, params["conv2_w"], params["conv2_b"])
    tp = jnp.pad(t, ((0, 0), (1, 1), (1, 1), (0, 0)))
    box = sum(tp[:, ky:ky + h, kx:kx + w, :] for ky in range(3) for kx in range(3))
    att = jnp.abs(9.0 * t - box)
    d = att / jnp.mean(att) / 2.0 / (module.band_width ** 2)
    chan = jnp.mean(d, axis=(1, 2), keepdims=True) + 1.0
    conv_img = (jax.nn.sigmoid(d) + 1.0) * t * chan
    conv_x = conv_img.reshape(b, L, c)

    if shift > 0:
        shifted = jnp.roll(x_img, (-shift, -shift), axis=(1, 2))
        mask = attn_mask
    else:
        shifted = x_img
        mask = None
    xw = window_partition(shifted, ws).reshape(-1, n, c)
    b_ = xw.shape[0]
    dh = c // nh
    qkv = xw @ params["qkv_w"] + params["qkv_b"]
    qkv = qkv.reshape(b_, n, 3, nh, dh).transpose(2, 0, 3, 1, 4)
    q, k, v = qkv[0] * module.scale, qkv[1], qkv[2]
    attn = jnp.einsum("bhnd,bhmd->bhnm", q, k)
    bias = params["rpb_table"][rpi_sa.reshape(-1)].reshape(n, n, nh).transpose(2, 0, 1)
    attn = attn + bias[None]
    if mask is not None:
        attn = attn.reshape(b_ // nW, nW, nh, n, n) + mask[None, :, None]
        attn = attn.reshape(b_, nh, n, n)
    attn = jax.nn.softmax(attn, axis=-1)
    o = jnp.einsum("bhnm,bhmd->bhnd", attn, v).transpose(0, 2, 1, 3).reshape(b_, n, c)
    o = (o @ params["proj_w"] + params["proj_b"]).reshape(-1, ws, ws, c)
    shifted = window_reverse(o, ws, h, w)
    attn_x = jnp.roll(shifted, (shift, shift), axis=(1, 2)) if shift > 0 else shifted
    attn_x = attn_x.reshape(b, L, c)

    x1 = shortcut + attn_x + conv_x * module.conv_scale
    xn2 = ln(x1, params["norm2_g"], params["norm2_b"])
    m = _gelu(xn2 @ params["fc1_w"] + params["fc1_b"]) @ params["fc2_w"] + params["fc2_b"]
    return x1 + m


if __name__ == "__main__":
    key = jax.random.PRNGKey(0)
    kp, kx = jax.random.split(key)

    # Small deterministic shapes: batch=2, 8x8 spatial, dim=32, 4 heads, ws=4.
    B, H, W, C = 2, 8, 8, 32
    num_heads, window_size = 4, 4
    L = H * W

    module = AFB(dim=C, input_resolution=(H, W), num_heads=num_heads,
                 window_size=window_size, shift_size=0, compress_ratio=4,
                 conv_scale=0.01, mlp_ratio=2.0)
    params = module.init_params(kp)
    x = jax.random.normal(kx, (B, L, C), dtype=jnp.float32)
    rpi = relative_position_index(module.window_size)

    fwd = jax.jit(lambda p, xx, rr: module(p, xx, (H, W), rr))
    y = fwd(params, x, rpi)
    y = jax.block_until_ready(y)

    y_ref = afb_reference(module, params, x, (H, W), rpi, attn_mask=None)
    err = float(jnp.max(jnp.abs(y - y_ref)))
    assert y.shape == (B, L, C), y.shape
    assert err < 2e-2, f"max abs err {err}"
    print("KERNEL_OK")
</pallas_src>

<mosaic_0001>
module attributes {stable_mosaic.version = 11 : i64} {
  func.func @_layernorm_kernel(%arg0: i32, %arg1: memref<128x32xf32, #tpu.memory_space<vmem>>, %arg2: memref<1x32xf32, #tpu.memory_space<vmem>>, %arg3: memref<1x32xf32, #tpu.memory_space<vmem>>, %arg4: memref<128x32xf32, #tpu.memory_space<vmem>>) attributes {dimension_semantics = [#tpu.dimension_semantics<parallel>], iteration_bounds = array<i64: 1>, scalar_prefetch = 0 : i64, scratch_operands = 0 : i64, tpu.core_type = #tpu.core_type<tc>, window_params = [{transform_indices = @transform_0, window_bounds = array<i64: 128, 32>}, {pipeline_mode = #tpu.pipeline_mode<synchronous>, transform_indices = @transform_1, window_bounds = array<i64: 1, 32>}, {pipeline_mode = #tpu.pipeline_mode<synchronous>, transform_indices = @transform_2, window_bounds = array<i64: 1, 32>}, {transform_indices = @transform_3, window_bounds = array<i64: 128, 32>}]} {
    %c0 = arith.constant 0 : index
    %c0_0 = arith.constant 0 : index
    %0 = vector.load %arg1[%c0, %c0_0] : memref<128x32xf32, #tpu.memory_space<vmem>>, vector<128x32xf32>
    %cst = arith.constant dense<0.000000e+00> : vector<128xf32>
    %1 = vector.multi_reduction <add>, %0, %cst [1] : vector<128x32xf32> to vector<128xf32>
    %2 = vector.shape_cast %1 : vector<128xf32> to vector<128x1xf32>
    %cst_1 = arith.constant 3.200000e+01 : f32
    %3 = vector.broadcast %cst_1 : f32 to vector<128x1xf32>
    %4 = arith.divf %2, %3 : vector<128x1xf32>
    %5 = vector.broadcast %4 : vector<128x1xf32> to vector<128x32xf32>
    %6 = arith.subf %0, %5 : vector<128x32xf32>
    %7 = arith.mulf %6, %6 : vector<128x32xf32>
    %cst_2 = arith.constant dense<0.000000e+00> : vector<128xf32>
    %8 = vector.multi_reduction <add>, %7, %cst_2 [1] : vector<128x32xf32> to vector<128xf32>
    %9 = vector.shape_cast %8 : vector<128xf32> to vector<128x1xf32>
    %cst_3 = arith.constant 3.200000e+01 : f32
    %10 = vector.broadcast %cst_3 : f32 to vector<128x1xf32>
    %11 = arith.divf %9, %10 : vector<128x1xf32>
    %cst_4 = arith.constant 9.99999974E-6 : f32
    %12 = vector.broadcast %cst_4 : f32 to vector<128x1xf32>
    %13 = arith.addf %11, %12 : vector<128x1xf32>
    %14 = math.rsqrt %13 : vector<128x1xf32>
    %15 = vector.broadcast %14 : vector<128x1xf32> to vector<128x32xf32>
    %16 = arith.mulf %6, %15 : vector<128x32xf32>
    %c0_5 = arith.constant 0 : index
    %c0_6 = arith.constant 0 : index
    %17 = vector.load %arg2[%c0_5, %c0_6] : memref<1x32xf32, #tpu.memory_space<vmem>>, vector<1x32xf32>
    %18 = vector.broadcast %17 : vector<1x32xf32> to vector<128x32xf32>
    %19 = arith.mulf %16, %18 : vector<128x32xf32>
    %c0_7 = arith.constant 0 : index
    %c0_8 = arith.constant 0 : index
    %20 = vector.load %arg3[%c0_7, %c0_8] : memref<1x32xf32, #tpu.memory_space<vmem>>, vector<1x32xf32>
    %21 = vector.broadcast %20 : vector<1x32xf32> to vector<128x32xf32>
    %22 = arith.addf %19, %21 : vector<128x32xf32>
    %c0_9 = arith.constant 0 : index
    %c0_10 = arith.constant 0 : index
    %23 = vector.load %arg4[%c0_9, %c0_10] : memref<128x32xf32, #tpu.memory_space<vmem>>, vector<128x32xf32>
    tpu.vector_store %arg4[%c0_9, %c0_10], %22 {strides = array<i32>} : memref<128x32xf32, #tpu.memory_space<vmem>>, vector<128x32xf32>,
    return
  }
  func.func @transform_0(%arg0: i32) -> (i32, i32) {
    %c0_i32 = arith.constant 0 : i32
    %c0_i32_0 = arith.constant 0 : i32
    return %arg0, %c0_i32 : i32, i32
  }
  func.func @transform_1(%arg0: i32) -> (i32, i32) {
    %c0_i32 = arith.constant 0 : i32
    %c0_i32_0 = arith.constant 0 : i32
    %c0_i32_1 = arith.constant 0 : i32
    return %c0_i32, %c0_i32_0 : i32, i32
  }
  func.func @transform_2(%arg0: i32) -> (i32, i32) {
    %c0_i32 = arith.constant 0 : i32
    %c0_i32_0 = arith.constant 0 : i32
    %c0_i32_1 = arith.constant 0 : i32
    return %c0_i32, %c0_i32_0 : i32, i32
  }
  func.func @transform_3(%arg0: i32) -> (i32, i32) {
    %c0_i32 = arith.constant 0 : i32
    %c0_i32_0 = arith.constant 0 : i32
    return %arg0, %c0_i32 : i32, i32
  }
}

module attributes {stable_mosaic.version = 11 : i64} {
  func.func @_linear_kernel(%arg0: i32, %arg1: i32, %arg2: i32, %arg3: memref<128x32xf32, #tpu.memory_space<vmem>>, %arg4: memref<32x96xf32, #tpu.memory_space<vmem>>, %arg5: memref<1x96xf32, #tpu.memory_space<vmem>>, %arg6: memref<128x96xf32, #tpu.memory_space<vmem>>, %arg7: memref<128x96xf32, #tpu.memory_space<vmem>>) attributes {dimension_semantics = [#tpu.dimension_semantics<parallel>, #tpu.dimension_semantics<parallel>, #tpu.dimension_semantics<arbitrary>], iteration_bounds = array<i64: 1, 1, 1>, scalar_prefetch = 0 : i64, scratch_operands = 1 : i64, tpu.core_type = #tpu.core_type<tc>, window_params = [{transform_indices = @transform_0, window_bounds = array<i64: 128, 32>}, {transform_indices = @transform_1, window_bounds = array<i64: 32, 96>}, {transform_indices = @transform_2, window_bounds = array<i64: 1, 96>}, {transform_indices = @transform_3, window_bounds = array<i64: 128, 96>}]} {
    %c0_i32 = arith.constant 0 : i32
    %0 = arith.cmpi eq, %arg2, %c0_i32 : i32
    %1 = arith.extui %0 : i1 to i32
    %c0_i32_0 = arith.constant 0 : i32
    %2 = arith.cmpi ne, %1, %c0_i32_0 : i32
    scf.if %2 {
      %cst_10 = arith.constant 0.000000e+00 : f32
      %12 = vector.broadcast %cst_10 : f32 to vector<128x96xf32>
      %c0_11 = arith.constant 0 : index
      %c0_12 = arith.constant 0 : index
      %13 = vector.load %arg7[%c0_11, %c0_12] : memref<128x96xf32, #tpu.memory_space<vmem>>, vector<128x96xf32>
      tpu.vector_store %arg7[%c0_11, %c0_12], %12 {strides = array<i32>} : memref<128x96xf32, #tpu.memory_space<vmem>>, vector<128x96xf32>,
    } else {
    }
    %c0 = arith.constant 0 : index
    %c0_1 = arith.constant 0 : index
    %3 = vector.load %arg7[%c0, %c0_1] : memref<128x96xf32, #tpu.memory_space<vmem>>, vector<128x96xf32>
    %c0_2 = arith.constant 0 : index
    %c0_3 = arith.constant 0 : index
    %4 = vector.load %arg3[%c0_2, %c0_3] : memref<128x32xf32, #tpu.memory_space<vmem>>, vector<128x32xf32>
    %c0_4 = arith.constant 0 : index
    %c0_5 = arith.constant 0 : index
    %5 = vector.load %arg4[%c0_4, %c0_5] : memref<32x96xf32, #tpu.memory_space<vmem>>, vector<32x96xf32>
    %cst = arith.constant dense<0.000000e+00> : vector<128x96xf32>
    %6 = tpu.matmul %4, %5, %cst {dimension_numbers = #tpu.dot_dimension_numbers<[1], [0], [0], [1], [0, 0, 1, 1], [], []>} : vector<128x32xf32>, vector<32x96xf32>, vector<128x96xf32> -> vector<128x96xf32>
    %7 = arith.addf %3, %6 : vector<128x96xf32>
    %c0_6 = arith.constant 0 : index
    %c0_7 = arith.constant 0 : index
    %8 = vector.load %arg7[%c0_6, %c0_7] : memref<128x96xf32, #tpu.memory_space<vmem>>, vector<128x96xf32>
    tpu.vector_store %arg7[%c0_6, %c0_7], %7 {strides = array<i32>} : memref<128x96xf32, #tpu.memory_space<vmem>>, vector<128x96xf32>,
    %c0_i32_8 = arith.constant 0 : i32
    %9 = arith.cmpi eq, %arg2, %c0_i32_8 : i32
    %10 = arith.extui %9 : i1 to i32
    %c0_i32_9 = arith.constant 0 : i32
    %11 = arith.cmpi ne, %10, %c0_i32_9 : i32
    scf.if %11 {
      %c0_10 = arith.constant 0 : index
      %c0_11 = arith.constant 0 : index
      %12 = vector.load %arg7[%c0_10, %c0_11] : memref<128x96xf32, #tpu.memory_space<vmem>>, vector<128x96xf32>
      %c0_12 = arith.constant 0 : index
      %c0_13 = arith.constant 0 : index
      %13 = vector.load %arg5[%c0_12, %c0_13] : memref<1x96xf32, #tpu.memory_space<vmem>>, vector<1x96xf32>
      %14 = vector.broadcast %13 : vector<1x96xf32> to vector<128x96xf32>
      %15 = arith.addf %12, %14 : vector<128x96xf32>
      %c0_14 = arith.constant 0 : index
      %c0_15 = arith.constant 0 : index
      %16 = vector.load %arg6[%c0_14, %c0_15] : memref<128x96xf32, #tpu.memory_space<vmem>>, vector<128x96xf32>
      tpu.vector_store %arg6[%c0_14, %c0_15], %15 {strides = array<i32>} : memref<128x96xf32, #tpu.memory_space<vmem>>, vector<128x96xf32>,
    } else {
    }
    return
  }
  func.func @transform_0(%arg0: i32, %arg1: i32, %arg2: i32) -> (i32, i32) {
    %c0_i32 = arith.constant 0 : i32
    return %arg0, %arg2 : i32, i32
  }
  func.func @transform_1(%arg0: i32, %arg1: i32, %arg2: i32) -> (i32, i32) {
    %c0_i32 = arith.constant 0 : i32
    return %arg2, %arg1 : i32, i32
  }
  func.func @transform_2(%arg0: i32, %arg1: i32, %arg2: i32) -> (i32, i32) {
    %c0_i32 = arith.constant 0 : i32
    %c0_i32_0 = arith.constant 0 : i32
    return %c0_i32, %arg1 : i32, i32
  }
  func.func @transform_3(%arg0: i32, %arg1: i32, %arg2: i32) -> (i32, i32) {
    %c0_i32 = arith.constant 0 : i32
    return %arg0, %arg1 : i32, i32
  }
}

module attributes {stable_mosaic.version = 11 : i64} {
  func.func @_window_attn_kernel(%arg0: i32, %arg1: memref<1x4x16x8xf32, #tpu.memory_space<vmem>>, %arg2: memref<1x4x16x8xf32, #tpu.memory_space<vmem>>, %arg3: memref<1x4x16x8xf32, #tpu.memory_space<vmem>>, %arg4: memref<4x16x16xf32, #tpu.memory_space<vmem>>, %arg5: memref<1x16x16xf32, #tpu.memory_space<vmem>>, %arg6: memref<1x4x16x8xf32, #tpu.memory_space<vmem>>) attributes {dimension_semantics = [#tpu.dimension_semantics<parallel>], iteration_bounds = array<i64: 8>, scalar_prefetch = 0 : i64, scratch_operands = 0 : i64, tpu.core_type = #tpu.core_type<tc>, window_params = [{transform_indices = @transform_0, window_bounds = array<i64: 1, 4, 16, 8>}, {transform_indices = @transform_1, window_bounds = array<i64: 1, 4, 16, 8>}, {transform_indices = @transform_2, window_bounds = array<i64: 1, 4, 16, 8>}, {pipeline_mode = #tpu.pipeline_mode<synchronous>, transform_indices = @transform_3, window_bounds = array<i64: 4, 16, 16>}, {transform_indices = @transform_4, window_bounds = array<i64: 1, 16, 16>}, {transform_indices = @transform_5, window_bounds = array<i64: 1, 4, 16, 8>}]} {
    %c0 = arith.constant 0 : index
    %c0_0 = arith.constant 0 : index
    %c0_1 = arith.constant 0 : index
    %c0_2 = arith.constant 0 : index
    %0 = vector.load %arg1[%c0, %c0_0, %c0_1, %c0_2] : memref<1x4x16x8xf32, #tpu.memory_space<vmem>>, vector<1x4x16x8xf32>
    %1 = vector.shape_cast %0 : vector<1x4x16x8xf32> to vector<4x16x8xf32>
    %cst = arith.constant 0.353553385 : f32
    %2 = vector.broadcast %cst : f32 to vector<4x16x8xf32>
    %3 = arith.mulf %1, %2 : vector<4x16x8xf32>
    %c0_3 = arith.constant 0 : index
    %c0_4 = arith.constant 0 : index
    %c0_5 = arith.constant 0 : index
    %c0_6 = arith.constant 0 : index
    %4 = vector.load %arg2[%c0_3, %c0_4, %c0_5, %c0_6] : memref<1x4x16x8xf32, #tpu.memory_space<vmem>>, vector<1x4x16x8xf32>
    %5 = vector.shape_cast %4 : vector<1x4x16x8xf32> to vector<4x16x8xf32>
    %c0_7 = arith.constant 0 : index
    %c0_8 = arith.constant 0 : index
    %c0_9 = arith.constant 0 : index
    %c0_10 = arith.constant 0 : index
    %6 = vector.load %arg3[%c0_7, %c0_8, %c0_9, %c0_10] : memref<1x4x16x8xf32, #tpu.memory_space<vmem>>, vector<1x4x16x8xf32>
    %7 = vector.shape_cast %6 : vector<1x4x16x8xf32> to vector<4x16x8xf32>
    "tpu.trace_start"() <{level = 10 : i32, message = "hnd,hmd->hnm"}> : () -> ()
    %cst_11 = arith.constant dense<0.000000e+00> : vector<4x16x16xf32>
    %8 = tpu.matmul %3, %5, %cst_11 {dimension_numbers = #tpu.dot_dimension_numbers<[2], [2], [1], [1], [0, 0, 0, 1, 1, 1], [0], [0]>} : vector<4x16x8xf32>, vector<4x16x8xf32>, vector<4x16x16xf32> -> vector<4x16x16xf32>
    "tpu.trace_stop"() : () -> ()
    %c0_12 = arith.constant 0 : index
    %c0_13 = arith.constant 0 : index
    %c0_14 = arith.constant 0 : index
    %9 = vector.load %arg4[%c0_12, %c0_13, %c0_14] : memref<4x16x16xf32, #tpu.memory_space<vmem>>, vector<4x16x16xf32>
    %10 = arith.addf %8, %9 : vector<4x16x16xf32>
    %c0_15 = arith.constant 0 : index
    %c0_16 = arith.constant 0 : index
    %c0_17 = arith.constant 0 : index
    %11 = vector.load %arg5[%c0_15, %c0_16, %c0_17] : memref<1x16x16xf32, #tpu.memory_space<vmem>>, vector<1x16x16xf32>
    %12 = vector.shape_cast %11 : vector<1x16x16xf32> to vector<16x16xf32>
    %13 = vector.shape_cast %12 : vector<16x16xf32> to vector<1x16x16xf32>
    %14 = vector.broadcast %13 : vector<1x16x16xf32> to vector<4x16x16xf32>
    %15 = arith.addf %10, %14 : vector<4x16x16xf32>
    %cst_18 = arith.constant dense<0xFF800000> : vector<4x16xf32>
    %16 = vector.multi_reduction <maximumf>, %15, %cst_18 [2] : vector<4x16x16xf32> to vector<4x16xf32>
    %17 = vector.shape_cast %16 : vector<4x16xf32> to vector<4x16x1xf32>
    %18 = vector.broadcast %17 : vector<4x16x1xf32> to vector<4x16x16xf32>
    %19 = arith.subf %15, %18 : vector<4x16x16xf32>
    %20 = math.exp %19 : vector<4x16x16xf32>
    %cst_19 = arith.constant dense<0.000000e+00> : vector<4x16xf32>
    %21 = vector.multi_reduction <add>, %20, %cst_19 [2] : vector<4x16x16xf32> to vector<4x16xf32>
    %22 = vector.shape_cast %21 : vector<4x16xf32> to vector<4x16x1xf32>
    %23 = vector.broadcast %22 : vector<4x16x1xf32> to vector<4x16x16xf32>
    %24 = arith.divf %20, %23 : vector<4x16x16xf32>
    "tpu.trace_start"() <{level = 10 : i32, message = "hnm,hmd->hnd"}> : () -> ()
    %cst_20 = arith.constant dense<0.000000e+00> : vector<4x16x8xf32>
    %25 = tpu.matmul %24, %7, %cst_20 {dimension_numbers = #tpu.dot_dimension_numbers<[2], [1], [1], [2], [0, 0, 0, 1, 1, 2], [0], [0]>} : vector<4x16x16xf32>, vector<4x16x8xf32>, vector<4x16x8xf32> -> vector<4x16x8xf32>
    "tpu.trace_stop"() : () -> ()
    %c0_21 = arith.constant 0 : index
    %c0_22 = arith.constant 0 : index
    %c0_23 = arith.constant 0 : index
    %c0_24 = arith.constant 0 : index
    %26 = vector.load %arg6[%c0_21, %c0_22, %c0_23, %c0_24] : memref<1x4x16x8xf32, #tpu.memory_space<vmem>>, vector<1x4x16x8xf32>
    %27 = vector.shape_cast %26 : vector<1x4x16x8xf32> to vector<4x16x8xf32>
    %28 = vector.shape_cast %25 : vector<4x16x8xf32> to vector<1x4x16x8xf32>
    tpu.vector_store %arg6[%c0_21, %c0_22, %c0_23, %c0_24], %28 {strides = array<i32>} : memref<1x4x16x8xf32, #tpu.memory_space<vmem>>, vector<1x4x16x8xf32>,
    return
  }
  func.func @transform_0(%arg0: i32) -> (i32, i32, i32, i32) {
    %c0_i32 = arith.constant 0 : i32
    %c0_i32_0 = arith.constant 0 : i32
    %c0_i32_1 = arith.constant 0 : i32
    %c0_i32_2 = arith.constant 0 : i32
    return %arg0, %c0_i32, %c0_i32_0, %c0_i32_1 : i32, i32, i32, i32
  }
  func.func @transform_1(%arg0: i32) -> (i32, i32, i32, i32) {
    %c0_i32 = arith.constant 0 : i32
    %c0_i32_0 = arith.constant 0 : i32
    %c0_i32_1 = arith.constant 0 : i32
    %c0_i32_2 = arith.constant 0 : i32
    return %arg0, %c0_i32, %c0_i32_0, %c0_i32_1 : i32, i32, i32, i32
  }
  func.func @transform_2(%arg0: i32) -> (i32, i32, i32, i32) {
    %c0_i32 = arith.constant 0 : i32
    %c0_i32_0 = arith.constant 0 : i32
    %c0_i32_1 = arith.constant 0 : i32
    %c0_i32_2 = arith.constant 0 : i32
    return %arg0, %c0_i32, %c0_i32_0, %c0_i32_1 : i32, i32, i32, i32
  }
  func.func @transform_3(%arg0: i32) -> (i32, i32, i32) {
    %c0_i32 = arith.constant 0 : i32
    %c0_i32_0 = arith.constant 0 : i32
    %c0_i32_1 = arith.constant 0 : i32
    %c0_i32_2 = arith.constant 0 : i32
    return %c0_i32, %c0_i32_0, %c0_i32_1 : i32, i32, i32
  }
  func.func @transform_4(%arg0: i32) -> (i32, i32, i32) {
    %c4_i32 = arith.constant 4 : i32
    %c0_i32 = arith.constant 0 : i32
    %0 = arith.cmpi eq, %c4_i32, %c0_i32 : i32
    %c1_i32 = arith.constant 1 : i32
    %1 = arith.select %0, %c1_i32, %c4_i32 : i32
    %2 = arith.remsi %arg0, %1 : i32
    %c0_i32_0 = arith.constant 0 : i32
    %3 = arith.cmpi ne, %2, %c0_i32_0 : i32
    %c0_i32_1 = arith.constant 0 : i32
    %4 = arith.cmpi slt, %2, %c0_i32_1 : i32
    %c0_i32_2 = arith.constant 0 : i32
    %5 = arith.cmpi slt, %1, %c0_i32_2 : i32
    %6 = arith.xori %4, %5 : i1
    %7 = arith.andi %6, %3 : i1
    %8 = arith.addi %2, %1 : i32
    %9 = arith.select %7, %8, %2 : i32
    %c0_i32_3 = arith.constant 0 : i32
    %c0_i32_4 = arith.constant 0 : i32
    %c0_i32_5 = arith.constant 0 : i32
    return %9, %c0_i32_3, %c0_i32_4 : i32, i32, i32
  }
  func.func @transform_5(%arg0: i32) -> (i32, i32, i32, i32) {
    %c0_i32 = arith.constant 0 : i32
    %c0_i32_0 = arith.constant 0 : i32
    %c0_i32_1 = arith.constant 0 : i32
    %c0_i32_2 = arith.constant 0 : i32
    return %arg0, %c0_i32, %c0_i32_0, %c0_i32_1 : i32, i32, i32, i32
  }
}

module attributes {stable_mosaic.version = 11 : i64} {
  func.func @_linear_kernel(%arg0: i32, %arg1: i32, %arg2: i32, %arg3: memref<128x32xf32, #tpu.memory_space<vmem>>, %arg4: memref<32x32xf32, #tpu.memory_space<vmem>>, %arg5: memref<1x32xf32, #tpu.memory_space<vmem>>, %arg6: memref<128x32xf32, #tpu.memory_space<vmem>>, %arg7: memref<128x32xf32, #tpu.memory_space<vmem>>) attributes {dimension_semantics = [#tpu.dimension_semantics<parallel>, #tpu.dimension_semantics<parallel>, #tpu.dimension_semantics<arbitrary>], iteration_bounds = array<i64: 1, 1, 1>, scalar_prefetch = 0 : i64, scratch_operands = 1 : i64, tpu.core_type = #tpu.core_type<tc>, window_params = [{transform_indices = @transform_0, window_bounds = array<i64: 128, 32>}, {transform_indices = @transform_1, window_bounds = array<i64: 32, 32>}, {transform_indices = @transform_2, window_bounds = array<i64: 1, 32>}, {transform_indices = @transform_3, window_bounds = array<i64: 128, 32>}]} {
    %c0_i32 = arith.constant 0 : i32
    %0 = arith.cmpi eq, %arg2, %c0_i32 : i32
    %1 = arith.extui %0 : i1 to i32
    %c0_i32_0 = arith.constant 0 : i32
    %2 = arith.cmpi ne, %1, %c0_i32_0 : i32
    scf.if %2 {
      %cst_10 = arith.constant 0.000000e+00 : f32
      %12 = vector.broadcast %cst_10 : f32 to vector<128x32xf32>
      %c0_11 = arith.constant 0 : index
      %c0_12 = arith.constant 0 : index
      %13 = vector.load %arg7[%c0_11, %c0_12] : memref<128x32xf32, #tpu.memory_space<vmem>>, vector<128x32xf32>
      tpu.vector_store %arg7[%c0_11, %c0_12], %12 {strides = array<i32>} : memref<128x32xf32, #tpu.memory_space<vmem>>, vector<128x32xf32>,
    } else {
    }
    %c0 = arith.constant 0 : index
    %c0_1 = arith.constant 0 : index
    %3 = vector.load %arg7[%c0, %c0_1] : memref<128x32xf32, #tpu.memory_space<vmem>>, vector<128x32xf32>
    %c0_2 = arith.constant 0 : index
    %c0_3 = arith.constant 0 : index
    %4 = vector.load %arg3[%c0_2, %c0_3] : memref<128x32xf32, #tpu.memory_space<vmem>>, vector<128x32xf32>
    %c0_4 = arith.constant 0 : index
    %c0_5 = arith.constant 0 : index
    %5 = vector.load %arg4[%c0_4, %c0_5] : memref<32x32xf32, #tpu.memory_space<vmem>>, vector<32x32xf32>
    %cst = arith.constant dense<0.000000e+00> : vector<128x32xf32>
    %6 = tpu.matmul %4, %5, %cst {dimension_numbers = #tpu.dot_dimension_numbers<[1], [0], [0], [1], [0, 0, 1, 1], [], []>} : vector<128x32xf32>, vector<32x32xf32>, vector<128x32xf32> -> vector<128x32xf32>
    %7 = arith.addf %3, %6 : vector<128x32xf32>
    %c0_6 = arith.constant 0 : index
    %c0_7 = arith.constant 0 : index
    %8 = vector.load %arg7[%c0_6, %c0_7] : memref<128x32xf32, #tpu.memory_space<vmem>>, vector<128x32xf32>
    tpu.vector_store %arg7[%c0_6, %c0_7], %7 {strides = array<i32>} : memref<128x32xf32, #tpu.memory_space<vmem>>, vector<128x32xf32>,
    %c0_i32_8 = arith.constant 0 : i32
    %9 = arith.cmpi eq, %arg2, %c0_i32_8 : i32
    %10 = arith.extui %9 : i1 to i32
    %c0_i32_9 = arith.constant 0 : i32
    %11 = arith.cmpi ne, %10, %c0_i32_9 : i32
    scf.if %11 {
      %c0_10 = arith.constant 0 : index
      %c0_11 = arith.constant 0 : index
      %12 = vector.load %arg7[%c0_10, %c0_11] : memref<128x32xf32, #tpu.memory_space<vmem>>, vector<128x32xf32>
      %c0_12 = arith.constant 0 : index
      %c0_13 = arith.constant 0 : index
      %13 = vector.load %arg5[%c0_12, %c0_13] : memref<1x32xf32, #tpu.memory_space<vmem>>, vector<1x32xf32>
      %14 = vector.broadcast %13 : vector<1x32xf32> to vector<128x32xf32>
      %15 = arith.addf %12, %14 : vector<128x32xf32>
      %c0_14 = arith.constant 0 : index
      %c0_15 = arith.constant 0 : index
      %16 = vector.load %arg6[%c0_14, %c0_15] : memref<128x32xf32, #tpu.memory_space<vmem>>, vector<128x32xf32>
      tpu.vector_store %arg6[%c0_14, %c0_15], %15 {strides = array<i32>} : memref<128x32xf32, #tpu.memory_space<vmem>>, vector<128x32xf32>,
    } else {
    }
    return
  }
  func.func @transform_0(%arg0: i32, %arg1: i32, %arg2: i32) -> (i32, i32) {
    %c0_i32 = arith.constant 0 : i32
    return %arg0, %arg2 : i32, i32
  }
  func.func @transform_1(%arg0: i32, %arg1: i32, %arg2: i32) -> (i32, i32) {
    %c0_i32 = arith.constant 0 : i32
    return %arg2, %arg1 : i32, i32
  }
  func.func @transform_2(%arg0: i32, %arg1: i32, %arg2: i32) -> (i32, i32) {
    %c0_i32 = arith.constant 0 : i32
    %c0_i32_0 = arith.constant 0 : i32
    return %c0_i32, %arg1 : i32, i32
  }
  func.func @transform_3(%arg0: i32, %arg1: i32, %arg2: i32) -> (i32, i32) {
    %c0_i32 = arith.constant 0 : i32
    return %arg0, %arg1 : i32, i32
  }
}

module attributes {stable_mosaic.version = 11 : i64} {
  func.func @_conv3x3_kernel(%arg0: i32, %arg1: memref<1x10x10x32xf32, #tpu.memory_space<vmem>>, %arg2: memref<3x3x32x8xf32, #tpu.memory_space<vmem>>, %arg3: memref<1x8xf32, #tpu.memory_space<vmem>>, %arg4: memref<1x8x8x8xf32, #tpu.memory_space<vmem>>) attributes {dimension_semantics = [#tpu.dimension_semantics<parallel>], iteration_bounds = array<i64: 2>, scalar_prefetch = 0 : i64, scratch_operands = 0 : i64, tpu.core_type = #tpu.core_type<tc>, window_params = [{transform_indices = @transform_0, window_bounds = array<i64: 1, 10, 10, 32>}, {pipeline_mode = #tpu.pipeline_mode<synchronous>, transform_indices = @transform_1, window_bounds = array<i64: 3, 3, 32, 8>}, {pipeline_mode = #tpu.pipeline_mode<synchronous>, transform_indices = @transform_2, window_bounds = array<i64: 1, 8>}, {transform_indices = @transform_3, window_bounds = array<i64: 1, 8, 8, 8>}]} {
    %c0 = arith.constant 0 : index
    %c0_0 = arith.constant 0 : index
    %c0_1 = arith.constant 0 : index
    %c0_2 = arith.constant 0 : index
    %0 = vector.load %arg1[%c0, %c0_0, %c0_1, %c0_2] : memref<1x10x10x32xf32, #tpu.memory_space<vmem>>, vector<1x10x10x32xf32>
    %1 = vector.shape_cast %0 : vector<1x10x10x32xf32> to vector<10x10x32xf32>
    %cst = arith.constant 0.000000e+00 : f32
    %2 = vector.broadcast %cst : f32 to vector<64x8xf32>
    %3 = vector.extract_strided_slice %1 {offsets = [0, 0, 0], sizes = [8, 8, 32], strides = [1, 1, 1]} : vector<10x10x32xf32> to vector<8x8x32xf32>
    %4 = vector.shape_cast %3 : vector<8x8x32xf32> to vector<64x32xf32>
    %c0_3 = arith.constant 0 : index
    %c0_4 = arith.constant 0 : index
    %c0_5 = arith.constant 0 : index
    %c0_6 = arith.constant 0 : index
    %5 = vector.load %arg2[%c0_3, %c0_4, %c0_5, %c0_6] : memref<3x3x32x8xf32, #tpu.memory_space<vmem>>, vector<1x1x32x8xf32>
    %6 = vector.shape_cast %5 : vector<1x1x32x8xf32> to vector<32x8xf32>
    %cst_7 = arith.constant dense<0.000000e+00> : vector<64x8xf32>
    %7 = tpu.matmul %4, %6, %cst_7 {dimension_numbers = #tpu.dot_dimension_numbers<[1], [0], [0], [1], [0, 0, 1, 1], [], []>} : vector<64x32xf32>, vector<32x8xf32>, vector<64x8xf32> -> vector<64x8xf32>
    %8 = arith.addf %2, %7 : vector<64x8xf32>
    %9 = vector.extract_strided_slice %1 {offsets = [0, 1, 0], sizes = [8, 8, 32], strides = [1, 1, 1]} : vector<10x10x32xf32> to vector<8x8x32xf32>
    %10 = vector.shape_cast %9 : vector<8x8x32xf32> to vector<64x32xf32>
    %c0_8 = arith.constant 0 : index
    %c1 = arith.constant 1 : index
    %c0_9 = arith.constant 0 : index
    %c0_10 = arith.constant 0 : index
    %11 = vector.load %arg2[%c0_8, %c1, %c0_9, %c0_10] : memref<3x3x32x8xf32, #tpu.memory_space<vmem>>, vector<1x1x32x8xf32>
    %12 = vector.shape_cast %11 : vector<1x1x32x8xf32> to vector<32x8xf32>
    %cst_11 = arith.constant dense<0.000000e+00> : vector<64x8xf32>
    %13 = tpu.matmul %10, %12, %cst_11 {dimension_numbers = #tpu.dot_dimension_numbers<[1], [0], [0], [1], [0, 0, 1, 1], [], []>} : vector<64x32xf32>, vector<32x8xf32>, vector<64x8xf32> -> vector<64x8xf32>
    %14 = arith.addf %8, %13 : vector<64x8xf32>
    %15 = vector.extract_strided_slice %1 {offsets = [0, 2, 0], sizes = [8, 8, 32], strides = [1, 1, 1]} : vector<10x10x32xf32> to vector<8x8x32xf32>
    %16 = vector.shape_cast %15 : vector<8x8x32xf32> to vector<64x32xf32>
    %c0_12 = arith.constant 0 : index
    %c2 = arith.constant 2 : index
    %c0_13 = arith.constant 0 : index
    %c0_14 = arith.constant 0 : index
    %17 = vector.load %arg2[%c0_12, %c2, %c0_13, %c0_14] : memref<3x3x32x8xf32, #tpu.memory_space<vmem>>, vector<1x1x32x8xf32>
    %18 = vector.shape_cast %17 : vector<1x1x32x8xf32> to vector<32x8xf32>
    %cst_15 = arith.constant dense<0.000000e+00> : vector<64x8xf32>
    %19 = tpu.matmul %16, %18, %cst_15 {dimension_numbers = #tpu.dot_dimension_numbers<[1], [0], [0], [1], [0, 0, 1, 1], [], []>} : vector<64x32xf32>, vector<32x8xf32>, vector<64x8xf32> -> vector<64x8xf32>
    %20 = arith.addf %14, %19 : vector<64x8xf32>
    %21 = vector.extract_strided_slice %1 {offsets = [1, 0, 0], sizes = [8, 8, 32], strides = [1, 1, 1]} : vector<10x10x32xf32> to vector<8x8x32xf32>
    %22 = vector.shape_cast %21 : vector<8x8x32xf32> to vector<64x32xf32>
    %c1_16 = arith.constant 1 : index
    %c0_17 = arith.constant 0 : index
    %c0_18 = arith.constant 0 : index
    %c0_19 = arith.constant 0 : index
    %23 = vector.load %arg2[%c1_16, %c0_17, %c0_18, %c0_19] : memref<3x3x32x8xf32, #tpu.memory_space<vmem>>, vector<1x1x32x8xf32>
    %24 = vector.shape_cast %23 : vector<1x1x32x8xf32> to vector<32x8xf32>
    %cst_20 = arith.constant dense<0.000000e+00> : vector<64x8xf32>
    %25 = tpu.matmul %22, %24, %cst_20 {dimension_numbers = #tpu.dot_dimension_numbers<[1], [0], [0], [1], [0, 0, 1, 1], [], []>} : vector<64x32xf32>, vector<32x8xf32>, vector<64x8xf32> -> vector<64x8xf32>
    %26 = arith.addf %20, %25 : vector<64x8xf32>
    %27 = vector.extract_strided_slice %1 {offsets = [1, 1, 0], sizes = [8, 8, 32], strides = [1, 1, 1]} : vector<10x10x32xf32> to vector<8x8x32xf32>
    %28 = vector.shape_cast %27 : vector<8x8x32xf32> to vector<64x32xf32>
    %c1_21 = arith.constant 1 : index
    %c1_22 = arith.constant 1 : index
    %c0_23 = arith.constant 0 : index
    %c0_24 = arith.constant 0 : index
    %29 = vector.load %arg2[%c1_21, %c1_22, %c0_23, %c0_24] : memref<3x3x32x8xf32, #tpu.memory_space<vmem>>, vector<1x1x32x8xf32>
    %30 = vector.shape_cast %29 : vector<1x1x32x8xf32> to vector<32x8xf32>
    %cst_25 = arith.constant dense<0.000000e+00> : vector<64x8xf32>
    %31 = tpu.matmul %28, %30, %cst_25 {dimension_numbers = #tpu.dot_dimension_numbers<[1], [0], [0], [1], [0, 0, 1, 1], [], []>} : vector<64x32xf32>, vector<32x8xf32>, vector<64x8xf32> -> vector<64x8xf32>
    %32 = arith.addf %26, %31 : vector<64x8xf32>
    %33 = vector.extract_strided_slice %1 {offsets = [1, 2, 0], sizes = [8, 8, 32], strides = [1, 1, 1]} : vector<10x10x32xf32> to vector<8x8x32xf32>
    %34 = vector.shape_cast %33 : vector<8x8x32xf32> to vector<64x32xf32>
    %c1_26 = arith.constant 1 : index
    %c2_27 = arith.constant 2 : index
    %c0_28 = arith.constant 0 : index
    %c0_29 = arith.constant 0 : index
    %35 = vector.load %arg2[%c1_26, %c2_27, %c0_28, %c0_29] : memref<3x3x32x8xf32, #tpu.memory_space<vmem>>, vector<1x1x32x8xf32>
    %36 = vector.shape_cast %35 : vector<1x1x32x8xf32> to vector<32x8xf32>
    %cst_30 = arith.constant dense<0.000000e+00> : vector<64x8xf32>
    %37 = tpu.matmul %34, %36, %cst_30 {dimension_numbers = #tpu.dot_dimension_numbers<[1], [0], [0], [1], [0, 0, 1, 1], [], []>} : vector<64x32xf32>, vector<32x8xf32>, vector<64x8xf32> -> vector<64x8xf32>
    %38 = arith.addf %32, %37 : vector<64x8xf32>
    %39 = vector.extract_strided_slice %1 {offsets = [2, 0, 0], sizes = [8, 8, 32], strides = [1, 1, 1]} : vector<10x10x32xf32> to vector<8x8x32xf32>
    %40 = vector.shape_cast %39 : vector<8x8x32xf32> to vector<64x32xf32>
    %c2_31 = arith.constant 2 : index
    %c0_32 = arith.constant 0 : index
    %c0_33 = arith.constant 0 : index
    %c0_34 = arith.constant 0 : index
    %41 = vector.load %arg2[%c2_31, %c0_32, %c0_33, %c0_34] : memref<3x3x32x8xf32, #tpu.memory_space<vmem>>, vector<1x1x32x8xf32>
    %42 = vector.shape_cast %41 : vector<1x1x32x8xf32> to vector<32x8xf32>
    %cst_35 = arith.constant dense<0.000000e+00> : vector<64x8xf32>
    %43 = tpu.matmul %40, %42, %cst_35 {dimension_numbers = #tpu.dot_dimension_numbers<[1], [0], [0], [1], [0, 0, 1, 1], [], []>} : vector<64x32xf32>, vector<32x8xf32>, vector<64x8xf32> -> vector<64x8xf32>
    %44 = arith.addf %38, %43 : vector<64x8xf32>
    %45 = vector.extract_strided_slice %1 {offsets = [2, 1, 0], sizes = [8, 8, 32], strides = [1, 1, 1]} : vector<10x10x32xf32> to vector<8x8x32xf32>
    %46 = vector.shape_cast %45 : vector<8x8x32xf32> to vector<64x32xf32>
    %c2_36 = arith.constant 2 : index
    %c1_37 = arith.constant 1 : index
    %c0_38 = arith.constant 0 : index
    %c0_39 = arith.constant 0 : index
    %47 = vector.load %arg2[%c2_36, %c1_37, %c0_38, %c0_39] : memref<3x3x32x8xf32, #tpu.memory_space<vmem>>, vector<1x1x32x8xf32>
    %48 = vector.shape_cast %47 : vector<1x1x32x8xf32> to vector<32x8xf32>
    %cst_40 = arith.constant dense<0.000000e+00> : vector<64x8xf32>
    %49 = tpu.matmul %46, %48, %cst_40 {dimension_numbers = #tpu.dot_dimension_numbers<[1], [0], [0], [1], [0, 0, 1, 1], [], []>} : vector<64x32xf32>, vector<32x8xf32>, vector<64x8xf32> -> vector<64x8xf32>
    %50 = arith.addf %44, %49 : vector<64x8xf32>
    %51 = vector.extract_strided_slice %1 {offsets = [2, 2, 0], sizes = [8, 8, 32], strides = [1, 1, 1]} : vector<10x10x32xf32> to vector<8x8x32xf32>
    %52 = vector.shape_cast %51 : vector<8x8x32xf32> to vector<64x32xf32>
    %c2_41 = arith.constant 2 : index
    %c2_42 = arith.constant 2 : index
    %c0_43 = arith.constant 0 : index
    %c0_44 = arith.constant 0 : index
    %53 = vector.load %arg2[%c2_41, %c2_42, %c0_43, %c0_44] : memref<3x3x32x8xf32, #tpu.memory_space<vmem>>, vector<1x1x32x8xf32>
    %54 = vector.shape_cast %53 : vector<1x1x32x8xf32> to vector<32x8xf32>
    %cst_45 = arith.constant dense<0.000000e+00> : vector<64x8xf32>
    %55 = tpu.matmul %52, %54, %cst_45 {dimension_numbers = #tpu.dot_dimension_numbers<[1], [0], [0], [1], [0, 0, 1, 1], [], []>} : vector<64x32xf32>, vector<32x8xf32>, vector<64x8xf32> -> vector<64x8xf32>
    %56 = arith.addf %50, %55 : vector<64x8xf32>
    %c0_46 = arith.constant 0 : index
    %c0_47 = arith.constant 0 : index
    %57 = vector.load %arg3[%c0_46, %c0_47] : memref<1x8xf32, #tpu.memory_space<vmem>>, vector<1x8xf32>
    %58 = vector.broadcast %57 : vector<1x8xf32> to vector<64x8xf32>
    %59 = arith.addf %56, %58 : vector<64x8xf32>
    %60 = arith.mulf %59, %59 : vector<64x8xf32>
    %61 = arith.mulf %59, %60 : vector<64x8xf32>
    %cst_48 = arith.constant 4.471500e-02 : f32
    %62 = vector.broadcast %cst_48 : f32 to vector<64x8xf32>
    %63 = arith.mulf %62, %61 : vector<64x8xf32>
    %64 = arith.addf %59, %63 : vector<64x8xf32>
    %cst_49 = arith.constant 0.797884583 : f32
    %65 = vector.broadcast %cst_49 : f32 to vector<64x8xf32>
    %66 = arith.mulf %65, %64 : vector<64x8xf32>
    %67 = math.tanh %66 : vector<64x8xf32>
    %cst_50 = arith.constant 1.000000e+00 : f32
    %68 = vector.broadcast %cst_50 : f32 to vector<64x8xf32>
    %69 = arith.addf %68, %67 : vector<64x8xf32>
    %cst_51 = arith.constant 5.000000e-01 : f32
    %70 = vector.broadcast %cst_51 : f32 to vector<64x8xf32>
    %71 = arith.mulf %70, %69 : vector<64x8xf32>
    %72 = arith.mulf %59, %71 : vector<64x8xf32>
    %73 = vector.shape_cast %72 : vector<64x8xf32> to vector<8x8x8xf32>
    %c0_52 = arith.constant 0 : index
    %c0_53 = arith.constant 0 : index
    %c0_54 = arith.constant 0 : index
    %c0_55 = arith.constant 0 : index
    %74 = vector.load %arg4[%c0_52, %c0_53, %c0_54, %c0_55] : memref<1x8x8x8xf32, #tpu.memory_space<vmem>>, vector<1x8x8x8xf32>
    %75 = vector.shape_cast %74 : vector<1x8x8x8xf32> to vector<8x8x8xf32>
    %76 = vector.shape_cast %73 : vector<8x8x8xf32> to vector<1x8x8x8xf32>
    tpu.vector_store %arg4[%c0_52, %c0_53, %c0_54, %c0_55], %76 {strides = array<i32>} : memref<1x8x8x8xf32, #tpu.memory_space<vmem>>, vector<1x8x8x8xf32>,
    return
  }
  func.func @transform_0(%arg0: i32) -> (i32, i32, i32, i32) {
    %c0_i32 = arith.constant 0 : i32
    %c0_i32_0 = arith.constant 0 : i32
    %c0_i32_1 = arith.constant 0 : i32
    %c0_i32_2 = arith.constant 0 : i32
    return %arg0, %c0_i32, %c0_i32_0, %c0_i32_1 : i32, i32, i32, i32
  }
  func.func @transform_1(%arg0: i32) -> (i32, i32, i32, i32) {
    %c0_i32 = arith.constant 0 : i32
    %c0_i32_0 = arith.constant 0 : i32
    %c0_i32_1 = arith.constant 0 : i32
    %c0_i32_2 = arith.constant 0 : i32
    %c0_i32_3 = arith.constant 0 : i32
    return %c0_i32, %c0_i32_0, %c0_i32_1, %c0_i32_2 : i32, i32, i32, i32
  }
  func.func @transform_2(%arg0: i32) -> (i32, i32) {
    %c0_i32 = arith.constant 0 : i32
    %c0_i32_0 = arith.constant 0 : i32
    %c0_i32_1 = arith.constant 0 : i32
    return %c0_i32, %c0_i32_0 : i32, i32
  }
  func.func @transform_3(%arg0: i32) -> (i32, i32, i32, i32) {
    %c0_i32 = arith.constant 0 : i32
    %c0_i32_0 = arith.constant 0 : i32
    %c0_i32_1 = arith.constant 0 : i32
    %c0_i32_2 = arith.constant 0 : i32
    return %arg0, %c0_i32, %c0_i32_0, %c0_i32_1 : i32, i32, i32, i32
  }
}

module attributes {stable_mosaic.version = 11 : i64} {
  func.func @_conv3x3_kernel(%arg0: i32, %arg1: memref<1x10x10x8xf32, #tpu.memory_space<vmem>>, %arg2: memref<3x3x8x32xf32, #tpu.memory_space<vmem>>, %arg3: memref<1x32xf32, #tpu.memory_space<vmem>>, %arg4: memref<1x8x8x32xf32, #tpu.memory_space<vmem>>) attributes {dimension_semantics = [#tpu.dimension_semantics<parallel>], iteration_bounds = array<i64: 2>, scalar_prefetch = 0 : i64, scratch_operands = 0 : i64, tpu.core_type = #tpu.core_type<tc>, window_params = [{transform_indices = @transform_0, window_bounds = array<i64: 1, 10, 10, 8>}, {pipeline_mode = #tpu.pipeline_mode<synchronous>, transform_indices = @transform_1, window_bounds = array<i64: 3, 3, 8, 32>}, {pipeline_mode = #tpu.pipeline_mode<synchronous>, transform_indices = @transform_2, window_bounds = array<i64: 1, 32>}, {transform_indices = @transform_3, window_bounds = array<i64: 1, 8, 8, 32>}]} {
    %c0 = arith.constant 0 : index
    %c0_0 = arith.constant 0 : index
    %c0_1 = arith.constant 0 : index
    %c0_2 = arith.constant 0 : index
    %0 = vector.load %arg1[%c0, %c0_0, %c0_1, %c0_2] : memref<1x10x10x8xf32, #tpu.memory_space<vmem>>, vector<1x10x10x8xf32>
    %1 = vector.shape_cast %0 : vector<1x10x10x8xf32> to vector<10x10x8xf32>
    %cst = arith.constant 0.000000e+00 : f32
    %2 = vector.broadcast %cst : f32 to vector<64x32xf32>
    %3 = vector.extract_strided_slice %1 {offsets = [0, 0, 0], sizes = [8, 8, 8], strides = [1, 1, 1]} : vector<10x10x8xf32> to vector<8x8x8xf32>
    %4 = vector.shape_cast %3 : vector<8x8x8xf32> to vector<64x8xf32>
    %c0_3 = arith.constant 0 : index
    %c0_4 = arith.constant 0 : index
    %c0_5 = arith.constant 0 : index
    %c0_6 = arith.constant 0 : index
    %5 = vector.load %arg2[%c0_3, %c0_4, %c0_5, %c0_6] : memref<3x3x8x32xf32, #tpu.memory_space<vmem>>, vector<1x1x8x32xf32>
    %6 = vector.shape_cast %5 : vector<1x1x8x32xf32> to vector<8x32xf32>
    %cst_7 = arith.constant dense<0.000000e+00> : vector<64x32xf32>
    %7 = tpu.matmul %4, %6, %cst_7 {dimension_numbers = #tpu.dot_dimension_numbers<[1], [0], [0], [1], [0, 0, 1, 1], [], []>} : vector<64x8xf32>, vector<8x32xf32>, vector<64x32xf32> -> vector<64x32xf32>
    %8 = arith.addf %2, %7 : vector<64x32xf32>
    %9 = vector.extract_strided_slice %1 {offsets = [0, 1, 0], sizes = [8, 8, 8], strides = [1, 1, 1]} : vector<10x10x8xf32> to vector<8x8x8xf32>
    %10 = vector.shape_cast %9 : vector<8x8x8xf32> to vector<64x8xf32>
    %c0_8 = arith.constant 0 : index
    %c1 = arith.constant 1 : index
    %c0_9 = arith.constant 0 : index
    %c0_10 = arith.constant 0 : index
    %11 = vector.load %arg2[%c0_8, %c1, %c0_9, %c0_10] : memref<3x3x8x32xf32, #tpu.memory_space<vmem>>, vector<1x1x8x32xf32>
    %12 = vector.shape_cast %11 : vector<1x1x8x32xf32> to vector<8x32xf32>
    %cst_11 = arith.constant dense<0.000000e+00> : vector<64x32xf32>
    %13 = tpu.matmul %10, %12, %cst_11 {dimension_numbers = #tpu.dot_dimension_numbers<[1], [0], [0], [1], [0, 0, 1, 1], [], []>} : vector<64x8xf32>, vector<8x32xf32>, vector<64x32xf32> -> vector<64x32xf32>
    %14 = arith.addf %8, %13 : vector<64x32xf32>
    %15 = vector.extract_strided_slice %1 {offsets = [0, 2, 0], sizes = [8, 8, 8], strides = [1, 1, 1]} : vector<10x10x8xf32> to vector<8x8x8xf32>
    %16 = vector.shape_cast %15 : vector<8x8x8xf32> to vector<64x8xf32>
    %c0_12 = arith.constant 0 : index
    %c2 = arith.constant 2 : index
    %c0_13 = arith.constant 0 : index
    %c0_14 = arith.constant 0 : index
    %17 = vector.load %arg2[%c0_12, %c2, %c0_13, %c0_14] : memref<3x3x8x32xf32, #tpu.memory_space<vmem>>, vector<1x1x8x32xf32>
    %18 = vector.shape_cast %17 : vector<1x1x8x32xf32> to vector<8x32xf32>
    %cst_15 = arith.constant dense<0.000000e+00> : vector<64x32xf32>
    %19 = tpu.matmul %16, %18, %cst_15 {dimension_numbers = #tpu.dot_dimension_numbers<[1], [0], [0], [1], [0, 0, 1, 1], [], []>} : vector<64x8xf32>, vector<8x32xf32>, vector<64x32xf32> -> vector<64x32xf32>
    %20 = arith.addf %14, %19 : vector<64x32xf32>
    %21 = vector.extract_strided_slice %1 {offsets = [1, 0, 0], sizes = [8, 8, 8], strides = [1, 1, 1]} : vector<10x10x8xf32> to vector<8x8x8xf32>
    %22 = vector.shape_cast %21 : vector<8x8x8xf32> to vector<64x8xf32>
    %c1_16 = arith.constant 1 : index
    %c0_17 = arith.constant 0 : index
    %c0_18 = arith.constant 0 : index
    %c0_19 = arith.constant 0 : index
    %23 = vector.load %arg2[%c1_16, %c0_17, %c0_18, %c0_19] : memref<3x3x8x32xf32, #tpu.memory_space<vmem>>, vector<1x1x8x32xf32>
    %24 = vector.shape_cast %23 : vector<1x1x8x32xf32> to vector<8x32xf32>
    %cst_20 = arith.constant dense<0.000000e+00> : vector<64x32xf32>
    %25 = tpu.matmul %22, %24, %cst_20 {dimension_numbers = #tpu.dot_dimension_numbers<[1], [0], [0], [1], [0, 0, 1, 1], [], []>} : vector<64x8xf32>, vector<8x32xf32>, vector<64x32xf32> -> vector<64x32xf32>
    %26 = arith.addf %20, %25 : vector<64x32xf32>
    %27 = vector.extract_strided_slice %1 {offsets = [1, 1, 0], sizes = [8, 8, 8], strides = [1, 1, 1]} : vector<10x10x8xf32> to vector<8x8x8xf32>
    %28 = vector.shape_cast %27 : vector<8x8x8xf32> to vector<64x8xf32>
    %c1_21 = arith.constant 1 : index
    %c1_22 = arith.constant 1 : index
    %c0_23 = arith.constant 0 : index
    %c0_24 = arith.constant 0 : index
    %29 = vector.load %arg2[%c1_21, %c1_22, %c0_23, %c0_24] : memref<3x3x8x32xf32, #tpu.memory_space<vmem>>, vector<1x1x8x32xf32>
    %30 = vector.shape_cast %29 : vector<1x1x8x32xf32> to vector<8x32xf32>
    %cst_25 = arith.constant dense<0.000000e+00> : vector<64x32xf32>
    %31 = tpu.matmul %28, %30, %cst_25 {dimension_numbers = #tpu.dot_dimension_numbers<[1], [0], [0], [1], [0, 0, 1, 1], [], []>} : vector<64x8xf32>, vector<8x32xf32>, vector<64x32xf32> -> vector<64x32xf32>
    %32 = arith.addf %26, %31 : vector<64x32xf32>
    %33 = vector.extract_strided_slice %1 {offsets = [1, 2, 0], sizes = [8, 8, 8], strides = [1, 1, 1]} : vector<10x10x8xf32> to vector<8x8x8xf32>
    %34 = vector.shape_cast %33 : vector<8x8x8xf32> to vector<64x8xf32>
    %c1_26 = arith.constant 1 : index
    %c2_27 = arith.constant 2 : index
    %c0_28 = arith.constant 0 : index
    %c0_29 = arith.constant 0 : index
    %35 = vector.load %arg2[%c1_26, %c2_27, %c0_28, %c0_29] : memref<3x3x8x32xf32, #tpu.memory_space<vmem>>, vector<1x1x8x32xf32>
    %36 = vector.shape_cast %35 : vector<1x1x8x32xf32> to vector<8x32xf32>
    %cst_30 = arith.constant dense<0.000000e+00> : vector<64x32xf32>
    %37 = tpu.matmul %34, %36, %cst_30 {dimension_numbers = #tpu.dot_dimension_numbers<[1], [0], [0], [1], [0, 0, 1, 1], [], []>} : vector<64x8xf32>, vector<8x32xf32>, vector<64x32xf32> -> vector<64x32xf32>
    %38 = arith.addf %32, %37 : vector<64x32xf32>
    %39 = vector.extract_strided_slice %1 {offsets = [2, 0, 0], sizes = [8, 8, 8], strides = [1, 1, 1]} : vector<10x10x8xf32> to vector<8x8x8xf32>
    %40 = vector.shape_cast %39 : vector<8x8x8xf32> to vector<64x8xf32>
    %c2_31 = arith.constant 2 : index
    %c0_32 = arith.constant 0 : index
    %c0_33 = arith.constant 0 : index
    %c0_34 = arith.constant 0 : index
    %41 = vector.load %arg2[%c2_31, %c0_32, %c0_33, %c0_34] : memref<3x3x8x32xf32, #tpu.memory_space<vmem>>, vector<1x1x8x32xf32>
    %42 = vector.shape_cast %41 : vector<1x1x8x32xf32> to vector<8x32xf32>
    %cst_35 = arith.constant dense<0.000000e+00> : vector<64x32xf32>
    %43 = tpu.matmul %40, %42, %cst_35 {dimension_numbers = #tpu.dot_dimension_numbers<[1], [0], [0], [1], [0, 0, 1, 1], [], []>} : vector<64x8xf32>, vector<8x32xf32>, vector<64x32xf32> -> vector<64x32xf32>
    %44 = arith.addf %38, %43 : vector<64x32xf32>
    %45 = vector.extract_strided_slice %1 {offsets = [2, 1, 0], sizes = [8, 8, 8], strides = [1, 1, 1]} : vector<10x10x8xf32> to vector<8x8x8xf32>
    %46 = vector.shape_cast %45 : vector<8x8x8xf32> to vector<64x8xf32>
    %c2_36 = arith.constant 2 : index
    %c1_37 = arith.constant 1 : index
    %c0_38 = arith.constant 0 : index
    %c0_39 = arith.constant 0 : index
    %47 = vector.load %arg2[%c2_36, %c1_37, %c0_38, %c0_39] : memref<3x3x8x32xf32, #tpu.memory_space<vmem>>, vector<1x1x8x32xf32>
    %48 = vector.shape_cast %47 : vector<1x1x8x32xf32> to vector<8x32xf32>
    %cst_40 = arith.constant dense<0.000000e+00> : vector<64x32xf32>
    %49 = tpu.matmul %46, %48, %cst_40 {dimension_numbers = #tpu.dot_dimension_numbers<[1], [0], [0], [1], [0, 0, 1, 1], [], []>} : vector<64x8xf32>, vector<8x32xf32>, vector<64x32xf32> -> vector<64x32xf32>
    %50 = arith.addf %44, %49 : vector<64x32xf32>
    %51 = vector.extract_strided_slice %1 {offsets = [2, 2, 0], sizes = [8, 8, 8], strides = [1, 1, 1]} : vector<10x10x8xf32> to vector<8x8x8xf32>
    %52 = vector.shape_cast %51 : vector<8x8x8xf32> to vector<64x8xf32>
    %c2_41 = arith.constant 2 : index
    %c2_42 = arith.constant 2 : index
    %c0_43 = arith.constant 0 : index
    %c0_44 = arith.constant 0 : index
    %53 = vector.load %arg2[%c2_41, %c2_42, %c0_43, %c0_44] : memref<3x3x8x32xf32, #tpu.memory_space<vmem>>, vector<1x1x8x32xf32>
    %54 = vector.shape_cast %53 : vector<1x1x8x32xf32> to vector<8x32xf32>
    %cst_45 = arith.constant dense<0.000000e+00> : vector<64x32xf32>
    %55 = tpu.matmul %52, %54, %cst_45 {dimension_numbers = #tpu.dot_dimension_numbers<[1], [0], [0], [1], [0, 0, 1, 1], [], []>} : vector<64x8xf32>, vector<8x32xf32>, vector<64x32xf32> -> vector<64x32xf32>
    %56 = arith.addf %50, %55 : vector<64x32xf32>
    %c0_46 = arith.constant 0 : index
    %c0_47 = arith.constant 0 : index
    %57 = vector.load %arg3[%c0_46, %c0_47] : memref<1x32xf32, #tpu.memory_space<vmem>>, vector<1x32xf32>
    %58 = vector.broadcast %57 : vector<1x32xf32> to vector<64x32xf32>
    %59 = arith.addf %56, %58 : vector<64x32xf32>
    %60 = vector.shape_cast %59 : vector<64x32xf32> to vector<8x8x32xf32>
    %c0_48 = arith.constant 0 : index
    %c0_49 = arith.constant 0 : index
    %c0_50 = arith.constant 0 : index
    %c0_51 = arith.constant 0 : index
    %61 = vector.load %arg4[%c0_48, %c0_49, %c0_50, %c0_51] : memref<1x8x8x32xf32, #tpu.memory_space<vmem>>, vector<1x8x8x32xf32>
    %62 = vector.shape_cast %61 : vector<1x8x8x32xf32> to vector<8x8x32xf32>
    %63 = vector.shape_cast %60 : vector<8x8x32xf32> to vector<1x8x8x32xf32>
    tpu.vector_store %arg4[%c0_48, %c0_49, %c0_50, %c0_51], %63 {strides = array<i32>} : memref<1x8x8x32xf32, #tpu.memory_space<vmem>>, vector<1x8x8x32xf32>,
    return
  }
  func.func @transform_0(%arg0: i32) -> (i32, i32, i32, i32) {
    %c0_i32 = arith.constant 0 : i32
    %c0_i32_0 = arith.constant 0 : i32
    %c0_i32_1 = arith.constant 0 : i32
    %c0_i32_2 = arith.constant 0 : i32
    return %arg0, %c0_i32, %c0_i32_0, %c0_i32_1 : i32, i32, i32, i32
  }
  func.func @transform_1(%arg0: i32) -> (i32, i32, i32, i32) {
    %c0_i32 = arith.constant 0 : i32
    %c0_i32_0 = arith.constant 0 : i32
    %c0_i32_1 = arith.constant 0 : i32
    %c0_i32_2 = arith.constant 0 : i32
    %c0_i32_3 = arith.constant 0 : i32
    return %c0_i32, %c0_i32_0, %c0_i32_1, %c0_i32_2 : i32, i32, i32, i32
  }
  func.func @transform_2(%arg0: i32) -> (i32, i32) {
    %c0_i32 = arith.constant 0 : i32
    %c0_i32_0 = arith.constant 0 : i32
    %c0_i32_1 = arith.constant 0 : i32
    return %c0_i32, %c0_i32_0 : i32, i32
  }
  func.func @transform_3(%arg0: i32) -> (i32, i32, i32, i32) {
    %c0_i32 = arith.constant 0 : i32
    %c0_i32_0 = arith.constant 0 : i32
    %c0_i32_1 = arith.constant 0 : i32
    %c0_i32_2 = arith.constant 0 : i32
    return %arg0, %c0_i32, %c0_i32_0, %c0_i32_1 : i32, i32, i32, i32
  }
}

module attributes {stable_mosaic.version = 11 : i64} {
  func.func @_saca_att_kernel(%arg0: i32, %arg1: memref<1x10x10x32xf32, #tpu.memory_space<vmem>>, %arg2: memref<1x8x8x32xf32, #tpu.memory_space<vmem>>) attributes {dimension_semantics = [#tpu.dimension_semantics<parallel>], iteration_bounds = array<i64: 2>, scalar_prefetch = 0 : i64, scratch_operands = 0 : i64, tpu.core_type = #tpu.core_type<tc>, window_params = [{transform_indices = @transform_0, window_bounds = array<i64: 1, 10, 10, 32>}, {transform_indices = @transform_1, window_bounds = array<i64: 1, 8, 8, 32>}]} {
    %c0 = arith.constant 0 : index
    %c0_0 = arith.constant 0 : index
    %c0_1 = arith.constant 0 : index
    %c0_2 = arith.constant 0 : index
    %0 = vector.load %arg1[%c0, %c0_0, %c0_1, %c0_2] : memref<1x10x10x32xf32, #tpu.memory_space<vmem>>, vector<1x10x10x32xf32>
    %1 = vector.shape_cast %0 : vector<1x10x10x32xf32> to vector<10x10x32xf32>
    %2 = vector.extract_strided_slice %1 {offsets = [1, 1, 0], sizes = [8, 8, 32], strides = [1, 1, 1]} : vector<10x10x32xf32> to vector<8x8x32xf32>
    %cst = arith.constant 0.000000e+00 : f32
    %3 = vector.broadcast %cst : f32 to vector<8x8x32xf32>
    %4 = vector.extract_strided_slice %1 {offsets = [0, 0, 0], sizes = [8, 8, 32], strides = [1, 1, 1]} : vector<10x10x32xf32> to vector<8x8x32xf32>
    %5 = arith.addf %3, %4 : vector<8x8x32xf32>
    %6 = vector.extract_strided_slice %1 {offsets = [0, 1, 0], sizes = [8, 8, 32], strides = [1, 1, 1]} : vector<10x10x32xf32> to vector<8x8x32xf32>
    %7 = arith.addf %5, %6 : vector<8x8x32xf32>
    %8 = vector.extract_strided_slice %1 {offsets = [0, 2, 0], sizes = [8, 8, 32], strides = [1, 1, 1]} : vector<10x10x32xf32> to vector<8x8x32xf32>
    %9 = arith.addf %7, %8 : vector<8x8x32xf32>
    %10 = vector.extract_strided_slice %1 {offsets = [1, 0, 0], sizes = [8, 8, 32], strides = [1, 1, 1]} : vector<10x10x32xf32> to vector<8x8x32xf32>
    %11 = arith.addf %9, %10 : vector<8x8x32xf32>
    %12 = vector.extract_strided_slice %1 {offsets = [1, 1, 0], sizes = [8, 8, 32], strides = [1, 1, 1]} : vector<10x10x32xf32> to vector<8x8x32xf32>
    %13 = arith.addf %11, %12 : vector<8x8x32xf32>
    %14 = vector.extract_strided_slice %1 {offsets = [1, 2, 0], sizes = [8, 8, 32], strides = [1, 1, 1]} : vector<10x10x32xf32> to vector<8x8x32xf32>
    %15 = arith.addf %13, %14 : vector<8x8x32xf32>
    %16 = vector.extract_strided_slice %1 {offsets = [2, 0, 0], sizes = [8, 8, 32], strides = [1, 1, 1]} : vector<10x10x32xf32> to vector<8x8x32xf32>
    %17 = arith.addf %15, %16 : vector<8x8x32xf32>
    %18 = vector.extract_strided_slice %1 {offsets = [2, 1, 0], sizes = [8, 8, 32], strides = [1, 1, 1]} : vector<10x10x32xf32> to vector<8x8x32xf32>
    %19 = arith.addf %17, %18 : vector<8x8x32xf32>
    %20 = vector.extract_strided_slice %1 {offsets = [2, 2, 0], sizes = [8, 8, 32], strides = [1, 1, 1]} : vector<10x10x32xf32> to vector<8x8x32xf32>
    %21 = arith.addf %19, %20 : vector<8x8x32xf32>
    %cst_3 = arith.constant 9.000000e+00 : f32
    %22 = vector.broadcast %cst_3 : f32 to vector<8x8x32xf32>
    %23 = arith.mulf %22, %2 : vector<8x8x32xf32>
    %24 = arith.subf %23, %21 : vector<8x8x32xf32>
    %25 = math.absf %24 : vector<8x8x32xf32>
    %c0_4 = arith.constant 0 : index
    %c0_5 = arith.constant 0 : index
    %c0_6 = arith.constant 0 : index
    %c0_7 = arith.constant 0 : index
    %26 = vector.load %arg2[%c0_4, %c0_5, %c0_6, %c0_7] : memref<1x8x8x32xf32, #tpu.memory_space<vmem>>, vector<1x8x8x32xf32>
    %27 = vector.shape_cast %26 : vector<1x8x8x32xf32> to vector<8x8x32xf32>
    %28 = vector.shape_cast %25 : vector<8x8x32xf32> to vector<1x8x8x32xf32>
    tpu.vector_store %arg2[%c0_4, %c0_5, %c0_6, %c0_7], %28 {strides = array<i32>} : memref<1x8x8x32xf32, #tpu.memory_space<vmem>>, vector<1x8x8x32xf32>,
    return
  }
  func.func @transform_0(%arg0: i32) -> (i32, i32, i32, i32) {
    %c0_i32 = arith.constant 0 : i32
    %c0_i32_0 = arith.constant 0 : i32
    %c0_i32_1 = arith.constant 0 : i32
    %c0_i32_2 = arith.constant 0 : i32
    return %arg0, %c0_i32, %c0_i32_0, %c0_i32_1 : i32, i32, i32, i32
  }
  func.func @transform_1(%arg0: i32) -> (i32, i32, i32, i32) {
    %c0_i32 = arith.constant 0 : i32
    %c0_i32_0 = arith.constant 0 : i32
    %c0_i32_1 = arith.constant 0 : i32
    %c0_i32_2 = arith.constant 0 : i32
    return %arg0, %c0_i32, %c0_i32_0, %c0_i32_1 : i32, i32, i32, i32
  }
}

module attributes {stable_mosaic.version = 11 : i64} {
  func.func @_saca_apply_kernel(%arg0: i32, %arg1: memref<1xf32, #tpu.memory_space<smem>>, %arg2: memref<1x8x8x32xf32, #tpu.memory_space<vmem>>, %arg3: memref<1x8x8x32xf32, #tpu.memory_space<vmem>>, %arg4: memref<1x8x8x32xf32, #tpu.memory_space<vmem>>) attributes {dimension_semantics = [#tpu.dimension_semantics<parallel>], iteration_bounds = array<i64: 2>, scalar_prefetch = 0 : i64, scratch_operands = 0 : i64, tpu.core_type = #tpu.core_type<tc>, window_params = [{transform_indices = @transform_0, window_bounds = array<i64: 1>}, {transform_indices = @transform_1, window_bounds = array<i64: 1, 8, 8, 32>}, {transform_indices = @transform_2, window_bounds = array<i64: 1, 8, 8, 32>}, {transform_indices = @transform_3, window_bounds = array<i64: 1, 8, 8, 32>}]} {
    %c0 = arith.constant 0 : index
    %0 = memref.load %arg1[%c0] : memref<1xf32, #tpu.memory_space<smem>>
    %c0_0 = arith.constant 0 : index
    %c0_1 = arith.constant 0 : index
    %c0_2 = arith.constant 0 : index
    %c0_3 = arith.constant 0 : index
    %1 = vector.load %arg2[%c0_0, %c0_1, %c0_2, %c0_3] : memref<1x8x8x32xf32, #tpu.memory_space<vmem>>, vector<1x8x8x32xf32>
    %2 = vector.shape_cast %1 : vector<1x8x8x32xf32> to vector<8x8x32xf32>
    %c0_4 = arith.constant 0 : index
    %c0_5 = arith.constant 0 : index
    %c0_6 = arith.constant 0 : index
    %c0_7 = arith.constant 0 : index
    %3 = vector.load %arg3[%c0_4, %c0_5, %c0_6, %c0_7] : memref<1x8x8x32xf32, #tpu.memory_space<vmem>>, vector<1x8x8x32xf32>
    %4 = vector.shape_cast %3 : vector<1x8x8x32xf32> to vector<8x8x32xf32>
    %5 = vector.broadcast %0 : f32 to vector<8x8x32xf32>
    %6 = arith.mulf %4, %5 : vector<8x8x32xf32>
    %cst = arith.constant dense<0.000000e+00> : vector<8x32xf32>
    %7 = vector.multi_reduction <add>, %6, %cst [0] : vector<8x8x32xf32> to vector<8x32xf32>
    %cst_8 = arith.constant 8.000000e+00 : f32
    %8 = vector.broadcast %cst_8 : f32 to vector<8x32xf32>
    %9 = arith.divf %7, %8 : vector<8x32xf32>
    %cst_9 = arith.constant dense<0.000000e+00> : vector<32xf32>
    %10 = vector.multi_reduction <add>, %9, %cst_9 [0] : vector<8x32xf32> to vector<32xf32>
    %cst_10 = arith.constant 8.000000e+00 : f32
    %11 = vector.broadcast %cst_10 : f32 to vector<32xf32>
    %12 = arith.divf %10, %11 : vector<32xf32>
    %cst_11 = arith.constant 1.000000e+00 : f32
    %13 = vector.broadcast %cst_11 : f32 to vector<32xf32>
    %14 = arith.addf %12, %13 : vector<32xf32>
    %15 = arith.negf %6 : vector<8x8x32xf32>
    %16 = math.exp %15 : vector<8x8x32xf32>
    %cst_12 = arith.constant 1.000000e+00 : f32
    %17 = vector.broadcast %cst_12 : f32 to vector<8x8x32xf32>
    %18 = arith.addf %17, %16 : vector<8x8x32xf32>
    %19 = arith.divf %17, %18 : vector<8x8x32xf32>
    %cst_13 = arith.constant 1.000000e+00 : f32
    %20 = vector.broadcast %cst_13 : f32 to vector<8x8x32xf32>
    %21 = arith.addf %19, %20 : vector<8x8x32xf32>
    %22 = arith.mulf %21, %2 : vector<8x8x32xf32>
    %23 = vector.shape_cast %14 : vector<32xf32> to vector<1x1x32xf32>
    %24 = vector.broadcast %23 : vector<1x1x32xf32> to vector<8x8x32xf32>
    %25 = arith.mulf %22, %24 : vector<8x8x32xf32>
    %c0_14 = arith.constant 0 : index
    %c0_15 = arith.constant 0 : index
    %c0_16 = arith.constant 0 : index
    %c0_17 = arith.constant 0 : index
    %26 = vector.load %arg4[%c0_14, %c0_15, %c0_16, %c0_17] : memref<1x8x8x32xf32, #tpu.memory_space<vmem>>, vector<1x8x8x32xf32>
    %27 = vector.shape_cast %26 : vector<1x8x8x32xf32> to vector<8x8x32xf32>
    %28 = vector.shape_cast %25 : vector<8x8x32xf32> to vector<1x8x8x32xf32>
    tpu.vector_store %arg4[%c0_14, %c0_15, %c0_16, %c0_17], %28 {strides = array<i32>} : memref<1x8x8x32xf32, #tpu.memory_space<vmem>>, vector<1x8x8x32xf32>,
    return
  }
  func.func @transform_0(%arg0: i32) -> i32 {
    %c0_i32 = arith.constant 0 : i32
    %c0_i32_0 = arith.constant 0 : i32
    return %c0_i32 : i32
  }
  func.func @transform_1(%arg0: i32) -> (i32, i32, i32, i32) {
    %c0_i32 = arith.constant 0 : i32
    %c0_i32_0 = arith.constant 0 : i32
    %c0_i32_1 = arith.constant 0 : i32
    %c0_i32_2 = arith.constant 0 : i32
    return %arg0, %c0_i32, %c0_i32_0, %c0_i32_1 : i32, i32, i32, i32
  }
  func.func @transform_2(%arg0: i32) -> (i32, i32, i32, i32) {
    %c0_i32 = arith.constant 0 : i32
    %c0_i32_0 = arith.constant 0 : i32
    %c0_i32_1 = arith.constant 0 : i32
    %c0_i32_2 = arith.constant 0 : i32
    return %arg0, %c0_i32, %c0_i32_0, %c0_i32_1 : i32, i32, i32, i32
  }
  func.func @transform_3(%arg0: i32) -> (i32, i32, i32, i32) {
    %c0_i32 = arith.constant 0 : i32
    %c0_i32_0 = arith.constant 0 : i32
    %c0_i32_1 = arith.constant 0 : i32
    %c0_i32_2 = arith.constant 0 : i32
    return %arg0, %c0_i32, %c0_i32_0, %c0_i32_1 : i32, i32, i32, i32
  }
}

module attributes {stable_mosaic.version = 11 : i64} {
  func.func @_linear_kernel(%arg0: i32, %arg1: i32, %arg2: i32, %arg3: memref<128x32xf32, #tpu.memory_space<vmem>>, %arg4: memref<32x64xf32, #tpu.memory_space<vmem>>, %arg5: memref<1x64xf32, #tpu.memory_space<vmem>>, %arg6: memref<128x64xf32, #tpu.memory_space<vmem>>, %arg7: memref<128x64xf32, #tpu.memory_space<vmem>>) attributes {dimension_semantics = [#tpu.dimension_semantics<parallel>, #tpu.dimension_semantics<parallel>, #tpu.dimension_semantics<arbitrary>], iteration_bounds = array<i64: 1, 1, 1>, scalar_prefetch = 0 : i64, scratch_operands = 1 : i64, tpu.core_type = #tpu.core_type<tc>, window_params = [{transform_indices = @transform_0, window_bounds = array<i64: 128, 32>}, {transform_indices = @transform_1, window_bounds = array<i64: 32, 64>}, {transform_indices = @transform_2, window_bounds = array<i64: 1, 64>}, {transform_indices = @transform_3, window_bounds = array<i64: 128, 64>}]} {
    %c0_i32 = arith.constant 0 : i32
    %0 = arith.cmpi eq, %arg2, %c0_i32 : i32
    %1 = arith.extui %0 : i1 to i32
    %c0_i32_0 = arith.constant 0 : i32
    %2 = arith.cmpi ne, %1, %c0_i32_0 : i32
    scf.if %2 {
      %cst_10 = arith.constant 0.000000e+00 : f32
      %12 = vector.broadcast %cst_10 : f32 to vector<128x64xf32>
      %c0_11 = arith.constant 0 : index
      %c0_12 = arith.constant 0 : index
      %13 = vector.load %arg7[%c0_11, %c0_12] : memref<128x64xf32, #tpu.memory_space<vmem>>, vector<128x64xf32>
      tpu.vector_store %arg7[%c0_11, %c0_12], %12 {strides = array<i32>} : memref<128x64xf32, #tpu.memory_space<vmem>>, vector<128x64xf32>,
    } else {
    }
    %c0 = arith.constant 0 : index
    %c0_1 = arith.constant 0 : index
    %3 = vector.load %arg7[%c0, %c0_1] : memref<128x64xf32, #tpu.memory_space<vmem>>, vector<128x64xf32>
    %c0_2 = arith.constant 0 : index
    %c0_3 = arith.constant 0 : index
    %4 = vector.load %arg3[%c0_2, %c0_3] : memref<128x32xf32, #tpu.memory_space<vmem>>, vector<128x32xf32>
    %c0_4 = arith.constant 0 : index
    %c0_5 = arith.constant 0 : index
    %5 = vector.load %arg4[%c0_4, %c0_5] : memref<32x64xf32, #tpu.memory_space<vmem>>, vector<32x64xf32>
    %cst = arith.constant dense<0.000000e+00> : vector<128x64xf32>
    %6 = tpu.matmul %4, %5, %cst {dimension_numbers = #tpu.dot_dimension_numbers<[1], [0], [0], [1], [0, 0, 1, 1], [], []>} : vector<128x32xf32>, vector<32x64xf32>, vector<128x64xf32> -> vector<128x64xf32>
    %7 = arith.addf %3, %6 : vector<128x64xf32>
    %c0_6 = arith.constant 0 : index
    %c0_7 = arith.constant 0 : index
    %8 = vector.load %arg7[%c0_6, %c0_7] : memref<128x64xf32, #tpu.memory_space<vmem>>, vector<128x64xf32>
    tpu.vector_store %arg7[%c0_6, %c0_7], %7 {strides = array<i32>} : memref<128x64xf32, #tpu.memory_space<vmem>>, vector<128x64xf32>,
    %c0_i32_8 = arith.constant 0 : i32
    %9 = arith.cmpi eq, %arg2, %c0_i32_8 : i32
    %10 = arith.extui %9 : i1 to i32
    %c0_i32_9 = arith.constant 0 : i32
    %11 = arith.cmpi ne, %10, %c0_i32_9 : i32
    scf.if %11 {
      %c0_10 = arith.constant 0 : index
      %c0_11 = arith.constant 0 : index
      %12 = vector.load %arg7[%c0_10, %c0_11] : memref<128x64xf32, #tpu.memory_space<vmem>>, vector<128x64xf32>
      %c0_12 = arith.constant 0 : index
      %c0_13 = arith.constant 0 : index
      %13 = vector.load %arg5[%c0_12, %c0_13] : memref<1x64xf32, #tpu.memory_space<vmem>>, vector<1x64xf32>
      %14 = vector.broadcast %13 : vector<1x64xf32> to vector<128x64xf32>
      %15 = arith.addf %12, %14 : vector<128x64xf32>
      %16 = arith.mulf %15, %15 : vector<128x64xf32>
      %17 = arith.mulf %15, %16 : vector<128x64xf32>
      %cst_14 = arith.constant 4.471500e-02 : f32
      %18 = vector.broadcast %cst_14 : f32 to vector<128x64xf32>
      %19 = arith.mulf %18, %17 : vector<128x64xf32>
      %20 = arith.addf %15, %19 : vector<128x64xf32>
      %cst_15 = arith.constant 0.797884583 : f32
      %21 = vector.broadcast %cst_15 : f32 to vector<128x64xf32>
      %22 = arith.mulf %21, %20 : vector<128x64xf32>
      %23 = math.tanh %22 : vector<128x64xf32>
      %cst_16 = arith.constant 1.000000e+00 : f32
      %24 = vector.broadcast %cst_16 : f32 to vector<128x64xf32>
      %25 = arith.addf %24, %23 : vector<128x64xf32>
      %cst_17 = arith.constant 5.000000e-01 : f32
      %26 = vector.broadcast %cst_17 : f32 to vector<128x64xf32>
      %27 = arith.mulf %26, %25 : vector<128x64xf32>
      %28 = arith.mulf %15, %27 : vector<128x64xf32>
      %c0_18 = arith.constant 0 : index
      %c0_19 = arith.constant 0 : index
      %29 = vector.load %arg6[%c0_18, %c0_19] : memref<128x64xf32, #tpu.memory_space<vmem>>, vector<128x64xf32>
      tpu.vector_store %arg6[%c0_18, %c0_19], %28 {strides = array<i32>} : memref<128x64xf32, #tpu.memory_space<vmem>>, vector<128x64xf32>,
    } else {
    }
    return
  }
  func.func @transform_0(%arg0: i32, %arg1: i32, %arg2: i32) -> (i32, i32) {
    %c0_i32 = arith.constant 0 : i32
    return %arg0, %arg2 : i32, i32
  }
  func.func @transform_1(%arg0: i32, %arg1: i32, %arg2: i32) -> (i32, i32) {
    %c0_i32 = arith.constant 0 : i32
    return %arg2, %arg1 : i32, i32
  }
  func.func @transform_2(%arg0: i32, %arg1: i32, %arg2: i32) -> (i32, i32) {
    %c0_i32 = arith.constant 0 : i32
    %c0_i32_0 = arith.constant 0 : i32
    return %c0_i32, %arg1 : i32, i32
  }
  func.func @transform_3(%arg0: i32, %arg1: i32, %arg2: i32) -> (i32, i32) {
    %c0_i32 = arith.constant 0 : i32
    return %arg0, %arg1 : i32, i32
  }
}

module attributes {stable_mosaic.version = 11 : i64} {
  func.func @_linear_kernel(%arg0: i32, %arg1: i32, %arg2: i32, %arg3: memref<128x64xf32, #tpu.memory_space<vmem>>, %arg4: memref<64x32xf32, #tpu.memory_space<vmem>>, %arg5: memref<1x32xf32, #tpu.memory_space<vmem>>, %arg6: memref<128x32xf32, #tpu.memory_space<vmem>>, %arg7: memref<128x32xf32, #tpu.memory_space<vmem>>) attributes {dimension_semantics = [#tpu.dimension_semantics<parallel>, #tpu.dimension_semantics<parallel>, #tpu.dimension_semantics<arbitrary>], iteration_bounds = array<i64: 1, 1, 1>, scalar_prefetch = 0 : i64, scratch_operands = 1 : i64, tpu.core_type = #tpu.core_type<tc>, window_params = [{transform_indices = @transform_0, window_bounds = array<i64: 128, 64>}, {transform_indices = @transform_1, window_bounds = array<i64: 64, 32>}, {transform_indices = @transform_2, window_bounds = array<i64: 1, 32>}, {transform_indices = @transform_3, window_bounds = array<i64: 128, 32>}]} {
    %c0_i32 = arith.constant 0 : i32
    %0 = arith.cmpi eq, %arg2, %c0_i32 : i32
    %1 = arith.extui %0 : i1 to i32
    %c0_i32_0 = arith.constant 0 : i32
    %2 = arith.cmpi ne, %1, %c0_i32_0 : i32
    scf.if %2 {
      %cst_10 = arith.constant 0.000000e+00 : f32
      %12 = vector.broadcast %cst_10 : f32 to vector<128x32xf32>
      %c0_11 = arith.constant 0 : index
      %c0_12 = arith.constant 0 : index
      %13 = vector.load %arg7[%c0_11, %c0_12] : memref<128x32xf32, #tpu.memory_space<vmem>>, vector<128x32xf32>
      tpu.vector_store %arg7[%c0_11, %c0_12], %12 {strides = array<i32>} : memref<128x32xf32, #tpu.memory_space<vmem>>, vector<128x32xf32>,
    } else {
    }
    %c0 = arith.constant 0 : index
    %c0_1 = arith.constant 0 : index
    %3 = vector.load %arg7[%c0, %c0_1] : memref<128x32xf32, #tpu.memory_space<vmem>>, vector<128x32xf32>
    %c0_2 = arith.constant 0 : index
    %c0_3 = arith.constant 0 : index
    %4 = vector.load %arg3[%c0_2, %c0_3] : memref<128x64xf32, #tpu.memory_space<vmem>>, vector<128x64xf32>
    %c0_4 = arith.constant 0 : index
    %c0_5 = arith.constant 0 : index
    %5 = vector.load %arg4[%c0_4, %c0_5] : memref<64x32xf32, #tpu.memory_space<vmem>>, vector<64x32xf32>
    %cst = arith.constant dense<0.000000e+00> : vector<128x32xf32>
    %6 = tpu.matmul %4, %5, %cst {dimension_numbers = #tpu.dot_dimension_numbers<[1], [0], [0], [1], [0, 0, 1, 1], [], []>} : vector<128x64xf32>, vector<64x32xf32>, vector<128x32xf32> -> vector<128x32xf32>
    %7 = arith.addf %3, %6 : vector<128x32xf32>
    %c0_6 = arith.constant 0 : index
    %c0_7 = arith.constant 0 : index
    %8 = vector.load %arg7[%c0_6, %c0_7] : memref<128x32xf32, #tpu.memory_space<vmem>>, vector<128x32xf32>
    tpu.vector_store %arg7[%c0_6, %c0_7], %7 {strides = array<i32>} : memref<128x32xf32, #tpu.memory_space<vmem>>, vector<128x32xf32>,
    %c0_i32_8 = arith.constant 0 : i32
    %9 = arith.cmpi eq, %arg2, %c0_i32_8 : i32
    %10 = arith.extui %9 : i1 to i32
    %c0_i32_9 = arith.constant 0 : i32
    %11 = arith.cmpi ne, %10, %c0_i32_9 : i32
    scf.if %11 {
      %c0_10 = arith.constant 0 : index
      %c0_11 = arith.constant 0 : index
      %12 = vector.load %arg7[%c0_10, %c0_11] : memref<128x32xf32, #tpu.memory_space<vmem>>, vector<128x32xf32>
      %c0_12 = arith.constant 0 : index
      %c0_13 = arith.constant 0 : index
      %13 = vector.load %arg5[%c0_12, %c0_13] : memref<1x32xf32, #tpu.memory_space<vmem>>, vector<1x32xf32>
      %14 = vector.broadcast %13 : vector<1x32xf32> to vector<128x32xf32>
      %15 = arith.addf %12, %14 : vector<128x32xf32>
      %c0_14 = arith.constant 0 : index
      %c0_15 = arith.constant 0 : index
      %16 = vector.load %arg6[%c0_14, %c0_15] : memref<128x32xf32, #tpu.memory_space<vmem>>, vector<128x32xf32>
      tpu.vector_store %arg6[%c0_14, %c0_15], %15 {strides = array<i32>} : memref<128x32xf32, #tpu.memory_space<vmem>>, vector<128x32xf32>,
    } else {
    }
    return
  }
  func.func @transform_0(%arg0: i32, %arg1: i32, %arg2: i32) -> (i32, i32) {
    %c0_i32 = arith.constant 0 : i32
    return %arg0, %arg2 : i32, i32
  }
  func.func @transform_1(%arg0: i32, %arg1: i32, %arg2: i32) -> (i32, i32) {
    %c0_i32 = arith.constant 0 : i32
    return %arg2, %arg1 : i32, i32
  }
  func.func @transform_2(%arg0: i32, %arg1: i32, %arg2: i32) -> (i32, i32) {
    %c0_i32 = arith.constant 0 : i32
    %c0_i32_0 = arith.constant 0 : i32
    return %c0_i32, %arg1 : i32, i32
  }
  func.func @transform_3(%arg0: i32, %arg1: i32, %arg2: i32) -> (i32, i32) {
    %c0_i32 = arith.constant 0 : i32
    return %arg0, %arg1 : i32, i32
  }
}

</mosaic_0001>

<llo_original>
// kernel: _lambda_.16
$region0: #{_lambda_.16}
  #allocation0 [shape = 'u32[]', space=smem, size = 0x4, offset = 0x4, fixed_abs, tag = 'smem constant byte address 0x4 - core index']
  #allocation1 [shape = 'u32[144,128]{1,0:T(1,128)}', space=vmem, size = 0x12000, scoped, tag = 'internal scratch']
  #allocation2 [shape = 'f32[128,96]{1,0:T(8,128)}', space=vmem, size = 0x10000, scoped, tag = 'scratch operand']
  %s0 = inlined_call_operand.vmem [shape: f32[128,32], index: 0, kind: input, shape index: {}]
  %s1 = inlined_call_operand.vmem [shape: f32[32,96], index: 1, kind: input, shape index: {}]
  %s2 = inlined_call_operand.vmem [shape: f32[1,96], index: 2, kind: input, shape index: {}]
  %s3 = inlined_call_operand.vmem [shape: f32[128,96], index: 3, kind: output, shape index: {}]
  %s4 = sld [smem:[#allocation0]]
  $region30: #{_lambda_.16} parent=0
    _
  %s6 = ssub.s32 1, %s4
  %s7 = scalar_select 0, %s6, %s4
  // Predicated region
  $region2: #{_lambda_.16} parent=0 // pred_check
    _
  $region3: #{_lambda_.16} parent=0 // pred_check_branch
    %9 = sbr.rel (0) target = $region5
  $region4: #{_lambda_.16} parent=0 // pred_region
    _
  $region5: #{_lambda_.16} parent=0 // pred_fallthru
    _
  // Predicated region
  $region6: #{_lambda_.16} parent=0 // pred_check
    _
  $region7: #{_lambda_.16} parent=0 // pred_check_branch
    %11 = sbr.rel (0) target = $region9
  $region8: #{_lambda_.16} parent=0 // pred_region
    _
  $region9: #{_lambda_.16} parent=0 // pred_fallthru
    _
  // Predicated region
  $region10: #{_lambda_.16} parent=0 // pred_check
    _
  $region11: #{_lambda_.16} parent=0 // pred_check_branch
    %13 = sbr.rel (0) target = $region13
  $region12: #{_lambda_.16} parent=0 // pred_region
    _
  $region13: #{_lambda_.16} parent=0 // pred_fallthru
    _
  %p14 = scmp.eq.s32.totalorder 0, 0
  // Predicated region
  $region14: #{_lambda_.16} parent=0 // pred_check
    %p15 = pneg %p14
  $region15: #{_lambda_.16} parent=0 // pred_check_branch
    %17 = sbr.rel (%p15) target = $region17
  $region16: #{_lambda_.16} parent=0 // pred_region
    %vm18 = vcmask 785408
    %19 = vst.msk [vmem:[#allocation2] sm:$0xff] %vm18, 0.0
    %20 = vst.msk [vmem:[#allocation2 + $0x8] sm:$0xff] %vm18, 0.0
    %21 = vst.msk [vmem:[#allocation2 + $0x10] sm:$0xff] %vm18, 0.0
    %22 = vst.msk [vmem:[#allocation2 + $0x18] sm:$0xff] %vm18, 0.0
    %23 = vst.msk [vmem:[#allocation2 + $0x20] sm:$0xff] %vm18, 0.0
    %24 = vst.msk [vmem:[#allocation2 + $0x28] sm:$0xff] %vm18, 0.0
    %25 = vst.msk [vmem:[#allocation2 + $0x30] sm:$0xff] %vm18, 0.0
    %26 = vst.msk [vmem:[#allocation2 + $0x38] sm:$0xff] %vm18, 0.0
    %27 = vst.msk [vmem:[#allocation2 + $0x40] sm:$0xff] %vm18, 0.0
    %28 = vst.msk [vmem:[#allocation2 + $0x48] sm:$0xff] %vm18, 0.0
    %29 = vst.msk [vmem:[#allocation2 + $0x50] sm:$0xff] %vm18, 0.0
    %30 = vst.msk [vmem:[#allocation2 + $0x58] sm:$0xff] %vm18, 0.0
    %31 = vst.msk [vmem:[#allocation2 + $0x60] sm:$0xff] %vm18, 0.0
    %32 = vst.msk [vmem:[#allocation2 + $0x68] sm:$0xff] %vm18, 0.0
    %33 = vst.msk [vmem:[#allocation2 + $0x70] sm:$0xff] %vm18, 0.0
    %34 = vst.msk [vmem:[#allocation2 + $0x78] sm:$0xff] %vm18, 0.0
  $region17: #{_lambda_.16} parent=0 // pred_fallthru
    _
  %v35 = vld [vmem:[#allocation2] sm:$0xff]
  %v36 = vld [vmem:[#allocation2 + $0x8] sm:$0xff]
  %v37 = vld [vmem:[#allocation2 + $0x10] sm:$0xff]
  %v38 = vld [vmem:[#allocation2 + $0x18] sm:$0xff]
  %v39 = vld [vmem:[#allocation2 + $0x20] sm:$0xff]
  %v40 = vld [vmem:[#allocation2 + $0x28] sm:$0xff]
  %v41 = vld [vmem:[#allocation2 + $0x30] sm:$0xff]
  %v42 = vld [vmem:[#allocation2 + $0x38] sm:$0xff]
  %v43 = vld [vmem:[#allocation2 + $0x40] sm:$0xff]
  %v44 = vld [vmem:[#allocation2 + $0x48] sm:$0xff]
  %v45 = vld [vmem:[#allocation2 + $0x50] sm:$0xff]
  %v46 = vld [vmem:[#allocation2 + $0x58] sm:$0xff]
  %v47 = vld [vmem:[#allocation2 + $0x60] sm:$0xff]
  %v48 = vld [vmem:[#allocation2 + $0x68] sm:$0xff]
  %v49 = vld [vmem:[#allocation2 + $0x70] sm:$0xff]
  %v50 = vld [vmem:[#allocation2 + $0x78] sm:$0xff]
  %v51 = vld [vmem:[%s0] sm:$0xff]
  %v52 = vld [vmem:[%s0 + $0x8] sm:$0xff]
  %v53 = vld [vmem:[%s0 + $0x10] sm:$0xff]
  %v54 = vld [vmem:[%s0 + $0x18] sm:$0xff]
  %v55 = vld [vmem:[%s0 + $0x20] sm:$0xff]
  %v56 = vld [vmem:[%s0 + $0x28] sm:$0xff]
  %v57 = vld [vmem:[%s0 + $0x30] sm:$0xff]
  %v58 = vld [vmem:[%s0 + $0x38] sm:$0xff]
  %v59 = vld [vmem:[%s0 + $0x40] sm:$0xff]
  %v60 = vld [vmem:[%s0 + $0x48] sm:$0xff]
  %v61 = vld [vmem:[%s0 + $0x50] sm:$0xff]
  %v62 = vld [vmem:[%s0 + $0x58] sm:$0xff]
  %v63 = vld [vmem:[%s0 + $0x60] sm:$0xff]
  %v64 = vld [vmem:[%s0 + $0x68] sm:$0xff]
  %v65 = vld [vmem:[%s0 + $0x70] sm:$0xff]
  %v66 = vld [vmem:[%s0 + $0x78] sm:$0xff]
  %v67 = vld [vmem:[%s1] sm:$0xff]
  %v68 = vld [vmem:[%s1 + $0x8] sm:$0xff]
  %v69 = vld [vmem:[%s1 + $0x10] sm:$0xff]
  %v70 = vld [vmem:[%s1 + $0x18] sm:$0xff]
  %vm71 = vcmask 261120
  %v73 = vsel %vm71, %v51, 0
  %v76 = vsel %vm71, %v52, 0
  %v79 = vsel %vm71, %v53, 0
  %v82 = vsel %vm71, %v54, 0
  %v85 = vsel %vm71, %v55, 0
  %v88 = vsel %vm71, %v56, 0
  %v91 = vsel %vm71, %v57, 0
  %v94 = vsel %vm71, %v58, 0
  %v97 = vsel %vm71, %v59, 0
  %v100 = vsel %vm71, %v60, 0
  %v103 = vsel %vm71, %v61, 0
  %v106 = vsel %vm71, %v62, 0
  %v109 = vsel %vm71, %v63, 0
  %v112 = vsel %vm71, %v64, 0
  %v115 = vsel %vm71, %v65, 0
  %v118 = vsel %vm71, %v66, 0
  %120 = vmatprep.subr.mxu0 0.0
  %121 = vmatpush1.msra.mxu0 %v67
  %122 = vmatprep.subr.mxu0 0.0
  %123 = vmatpush1.msra.mxu0 %v68
  %124 = vmatprep.subr.mxu0 0.0
  %125 = vmatpush1.msra.mxu0 %v69
  %126 = vmatprep.subr.mxu0 0.0
  %127 = vmatpush1.msra.mxu0 %v70
  %128 = vmatprep.subr.mxu0 0.0
  %129 = vmatpush1.msra.mxu0 0.0
  %130 = vmatprep.subr.mxu0 0.0
  %131 = vmatpush1.msra.mxu0 0.0
  %132 = vmatprep.subr.mxu0 0.0
  %133 = vmatpush1.msra.mxu0 0.0
  %134 = vmatprep.subr.mxu0 0.0
  %135 = vmatpush1.msra.mxu0 0.0
  %136 = vmatprep.subr.mxu0 0.0
  %137 = vmatpush1.msra.mxu0 0.0
  %138 = vmatprep.subr.mxu0 0.0
  %139 = vmatpush1.msra.mxu0 0.0
  %140 = vmatprep.subr.mxu0 0.0
  %141 = vmatpush1.msra.mxu0 0.0
  %142 = vmatprep.subr.mxu0 0.0
  %143 = vmatpush1.msra.mxu0 0.0
  %144 = vmatprep.subr.mxu0 0.0
  %145 = vmatpush1.msra.mxu0 0.0
  %146 = vmatprep.subr.mxu0 0.0
  %147 = vmatpush1.msra.mxu0 0.0
  %148 = vmatprep.subr.mxu0 0.0
  %149 = vmatpush1.msra.mxu0 0.0
  %150 = vmatprep.subr.mxu0 0.0
  %151 = vmatpush1.msra.mxu0 0.0
  %152 = vmatprep.subr.mxu0 0.0
  %153 = vmatpush1.msra.mxu0 0.0
  %154 = vmatprep.subr.mxu0 0.0
  %155 = vmatpush1.msra.mxu0 0.0
  %156 = vmatprep.subr.mxu0 0.0
  %157 = vmatpush1.msra.mxu0 0.0
  %158 = vmatprep.subr.mxu0 0.0
  %159 = vmatpush1.msra.mxu0 0.0
  %160 = vmatprep.subr.mxu0 0.0
  %161 = vmatpush1.msra.mxu0 0.0
  %162 = vmatprep.subr.mxu0 0.0
  %163 = vmatpush1.msra.mxu0 0.0
  %164 = vmatprep.subr.mxu0 0.0
  %165 = vmatpush1.msra.mxu0 0.0
  %166 = vmatprep.subr.mxu0 0.0
  %167 = vmatpush1.msra.mxu0 0.0
  %168 = vmatprep.subr.mxu0 0.0
  %169 = vmatpush1.msra.mxu0 0.0
  %170 = vmatprep.subr.mxu0 0.0
  %171 = vmatpush1.msra.mxu0 0.0
  %172 = vmatprep.subr.mxu0 0.0
  %173 = vmatpush1.msra.mxu0 0.0
  %174 = vmatprep.subr.mxu0 0.0
  %175 = vmatpush1.msra.mxu0 0.0
  %176 = vmatprep.subr.mxu0 0.0
  %177 = vmatpush1.msra.mxu0 0.0
  %178 = vmatprep.subr.mxu0 0.0
  %179 = vmatpush1.msra.mxu0 0.0
  %180 = vmatprep.subr.mxu0 0.0
  %181 = vmatpush1.msra.mxu0 0.0
  %182 = vmatprep.subr.mxu0 0.0
  %183 = vmatpush1.msra.mxu0 0.0
  %184 = vmatprep.mubr.f32.mxu0 0.0
  %185 = vmatmul.mubr.f32.gmra.mrb[0].mxu0 %v73
  %v186 = vpop.f32.mrb[0].mxu0
  %v187 = vadd.f32 0.0, %v186
  %v188 = vpop.f32.mrb[0].mxu0
  %189 = vmatprep.mubr.f32.mxu0 0.0
  %190 = vmatmul.mubr.f32.gmra.mrb[0].mxu0 %v76
  %v191 = vpop.f32.mrb[0].mxu0
  %v192 = vadd.f32 0.0, %v191
  %v193 = vpop.f32.mrb[0].mxu0
  %194 = vmatprep.mubr.f32.mxu0 0.0
  %195 = vmatmul.mubr.f32.gmra.mrb[0].mxu0 %v79
  %v196 = vpop.f32.mrb[0].mxu0
  %v197 = vadd.f32 0.0, %v196
  %v198 = vpop.f32.mrb[0].mxu0
  %199 = vmatprep.mubr.f32.mxu0 0.0
  %200 = vmatmul.mubr.f32.gmra.mrb[0].mxu0 %v82
  %v201 = vpop.f32.mrb[0].mxu0
  %v202 = vadd.f32 0.0, %v201
  %v203 = vpop.f32.mrb[0].mxu0
  %204 = vmatprep.mubr.f32.mxu0 0.0
  %205 = vmatmul.mubr.f32.gmra.mrb[0].mxu0 %v85
  %v206 = vpop.f32.mrb[0].mxu0
  %v207 = vadd.f32 0.0, %v206
  %v208 = vpop.f32.mrb[0].mxu0
  %209 = vmatprep.mubr.f32.mxu0 0.0
  %210 = vmatmul.mubr.f32.gmra.mrb[0].mxu0 %v88
  %v211 = vpop.f32.mrb[0].mxu0
  %v212 = vadd.f32 0.0, %v211
  %v213 = vpop.f32.mrb[0].mxu0
  %214 = vmatprep.mubr.f32.mxu0 0.0
  %215 = vmatmul.mubr.f32.gmra.mrb[0].mxu0 %v91
  %v216 = vpop.f32.mrb[0].mxu0
  %v217 = vadd.f32 0.0, %v216
  %v218 = vpop.f32.mrb[0].mxu0
  %219 = vmatprep.mubr.f32.mxu0 0.0
  %220 = vmatmul.mubr.f32.gmra.mrb[0].mxu0 %v94
  %v221 = vpop.f32.mrb[0].mxu0
  %v222 = vadd.f32 0.0, %v221
  %v223 = vpop.f32.mrb[0].mxu0
  %224 = vmatprep.mubr.f32.mxu0 0.0
  %225 = vmatmul.mubr.f32.gmra.mrb[0].mxu0 %v97
  %v226 = vpop.f32.mrb[0].mxu0
  %v227 = vadd.f32 0.0, %v226
  %v228 = vpop.f32.mrb[0].mxu0
  %229 = vmatprep.mubr.f32.mxu0 0.0
  %230 = vmatmul.mubr.f32.gmra.mrb[0].mxu0 %v100
  %v231 = vpop.f32.mrb[0].mxu0
  %v232 = vadd.f32 0.0, %v231
  %v233 = vpop.f32.mrb[0].mxu0
  %234 = vmatprep.mubr.f32.mxu0 0.0
  %235 = vmatmul.mubr.f32.gmra.mrb[0].mxu0 %v103
  %v236 = vpop.f32.mrb[0].mxu0
  %v237 = vadd.f32 0.0, %v236
  %v238 = vpop.f32.mrb[0].mxu0
  %239 = vmatprep.mubr.f32.mxu0 0.0
  %240 = vmatmul.mubr.f32.gmra.mrb[0].mxu0 %v106
  %v241 = vpop.f32.mrb[0].mxu0
  %v242 = vadd.f32 0.0, %v241
  %v243 = vpop.f32.mrb[0].mxu0
  %244 = vmatprep.mubr.f32.mxu0 0.0
  %245 = vmatmul.mubr.f32.gmra.mrb[0].mxu0 %v109
  %v246 = vpop.f32.mrb[0].mxu0
  %v247 = vadd.f32 0.0, %v246
  %v248 = vpop.f32.mrb[0].mxu0
  %249 = vmatprep.mubr.f32.mxu0 0.0
  %250 = vmatmul.mubr.f32.gmra.mrb[0].mxu0 %v112
  %v251 = vpop.f32.mrb[0].mxu0
  %v252 = vadd.f32 0.0, %v251
  %v253 = vpop.f32.mrb[0].mxu0
  %254 = vmatprep.mubr.f32.mxu0 0.0
  %255 = vmatmul.mubr.f32.gmra.mrb[0].mxu0 %v115
  %v256 = vpop.f32.mrb[0].mxu0
  %v257 = vadd.f32 0.0, %v256
  %v258 = vpop.f32.mrb[0].mxu0
  %259 = vmatprep.mubr.f32.mxu0 0.0
  %260 = vmatmul.mubr.f32.gmra.mrb[0].mxu0 %v118
  %v261 = vpop.f32.mrb[0].mxu0
  %v262 = vadd.f32 0.0, %v261
  %v263 = vpop.f32.mrb[0].mxu0
  %264 = vdwg.mxu0
  %v265 = vadd.f32 %v35, %v187
  %v266 = vadd.f32 %v36, %v192
  %v267 = vadd.f32 %v37, %v197
  %v268 = vadd.f32 %v38, %v202
  %v269 = vadd.f32 %v39, %v207
  %v270 = vadd.f32 %v40, %v212
  %v271 = vadd.f32 %v41, %v217
  %v272 = vadd.f32 %v42, %v222
  %v273 = vadd.f32 %v43, %v227
  %v274 = vadd.f32 %v44, %v232
  %v275 = vadd.f32 %v45, %v237
  %v276 = vadd.f32 %v46, %v242
  %v277 = vadd.f32 %v47, %v247
  %v278 = vadd.f32 %v48, %v252
  %v279 = vadd.f32 %v49, %v257
  %v280 = vadd.f32 %v50, %v262
  %vm281 = vcmask 785408
  %282 = vst.msk [vmem:[#allocation2] sm:$0xff] %vm281, %v265
  %283 = vst.msk [vmem:[#allocation2 + $0x8] sm:$0xff] %vm281, %v266
  %284 = vst.msk [vmem:[#allocation2 + $0x10] sm:$0xff] %vm281, %v267
  %285 = vst.msk [vmem:[#allocation2 + $0x18] sm:$0xff] %vm281, %v268
  %286 = vst.msk [vmem:[#allocation2 + $0x20] sm:$0xff] %vm281, %v269
  %287 = vst.msk [vmem:[#allocation2 + $0x28] sm:$0xff] %vm281, %v270
  %288 = vst.msk [vmem:[#allocation2 + $0x30] sm:$0xff] %vm281, %v271
  %289 = vst.msk [vmem:[#allocation2 + $0x38] sm:$0xff] %vm281, %v272
  %290 = vst.msk [vmem:[#allocation2 + $0x40] sm:$0xff] %vm281, %v273
  %291 = vst.msk [vmem:[#allocation2 + $0x48] sm:$0xff] %vm281, %v274
  %292 = vst.msk [vmem:[#allocation2 + $0x50] sm:$0xff] %vm281, %v275
  %293 = vst.msk [vmem:[#allocation2 + $0x58] sm:$0xff] %vm281, %v276
  %294 = vst.msk [vmem:[#allocation2 + $0x60] sm:$0xff] %vm281, %v277
  %295 = vst.msk [vmem:[#allocation2 + $0x68] sm:$0xff] %vm281, %v278
  %296 = vst.msk [vmem:[#allocation2 + $0x70] sm:$0xff] %vm281, %v279
  %297 = vst.msk [vmem:[#allocation2 + $0x78] sm:$0xff] %vm281, %v280
  // Predicated region
  $region18: #{_lambda_.16} parent=0 // pred_check
    %p298 = pneg %p14
  $region19: #{_lambda_.16} parent=0 // pred_check_branch
    %300 = sbr.rel (%p298) target = $region21
  $region20: #{_lambda_.16} parent=0 // pred_region
    %v301 = vld [vmem:[#allocation2] sm:$0xff]
    %v302 = vld [vmem:[#allocation2 + $0x8] sm:$0xff]
    %v303 = vld [vmem:[#allocation2 + $0x10] sm:$0xff]
    %v304 = vld [vmem:[#allocation2 + $0x18] sm:$0xff]
    %v305 = vld [vmem:[#allocation2 + $0x20] sm:$0xff]
    %v306 = vld [vmem:[#allocation2 + $0x28] sm:$0xff]
    %v307 = vld [vmem:[#allocation2 + $0x30] sm:$0xff]
    %v308 = vld [vmem:[#allocation2 + $0x38] sm:$0xff]
    %v309 = vld [vmem:[#allocation2 + $0x40] sm:$0xff]
    %v310 = vld [vmem:[#allocation2 + $0x48] sm:$0xff]
    %v311 = vld [vmem:[#allocation2 + $0x50] sm:$0xff]
    %v312 = vld [vmem:[#allocation2 + $0x58] sm:$0xff]
    %v313 = vld [vmem:[#allocation2 + $0x60] sm:$0xff]
    %v314 = vld [vmem:[#allocation2 + $0x68] sm:$0xff]
    %v315 = vld [vmem:[#allocation2 + $0x70] sm:$0xff]
    %v316 = vld [vmem:[#allocation2 + $0x78] sm:$0xff]
    %v317 = vld [vmem:[%s2] sm:$0x1]
    %v319 = vlaneseq
    %v320 = vshrl.u32 %v319, 7
    %v321 = vsub.s32 0, %v320
    %v322 = vrot.slane %v317, %v321
    %v324 = vadd.f32 %v301, %v322
    %v325 = vadd.f32 %v302, %v322
    %v326 = vadd.f32 %v303, %v322
    %v327 = vadd.f32 %v304, %v322
    %v328 = vadd.f32 %v305, %v322
    %v329 = vadd.f32 %v306, %v322
    %v330 = vadd.f32 %v307, %v322
    %v331 = vadd.f32 %v308, %v322
    %v332 = vadd.f32 %v309, %v322
    %v333 = vadd.f32 %v310, %v322
    %v334 = vadd.f32 %v311, %v322
    %v335 = vadd.f32 %v312, %v322
    %v336 = vadd.f32 %v313, %v322
    %v337 = vadd.f32 %v314, %v322
    %v338 = vadd.f32 %v315, %v322
    %v339 = vadd.f32 %v316, %v322
    %340 = vst.msk [vmem:[%s3] sm:$0xff] %vm281, %v324
    %341 = vst.msk [vmem:[%s3 + $0x8] sm:$0xff] %vm281, %v325
    %342 = vst.msk [vmem:[%s3 + $0x10] sm:$0xff] %vm281, %v326
    %343 = vst.msk [vmem:[%s3 + $0x18] sm:$0xff] %vm281, %v327
    %344 = vst.msk [vmem:[%s3 + $0x20] sm:$0xff] %vm281, %v328
    %345 = vst.msk [vmem:[%s3 + $0x28] sm:$0xff] %vm281, %v329
    %346 = vst.msk [vmem:[%s3 + $0x30] sm:$0xff] %vm281, %v330
    %347 = vst.msk [vmem:[%s3 + $0x38] sm:$0xff] %vm281, %v331
    %348 = vst.msk [vmem:[%s3 + $0x40] sm:$0xff] %vm281, %v332
    %349 = vst.msk [vmem:[%s3 + $0x48] sm:$0xff] %vm281, %v333
    %350 = vst.msk [vmem:[%s3 + $0x50] sm:$0xff] %vm281, %v334
    %351 = vst.msk [vmem:[%s3 + $0x58] sm:$0xff] %vm281, %v335
    %352 = vst.msk [vmem:[%s3 + $0x60] sm:$0xff] %vm281, %v336
    %353 = vst.msk [vmem:[%s3 + $0x68] sm:$0xff] %vm281, %v337
    %354 = vst.msk [vmem:[%s3 + $0x70] sm:$0xff] %vm281, %v338
    %355 = vst.msk [vmem:[%s3 + $0x78] sm:$0xff] %vm281, %v339
  $region21: #{_lambda_.16} parent=0 // pred_fallthru
    _
  // Predicated region
  $region22: #{_lambda_.16} parent=0 // pred_check
    _
  $region23: #{_lambda_.16} parent=0 // pred_check_branch
    %357 = sbr.rel (0) target = $region25
  $region24: #{_lambda_.16} parent=0 // pred_region
    _
  $region25: #{_lambda_.16} parent=0 // pred_fallthru
    _
  // Predicated region
  $region26: #{_lambda_.16} parent=0 // pred_check
    _
  $region27: #{_lambda_.16} parent=0 // pred_check_branch
    %359 = sbr.rel (0) target = $region29
  $region28: #{_lambda_.16} parent=0 // pred_region
    _
  $region29: #{_lambda_.16} parent=0 // pred_fallthru
    _

// kernel: _lambda_.11
$region0: #{_lambda_.11}
  #allocation0 [shape = 'u32[]', space=smem, size = 0x4, offset = 0x4, fixed_abs, tag = 'smem constant byte address 0x4 - core index']
  #allocation1 [shape = 'u32[144,128]{1,0:T(1,128)}', space=vmem, size = 0x12000, scoped, tag = 'internal scratch']
  %s0 = inlined_call_operand.vmem [shape: f32[128,32], index: 0, kind: input, shape index: {}]
  %s1 = inlined_call_operand.vmem [shape: f32[1,32], index: 1, kind: input, shape index: {}]
  %s2 = inlined_call_operand.vmem [shape: f32[1,32], index: 2, kind: input, shape index: {}]
  %s3 = inlined_call_operand.vmem [shape: f32[128,32], index: 3, kind: output, shape index: {}]
  %s4 = sld [smem:[#allocation0]]
  $region22: #{_lambda_.11} parent=0
    _
  %s6 = ssub.s32 1, %s4
  %s7 = scalar_select 0, %s6, %s4
  // Predicated region
  $region2: #{_lambda_.11} parent=0 // pred_check
    _
  $region3: #{_lambda_.11} parent=0 // pred_check_branch
    %9 = sbr.rel (0) target = $region5
  $region4: #{_lambda_.11} parent=0 // pred_region
    _
  $region5: #{_lambda_.11} parent=0 // pred_fallthru
    _
  // Predicated region
  $region6: #{_lambda_.11} parent=0 // pred_check
    _
  $region7: #{_lambda_.11} parent=0 // pred_check_branch
    %11 = sbr.rel (0) target = $region9
  $region8: #{_lambda_.11} parent=0 // pred_region
    _
  $region9: #{_lambda_.11} parent=0 // pred_fallthru
    _
  // Predicated region
  $region10: #{_lambda_.11} parent=0 // pred_check
    _
  $region11: #{_lambda_.11} parent=0 // pred_check_branch
    %13 = sbr.rel (0) target = $region13
  $region12: #{_lambda_.11} parent=0 // pred_region
    _
  $region13: #{_lambda_.11} parent=0 // pred_fallthru
    _
  %v14 = vld [vmem:[%s0] sm:$0xff]
  %v15 = vld [vmem:[%s0 + $0x8] sm:$0xff]
  %v16 = vld [vmem:[%s0 + $0x10] sm:$0xff]
  %v17 = vld [vmem:[%s0 + $0x18] sm:$0xff]
  %v18 = vld [vmem:[%s0 + $0x20] sm:$0xff]
  %v19 = vld [vmem:[%s0 + $0x28] sm:$0xff]
  %v20 = vld [vmem:[%s0 + $0x30] sm:$0xff]
  %v21 = vld [vmem:[%s0 + $0x38] sm:$0xff]
  %v22 = vld [vmem:[%s0 + $0x40] sm:$0xff]
  %v23 = vld [vmem:[%s0 + $0x48] sm:$0xff]
  %v24 = vld [vmem:[%s0 + $0x50] sm:$0xff]
  %v25 = vld [vmem:[%s0 + $0x58] sm:$0xff]
  %v26 = vld [vmem:[%s0 + $0x60] sm:$0xff]
  %v27 = vld [vmem:[%s0 + $0x68] sm:$0xff]
  %v28 = vld [vmem:[%s0 + $0x70] sm:$0xff]
  %v29 = vld [vmem:[%s0 + $0x78] sm:$0xff]
  %vm30 = vcmask 261120
  %v31 = vsel %vm30, %v14, 0.0
  %32 = vadd.xlane.f32.xlu0 %v31
  %v33 = vpop.xlane.xlu0 %32
  %v34 = vsel %vm30, %v15, 0.0
  %35 = vadd.xlane.f32.xlu0 %v34
  %v36 = vpop.xlane.xlu0 %35
  %v37 = vsel %vm30, %v16, 0.0
  %38 = vadd.xlane.f32.xlu0 %v37
  %v39 = vpop.xlane.xlu0 %38
  %v40 = vsel %vm30, %v17, 0.0
  %41 = vadd.xlane.f32.xlu0 %v40
  %v42 = vpop.xlane.xlu0 %41
  %v43 = vsel %vm30, %v18, 0.0
  %44 = vadd.xlane.f32.xlu0 %v43
  %v45 = vpop.xlane.xlu0 %44
  %v46 = vsel %vm30, %v19, 0.0
  %47 = vadd.xlane.f32.xlu0 %v46
  %v48 = vpop.xlane.xlu0 %47
  %v49 = vsel %vm30, %v20, 0.0
  %50 = vadd.xlane.f32.xlu0 %v49
  %v51 = vpop.xlane.xlu0 %50
  %v52 = vsel %vm30, %v21, 0.0
  %53 = vadd.xlane.f32.xlu0 %v52
  %v54 = vpop.xlane.xlu0 %53
  %v55 = vsel %vm30, %v22, 0.0
  %56 = vadd.xlane.f32.xlu0 %v55
  %v57 = vpop.xlane.xlu0 %56
  %v58 = vsel %vm30, %v23, 0.0
  %59 = vadd.xlane.f32.xlu0 %v58
  %v60 = vpop.xlane.xlu0 %59
  %v61 = vsel %vm30, %v24, 0.0
  %62 = vadd.xlane.f32.xlu0 %v61
  %v63 = vpop.xlane.xlu0 %62
  %v64 = vsel %vm30, %v25, 0.0
  %65 = vadd.xlane.f32.xlu0 %v64
  %v66 = vpop.xlane.xlu0 %65
  %v67 = vsel %vm30, %v26, 0.0
  %68 = vadd.xlane.f32.xlu0 %v67
  %v69 = vpop.xlane.xlu0 %68
  %v70 = vsel %vm30, %v27, 0.0
  %71 = vadd.xlane.f32.xlu0 %v70
  %v72 = vpop.xlane.xlu0 %71
  %v73 = vsel %vm30, %v28, 0.0
  %74 = vadd.xlane.f32.xlu0 %v73
  %v75 = vpop.xlane.xlu0 %74
  %v76 = vsel %vm30, %v29, 0.0
  %77 = vadd.xlane.f32.xlu0 %v76
  %v78 = vpop.xlane.xlu0 %77
  %v79 = vrcp.pop 32.0
  %v80 = vmul.f32 %v33, %v79
  %v81 = vmul.f32 %v36, %v79
  %v82 = vmul.f32 %v39, %v79
  %v83 = vmul.f32 %v42, %v79
  %v84 = vmul.f32 %v45, %v79
  %v85 = vmul.f32 %v48, %v79
  %v86 = vmul.f32 %v51, %v79
  %v87 = vmul.f32 %v54, %v79
  %v88 = vmul.f32 %v57, %v79
  %v89 = vmul.f32 %v60, %v79
  %v90 = vmul.f32 %v63, %v79
  %v91 = vmul.f32 %v66, %v79
  %v92 = vmul.f32 %v69, %v79
  %v93 = vmul.f32 %v72, %v79
  %v94 = vmul.f32 %v75, %v79
  %v95 = vmul.f32 %v78, %v79
  %v96 = vsub.f32 %v14, %v80
  %v97 = vsub.f32 %v15, %v81
  %v98 = vsub.f32 %v16, %v82
  %v99 = vsub.f32 %v17, %v83
  %v100 = vsub.f32 %v18, %v84
  %v101 = vsub.f32 %v19, %v85
  %v102 = vsub.f32 %v20, %v86
  %v103 = vsub.f32 %v21, %v87
  %v104 = vsub.f32 %v22, %v88
  %v105 = vsub.f32 %v23, %v89
  %v106 = vsub.f32 %v24, %v90
  %v107 = vsub.f32 %v25, %v91
  %v108 = vsub.f32 %v26, %v92
  %v109 = vsub.f32 %v27, %v93
  %v110 = vsub.f32 %v28, %v94
  %v111 = vsub.f32 %v29, %v95
  %v112 = vmul.f32 %v96, %v96
  %v113 = vmul.f32 %v97, %v97
  %v114 = vmul.f32 %v98, %v98
  %v115 = vmul.f32 %v99, %v99
  %v116 = vmul.f32 %v100, %v100
  %v117 = vmul.f32 %v101, %v101
  %v118 = vmul.f32 %v102, %v102
  %v119 = vmul.f32 %v103, %v103
  %v120 = vmul.f32 %v104, %v104
  %v121 = vmul.f32 %v105, %v105
  %v122 = vmul.f32 %v106, %v106
  %v123 = vmul.f32 %v107, %v107
  %v124 = vmul.f32 %v108, %v108
  %v125 = vmul.f32 %v109, %v109
  %v126 = vmul.f32 %v110, %v110
  %v127 = vmul.f32 %v111, %v111
  %v128 = vsel %vm30, %v112, 0.0
  %129 = vadd.xlane.f32.xlu0 %v128
  %v130 = vpop.xlane.xlu0 %129
  %v131 = vsel %vm30, %v113, 0.0
  %132 = vadd.xlane.f32.xlu0 %v131
  %v133 = vpop.xlane.xlu0 %132
  %v134 = vsel %vm30, %v114, 0.0
  %135 = vadd.xlane.f32.xlu0 %v134
  %v136 = vpop.xlane.xlu0 %135
  %v137 = vsel %vm30, %v115, 0.0
  %138 = vadd.xlane.f32.xlu0 %v137
  %v139 = vpop.xlane.xlu0 %138
  %v140 = vsel %vm30, %v116, 0.0
  %141 = vadd.xlane.f32.xlu0 %v140
  %v142 = vpop.xlane.xlu0 %141
  %v143 = vsel %vm30, %v117, 0.0
  %144 = vadd.xlane.f32.xlu0 %v143
  %v145 = vpop.xlane.xlu0 %144
  %v146 = vsel %vm30, %v118, 0.0
  %147 = vadd.xlane.f32.xlu0 %v146
  %v148 = vpop.xlane.xlu0 %147
  %v149 = vsel %vm30, %v119, 0.0
  %150 = vadd.xlane.f32.xlu0 %v149
  %v151 = vpop.xlane.xlu0 %150
  %v152 = vsel %vm30, %v120, 0.0
  %153 = vadd.xlane.f32.xlu0 %v152
  %v154 = vpop.xlane.xlu0 %153
  %v155 = vsel %vm30, %v121, 0.0
  %156 = vadd.xlane.f32.xlu0 %v155
  %v157 = vpop.xlane.xlu0 %156
  %v158 = vsel %vm30, %v122, 0.0
  %159 = vadd.xlane.f32.xlu0 %v158
  %v160 = vpop.xlane.xlu0 %159
  %v161 = vsel %vm30, %v123, 0.0
  %162 = vadd.xlane.f32.xlu0 %v161
  %v163 = vpop.xlane.xlu0 %162
  %v164 = vsel %vm30, %v124, 0.0
  %165 = vadd.xlane.f32.xlu0 %v164
  %v166 = vpop.xlane.xlu0 %165
  %v167 = vsel %vm30, %v125, 0.0
  %168 = vadd.xlane.f32.xlu0 %v167
  %v169 = vpop.xlane.xlu0 %168
  %v170 = vsel %vm30, %v126, 0.0
  %171 = vadd.xlane.f32.xlu0 %v170
  %v172 = vpop.xlane.xlu0 %171
  %v173 = vsel %vm30, %v127, 0.0
  %174 = vadd.xlane.f32.xlu0 %v173
  %v175 = vpop.xlane.xlu0 %174
  %v176 = vmul.f32 %v130, %v79
  %v177 = vmul.f32 %v133, %v79
  %v178 = vmul.f32 %v136, %v79
  %v179 = vmul.f32 %v139, %v79
  %v180 = vmul.f32 %v142, %v79
  %v181 = vmul.f32 %v145, %v79
  %v182 = vmul.f32 %v148, %v79
  %v183 = vmul.f32 %v151, %v79
  %v184 = vmul.f32 %v154, %v79
  %v185 = vmul.f32 %v157, %v79
  %v186 = vmul.f32 %v160, %v79
  %v187 = vmul.f32 %v163, %v79
  %v188 = vmul.f32 %v166, %v79
  %v189 = vmul.f32 %v169, %v79
  %v190 = vmul.f32 %v172, %v79
  %v191 = vmul.f32 %v175, %v79
  %v192 = vadd.f32 %v176, 1e-05
  %v193 = vadd.f32 %v177, 1e-05
  %v194 = vadd.f32 %v178, 1e-05
  %v195 = vadd.f32 %v179, 1e-05
  %v196 = vadd.f32 %v180, 1e-05
  %v197 = vadd.f32 %v181, 1e-05
  %v198 = vadd.f32 %v182, 1e-05
  %v199 = vadd.f32 %v183, 1e-05
  %v200 = vadd.f32 %v184, 1e-05
  %v201 = vadd.f32 %v185, 1e-05
  %v202 = vadd.f32 %v186, 1e-05
  %v203 = vadd.f32 %v187, 1e-05
  %v204 = vadd.f32 %v188, 1e-05
  %v205 = vadd.f32 %v189, 1e-05
  %v206 = vadd.f32 %v190, 1e-05
  %v207 = vadd.f32 %v191, 1e-05
  %v208 = vrsqrt.pop %v192
  %v209 = vrsqrt.pop %v193
  %v210 = vrsqrt.pop %v194
  %v211 = vrsqrt.pop %v195
  %v212 = vrsqrt.pop %v196
  %v213 = vrsqrt.pop %v197
  %v214 = vrsqrt.pop %v198
  %v215 = vrsqrt.pop %v199
  %v216 = vrsqrt.pop %v200
  %v217 = vrsqrt.pop %v201
  %v218 = vrsqrt.pop %v202
  %v219 = vrsqrt.pop %v203
  %v220 = vrsqrt.pop %v204
  %v221 = vrsqrt.pop %v205
  %v222 = vrsqrt.pop %v206
  %v223 = vrsqrt.pop %v207
  %v224 = vmul.f32 %v96, %v208
  %v225 = vmul.f32 %v97, %v209
  %v226 = vmul.f32 %v98, %v210
  %v227 = vmul.f32 %v99, %v211
  %v228 = vmul.f32 %v100, %v212
  %v229 = vmul.f32 %v101, %v213
  %v230 = vmul.f32 %v102, %v214
  %v231 = vmul.f32 %v103, %v215
  %v232 = vmul.f32 %v104, %v216
  %v233 = vmul.f32 %v105, %v217
  %v234 = vmul.f32 %v106, %v218
  %v235 = vmul.f32 %v107, %v219
  %v236 = vmul.f32 %v108, %v220
  %v237 = vmul.f32 %v109, %v221
  %v238 = vmul.f32 %v110, %v222
  %v239 = vmul.f32 %v111, %v223
  %v240 = vld [vmem:[%s1] sm:$0x1]
  %v242 = vlaneseq
  %v243 = vshrl.u32 %v242, 7
  %v244 = vsub.s32 0, %v243
  %v245 = vrot.slane %v240, %v244
  %v247 = vmul.f32 %v224, %v245
  %v248 = vmul.f32 %v225, %v245
  %v249 = vmul.f32 %v226, %v245
  %v250 = vmul.f32 %v227, %v245
  %v251 = vmul.f32 %v228, %v245
  %v252 = vmul.f32 %v229, %v245
  %v253 = vmul.f32 %v230, %v245
  %v254 = vmul.f32 %v231, %v245
  %v255 = vmul.f32 %v232, %v245
  %v256 = vmul.f32 %v233, %v245
  %v257 = vmul.f32 %v234, %v245
  %v258 = vmul.f32 %v235, %v245
  %v259 = vmul.f32 %v236, %v245
  %v260 = vmul.f32 %v237, %v245
  %v261 = vmul.f32 %v238, %v245
  %v262 = vmul.f32 %v239, %v245
  %v263 = vld [vmem:[%s2] sm:$0x1]
  %v265 = vlaneseq
  %v266 = vshrl.u32 %v265, 7
  %v267 = vsub.s32 0, %v266
  %v268 = vrot.slane %v263, %v267
  %v270 = vadd.f32 %v247, %v268
  %v271 = vadd.f32 %v248, %v268
  %v272 = vadd.f32 %v249, %v268
  %v273 = vadd.f32 %v250, %v268
  %v274 = vadd.f32 %v251, %v268
  %v275 = vadd.f32 %v252, %v268
  %v276 = vadd.f32 %v253, %v268
  %v277 = vadd.f32 %v254, %v268
  %v278 = vadd.f32 %v255, %v268
  %v279 = vadd.f32 %v256, %v268
  %v280 = vadd.f32 %v257, %v268
  %v281 = vadd.f32 %v258, %v268
  %v282 = vadd.f32 %v259, %v268
  %v283 = vadd.f32 %v260, %v268
  %v284 = vadd.f32 %v261, %v268
  %v285 = vadd.f32 %v262, %v268
  %286 = vst.msk [vmem:[%s3] sm:$0xff] %vm30, %v270
  %287 = vst.msk [vmem:[%s3 + $0x8] sm:$0xff] %vm30, %v271
  %288 = vst.msk [vmem:[%s3 + $0x10] sm:$0xff] %vm30, %v272
  %289 = vst.msk [vmem:[%s3 + $0x18] sm:$0xff] %vm30, %v273
  %290 = vst.msk [vmem:[%s3 + $0x20] sm:$0xff] %vm30, %v274
  %291 = vst.msk [vmem:[%s3 + $0x28] sm:$0xff] %vm30, %v275
  %292 = vst.msk [vmem:[%s3 + $0x30] sm:$0xff] %vm30, %v276
  %293 = vst.msk [vmem:[%s3 + $0x38] sm:$0xff] %vm30, %v277
  %294 = vst.msk [vmem:[%s3 + $0x40] sm:$0xff] %vm30, %v278
  %295 = vst.msk [vmem:[%s3 + $0x48] sm:$0xff] %vm30, %v279
  %296 = vst.msk [vmem:[%s3 + $0x50] sm:$0xff] %vm30, %v280
  %297 = vst.msk [vmem:[%s3 + $0x58] sm:$0xff] %vm30, %v281
  %298 = vst.msk [vmem:[%s3 + $0x60] sm:$0xff] %vm30, %v282
  %299 = vst.msk [vmem:[%s3 + $0x68] sm:$0xff] %vm30, %v283
  %300 = vst.msk [vmem:[%s3 + $0x70] sm:$0xff] %vm30, %v284
  %301 = vst.msk [vmem:[%s3 + $0x78] sm:$0xff] %vm30, %v285
  // Predicated region
  $region14: #{_lambda_.11} parent=0 // pred_check
    _
  $region15: #{_lambda_.11} parent=0 // pred_check_branch
    %303 = sbr.rel (0) target = $region17
  $region16: #{_lambda_.11} parent=0 // pred_region
    _
  $region17: #{_lambda_.11} parent=0 // pred_fallthru
    _
  // Predicated region
  $region18: #{_lambda_.11} parent=0 // pred_check
    _
  $region19: #{_lambda_.11} parent=0 // pred_check_branch
    %305 = sbr.rel (0) target = $region21
  $region20: #{_lambda_.11} parent=0 // pred_region
    _
  $region21: #{_lambda_.11} parent=0 // pred_fallthru
    _

// kernel: _lambda_.17
$region0: #{_lambda_.17}
  #allocation0 [shape = 'u32[]', space=smem, size = 0x4, offset = 0x4, fixed_abs, tag = 'smem constant byte address 0x4 - core index']
  #allocation1 [shape = 'u32[144,128]{1,0:T(1,128)}', space=vmem, size = 0x12000, scoped, tag = 'internal scratch']
  %s0 = inlined_call_operand.vmem [shape: f32[8,4,16,8], index: 0, kind: input, shape index: {}]
  %s1 = inlined_call_operand.vmem [shape: f32[8,4,16,8], index: 1, kind: input, shape index: {}]
  %s2 = inlined_call_operand.vmem [shape: f32[8,4,16,8], index: 2, kind: input, shape index: {}]
  %s3 = inlined_call_operand.vmem [shape: f32[4,16,16], index: 3, kind: input, shape index: {}]
  %s4 = inlined_call_operand.vmem [shape: f32[4,16,16], index: 4, kind: input, shape index: {}]
  %s5 = inlined_call_operand.vmem [shape: f32[8,4,16,8], index: 5, kind: output, shape index: {}]
  %s6 = sld [smem:[#allocation0]]
  $region53: #{_lambda_.17} parent=0
    _
  %s8 = ssub.s32 1, %s6
  %s9 = scalar_select 0, %s8, %s6
  loop: start=0, step=1, limit=10
  $region2: #{_lambda_.17} parent=0 // loop_pre_header
    _
  $region3: #{_lambda_.17} parent=0 // loop_header
    %s11 = sphi 0, %s15
    %p12 = scmp.ge.s32.totalorder %s11, 10
    %s21 = sphi 0, %s23
    %s24 = sphi 0, %s21
    %s25 = sphi 0, %s24
    %s41 = sphi 0, %s25
    %s47 = sphi 0, %s49
    %s50 = sphi 0, %s47
    %s51 = sphi 0, %s50
    %s67 = sphi 0, %s51
    %s73 = sphi 0, %s75
    %s76 = sphi 0, %s73
    %s77 = sphi 0, %s76
    %s93 = sphi 0, %s77
    %s97 = sphi 0, %s97
    %s99 = sphi 0, %s97
    %s100 = sphi 0, %s99
    %s114 = sphi 0, %s100
    %s144 = sphi 0, %s146
    %s147 = sphi 0, %s144
    %s148 = sphi 0, %s147
    %s164 = sphi 0, %s148
    %s170 = sphi 0, %s172
    %s173 = sphi 0, %s170
    %s174 = sphi 0, %s173
    %s190 = sphi 0, %s174
  $region4: #{_lambda_.17} parent=0 // loop_header_branch
    %14 = sbr.rel (%p12) target = $region8
  $region5: #{_lambda_.17} parent=0 // loop_body
    %s16 = ssub.s32 %s11, 1
    %s17 = ssub.s32 %s11, 2
    %s18 = sadd.s32 %s11, 1
    %s19 = ssub.s32 %s11, %s18
    %p20 = scmp.eq.s32.totalorder %s19, 0
    %s22 = sadd.s32 %s21, 1
    %s23 = scalar_select %p20, %s21, %s22
    %p26 = pneg %p20
    %p27 = scmp.eq.s32.totalorder %s11, 7
    %p28 = por %p26, %p27
    %p29 = scmp.ne.s32.totalorder %s21, %s24
    %p30 = scmp.eq.s32.totalorder %s11, 0
    %p31 = por %p29, %p30
    %p32 = scmp.ne.s32.totalorder %s21, %s24
    %p33 = scmp.eq.s32.totalorder %s16, 7
    %p34 = por %p32, %p33
    %p35 = scmp.ne.s32.totalorder %s24, %s25
    %p36 = scmp.eq.s32.totalorder %s16, 0
    %p37 = por %p35, %p36
    %p38 = scmp.ne.s32.totalorder %s24, %s25
    %p39 = scmp.eq.s32.totalorder %s17, 7
    %p40 = por %p38, %p39
    %p42 = scmp.ne.s32.totalorder %s25, %s41
    %p43 = scmp.eq.s32.totalorder %s17, 0
    %p44 = por %p42, %p43
    %s45 = ssub.s32 %s11, %s18
    %p46 = scmp.eq.s32.totalorder %s45, 0
    %s48 = sadd.s32 %s47, 1
    %s49 = scalar_select %p46, %s47, %s48
    %p52 = pneg %p46
    %p53 = scmp.eq.s32.totalorder %s11, 7
    %p54 = por %p52, %p53
    %p55 = scmp.ne.s32.totalorder %s47, %s50
    %p56 = scmp.eq.s32.totalorder %s11, 0
    %p57 = por %p55, %p56
    %p58 = scmp.ne.s32.totalorder %s47, %s50
    %p59 = scmp.eq.s32.totalorder %s16, 7
    %p60 = por %p58, %p59
    %p61 = scmp.ne.s32.totalorder %s50, %s51
    %p62 = scmp.eq.s32.totalorder %s16, 0
    %p63 = por %p61, %p62
    %p64 = scmp.ne.s32.totalorder %s50, %s51
    %p65 = scmp.eq.s32.totalorder %s17, 7
    %p66 = por %p64, %p65
    %p68 = scmp.ne.s32.totalorder %s51, %s67
    %p69 = scmp.eq.s32.totalorder %s17, 0
    %p70 = por %p68, %p69
    %s71 = ssub.s32 %s11, %s18
    %p72 = scmp.eq.s32.totalorder %s71, 0
    %s74 = sadd.s32 %s73, 1
    %s75 = scalar_select %p72, %s73, %s74
    %p78 = pneg %p72
    %p79 = scmp.eq.s32.totalorder %s11, 7
    %p80 = por %p78, %p79
    %p81 = scmp.ne.s32.totalorder %s73, %s76
    %p82 = scmp.eq.s32.totalorder %s11, 0
    %p83 = por %p81, %p82
    %p84 = scmp.ne.s32.totalorder %s73, %s76
    %p85 = scmp.eq.s32.totalorder %s16, 7
    %p86 = por %p84, %p85
    %p87 = scmp.ne.s32.totalorder %s76, %s77
    %p88 = scmp.eq.s32.totalorder %s16, 0
    %p89 = por %p87, %p88
    %p90 = scmp.ne.s32.totalorder %s76, %s77
    %p91 = scmp.eq.s32.totalorder %s17, 7
    %p92 = por %p90, %p91
    %p94 = scmp.ne.s32.totalorder %s77, %s93
    %p95 = scmp.eq.s32.totalorder %s17, 0
    %p96 = por %p94, %p95
    %s98 = sadd.s32 %s97, 1
    %p101 = scmp.eq.s32.totalorder %s11, 7
    %p102 = scmp.ne.s32.totalorder %s97, %s99
    %p103 = scmp.eq.s32.totalorder %s11, 0
    %p104 = por %p102, %p103
    %p105 = scmp.ne.s32.totalorder %s97, %s99
    %p106 = scmp.eq.s32.totalorder %s16, 7
    %p107 = por %p105, %p106
    %p108 = scmp.ne.s32.totalorder %s99, %s100
    %p109 = scmp.eq.s32.totalorder %s16, 0
    %p110 = por %p108, %p109
    %p111 = scmp.ne.s32.totalorder %s99, %s100
    %p112 = scmp.eq.s32.totalorder %s17, 7
    %p113 = por %p111, %p112
    %p115 = scmp.ne.s32.totalorder %s100, %s114
    %p116 = scmp.eq.s32.totalorder %s17, 0
    %p117 = por %p115, %p116
    %p118 = scmp.lt.s32.totalorder %s11, 0
    %s119 = ssub.s32 0, %s11
    %s120 = scalar_select %p118, %s119, %s11
    %s121 = sand.u32 %s120, 3
    %s122 = ssub.s32 0, %s121
    %s123 = scalar_select %p118, %s122, %s121
    %p124 = scmp.ne.s32.totalorder %s123, 0
    %p125 = scmp.lt.s32.totalorder %s123, 0
    %p126 = pnand %p125, %p124
    %p127 = pneg %p126
    %s128 = sadd.s32 %s123, 4
    %s129 = scalar_select %p127, %s128, %s123
    %p130 = scmp.lt.s32.totalorder %s18, 0
    %s131 = ssub.s32 0, %s18
    %s132 = scalar_select %p130, %s131, %s18
    %s133 = sand.u32 %s132, 3
    %s134 = ssub.s32 0, %s133
    %s135 = scalar_select %p130, %s134, %s133
    %p136 = scmp.ne.s32.totalorder %s135, 0
    %p137 = scmp.lt.s32.totalorder %s135, 0
    %p138 = pnand %p137, %p136
    %p139 = pneg %p138
    %s140 = sadd.s32 %s135, 4
    %s141 = scalar_select %p139, %s140, %s135
    %s142 = ssub.s32 %s129, %s141
    %p143 = scmp.eq.s32.totalorder %s142, 0
    %s145 = sadd.s32 %s144, 1
    %s146 = scalar_select %p143, %s144, %s145
    %p149 = pneg %p143
    %p150 = scmp.eq.s32.totalorder %s11, 7
    %p151 = por %p149, %p150
    %p152 = scmp.ne.s32.totalorder %s144, %s147
    %p153 = scmp.eq.s32.totalorder %s11, 0
    %p154 = por %p152, %p153
    %p155 = scmp.ne.s32.totalorder %s144, %s147
    %p156 = scmp.eq.s32.totalorder %s16, 7
    %p157 = por %p155, %p156
    %p158 = scmp.ne.s32.totalorder %s147, %s148
    %p159 = scmp.eq.s32.totalorder %s16, 0
    %p160 = por %p158, %p159
    %p161 = scmp.ne.s32.totalorder %s147, %s148
    %p162 = scmp.eq.s32.totalorder %s17, 7
    %p163 = por %p161, %p162
    %p165 = scmp.ne.s32.totalorder %s148, %s164
    %p166 = scmp.eq.s32.totalorder %s17, 0
    %p167 = por %p165, %p166
    %s168 = ssub.s32 %s11, %s18
    %p169 = scmp.eq.s32.totalorder %s168, 0
    %s171 = sadd.s32 %s170, 1
    %s172 = scalar_select %p169, %s170, %s171
    %p175 = pneg %p169
    %p176 = scmp.eq.s32.totalorder %s11, 7
    %p177 = por %p175, %p176
    %p178 = scmp.ne.s32.totalorder %s170, %s173
    %p179 = scmp.eq.s32.totalorder %s11, 0
    %p180 = por %p178, %p179
    %p181 = scmp.ne.s32.totalorder %s170, %s173
    %p182 = scmp.eq.s32.totalorder %s16, 7
    %p183 = por %p181, %p182
    %p184 = scmp.ne.s32.totalorder %s173, %s174
    %p185 = scmp.eq.s32.totalorder %s16, 0
    %p186 = por %p184, %p185
    %p187 = scmp.ne.s32.totalorder %s173, %s174
    %p188 = scmp.eq.s32.totalorder %s17, 7
    %p189 = por %p187, %p188
    %p191 = scmp.ne.s32.totalorder %s174, %s190
    %p192 = scmp.eq.s32.totalorder %s17, 0
    %p193 = por %p191, %p192
    %p194 = scmp.le.s32.totalorder 1, %s11
    %p195 = scmp.lt.s32.totalorder %s11, 9
    %p196 = pnand %p194, %p195
    %p197 = pneg %p196
    // Predicated region
    $region9: #{_lambda_.17} parent=5 // pred_check
      _
    $region10: #{_lambda_.17} parent=5 // pred_check_branch
      %199 = sbr.rel (%p196) target = $region12
    $region11: #{_lambda_.17} parent=5 // pred_region
      %s200 = ssub.s32 %s11, 1
      // Predicated region
      $region13: #{_lambda_.17} parent=11 // pred_check
        %p201 = pneg %p110
      $region14: #{_lambda_.17} parent=11 // pred_check_branch
        %203 = sbr.rel (%p201) target = $region16
      $region15: #{_lambda_.17} parent=11 // pred_region
        _
      $region16: #{_lambda_.17} parent=11 // pred_fallthru
        _
    $region12: #{_lambda_.17} parent=5 // pred_fallthru
      _
    %p204 = scmp.lt.s32.totalorder %s11, 8
    // Predicated region
    $region17: #{_lambda_.17} parent=5 // pred_check
      %p205 = pneg %p204
    $region18: #{_lambda_.17} parent=5 // pred_check_branch
      %207 = sbr.rel (%p205) target = $region20
    $region19: #{_lambda_.17} parent=5 // pred_region
      // Predicated region
      $region21: #{_lambda_.17} parent=19 // pred_check
        %p208 = pneg %p31
      $region22: #{_lambda_.17} parent=19 // pred_check_branch
        %210 = sbr.rel (%p208) target = $region24
      $region23: #{_lambda_.17} parent=19 // pred_region
        %p211 = scmp.lt.s32.totalorder %s11, 7
        %s212 = scalar_select %p211, %s11, 7
        %s213 = smul.addr %s212, 8
        %s214 = smul.addr %s213, 8
        %s215 = scalar_lea.vmem %s0, %s214
      $region24: #{_lambda_.17} parent=19 // pred_fallthru
        _
      // Predicated region
      $region25: #{_lambda_.17} parent=19 // pred_check
        %p216 = pneg %p57
      $region26: #{_lambda_.17} parent=19 // pred_check_branch
        %218 = sbr.rel (%p216) target = $region28
      $region27: #{_lambda_.17} parent=19 // pred_region
        %p219 = scmp.lt.s32.totalorder %s11, 7
        %s220 = scalar_select %p219, %s11, 7
        %s221 = smul.addr %s220, 8
        %s222 = smul.addr %s221, 8
        %s223 = scalar_lea.vmem %s1, %s222
      $region28: #{_lambda_.17} parent=19 // pred_fallthru
        _
      // Predicated region
      $region29: #{_lambda_.17} parent=19 // pred_check
        %p224 = pneg %p83
      $region30: #{_lambda_.17} parent=19 // pred_check_branch
        %226 = sbr.rel (%p224) target = $region32
      $region31: #{_lambda_.17} parent=19 // pred_region
        %p227 = scmp.lt.s32.totalorder %s11, 7
        %s228 = scalar_select %p227, %s11, 7
        %s229 = smul.addr %s228, 8
        %s230 = smul.addr %s229, 8
        %s231 = scalar_lea.vmem %s2, %s230
      $region32: #{_lambda_.17} parent=19 // pred_fallthru
        _
      // Predicated region
      $region33: #{_lambda_.17} parent=19 // pred_check
        %p232 = pneg %p154
      $region34: #{_lambda_.17} parent=19 // pred_check_branch
        %234 = sbr.rel (%p232) target = $region36
      $region35: #{_lambda_.17} parent=19 // pred_region
        %p235 = scmp.lt.s32.totalorder %s11, 0
        %s236 = ssub.s32 0, %s11
        %s237 = scalar_select %p235, %s236, %s11
        %s238 = sand.u32 %s237, 3
        %s239 = ssub.s32 0, %s238
        %s240 = scalar_select %p235, %s239, %s238
        %p241 = scmp.ne.s32.totalorder %s240, 0
        %p242 = scmp.lt.s32.totalorder %s240, 0
        %p243 = pnand %p242, %p241
        %p244 = pneg %p243
        %s245 = sadd.s32 %s240, 4
        %s246 = scalar_select %p244, %s245, %s240
        %p247 = scmp.lt.s32.totalorder %s246, 3
        %s248 = scalar_select %p247, %s246, 3
        %s249 = smul.addr %s248, 2
        %s250 = smul.addr %s249, 8
        %s251 = scalar_lea.vmem %s4, %s250
        %p252 = scmp.lt.s32.totalorder %s11, 0
        %s253 = ssub.s32 0, %s11
        %s254 = scalar_select %p252, %s253, %s11
        %s255 = sand.u32 %s254, 3
        %s256 = ssub.s32 0, %s255
        %s257 = scalar_select %p252, %s256, %s255
        %p258 = scmp.ne.s32.totalorder %s257, 0
        %p259 = scmp.lt.s32.totalorder %s257, 0
        %p260 = pnand %p259, %p258
        %p261 = pneg %p260
        %s262 = sadd.s32 %s257, 4
        %s263 = scalar_select %p261, %s262, %s257
      $region36: #{_lambda_.17} parent=19 // pred_fallthru
        _
    $region20: #{_lambda_.17} parent=5 // pred_fallthru
      _
    %p264 = scmp.le.s32.totalorder 1, %s11
    %p265 = scmp.lt.s32.totalorder %s11, 9
    %p266 = pnand %p264, %p265
    %p267 = pneg %p266
    // Predicated region
    $region37: #{_lambda_.17} parent=5 // pred_check
      _
    $region38: #{_lambda_.17} parent=5 // pred_check_branch
      %269 = sbr.rel (%p266) target = $region40
    $region39: #{_lambda_.17} parent=5 // pred_region
      %s270 = ssub.s32 %s11, 1
      %p271 = scmp.lt.s32.totalorder %s16, 7
      %s272 = scalar_select %p271, %s16, 7
      %s273 = smul.addr %s272, 8
      %s274 = smul.addr %s273, 8
      %s275 = scalar_lea.vmem %s0, %s274
      %p276 = pneg %p37
      %p277 = pneg %p34
      %p278 = scmp.lt.s32.totalorder %s16, 7
      %s279 = scalar_select %p278, %s16, 7
      %s280 = smul.addr %s279, 8
      %s281 = smul.addr %s280, 8
      %s282 = scalar_lea.vmem %s1, %s281
      %p283 = pneg %p63
      %p284 = pneg %p60
      %p285 = scmp.lt.s32.totalorder %s16, 7
      %s286 = scalar_select %p285, %s16, 7
      %s287 = smul.addr %s286, 8
      %s288 = smul.addr %s287, 8
      %s289 = scalar_lea.vmem %s2, %s288
      %p290 = pneg %p89
      %p291 = pneg %p86
      %p292 = pneg %p110
      %p293 = pneg %p107
      %p294 = scmp.lt.s32.totalorder %s16, 0
      %s295 = ssub.s32 0, %s16
      %s296 = scalar_select %p294, %s295, %s16
      %s297 = sand.u32 %s296, 3
      %s298 = ssub.s32 0, %s297
      %s299 = scalar_select %p294, %s298, %s297
      %p300 = scmp.ne.s32.totalorder %s299, 0
      %p301 = scmp.lt.s32.totalorder %s299, 0
      %p302 = pnand %p301, %p300
      %p303 = pneg %p302
      %s304 = sadd.s32 %s299, 4
      %s305 = scalar_select %p303, %s304, %s299
      %p306 = scmp.lt.s32.totalorder %s305, 3
      %s307 = scalar_select %p306, %s305, 3
      %s308 = smul.addr %s307, 2
      %s309 = smul.addr %s308, 8
      %s310 = scalar_lea.vmem %s4, %s309
      %p311 = pneg %p160
      %p312 = pneg %p157
      %p313 = pneg %p186
      %p314 = pneg %p183
      %p315 = scmp.lt.s32.totalorder %s16, 7
      %s316 = scalar_select %p315, %s16, 7
      %s317 = smul.addr %s316, 8
      %s318 = smul.addr %s317, 8
      %s319 = scalar_lea.vmem %s5, %s318
      %p320 = scmp.lt.s32.totalorder %s16, 7
      %s321 = scalar_select %p320, %s16, 7
      %s322 = smul.addr %s321, 8
      %s323 = smul.addr %s322, 8
      %s324 = scalar_lea.vmem %s0, %s323
      %p325 = scmp.lt.s32.totalorder %s16, 7
      %s326 = scalar_select %p325, %s16, 7
      %s327 = smul.addr %s326, 8
      %s328 = smul.addr %s327, 8
      %s329 = scalar_lea.vmem %s1, %s328
      %p330 = scmp.lt.s32.totalorder %s16, 7
      %s331 = scalar_select %p330, %s16, 7
      %s332 = smul.addr %s331, 8
      %s333 = smul.addr %s332, 8
      %s334 = scalar_lea.vmem %s2, %s333
      %p335 = scmp.lt.s32.totalorder %s16, 0
      %s336 = ssub.s32 0, %s16
      %s337 = scalar_select %p335, %s336, %s16
      %s338 = sand.u32 %s337, 3
      %s339 = ssub.s32 0, %s338
      %s340 = scalar_select %p335, %s339, %s338
      %p341 = scmp.ne.s32.totalorder %s340, 0
      %p342 = scmp.lt.s32.totalorder %s340, 0
      %p343 = pnand %p342, %p341
      %p344 = pneg %p343
      %s345 = sadd.s32 %s340, 4
      %s346 = scalar_select %p344, %s345, %s340
      %p347 = scmp.lt.s32.totalorder %s346, 3
      %s348 = scalar_select %p347, %s346, 3
      %s349 = smul.addr %s348, 2
      %s350 = smul.addr %s349, 8
      %s351 = scalar_lea.vmem %s4, %s350
      %p352 = scmp.lt.s32.totalorder %s16, 0
      %s353 = ssub.s32 0, %s16
      %s354 = scalar_select %p352, %s353, %s16
      %s355 = sand.u32 %s354, 3
      %s356 = ssub.s32 0, %s355
      %s357 = scalar_select %p352, %s356, %s355
      %p358 = scmp.ne.s32.totalorder %s357, 0
      %p359 = scmp.lt.s32.totalorder %s357, 0
      %p360 = pnand %p359, %p358
      %p361 = pneg %p360
      %s362 = sadd.s32 %s357, 4
      %s363 = scalar_select %p361, %s362, %s357
      %p364 = scmp.lt.s32.totalorder %s16, 7
      %s365 = scalar_select %p364, %s16, 7
      %s366 = smul.addr %s365, 8
      %s367 = smul.addr %s366, 8
      %s368 = scalar_lea.vmem %s5, %s367
      %v369 = vld [vmem:[%s324] sm:$0xff]
      %v370 = vld [vmem:[%s324 + $0x8] sm:$0xff]
      %v371 = vld [vmem:[%s324 + $0x10] sm:$0xff]
      %v372 = vld [vmem:[%s324 + $0x18] sm:$0xff]
      %v373 = vld [vmem:[%s324 + $0x20] sm:$0xff]
      %v374 = vld [vmem:[%s324 + $0x28] sm:$0xff]
      %v375 = vld [vmem:[%s324 + $0x30] sm:$0xff]
      %v376 = vld [vmem:[%s324 + $0x38] sm:$0xff]
      %v377 = vmul.f32 %v369, 0.35355338
      %v378 = vmul.f32 %v370, 0.35355338
      %v379 = vmul.f32 %v371, 0.35355338
      %v380 = vmul.f32 %v372, 0.35355338
      %v381 = vmul.f32 %v373, 0.35355338
      %v382 = vmul.f32 %v374, 0.35355338
      %v383 = vmul.f32 %v375, 0.35355338
      %v384 = vmul.f32 %v376, 0.35355338
      %v385 = vld [vmem:[%s329] sm:$0xff]
      %v386 = vld [vmem:[%s329 + $0x8] sm:$0xff]
      %v387 = vld [vmem:[%s329 + $0x10] sm:$0xff]
      %v388 = vld [vmem:[%s329 + $0x18] sm:$0xff]
      %v389 = vld [vmem:[%s329 + $0x20] sm:$0xff]
      %v390 = vld [vmem:[%s329 + $0x28] sm:$0xff]
      %v391 = vld [vmem:[%s329 + $0x30] sm:$0xff]
      %v392 = vld [vmem:[%s329 + $0x38] sm:$0xff]
      %v393 = vld [vmem:[%s334] sm:$0xff]
      %v394 = vld [vmem:[%s334 + $0x8] sm:$0xff]
      %v395 = vld [vmem:[%s334 + $0x10] sm:$0xff]
      %v396 = vld [vmem:[%s334 + $0x18] sm:$0xff]
      %v397 = vld [vmem:[%s334 + $0x20] sm:$0xff]
      %v398 = vld [vmem:[%s334 + $0x28] sm:$0xff]
      %v399 = vld [vmem:[%s334 + $0x30] sm:$0xff]
      %v400 = vld [vmem:[%s334 + $0x38] sm:$0xff]
      %v401 = vld [vmem:[%s3] sm:$0xff]
      %v402 = vld [vmem:[%s3 + $0x8] sm:$0xff]
      %v403 = vld [vmem:[%s3 + $0x10] sm:$0xff]
      %v404 = vld [vmem:[%s3 + $0x18] sm:$0xff]
      %v405 = vld [vmem:[%s3 + $0x20] sm:$0xff]
      %v406 = vld [vmem:[%s3 + $0x28] sm:$0xff]
      %v407 = vld [vmem:[%s3 + $0x30] sm:$0xff]
      %v408 = vld [vmem:[%s3 + $0x38] sm:$0xff]
      %vm409 = vcmask 64512
      %v411 = vsel %vm409, %v377, 0
      %v414 = vsel %vm409, %v378, 0
      %v417 = vsel %vm409, %v385, 0
      %v420 = vsel %vm409, %v386, 0
      %422 = vmatprep.subr.mxu0 0.0
      %423 = vmatpush1.xpose.msra.mxu0 %v417
      %424 = vmatprep.subr.mxu0 0.0
      %425 = vmatpush1.xpose.msra.mxu0 %v420
      %426 = vmatprep.subr.mxu0 0.0
      %427 = vmatpush1.xpose.msra.mxu0 0.0
      %428 = vmatprep.subr.mxu0 0.0
      %429 = vmatpush1.xpose.msra.mxu0 0.0
      %430 = vmatprep.subr.mxu0 0.0
      %431 = vmatpush1.xpose.msra.mxu0 0.0
      %432 = vmatprep.subr.mxu0 0.0
      %433 = vmatpush1.xpose.msra.mxu0 0.0
      %434 = vmatprep.subr.mxu0 0.0
      %435 = vmatpush1.xpose.msra.mxu0 0.0
      %436 = vmatprep.subr.mxu0 0.0
      %437 = vmatpush1.xpose.msra.mxu0 0.0
      %438 = vmatprep.subr.mxu0 0.0
      %439 = vmatpush1.xpose.msra.mxu0 0.0
      %440 = vmatprep.subr.mxu0 0.0
      %441 = vmatpush1.xpose.msra.mxu0 0.0
      %442 = vmatprep.subr.mxu0 0.0
      %443 = vmatpush1.xpose.msra.mxu0 0.0
      %444 = vmatprep.subr.mxu0 0.0
      %445 = vmatpush1.xpose.msra.mxu0 0.0
      %446 = vmatprep.subr.mxu0 0.0
      %447 = vmatpush1.xpose.msra.mxu0 0.0
      %448 = vmatprep.subr.mxu0 0.0
      %449 = vmatpush1.xpose.msra.mxu0 0.0
      %450 = vmatprep.subr.mxu0 0.0
      %451 = vmatpush1.xpose.msra.mxu0 0.0
      %452 = vmatprep.subr.mxu0 0.0
      %453 = vmatpush1.xpose.msra.mxu0 0.0
      %454 = vmatprep.subr.mxu0 0.0
      %455 = vmatpush1.xpose.msra.mxu0 0.0
      %456 = vmatprep.subr.mxu0 0.0
      %457 = vmatpush1.xpose.msra.mxu0 0.0
      %458 = vmatprep.subr.mxu0 0.0
      %459 = vmatpush1.xpose.msra.mxu0 0.0
      %460 = vmatprep.subr.mxu0 0.0
      %461 = vmatpush1.xpose.msra.mxu0 0.0
      %462 = vmatprep.subr.mxu0 0.0
      %463 = vmatpush1.xpose.msra.mxu0 0.0
      %464 = vmatprep.subr.mxu0 0.0
      %465 = vmatpush1.xpose.msra.mxu0 0.0
      %466 = vmatprep.subr.mxu0 0.0
      %467 = vmatpush1.xpose.msra.mxu0 0.0
      %468 = vmatprep.subr.mxu0 0.0
      %469 = vmatpush1.xpose.msra.mxu0 0.0
      %470 = vmatprep.subr.mxu0 0.0
      %471 = vmatpush1.xpose.msra.mxu0 0.0
      %472 = vmatprep.subr.mxu0 0.0
      %473 = vmatpush1.xpose.msra.mxu0 0.0
      %474 = vmatprep.subr.mxu0 0.0
      %475 = vmatpush1.xpose.msra.mxu0 0.0
      %476 = vmatprep.subr.mxu0 0.0
      %477 = vmatpush1.xpose.msra.mxu0 0.0
      %478 = vmatprep.subr.mxu0 0.0
      %479 = vmatpush1.xpose.msra.mxu0 0.0
      %480 = vmatprep.subr.mxu0 0.0
      %481 = vmatpush1.xpose.msra.mxu0 0.0
      %482 = vmatprep.subr.mxu0 0.0
      %483 = vmatpush1.xpose.msra.mxu0 0.0
      %484 = vmatprep.subr.mxu0 0.0
      %485 = vmatpush1.xpose.msra.mxu0 0.0
      %486 = vmatprep.mubr.f32.mxu0 0.0
      %487 = vmatmul.mubr.f32.gmra.mrb[0].mxu0 %v411
      %v488 = vpop.f32.mrb[0].mxu0
      %v489 = vadd.f32 %v401, %v488
      %v490 = vpop.f32.mrb[0].mxu0
      %491 = vmatprep.mubr.f32.mxu0 0.0
      %492 = vmatmul.mubr.f32.gmra.mrb[0].mxu0 %v414
      %v493 = vpop.f32.mrb[0].mxu0
      %v494 = vadd.f32 %v402, %v493
      %v495 = vpop.f32.mrb[0].mxu0
      %496 = vdwg.mxu0
      %v498 = vsel %vm409, %v379, 0
      %v501 = vsel %vm409, %v380, 0
      %v504 = vsel %vm409, %v387, 0
      %v507 = vsel %vm409, %v388, 0
      %509 = vmatprep.subr.mxu0 0.0
      %510 = vmatpush1.xpose.msra.mxu0 %v504
      %511 = vmatprep.subr.mxu0 0.0
      %512 = vmatpush1.xpose.msra.mxu0 %v507
      %513 = vmatprep.subr.mxu0 0.0
      %514 = vmatpush1.xpose.msra.mxu0 0.0
      %515 = vmatprep.subr.mxu0 0.0
      %516 = vmatpush1.xpose.msra.mxu0 0.0
      %517 = vmatprep.subr.mxu0 0.0
      %518 = vmatpush1.xpose.msra.mxu0 0.0
      %519 = vmatprep.subr.mxu0 0.0
      %520 = vmatpush1.xpose.msra.mxu0 0.0
      %521 = vmatprep.subr.mxu0 0.0
      %522 = vmatpush1.xpose.msra.mxu0 0.0
      %523 = vmatprep.subr.mxu0 0.0
      %524 = vmatpush1.xpose.msra.mxu0 0.0
      %525 = vmatprep.subr.mxu0 0.0
      %526 = vmatpush1.xpose.msra.mxu0 0.0
      %527 = vmatprep.subr.mxu0 0.0
      %528 = vmatpush1.xpose.msra.mxu0 0.0
      %529 = vmatprep.subr.mxu0 0.0
      %530 = vmatpush1.xpose.msra.mxu0 0.0
      %531 = vmatprep.subr.mxu0 0.0
      %532 = vmatpush1.xpose.msra.mxu0 0.0
      %533 = vmatprep.subr.mxu0 0.0
      %534 = vmatpush1.xpose.msra.mxu0 0.0
      %535 = vmatprep.subr.mxu0 0.0
      %536 = vmatpush1.xpose.msra.mxu0 0.0
      %537 = vmatprep.subr.mxu0 0.0
      %538 = vmatpush1.xpose.msra.mxu0 0.0
      %539 = vmatprep.subr.mxu0 0.0
      %540 = vmatpush1.xpose.msra.mxu0 0.0
      %541 = vmatprep.subr.mxu0 0.0
      %542 = vmatpush1.xpose.msra.mxu0 0.0
      %543 = vmatprep.subr.mxu0 0.0
      %544 = vmatpush1.xpose.msra.mxu0 0.0
      %545 = vmatprep.subr.mxu0 0.0
      %546 = vmatpush1.xpose.msra.mxu0 0.0
      %547 = vmatprep.subr.mxu0 0.0
      %548 = vmatpush1.xpose.msra.mxu0 0.0
      %549 = vmatprep.subr.mxu0 0.0
      %550 = vmatpush1.xpose.msra.mxu0 0.0
      %551 = vmatprep.subr.mxu0 0.0
      %552 = vmatpush1.xpose.msra.mxu0 0.0
      %553 = vmatprep.subr.mxu0 0.0
      %554 = vmatpush1.xpose.msra.mxu0 0.0
      %555 = vmatprep.subr.mxu0 0.0
      %556 = vmatpush1.xpose.msra.mxu0 0.0
      %557 = vmatprep.subr.mxu0 0.0
      %558 = vmatpush1.xpose.msra.mxu0 0.0
      %559 = vmatprep.subr.mxu0 0.0
      %560 = vmatpush1.xpose.msra.mxu0 0.0
      %561 = vmatprep.subr.mxu0 0.0
      %562 = vmatpush1.xpose.msra.mxu0 0.0
      %563 = vmatprep.subr.mxu0 0.0
      %564 = vmatpush1.xpose.msra.mxu0 0.0
      %565 = vmatprep.subr.mxu0 0.0
      %566 = vmatpush1.xpose.msra.mxu0 0.0
      %567 = vmatprep.subr.mxu0 0.0
      %568 = vmatpush1.xpose.msra.mxu0 0.0
      %569 = vmatprep.subr.mxu0 0.0
      %570 = vmatpush1.xpose.msra.mxu0 0.0
      %571 = vmatprep.subr.mxu0 0.0
      %572 = vmatpush1.xpose.msra.mxu0 0.0
      %573 = vmatprep.mubr.f32.mxu0 0.0
      %574 = vmatmul.mubr.f32.gmra.mrb[0].mxu0 %v498
      %v575 = vpop.f32.mrb[0].mxu0
      %v576 = vadd.f32 %v403, %v575
      %v577 = vpop.f32.mrb[0].mxu0
      %578 = vmatprep.mubr.f32.mxu0 0.0
      %579 = vmatmul.mubr.f32.gmra.mrb[0].mxu0 %v501
      %v580 = vpop.f32.mrb[0].mxu0
      %v581 = vadd.f32 %v404, %v580
      %v582 = vpop.f32.mrb[0].mxu0
      %583 = vdwg.mxu0
      %v585 = vsel %vm409, %v381, 0
      %v588 = vsel %vm409, %v382, 0
      %v591 = vsel %vm409, %v389, 0
      %v594 = vsel %vm409, %v390, 0
      %596 = vmatprep.subr.mxu0 0.0
      %597 = vmatpush1.xpose.msra.mxu0 %v591
      %598 = vmatprep.subr.mxu0 0.0
      %599 = vmatpush1.xpose.msra.mxu0 %v594
      %600 = vmatprep.subr.mxu0 0.0
      %601 = vmatpush1.xpose.msra.mxu0 0.0
      %602 = vmatprep.subr.mxu0 0.0
      %603 = vmatpush1.xpose.msra.mxu0 0.0
      %604 = vmatprep.subr.mxu0 0.0
      %605 = vmatpush1.xpose.msra.mxu0 0.0
      %606 = vmatprep.subr.mxu0 0.0
      %607 = vmatpush1.xpose.msra.mxu0 0.0
      %608 = vmatprep.subr.mxu0 0.0
      %609 = vmatpush1.xpose.msra.mxu0 0.0
      %610 = vmatprep.subr.mxu0 0.0
      %611 = vmatpush1.xpose.msra.mxu0 0.0
      %612 = vmatprep.subr.mxu0 0.0
      %613 = vmatpush1.xpose.msra.mxu0 0.0
      %614 = vmatprep.subr.mxu0 0.0
      %615 = vmatpush1.xpose.msra.mxu0 0.0
      %616 = vmatprep.subr.mxu0 0.0
      %617 = vmatpush1.xpose.msra.mxu0 0.0
      %618 = vmatprep.subr.mxu0 0.0
      %619 = vmatpush1.xpose.msra.mxu0 0.0
      %620 = vmatprep.subr.mxu0 0.0
      %621 = vmatpush1.xpose.msra.mxu0 0.0
      %622 = vmatprep.subr.mxu0 0.0
      %623 = vmatpush1.xpose.msra.mxu0 0.0
      %624 = vmatprep.subr.mxu0 0.0
      %625 = vmatpush1.xpose.msra.mxu0 0.0
      %626 = vmatprep.subr.mxu0 0.0
      %627 = vmatpush1.xpose.msra.mxu0 0.0
      %628 = vmatprep.subr.mxu0 0.0
      %629 = vmatpush1.xpose.msra.mxu0 0.0
      %630 = vmatprep.subr.mxu0 0.0
      %631 = vmatpush1.xpose.msra.mxu0 0.0
      %632 = vmatprep.subr.mxu0 0.0
      %633 = vmatpush1.xpose.msra.mxu0 0.0
      %634 = vmatprep.subr.mxu0 0.0
      %635 = vmatpush1.xpose.msra.mxu0 0.0
      %636 = vmatprep.subr.mxu0 0.0
      %637 = vmatpush1.xpose.msra.mxu0 0.0
      %638 = vmatprep.subr.mxu0 0.0
      %639 = vmatpush1.xpose.msra.mxu0 0.0
      %640 = vmatprep.subr.mxu0 0.0
      %641 = vmatpush1.xpose.msra.mxu0 0.0
      %642 = vmatprep.subr.mxu0 0.0
      %643 = vmatpush1.xpose.msra.mxu0 0.0
      %644 = vmatprep.subr.mxu0 0.0
      %645 = vmatpush1.xpose.msra.mxu0 0.0
      %646 = vmatprep.subr.mxu0 0.0
      %647 = vmatpush1.xpose.msra.mxu0 0.0
      %648 = vmatprep.subr.mxu0 0.0
      %649 = vmatpush1.xpose.msra.mxu0 0.0
      %650 = vmatprep.subr.mxu0 0.0
      %651 = vmatpush1.xpose.msra.mxu0 0.0
      %652 = vmatprep.subr.mxu0 0.0
      %653 = vmatpush1.xpose.msra.mxu0 0.0
      %654 = vmatprep.subr.mxu0 0.0
      %655 = vmatpush1.xpose.msra.mxu0 0.0
      %656 = vmatprep.subr.mxu0 0.0
      %657 = vmatpush1.xpose.msra.mxu0 0.0
      %658 = vmatprep.subr.mxu0 0.0
      %659 = vmatpush1.xpose.msra.mxu0 0.0
      %660 = vmatprep.mubr.f32.mxu0 0.0
      %661 = vmatmul.mubr.f32.gmra.mrb[0].mxu0 %v585
      %v662 = vpop.f32.mrb[0].mxu0
      %v663 = vadd.f32 %v405, %v662
      %v664 = vpop.f32.mrb[0].mxu0
      %665 = vmatprep.mubr.f32.mxu0 0.0
      %666 = vmatmul.mubr.f32.gmra.mrb[0].mxu0 %v588
      %v667 = vpop.f32.mrb[0].mxu0
      %v668 = vadd.f32 %v406, %v667
      %v669 = vpop.f32.mrb[0].mxu0
      %670 = vdwg.mxu0
      %v672 = vsel %vm409, %v383, 0
      %v675 = vsel %vm409, %v384, 0
      %v678 = vsel %vm409, %v391, 0
      %v681 = vsel %vm409, %v392, 0
      %683 = vmatprep.subr.mxu0 0.0
      %684 = vmatpush1.xpose.msra.mxu0 %v678
      %685 = vmatprep.subr.mxu0 0.0
      %686 = vmatpush1.xpose.msra.mxu0 %v681
      %687 = vmatprep.subr.mxu0 0.0
      %688 = vmatpush1.xpose.msra.mxu0 0.0
      %689 = vmatprep.subr.mxu0 0.0
      %690 = vmatpush1.xpose.msra.mxu0 0.0
      %691 = vmatprep.subr.mxu0 0.0
      %692 = vmatpush1.xpose.msra.mxu0 0.0
      %693 = vmatprep.subr.mxu0 0.0
      %694 = vmatpush1.xpose.msra.mxu0 0.0
      %695 = vmatprep.subr.mxu0 0.0
      %696 = vmatpush1.xpose.msra.mxu0 0.0
      %697 = vmatprep.subr.mxu0 0.0
      %698 = vmatpush1.xpose.msra.mxu0 0.0
      %699 = vmatprep.subr.mxu0 0.0
      %700 = vmatpush1.xpose.msra.mxu0 0.0
      %701 = vmatprep.subr.mxu0 0.0
      %702 = vmatpush1.xpose.msra.mxu0 0.0
      %703 = vmatprep.subr.mxu0 0.0
      %704 = vmatpush1.xpose.msra.mxu0 0.0
      %705 = vmatprep.subr.mxu0 0.0
      %706 = vmatpush1.xpose.msra.mxu0 0.0
      %707 = vmatprep.subr.mxu0 0.0
      %708 = vmatpush1.xpose.msra.mxu0 0.0
      %709 = vmatprep.subr.mxu0 0.0
      %710 = vmatpush1.xpose.msra.mxu0 0.0
      %711 = vmatprep.subr.mxu0 0.0
      %712 = vmatpush1.xpose.msra.mxu0 0.0
      %713 = vmatprep.subr.mxu0 0.0
      %714 = vmatpush1.xpose.msra.mxu0 0.0
      %715 = vmatprep.subr.mxu0 0.0
      %716 = vmatpush1.xpose.msra.mxu0 0.0
      %717 = vmatprep.subr.mxu0 0.0
      %718 = vmatpush1.xpose.msra.mxu0 0.0
      %719 = vmatprep.subr.mxu0 0.0
      %720 = vmatpush1.xpose.msra.mxu0 0.0
      %721 = vmatprep.subr.mxu0 0.0
      %722 = vmatpush1.xpose.msra.mxu0 0.0
      %723 = vmatprep.subr.mxu0 0.0
      %724 = vmatpush1.xpose.msra.mxu0 0.0
      %725 = vmatprep.subr.mxu0 0.0
      %726 = vmatpush1.xpose.msra.mxu0 0.0
      %727 = vmatprep.subr.mxu0 0.0
      %728 = vmatpush1.xpose.msra.mxu0 0.0
      %729 = vmatprep.subr.mxu0 0.0
      %730 = vmatpush1.xpose.msra.mxu0 0.0
      %731 = vmatprep.subr.mxu0 0.0
      %732 = vmatpush1.xpose.msra.mxu0 0.0
      %733 = vmatprep.subr.mxu0 0.0
      %734 = vmatpush1.xpose.msra.mxu0 0.0
      %735 = vmatprep.subr.mxu0 0.0
      %736 = vmatpush1.xpose.msra.mxu0 0.0
      %737 = vmatprep.subr.mxu0 0.0
      %738 = vmatpush1.xpose.msra.mxu0 0.0
      %739 = vmatprep.subr.mxu0 0.0
      %740 = vmatpush1.xpose.msra.mxu0 0.0
      %741 = vmatprep.subr.mxu0 0.0
      %742 = vmatpush1.xpose.msra.mxu0 0.0
      %743 = vmatprep.subr.mxu0 0.0
      %744 = vmatpush1.xpose.msra.mxu0 0.0
      %745 = vmatprep.subr.mxu0 0.0
      %746 = vmatpush1.xpose.msra.mxu0 0.0
      %747 = vmatprep.mubr.f32.mxu0 0.0
      %748 = vmatmul.mubr.f32.gmra.mrb[0].mxu0 %v672
      %v749 = vpop.f32.mrb[0].mxu0
      %v750 = vadd.f32 %v407, %v749
      %v751 = vpop.f32.mrb[0].mxu0
      %752 = vmatprep.mubr.f32.mxu0 0.0
      %753 = vmatmul.mubr.f32.gmra.mrb[0].mxu0 %v675
      %v754 = vpop.f32.mrb[0].mxu0
      %v755 = vadd.f32 %v408, %v754
      %v756 = vpop.f32.mrb[0].mxu0
      %757 = vdwg.mxu0
      %v758 = vld [vmem:[%s351] sm:$0xff]
      %v759 = vld [vmem:[%s351 + $0x8] sm:$0xff]
      %v760 = vadd.f32 %v489, %v758
      %v761 = vadd.f32 %v494, %v759
      %v762 = vadd.f32 %v576, %v758
      %v763 = vadd.f32 %v581, %v759
      %v764 = vadd.f32 %v663, %v758
      %v765 = vadd.f32 %v668, %v759
      %v766 = vadd.f32 %v750, %v758
      %v767 = vadd.f32 %v755, %v759
      %vm768 = vcmask 130048
      %v769 = vsel %vm768, %v760, -inf
      %770 = vmax.xlane.f32.xlu0 %v769
      %v771 = vpop.xlane.xlu0 %770
      %v772 = vsel %vm768, %v761, -inf
      %773 = vmax.xlane.f32.xlu0 %v772
      %v774 = vpop.xlane.xlu0 %773
      %v775 = vsel %vm768, %v762, -inf
      %776 = vmax.xlane.f32.xlu0 %v775
      %v777 = vpop.xlane.xlu0 %776
      %v778 = vsel %vm768, %v763, -inf
      %779 = vmax.xlane.f32.xlu0 %v778
      %v780 = vpop.xlane.xlu0 %779
      %v781 = vsel %vm768, %v764, -inf
      %782 = vmax.xlane.f32.xlu0 %v781
      %v783 = vpop.xlane.xlu0 %782
      %v784 = vsel %vm768, %v765, -inf
      %785 = vmax.xlane.f32.xlu0 %v784
      %v786 = vpop.xlane.xlu0 %785
      %v787 = vsel %vm768, %v766, -inf
      %788 = vmax.xlane.f32.xlu0 %v787
      %v789 = vpop.xlane.xlu0 %788
      %v790 = vsel %vm768, %v767, -inf
      %791 = vmax.xlane.f32.xlu0 %v790
      %v792 = vpop.xlane.xlu0 %791
      %v793 = vsub.f32 %v760, %v771
      %v794 = vsub.f32 %v761, %v774
      %v795 = vsub.f32 %v762, %v777
      %v796 = vsub.f32 %v763, %v780
      %v797 = vsub.f32 %v764, %v783
      %v798 = vsub.f32 %v765, %v786
      %v799 = vsub.f32 %v766, %v789
      %v800 = vsub.f32 %v767, %v792
      %v801 = vmul.f32 %v793, 1.442695
      %v802 = vpow.pop %v801
      %v803 = vmul.f32 %v794, 1.442695
      %v804 = vpow.pop %v803
      %v805 = vmul.f32 %v795, 1.442695
      %v806 = vpow.pop %v805
      %v807 = vmul.f32 %v796, 1.442695
      %v808 = vpow.pop %v807
      %v809 = vmul.f32 %v797, 1.442695
      %v810 = vpow.pop %v809
      %v811 = vmul.f32 %v798, 1.442695
      %v812 = vpow.pop %v811
      %v813 = vmul.f32 %v799, 1.442695
      %v814 = vpow.pop %v813
      %v815 = vmul.f32 %v800, 1.442695
      %v816 = vpow.pop %v815
      %v817 = vsel %vm768, %v802, 0.0
      %818 = vadd.xlane.f32.xlu0 %v817
      %v819 = vpop.xlane.xlu0 %818
      %v820 = vsel %vm768, %v804, 0.0
      %821 = vadd.xlane.f32.xlu0 %v820
      %v822 = vpop.xlane.xlu0 %821
      %v823 = vsel %vm768, %v806, 0.0
      %824 = vadd.xlane.f32.xlu0 %v823
      %v825 = vpop.xlane.xlu0 %824
      %v826 = vsel %vm768, %v808, 0.0
      %827 = vadd.xlane.f32.xlu0 %v826
      %v828 = vpop.xlane.xlu0 %827
      %v829 = vsel %vm768, %v810, 0.0
      %830 = vadd.xlane.f32.xlu0 %v829
      %v831 = vpop.xlane.xlu0 %830
      %v832 = vsel %vm768, %v812, 0.0
      %833 = vadd.xlane.f32.xlu0 %v832
      %v834 = vpop.xlane.xlu0 %833
      %v835 = vsel %vm768, %v814, 0.0
      %836 = vadd.xlane.f32.xlu0 %v835
      %v837 = vpop.xlane.xlu0 %836
      %v838 = vsel %vm768, %v816, 0.0
      %839 = vadd.xlane.f32.xlu0 %v838
      %v840 = vpop.xlane.xlu0 %839
      %v841 = vrcp.pop %v819
      %v842 = vmul.f32 %v802, %v841
      %v843 = vrcp.pop %v822
      %v844 = vmul.f32 %v804, %v843
      %v845 = vrcp.pop %v825
      %v846 = vmul.f32 %v806, %v845
      %v847 = vrcp.pop %v828
      %v848 = vmul.f32 %v808, %v847
      %v849 = vrcp.pop %v831
      %v850 = vmul.f32 %v810, %v849
      %v851 = vrcp.pop %v834
      %v852 = vmul.f32 %v812, %v851
      %v853 = vrcp.pop %v837
      %v854 = vmul.f32 %v814, %v853
      %v855 = vrcp.pop %v840
      %v856 = vmul.f32 %v816, %v855
      %v858 = vsel %vm768, %v842, 0
      %v861 = vsel %vm768, %v844, 0
      %863 = vmatprep.subr.mxu0 0.0
      %864 = vmatpush1.msra.mxu0 %v393
      %865 = vmatprep.subr.mxu0 0.0
      %866 = vmatpush1.msra.mxu0 %v394
      %867 = vmatprep.subr.mxu0 0.0
      %868 = vmatpush1.msra.mxu0 0.0
      %869 = vmatprep.subr.mxu0 0.0
      %870 = vmatpush1.msra.mxu0 0.0
      %871 = vmatprep.subr.mxu0 0.0
      %872 = vmatpush1.msra.mxu0 0.0
      %873 = vmatprep.subr.mxu0 0.0
      %874 = vmatpush1.msra.mxu0 0.0
      %875 = vmatprep.subr.mxu0 0.0
      %876 = vmatpush1.msra.mxu0 0.0
      %877 = vmatprep.subr.mxu0 0.0
      %878 = vmatpush1.msra.mxu0 0.0
      %879 = vmatprep.subr.mxu0 0.0
      %880 = vmatpush1.msra.mxu0 0.0
      %881 = vmatprep.subr.mxu0 0.0
      %882 = vmatpush1.msra.mxu0 0.0
      %883 = vmatprep.subr.mxu0 0.0
      %884 = vmatpush1.msra.mxu0 0.0
      %885 = vmatprep.subr.mxu0 0.0
      %886 = vmatpush1.msra.mxu0 0.0
      %887 = vmatprep.subr.mxu0 0.0
      %888 = vmatpush1.msra.mxu0 0.0
      %889 = vmatprep.subr.mxu0 0.0
      %890 = vmatpush1.msra.mxu0 0.0
      %891 = vmatprep.subr.mxu0 0.0
      %892 = vmatpush1.msra.mxu0 0.0
      %893 = vmatprep.subr.mxu0 0.0
      %894 = vmatpush1.msra.mxu0 0.0
      %895 = vmatprep.subr.mxu0 0.0
      %896 = vmatpush1.msra.mxu0 0.0
      %897 = vmatprep.subr.mxu0 0.0
      %898 = vmatpush1.msra.mxu0 0.0
      %899 = vmatprep.subr.mxu0 0.0
      %900 = vmatpush1.msra.mxu0 0.0
      %901 = vmatprep.subr.mxu0 0.0
      %902 = vmatpush1.msra.mxu0 0.0
      %903 = vmatprep.subr.mxu0 0.0
      %904 = vmatpush1.msra.mxu0 0.0
      %905 = vmatprep.subr.mxu0 0.0
      %906 = vmatpush1.msra.mxu0 0.0
      %907 = vmatprep.subr.mxu0 0.0
      %908 = vmatpush1.msra.mxu0 0.0
      %909 = vmatprep.subr.mxu0 0.0
      %910 = vmatpush1.msra.mxu0 0.0
      %911 = vmatprep.subr.mxu0 0.0
      %912 = vmatpush1.msra.mxu0 0.0
      %913 = vmatprep.subr.mxu0 0.0
      %914 = vmatpush1.msra.mxu0 0.0
      %915 = vmatprep.subr.mxu0 0.0
      %916 = vmatpush1.msra.mxu0 0.0
      %917 = vmatprep.subr.mxu0 0.0
      %918 = vmatpush1.msra.mxu0 0.0
      %919 = vmatprep.subr.mxu0 0.0
      %920 = vmatpush1.msra.mxu0 0.0
      %921 = vmatprep.subr.mxu0 0.0
      %922 = vmatpush1.msra.mxu0 0.0
      %923 = vmatprep.subr.mxu0 0.0
      %924 = vmatpush1.msra.mxu0 0.0
      %925 = vmatprep.subr.mxu0 0.0
      %926 = vmatpush1.msra.mxu0 0.0
      %927 = vmatprep.mubr.f32.mxu0 0.0
      %928 = vmatmul.mubr.f32.gmra.mrb[0].mxu0 %v858
      %v929 = vpop.f32.mrb[0].mxu0
      %v930 = vadd.f32 0.0, %v929
      %v931 = vpop.f32.mrb[0].mxu0
      %932 = vmatprep.mubr.f32.mxu0 0.0
      %933 = vmatmul.mubr.f32.gmra.mrb[0].mxu0 %v861
      %v934 = vpop.f32.mrb[0].mxu0
      %v935 = vadd.f32 0.0, %v934
      %v936 = vpop.f32.mrb[0].mxu0
      %937 = vdwg.mxu0
      %v939 = vsel %vm768, %v846, 0
      %v942 = vsel %vm768, %v848, 0
      %944 = vmatprep.subr.mxu0 0.0
      %945 = vmatpush1.msra.mxu0 %v395
      %946 = vmatprep.subr.mxu0 0.0
      %947 = vmatpush1.msra.mxu0 %v396
      %948 = vmatprep.subr.mxu0 0.0
      %949 = vmatpush1.msra.mxu0 0.0
      %950 = vmatprep.subr.mxu0 0.0
      %951 = vmatpush1.msra.mxu0 0.0
      %952 = vmatprep.subr.mxu0 0.0
      %953 = vmatpush1.msra.mxu0 0.0
      %954 = vmatprep.subr.mxu0 0.0
      %955 = vmatpush1.msra.mxu0 0.0
      %956 = vmatprep.subr.mxu0 0.0
      %957 = vmatpush1.msra.mxu0 0.0
      %958 = vmatprep.subr.mxu0 0.0
      %959 = vmatpush1.msra.mxu0 0.0
      %960 = vmatprep.subr.mxu0 0.0
      %961 = vmatpush1.msra.mxu0 0.0
      %962 = vmatprep.subr.mxu0 0.0
      %963 = vmatpush1.msra.mxu0 0.0
      %964 = vmatprep.subr.mxu0 0.0
      %965 = vmatpush1.msra.mxu0 0.0
      %966 = vmatprep.subr.mxu0 0.0
      %967 = vmatpush1.msra.mxu0 0.0
      %968 = vmatprep.subr.mxu0 0.0
      %969 = vmatpush1.msra.mxu0 0.0
      %970 = vmatprep.subr.mxu0 0.0
      %971 = vmatpush1.msra.mxu0 0.0
      %972 = vmatprep.subr.mxu0 0.0
      %973 = vmatpush1.msra.mxu0 0.0
      %974 = vmatprep.subr.mxu0 0.0
      %975 = vmatpush1.msra.mxu0 0.0
      %976 = vmatprep.subr.mxu0 0.0
      %977 = vmatpush1.msra.mxu0 0.0
      %978 = vmatprep.subr.mxu0 0.0
      %979 = vmatpush1.msra.mxu0 0.0
      %980 = vmatprep.subr.mxu0 0.0
      %981 = vmatpush1.msra.mxu0 0.0
      %982 = vmatprep.subr.mxu0 0.0
      %983 = vmatpush1.msra.mxu0 0.0
      %984 = vmatprep.subr.mxu0 0.0
      %985 = vmatpush1.msra.mxu0 0.0
      %986 = vmatprep.subr.mxu0 0.0
      %987 = vmatpush1.msra.mxu0 0.0
      %988 = vmatprep.subr.mxu0 0.0
      %989 = vmatpush1.msra.mxu0 0.0
      %990 = vmatprep.subr.mxu0 0.0
      %991 = vmatpush1.msra.mxu0 0.0
      %992 = vmatprep.subr.mxu0 0.0
      %993 = vmatpush1.msra.mxu0 0.0
      %994 = vmatprep.subr.mxu0 0.0
      %995 = vmatpush1.msra.mxu0 0.0
      %996 = vmatprep.subr.mxu0 0.0
      %997 = vmatpush1.msra.mxu0 0.0
      %998 = vmatprep.subr.mxu0 0.0
      %999 = vmatpush1.msra.mxu0 0.0
      %1000 = vmatprep.subr.mxu0 0.0
      %1001 = vmatpush1.msra.mxu0 0.0
      %1002 = vmatprep.subr.mxu0 0.0
      %1003 = vmatpush1.msra.mxu0 0.0
      %1004 = vmatprep.subr.mxu0 0.0
      %1005 = vmatpush1.msra.mxu0 0.0
      %1006 = vmatprep.subr.mxu0 0.0
      %1007 = vmatpush1.msra.mxu0 0.0
      %1008 = vmatprep.mubr.f32.mxu0 0.0
      %1009 = vmatmul.mubr.f32.gmra.mrb[0].mxu0 %v939
      %v1010 = vpop.f32.mrb[0].mxu0
      %v1011 = vadd.f32 0.0, %v1010
      %v1012 = vpop.f32.mrb[0].mxu0
      %1013 = vmatprep.mubr.f32.mxu0 0.0
      %1014 = vmatmul.mubr.f32.gmra.mrb[0].mxu0 %v942
      %v1015 = vpop.f32.mrb[0].mxu0
      %v1016 = vadd.f32 0.0, %v1015
      %v1017 = vpop.f32.mrb[0].mxu0
      %1018 = vdwg.mxu0
      %v1020 = vsel %vm768, %v850, 0
      %v1023 = vsel %vm768, %v852, 0
      %1025 = vmatprep.subr.mxu0 0.0
      %1026 = vmatpush1.msra.mxu0 %v397
      %1027 = vmatprep.subr.mxu0 0.0
      %1028 = vmatpush1.msra.mxu0 %v398
      %1029 = vmatprep.subr.mxu0 0.0
      %1030 = vmatpush1.msra.mxu0 0.0
      %1031 = vmatprep.subr.mxu0 0.0
      %1032 = vmatpush1.msra.mxu0 0.0
      %1033 = vmatprep.subr.mxu0 0.0
      %1034 = vmatpush1.msra.mxu0 0.0
      %1035 = vmatprep.subr.mxu0 0.0
      %1036 = vmatpush1.msra.mxu0 0.0
      %1037 = vmatprep.subr.mxu0 0.0
      %1038 = vmatpush1.msra.mxu0 0.0
      %1039 = vmatprep.subr.mxu0 0.0
      %1040 = vmatpush1.msra.mxu0 0.0
      %1041 = vmatprep.subr.mxu0 0.0
      %1042 = vmatpush1.msra.mxu0 0.0
      %1043 = vmatprep.subr.mxu0 0.0
      %1044 = vmatpush1.msra.mxu0 0.0
      %1045 = vmatprep.subr.mxu0 0.0
      %1046 = vmatpush1.msra.mxu0 0.0
      %1047 = vmatprep.subr.mxu0 0.0
      %1048 = vmatpush1.msra.mxu0 0.0
      %1049 = vmatprep.subr.mxu0 0.0
      %1050 = vmatpush1.msra.mxu0 0.0
      %1051 = vmatprep.subr.mxu0 0.0
      %1052 = vmatpush1.msra.mxu0 0.0
      %1053 = vmatprep.subr.mxu0 0.0
      %1054 = vmatpush1.msra.mxu0 0.0
      %1055 = vmatprep.subr.mxu0 0.0
      %1056 = vmatpush1.msra.mxu0 0.0
      %1057 = vmatprep.subr.mxu0 0.0
      %1058 = vmatpush1.msra.mxu0 0.0
      %1059 = vmatprep.subr.mxu0 0.0
      %1060 = vmatpush1.msra.mxu0 0.0
      %1061 = vmatprep.subr.mxu0 0.0
      %1062 = vmatpush1.msra.mxu0 0.0
      %1063 = vmatprep.subr.mxu0 0.0
      %1064 = vmatpush1.msra.mxu0 0.0
      %1065 = vmatprep.subr.mxu0 0.0
      %1066 = vmatpush1.msra.mxu0 0.0
      %1067 = vmatprep.subr.mxu0 0.0
      %1068 = vmatpush1.msra.mxu0 0.0
      %1069 = vmatprep.subr.mxu0 0.0
      %1070 = vmatpush1.msra.mxu0 0.0
      %1071 = vmatprep.subr.mxu0 0.0
      %1072 = vmatpush1.msra.mxu0 0.0
      %1073 = vmatprep.subr.mxu0 0.0
      %1074 = vmatpush1.msra.mxu0 0.0
      %1075 = vmatprep.subr.mxu0 0.0
      %1076 = vmatpush1.msra.mxu0 0.0
      %1077 = vmatprep.subr.mxu0 0.0
      %1078 = vmatpush1.msra.mxu0 0.0
      %1079 = vmatprep.subr.mxu0 0.0
      %1080 = vmatpush1.msra.mxu0 0.0
      %1081 = vmatprep.subr.mxu0 0.0
      %1082 = vmatpush1.msra.mxu0 0.0
      %1083 = vmatprep.subr.mxu0 0.0
      %1084 = vmatpush1.msra.mxu0 0.0
      %1085 = vmatprep.subr.mxu0 0.0
      %1086 = vmatpush1.msra.mxu0 0.0
      %1087 = vmatprep.subr.mxu0 0.0
      %1088 = vmatpush1.msra.mxu0 0.0
      %1089 = vmatprep.mubr.f32.mxu0 0.0
      %1090 = vmatmul.mubr.f32.gmra.mrb[0].mxu0 %v1020
      %v1091 = vpop.f32.mrb[0].mxu0
      %v1092 = vadd.f32 0.0, %v1091
      %v1093 = vpop.f32.mrb[0].mxu0
      %1094 = vmatprep.mubr.f32.mxu0 0.0
      %1095 = vmatmul.mubr.f32.gmra.mrb[0].mxu0 %v1023
      %v1096 = vpop.f32.mrb[0].mxu0
      %v1097 = vadd.f32 0.0, %v1096
      %v1098 = vpop.f32.mrb[0].mxu0
      %1099 = vdwg.mxu0
      %v1101 = vsel %vm768, %v854, 0
      %v1104 = vsel %vm768, %v856, 0
      %1106 = vmatprep.subr.mxu0 0.0
      %1107 = vmatpush1.msra.mxu0 %v399
      %1108 = vmatprep.subr.mxu0 0.0
      %1109 = vmatpush1.msra.mxu0 %v400
      %1110 = vmatprep.subr.mxu0 0.0
      %1111 = vmatpush1.msra.mxu0 0.0
      %1112 = vmatprep.subr.mxu0 0.0
      %1113 = vmatpush1.msra.mxu0 0.0
      %1114 = vmatprep.subr.mxu0 0.0
      %1115 = vmatpush1.msra.mxu0 0.0
      %1116 = vmatprep.subr.mxu0 0.0
      %1117 = vmatpush1.msra.mxu0 0.0
      %1118 = vmatprep.subr.mxu0 0.0
      %1119 = vmatpush1.msra.mxu0 0.0
      %1120 = vmatprep.subr.mxu0 0.0
      %1121 = vmatpush1.msra.mxu0 0.0
      %1122 = vmatprep.subr.mxu0 0.0
      %1123 = vmatpush1.msra.mxu0 0.0
      %1124 = vmatprep.subr.mxu0 0.0
      %1125 = vmatpush1.msra.mxu0 0.0
      %1126 = vmatprep.subr.mxu0 0.0
      %1127 = vmatpush1.msra.mxu0 0.0
      %1128 = vmatprep.subr.mxu0 0.0
      %1129 = vmatpush1.msra.mxu0 0.0
      %1130 = vmatprep.subr.mxu0 0.0
      %1131 = vmatpush1.msra.mxu0 0.0
      %1132 = vmatprep.subr.mxu0 0.0
      %1133 = vmatpush1.msra.mxu0 0.0
      %1134 = vmatprep.subr.mxu0 0.0
      %1135 = vmatpush1.msra.mxu0 0.0
      %1136 = vmatprep.subr.mxu0 0.0
      %1137 = vmatpush1.msra.mxu0 0.0
      %1138 = vmatprep.subr.mxu0 0.0
      %1139 = vmatpush1.msra.mxu0 0.0
      %1140 = vmatprep.subr.mxu0 0.0
      %1141 = vmatpush1.msra.mxu0 0.0
      %1142 = vmatprep.subr.mxu0 0.0
      %1143 = vmatpush1.msra.mxu0 0.0
      %1144 = vmatprep.subr.mxu0 0.0
      %1145 = vmatpush1.msra.mxu0 0.0
      %1146 = vmatprep.subr.mxu0 0.0
      %1147 = vmatpush1.msra.mxu0 0.0
      %1148 = vmatprep.subr.mxu0 0.0
      %1149 = vmatpush1.msra.mxu0 0.0
      %1150 = vmatprep.subr.mxu0 0.0
      %1151 = vmatpush1.msra.mxu0 0.0
      %1152 = vmatprep.subr.mxu0 0.0
      %1153 = vmatpush1.msra.mxu0 0.0
      %1154 = vmatprep.subr.mxu0 0.0
      %1155 = vmatpush1.msra.mxu0 0.0
      %1156 = vmatprep.subr.mxu0 0.0
      %1157 = vmatpush1.msra.mxu0 0.0
      %1158 = vmatprep.subr.mxu0 0.0
      %1159 = vmatpush1.msra.mxu0 0.0
      %1160 = vmatprep.subr.mxu0 0.0
      %1161 = vmatpush1.msra.mxu0 0.0
      %1162 = vmatprep.subr.mxu0 0.0
      %1163 = vmatpush1.msra.mxu0 0.0
      %1164 = vmatprep.subr.mxu0 0.0
      %1165 = vmatpush1.msra.mxu0 0.0
      %1166 = vmatprep.subr.mxu0 0.0
      %1167 = vmatpush1.msra.mxu0 0.0
      %1168 = vmatprep.subr.mxu0 0.0
      %1169 = vmatpush1.msra.mxu0 0.0
      %1170 = vmatprep.mubr.f32.mxu0 0.0
      %1171 = vmatmul.mubr.f32.gmra.mrb[0].mxu0 %v1101
      %v1172 = vpop.f32.mrb[0].mxu0
      %v1173 = vadd.f32 0.0, %v1172
      %v1174 = vpop.f32.mrb[0].mxu0
      %1175 = vmatprep.mubr.f32.mxu0 0.0
      %1176 = vmatmul.mubr.f32.gmra.mrb[0].mxu0 %v1104
      %v1177 = vpop.f32.mrb[0].mxu0
      %v1178 = vadd.f32 0.0, %v1177
      %v1179 = vpop.f32.mrb[0].mxu0
      %1180 = vdwg.mxu0
      %1181 = vst.msk [vmem:[%s368] sm:$0xff] %vm409, %v930
      %1182 = vst.msk [vmem:[%s368 + $0x8] sm:$0xff] %vm409, %v935
      %1183 = vst.msk [vmem:[%s368 + $0x10] sm:$0xff] %vm409, %v1011
      %1184 = vst.msk [vmem:[%s368 + $0x18] sm:$0xff] %vm409, %v1016
      %1185 = vst.msk [vmem:[%s368 + $0x20] sm:$0xff] %vm409, %v1092
      %1186 = vst.msk [vmem:[%s368 + $0x28] sm:$0xff] %vm409, %v1097
      %1187 = vst.msk [vmem:[%s368 + $0x30] sm:$0xff] %vm409, %v1173
      %1188 = vst.msk [vmem:[%s368 + $0x38] sm:$0xff] %vm409, %v1178
      %p1189 = scmp.lt.s32.totalorder %s16, 7
      %s1190 = scalar_select %p1189, %s16, 7
      %s1191 = smul.addr %s1190, 8
      %s1192 = smul.addr %s1191, 8
      %s1193 = scalar_lea.vmem %s5, %s1192
      // Predicated region
      $region41: #{_lambda_.17} parent=39 // pred_check
        %p1194 = pneg %p183
      $region42: #{_lambda_.17} parent=39 // pred_check_branch
        %1196 = sbr.rel (%p1194) target = $region44
      $region43: #{_lambda_.17} parent=39 // pred_region
        _
      $region44: #{_lambda_.17} parent=39 // pred_fallthru
        _
    $region40: #{_lambda_.17} parent=5 // pred_fallthru
      _
    %p1197 = scmp.le.s32.totalorder 2, %s11
    // Predicated region
    $region45: #{_lambda_.17} parent=5 // pred_check
      %p1198 = pneg %p1197
    $region46: #{_lambda_.17} parent=5 // pred_check_branch
      %1200 = sbr.rel (%p1198) target = $region48
    $region47: #{_lambda_.17} parent=5 // pred_region
      %s1201 = ssub.s32 %s11, 2
      // Predicated region
      $region49: #{_lambda_.17} parent=47 // pred_check
        %p1202 = pneg %p189
      $region50: #{_lambda_.17} parent=47 // pred_check_branch
        %1204 = sbr.rel (%p1202) target = $region52
      $region51: #{_lambda_.17} parent=47 // pred_region
        %p1205 = scmp.lt.s32.totalorder %s17, 7
        %s1206 = scalar_select %p1205, %s17, 7
        %s1207 = smul.addr %s1206, 8
        %s1208 = smul.addr %s1207, 8
        %s1209 = scalar_lea.vmem %s5, %s1208
      $region52: #{_lambda_.17} parent=47 // pred_fallthru
        _
    $region48: #{_lambda_.17} parent=5 // pred_fallthru
      _
  $region6: #{_lambda_.17} parent=0 // loop_footer
    %s15 = sadd.s32 1, %s11
  $region7: #{_lambda_.17} parent=0 // loop_footer_branch
    %10 = sbr.rel target = $region3
  $region8: #{_lambda_.17} parent=0 // loop_exit
    _

// kernel: _lambda_.18
$region0: #{_lambda_.18}
  #allocation0 [shape = 'u32[]', space=smem, size = 0x4, offset = 0x4, fixed_abs, tag = 'smem constant byte address 0x4 - core index']
  #allocation1 [shape = 'u32[144,128]{1,0:T(1,128)}', space=vmem, size = 0x12000, scoped, tag = 'internal scratch']
  #allocation2 [shape = 'f32[128,32]{1,0:T(8,128)}', space=vmem, size = 0x10000, scoped, tag = 'scratch operand']
  %s0 = inlined_call_operand.vmem [shape: f32[128,32], index: 0, kind: input, shape index: {}]
  %s1 = inlined_call_operand.vmem [shape: f32[32,32], index: 1, kind: input, shape index: {}]
  %s2 = inlined_call_operand.vmem [shape: f32[1,32], index: 2, kind: input, shape index: {}]
  %s3 = inlined_call_operand.vmem [shape: f32[128,32], index: 3, kind: output, shape index: {}]
  %s4 = sld [smem:[#allocation0]]
  $region30: #{_lambda_.18} parent=0
    _
  %s6 = ssub.s32 1, %s4
  %s7 = scalar_select 0, %s6, %s4
  // Predicated region
  $region2: #{_lambda_.18} parent=0 // pred_check
    _
  $region3: #{_lambda_.18} parent=0 // pred_check_branch
    %9 = sbr.rel (0) target = $region5
  $region4: #{_lambda_.18} parent=0 // pred_region
    _
  $region5: #{_lambda_.18} parent=0 // pred_fallthru
    _
  // Predicated region
  $region6: #{_lambda_.18} parent=0 // pred_check
    _
  $region7: #{_lambda_.18} parent=0 // pred_check_branch
    %11 = sbr.rel (0) target = $region9
  $region8: #{_lambda_.18} parent=0 // pred_region
    _
  $region9: #{_lambda_.18} parent=0 // pred_fallthru
    _
  // Predicated region
  $region10: #{_lambda_.18} parent=0 // pred_check
    _
  $region11: #{_lambda_.18} parent=0 // pred_check_branch
    %13 = sbr.rel (0) target = $region13
  $region12: #{_lambda_.18} parent=0 // pred_region
    _
  $region13: #{_lambda_.18} parent=0 // pred_fallthru
    _
  %p14 = scmp.eq.s32.totalorder 0, 0
  // Predicated region
  $region14: #{_lambda_.18} parent=0 // pred_check
    %p15 = pneg %p14
  $region15: #{_lambda_.18} parent=0 // pred_check_branch
    %17 = sbr.rel (%p15) target = $region17
  $region16: #{_lambda_.18} parent=0 // pred_region
    %vm18 = vcmask 261120
    %19 = vst.msk [vmem:[#allocation2] sm:$0xff] %vm18, 0.0
    %20 = vst.msk [vmem:[#allocation2 + $0x8] sm:$0xff] %vm18, 0.0
    %21 = vst.msk [vmem:[#allocation2 + $0x10] sm:$0xff] %vm18, 0.0
    %22 = vst.msk [vmem:[#allocation2 + $0x18] sm:$0xff] %vm18, 0.0
    %23 = vst.msk [vmem:[#allocation2 + $0x20] sm:$0xff] %vm18, 0.0
    %24 = vst.msk [vmem:[#allocation2 + $0x28] sm:$0xff] %vm18, 0.0
    %25 = vst.msk [vmem:[#allocation2 + $0x30] sm:$0xff] %vm18, 0.0
    %26 = vst.msk [vmem:[#allocation2 + $0x38] sm:$0xff] %vm18, 0.0
    %27 = vst.msk [vmem:[#allocation2 + $0x40] sm:$0xff] %vm18, 0.0
    %28 = vst.msk [vmem:[#allocation2 + $0x48] sm:$0xff] %vm18, 0.0
    %29 = vst.msk [vmem:[#allocation2 + $0x50] sm:$0xff] %vm18, 0.0
    %30 = vst.msk [vmem:[#allocation2 + $0x58] sm:$0xff] %vm18, 0.0
    %31 = vst.msk [vmem:[#allocation2 + $0x60] sm:$0xff] %vm18, 0.0
    %32 = vst.msk [vmem:[#allocation2 + $0x68] sm:$0xff] %vm18, 0.0
    %33 = vst.msk [vmem:[#allocation2 + $0x70] sm:$0xff] %vm18, 0.0
    %34 = vst.msk [vmem:[#allocation2 + $0x78] sm:$0xff] %vm18, 0.0
  $region17: #{_lambda_.18} parent=0 // pred_fallthru
    _
  %v35 = vld [vmem:[#allocation2] sm:$0xff]
  %v36 = vld [vmem:[#allocation2 + $0x8] sm:$0xff]
  %v37 = vld [vmem:[#allocation2 + $0x10] sm:$0xff]
  %v38 = vld [vmem:[#allocation2 + $0x18] sm:$0xff]
  %v39 = vld [vmem:[#allocation2 + $0x20] sm:$0xff]
  %v40 = vld [vmem:[#allocation2 + $0x28] sm:$0xff]
  %v41 = vld [vmem:[#allocation2 + $0x30] sm:$0xff]
  %v42 = vld [vmem:[#allocation2 + $0x38] sm:$0xff]
  %v43 = vld [vmem:[#allocation2 + $0x40] sm:$0xff]
  %v44 = vld [vmem:[#allocation2 + $0x48] sm:$0xff]
  %v45 = vld [vmem:[#allocation2 + $0x50] sm:$0xff]
  %v46 = vld [vmem:[#allocation2 + $0x58] sm:$0xff]
  %v47 = vld [vmem:[#allocation2 + $0x60] sm:$0xff]
  %v48 = vld [vmem:[#allocation2 + $0x68] sm:$0xff]
  %v49 = vld [vmem:[#allocation2 + $0x70] sm:$0xff]
  %v50 = vld [vmem:[#allocation2 + $0x78] sm:$0xff]
  %v51 = vld [vmem:[%s0] sm:$0xff]
  %v52 = vld [vmem:[%s0 + $0x8] sm:$0xff]
  %v53 = vld [vmem:[%s0 + $0x10] sm:$0xff]
  %v54 = vld [vmem:[%s0 + $0x18] sm:$0xff]
  %v55 = vld [vmem:[%s0 + $0x20] sm:$0xff]
  %v56 = vld [vmem:[%s0 + $0x28] sm:$0xff]
  %v57 = vld [vmem:[%s0 + $0x30] sm:$0xff]
  %v58 = vld [vmem:[%s0 + $0x38] sm:$0xff]
  %v59 = vld [vmem:[%s0 + $0x40] sm:$0xff]
  %v60 = vld [vmem:[%s0 + $0x48] sm:$0xff]
  %v61 = vld [vmem:[%s0 + $0x50] sm:$0xff]
  %v62 = vld [vmem:[%s0 + $0x58] sm:$0xff]
  %v63 = vld [vmem:[%s0 + $0x60] sm:$0xff]
  %v64 = vld [vmem:[%s0 + $0x68] sm:$0xff]
  %v65 = vld [vmem:[%s0 + $0x70] sm:$0xff]
  %v66 = vld [vmem:[%s0 + $0x78] sm:$0xff]
  %v67 = vld [vmem:[%s1] sm:$0xff]
  %v68 = vld [vmem:[%s1 + $0x8] sm:$0xff]
  %v69 = vld [vmem:[%s1 + $0x10] sm:$0xff]
  %v70 = vld [vmem:[%s1 + $0x18] sm:$0xff]
  %vm71 = vcmask 261120
  %v73 = vsel %vm71, %v51, 0
  %v76 = vsel %vm71, %v52, 0
  %v79 = vsel %vm71, %v53, 0
  %v82 = vsel %vm71, %v54, 0
  %v85 = vsel %vm71, %v55, 0
  %v88 = vsel %vm71, %v56, 0
  %v91 = vsel %vm71, %v57, 0
  %v94 = vsel %vm71, %v58, 0
  %v97 = vsel %vm71, %v59, 0
  %v100 = vsel %vm71, %v60, 0
  %v103 = vsel %vm71, %v61, 0
  %v106 = vsel %vm71, %v62, 0
  %v109 = vsel %vm71, %v63, 0
  %v112 = vsel %vm71, %v64, 0
  %v115 = vsel %vm71, %v65, 0
  %v118 = vsel %vm71, %v66, 0
  %120 = vmatprep.subr.mxu0 0.0
  %121 = vmatpush1.msra.mxu0 %v67
  %122 = vmatprep.subr.mxu0 0.0
  %123 = vmatpush1.msra.mxu0 %v68
  %124 = vmatprep.subr.mxu0 0.0
  %125 = vmatpush1.msra.mxu0 %v69
  %126 = vmatprep.subr.mxu0 0.0
  %127 = vmatpush1.msra.mxu0 %v70
  %128 = vmatprep.subr.mxu0 0.0
  %129 = vmatpush1.msra.mxu0 0.0
  %130 = vmatprep.subr.mxu0 0.0
  %131 = vmatpush1.msra.mxu0 0.0
  %132 = vmatprep.subr.mxu0 0.0
  %133 = vmatpush1.msra.mxu0 0.0
  %134 = vmatprep.subr.mxu0 0.0
  %135 = vmatpush1.msra.mxu0 0.0
  %136 = vmatprep.subr.mxu0 0.0
  %137 = vmatpush1.msra.mxu0 0.0
  %138 = vmatprep.subr.mxu0 0.0
  %139 = vmatpush1.msra.mxu0 0.0
  %140 = vmatprep.subr.mxu0 0.0
  %141 = vmatpush1.msra.mxu0 0.0
  %142 = vmatprep.subr.mxu0 0.0
  %143 = vmatpush1.msra.mxu0 0.0
  %144 = vmatprep.subr.mxu0 0.0
  %145 = vmatpush1.msra.mxu0 0.0
  %146 = vmatprep.subr.mxu0 0.0
  %147 = vmatpush1.msra.mxu0 0.0
  %148 = vmatprep.subr.mxu0 0.0
  %149 = vmatpush1.msra.mxu0 0.0
  %150 = vmatprep.subr.mxu0 0.0
  %151 = vmatpush1.msra.mxu0 0.0
  %152 = vmatprep.subr.mxu0 0.0
  %153 = vmatpush1.msra.mxu0 0.0
  %154 = vmatprep.subr.mxu0 0.0
  %155 = vmatpush1.msra.mxu0 0.0
  %156 = vmatprep.subr.mxu0 0.0
  %157 = vmatpush1.msra.mxu0 0.0
  %158 = vmatprep.subr.mxu0 0.0
  %159 = vmatpush1.msra.mxu0 0.0
  %160 = vmatprep.subr.mxu0 0.0
  %161 = vmatpush1.msra.mxu0 0.0
  %162 = vmatprep.subr.mxu0 0.0
  %163 = vmatpush1.msra.mxu0 0.0
  %164 = vmatprep.subr.mxu0 0.0
  %165 = vmatpush1.msra.mxu0 0.0
  %166 = vmatprep.subr.mxu0 0.0
  %167 = vmatpush1.msra.mxu0 0.0
  %168 = vmatprep.subr.mxu0 0.0
  %169 = vmatpush1.msra.mxu0 0.0
  %170 = vmatprep.subr.mxu0 0.0
  %171 = vmatpush1.msra.mxu0 0.0
  %172 = vmatprep.subr.mxu0 0.0
  %173 = vmatpush1.msra.mxu0 0.0
  %174 = vmatprep.subr.mxu0 0.0
  %175 = vmatpush1.msra.mxu0 0.0
  %176 = vmatprep.subr.mxu0 0.0
  %177 = vmatpush1.msra.mxu0 0.0
  %178 = vmatprep.subr.mxu0 0.0
  %179 = vmatpush1.msra.mxu0 0.0
  %180 = vmatprep.subr.mxu0 0.0
  %181 = vmatpush1.msra.mxu0 0.0
  %182 = vmatprep.subr.mxu0 0.0
  %183 = vmatpush1.msra.mxu0 0.0
  %184 = vmatprep.mubr.f32.mxu0 0.0
  %185 = vmatmul.mubr.f32.gmra.mrb[0].mxu0 %v73
  %v186 = vpop.f32.mrb[0].mxu0
  %v187 = vadd.f32 0.0, %v186
  %v188 = vpop.f32.mrb[0].mxu0
  %189 = vmatprep.mubr.f32.mxu0 0.0
  %190 = vmatmul.mubr.f32.gmra.mrb[0].mxu0 %v76
  %v191 = vpop.f32.mrb[0].mxu0
  %v192 = vadd.f32 0.0, %v191
  %v193 = vpop.f32.mrb[0].mxu0
  %194 = vmatprep.mubr.f32.mxu0 0.0
  %195 = vmatmul.mubr.f32.gmra.mrb[0].mxu0 %v79
  %v196 = vpop.f32.mrb[0].mxu0
  %v197 = vadd.f32 0.0, %v196
  %v198 = vpop.f32.mrb[0].mxu0
  %199 = vmatprep.mubr.f32.mxu0 0.0
  %200 = vmatmul.mubr.f32.gmra.mrb[0].mxu0 %v82
  %v201 = vpop.f32.mrb[0].mxu0
  %v202 = vadd.f32 0.0, %v201
  %v203 = vpop.f32.mrb[0].mxu0
  %204 = vmatprep.mubr.f32.mxu0 0.0
  %205 = vmatmul.mubr.f32.gmra.mrb[0].mxu0 %v85
  %v206 = vpop.f32.mrb[0].mxu0
  %v207 = vadd.f32 0.0, %v206
  %v208 = vpop.f32.mrb[0].mxu0
  %209 = vmatprep.mubr.f32.mxu0 0.0
  %210 = vmatmul.mubr.f32.gmra.mrb[0].mxu0 %v88
  %v211 = vpop.f32.mrb[0].mxu0
  %v212 = vadd.f32 0.0, %v211
  %v213 = vpop.f32.mrb[0].mxu0
  %214 = vmatprep.mubr.f32.mxu0 0.0
  %215 = vmatmul.mubr.f32.gmra.mrb[0].mxu0 %v91
  %v216 = vpop.f32.mrb[0].mxu0
  %v217 = vadd.f32 0.0, %v216
  %v218 = vpop.f32.mrb[0].mxu0
  %219 = vmatprep.mubr.f32.mxu0 0.0
  %220 = vmatmul.mubr.f32.gmra.mrb[0].mxu0 %v94
  %v221 = vpop.f32.mrb[0].mxu0
  %v222 = vadd.f32 0.0, %v221
  %v223 = vpop.f32.mrb[0].mxu0
  %224 = vmatprep.mubr.f32.mxu0 0.0
  %225 = vmatmul.mubr.f32.gmra.mrb[0].mxu0 %v97
  %v226 = vpop.f32.mrb[0].mxu0
  %v227 = vadd.f32 0.0, %v226
  %v228 = vpop.f32.mrb[0].mxu0
  %229 = vmatprep.mubr.f32.mxu0 0.0
  %230 = vmatmul.mubr.f32.gmra.mrb[0].mxu0 %v100
  %v231 = vpop.f32.mrb[0].mxu0
  %v232 = vadd.f32 0.0, %v231
  %v233 = vpop.f32.mrb[0].mxu0
  %234 = vmatprep.mubr.f32.mxu0 0.0
  %235 = vmatmul.mubr.f32.gmra.mrb[0].mxu0 %v103
  %v236 = vpop.f32.mrb[0].mxu0
  %v237 = vadd.f32 0.0, %v236
  %v238 = vpop.f32.mrb[0].mxu0
  %239 = vmatprep.mubr.f32.mxu0 0.0
  %240 = vmatmul.mubr.f32.gmra.mrb[0].mxu0 %v106
  %v241 = vpop.f32.mrb[0].mxu0
  %v242 = vadd.f32 0.0, %v241
  %v243 = vpop.f32.mrb[0].mxu0
  %244 = vmatprep.mubr.f32.mxu0 0.0
  %245 = vmatmul.mubr.f32.gmra.mrb[0].mxu0 %v109
  %v246 = vpop.f32.mrb[0].mxu0
  %v247 = vadd.f32 0.0, %v246
  %v248 = vpop.f32.mrb[0].mxu0
  %249 = vmatprep.mubr.f32.mxu0 0.0
  %250 = vmatmul.mubr.f32.gmra.mrb[0].mxu0 %v112
  %v251 = vpop.f32.mrb[0].mxu0
  %v252 = vadd.f32 0.0, %v251
  %v253 = vpop.f32.mrb[0].mxu0
  %254 = vmatprep.mubr.f32.mxu0 0.0
  %255 = vmatmul.mubr.f32.gmra.mrb[0].mxu0 %v115
  %v256 = vpop.f32.mrb[0].mxu0
  %v257 = vadd.f32 0.0, %v256
  %v258 = vpop.f32.mrb[0].mxu0
  %259 = vmatprep.mubr.f32.mxu0 0.0
  %260 = vmatmul.mubr.f32.gmra.mrb[0].mxu0 %v118
  %v261 = vpop.f32.mrb[0].mxu0
  %v262 = vadd.f32 0.0, %v261
  %v263 = vpop.f32.mrb[0].mxu0
  %264 = vdwg.mxu0
  %v265 = vadd.f32 %v35, %v187
  %v266 = vadd.f32 %v36, %v192
  %v267 = vadd.f32 %v37, %v197
  %v268 = vadd.f32 %v38, %v202
  %v269 = vadd.f32 %v39, %v207
  %v270 = vadd.f32 %v40, %v212
  %v271 = vadd.f32 %v41, %v217
  %v272 = vadd.f32 %v42, %v222
  %v273 = vadd.f32 %v43, %v227
  %v274 = vadd.f32 %v44, %v232
  %v275 = vadd.f32 %v45, %v237
  %v276 = vadd.f32 %v46, %v242
  %v277 = vadd.f32 %v47, %v247
  %v278 = vadd.f32 %v48, %v252
  %v279 = vadd.f32 %v49, %v257
  %v280 = vadd.f32 %v50, %v262
  %281 = vst.msk [vmem:[#allocation2] sm:$0xff] %vm71, %v265
  %282 = vst.msk [vmem:[#allocation2 + $0x8] sm:$0xff] %vm71, %v266
  %283 = vst.msk [vmem:[#allocation2 + $0x10] sm:$0xff] %vm71, %v267
  %284 = vst.msk [vmem:[#allocation2 + $0x18] sm:$0xff] %vm71, %v268
  %285 = vst.msk [vmem:[#allocation2 + $0x20] sm:$0xff] %vm71, %v269
  %286 = vst.msk [vmem:[#allocation2 + $0x28] sm:$0xff] %vm71, %v270
  %287 = vst.msk [vmem:[#allocation2 + $0x30] sm:$0xff] %vm71, %v271
  %288 = vst.msk [vmem:[#allocation2 + $0x38] sm:$0xff] %vm71, %v272
  %289 = vst.msk [vmem:[#allocation2 + $0x40] sm:$0xff] %vm71, %v273
  %290 = vst.msk [vmem:[#allocation2 + $0x48] sm:$0xff] %vm71, %v274
  %291 = vst.msk [vmem:[#allocation2 + $0x50] sm:$0xff] %vm71, %v275
  %292 = vst.msk [vmem:[#allocation2 + $0x58] sm:$0xff] %vm71, %v276
  %293 = vst.msk [vmem:[#allocation2 + $0x60] sm:$0xff] %vm71, %v277
  %294 = vst.msk [vmem:[#allocation2 + $0x68] sm:$0xff] %vm71, %v278
  %295 = vst.msk [vmem:[#allocation2 + $0x70] sm:$0xff] %vm71, %v279
  %296 = vst.msk [vmem:[#allocation2 + $0x78] sm:$0xff] %vm71, %v280
  // Predicated region
  $region18: #{_lambda_.18} parent=0 // pred_check
    %p297 = pneg %p14
  $region19: #{_lambda_.18} parent=0 // pred_check_branch
    %299 = sbr.rel (%p297) target = $region21
  $region20: #{_lambda_.18} parent=0 // pred_region
    %v300 = vld [vmem:[#allocation2] sm:$0xff]
    %v301 = vld [vmem:[#allocation2 + $0x8] sm:$0xff]
    %v302 = vld [vmem:[#allocation2 + $0x10] sm:$0xff]
    %v303 = vld [vmem:[#allocation2 + $0x18] sm:$0xff]
    %v304 = vld [vmem:[#allocation2 + $0x20] sm:$0xff]
    %v305 = vld [vmem:[#allocation2 + $0x28] sm:$0xff]
    %v306 = vld [vmem:[#allocation2 + $0x30] sm:$0xff]
    %v307 = vld [vmem:[#allocation2 + $0x38] sm:$0xff]
    %v308 = vld [vmem:[#allocation2 + $0x40] sm:$0xff]
    %v309 = vld [vmem:[#allocation2 + $0x48] sm:$0xff]
    %v310 = vld [vmem:[#allocation2 + $0x50] sm:$0xff]
    %v311 = vld [vmem:[#allocation2 + $0x58] sm:$0xff]
    %v312 = vld [vmem:[#allocation2 + $0x60] sm:$0xff]
    %v313 = vld [vmem:[#allocation2 + $0x68] sm:$0xff]
    %v314 = vld [vmem:[#allocation2 + $0x70] sm:$0xff]
    %v315 = vld [vmem:[#allocation2 + $0x78] sm:$0xff]
    %v316 = vld [vmem:[%s2] sm:$0x1]
    %v318 = vlaneseq
    %v319 = vshrl.u32 %v318, 7
    %v320 = vsub.s32 0, %v319
    %v321 = vrot.slane %v316, %v320
    %v323 = vadd.f32 %v300, %v321
    %v324 = vadd.f32 %v301, %v321
    %v325 = vadd.f32 %v302, %v321
    %v326 = vadd.f32 %v303, %v321
    %v327 = vadd.f32 %v304, %v321
    %v328 = vadd.f32 %v305, %v321
    %v329 = vadd.f32 %v306, %v321
    %v330 = vadd.f32 %v307, %v321
    %v331 = vadd.f32 %v308, %v321
    %v332 = vadd.f32 %v309, %v321
    %v333 = vadd.f32 %v310, %v321
    %v334 = vadd.f32 %v311, %v321
    %v335 = vadd.f32 %v312, %v321
    %v336 = vadd.f32 %v313, %v321
    %v337 = vadd.f32 %v314, %v321
    %v338 = vadd.f32 %v315, %v321
    %339 = vst.msk [vmem:[%s3] sm:$0xff] %vm71, %v323
    %340 = vst.msk [vmem:[%s3 + $0x8] sm:$0xff] %vm71, %v324
    %341 = vst.msk [vmem:[%s3 + $0x10] sm:$0xff] %vm71, %v325
    %342 = vst.msk [vmem:[%s3 + $0x18] sm:$0xff] %vm71, %v326
    %343 = vst.msk [vmem:[%s3 + $0x20] sm:$0xff] %vm71, %v327
    %344 = vst.msk [vmem:[%s3 + $0x28] sm:$0xff] %vm71, %v328
    %345 = vst.msk [vmem:[%s3 + $0x30] sm:$0xff] %vm71, %v329
    %346 = vst.msk [vmem:[%s3 + $0x38] sm:$0xff] %vm71, %v330
    %347 = vst.msk [vmem:[%s3 + $0x40] sm:$0xff] %vm71, %v331
    %348 = vst.msk [vmem:[%s3 + $0x48] sm:$0xff] %vm71, %v332
    %349 = vst.msk [vmem:[%s3 + $0x50] sm:$0xff] %vm71, %v333
    %350 = vst.msk [vmem:[%s3 + $0x58] sm:$0xff] %vm71, %v334
    %351 = vst.msk [vmem:[%s3 + $0x60] sm:$0xff] %vm71, %v335
    %352 = vst.msk [vmem:[%s3 + $0x68] sm:$0xff] %vm71, %v336
    %353 = vst.msk [vmem:[%s3 + $0x70] sm:$0xff] %vm71, %v337
    %354 = vst.msk [vmem:[%s3 + $0x78] sm:$0xff] %vm71, %v338
  $region21: #{_lambda_.18} parent=0 // pred_fallthru
    _
  // Predicated region
  $region22: #{_lambda_.18} parent=0 // pred_check
    _
  $region23: #{_lambda_.18} parent=0 // pred_check_branch
    %356 = sbr.rel (0) target = $region25
  $region24: #{_lambda_.18} parent=0 // pred_region
    _
  $region25: #{_lambda_.18} parent=0 // pred_fallthru
    _
  // Predicated region
  $region26: #{_lambda_.18} parent=0 // pred_check
    _
  $region27: #{_lambda_.18} parent=0 // pred_check_branch
    %358 = sbr.rel (0) target = $region29
  $region28: #{_lambda_.18} parent=0 // pred_region
    _
  $region29: #{_lambda_.18} parent=0 // pred_fallthru
    _

// kernel: _lambda_.15
$region0: #{_lambda_.15}
  #allocation0 [shape = 'u32[]', space=smem, size = 0x4, offset = 0x4, fixed_abs, tag = 'smem constant byte address 0x4 - core index']
  #allocation1 [shape = 'u32[144,128]{1,0:T(1,128)}', space=vmem, size = 0x12000, scoped, tag = 'internal scratch']
  #allocation2 [shape = 'f32[1]{0:T(128)S(6)}', space=smem, size = 0x200, scoped, tag = 'scoped memory for _lambda_.15']
  %s0 = inlined_call_operand.<no memory space> [shape: f32[1], index: 0, kind: input, shape index: {}]
  %s1 = inlined_call_operand.vmem [shape: f32[2,8,8,32], index: 1, kind: input, shape index: {}]
  %s2 = inlined_call_operand.vmem [shape: f32[2,8,8,32], index: 2, kind: input, shape index: {}]
  %s3 = inlined_call_operand.vmem [shape: f32[2,8,8,32], index: 3, kind: output, shape index: {}]
  %s4 = sld [smem:[#allocation0]]
  $region45: #{_lambda_.15} parent=0
    _
  %s6 = ssub.s32 1, %s4
  %s7 = scalar_select 0, %s6, %s4
  %8 = sst [smem:[#allocation2]] %s0
  loop: start=0, step=1, limit=4
  $region2: #{_lambda_.15} parent=0 // loop_pre_header
    _
  $region3: #{_lambda_.15} parent=0 // loop_header
    %s10 = sphi 0, %s14
    %p11 = scmp.ge.s32.totalorder %s10, 4
    %s18 = sphi 0, %s18
    %s20 = sphi 0, %s18
    %s21 = sphi 0, %s20
    %s35 = sphi 0, %s21
    %s41 = sphi 0, %s43
    %s44 = sphi 0, %s41
    %s45 = sphi 0, %s44
    %s61 = sphi 0, %s45
    %s67 = sphi 0, %s69
    %s70 = sphi 0, %s67
    %s71 = sphi 0, %s70
    %s87 = sphi 0, %s71
    %s93 = sphi 0, %s95
    %s96 = sphi 0, %s93
    %s97 = sphi 0, %s96
    %s113 = sphi 0, %s97
  $region4: #{_lambda_.15} parent=0 // loop_header_branch
    %13 = sbr.rel (%p11) target = $region8
  $region5: #{_lambda_.15} parent=0 // loop_body
    %s15 = ssub.s32 %s10, 1
    %s16 = ssub.s32 %s10, 2
    %s17 = sadd.s32 %s10, 1
    %s19 = sadd.s32 %s18, 1
    %p22 = scmp.eq.s32.totalorder %s10, 1
    %p23 = scmp.ne.s32.totalorder %s18, %s20
    %p24 = scmp.eq.s32.totalorder %s10, 0
    %p25 = por %p23, %p24
    %p26 = scmp.ne.s32.totalorder %s18, %s20
    %p27 = scmp.eq.s32.totalorder %s15, 1
    %p28 = por %p26, %p27
    %p29 = scmp.ne.s32.totalorder %s20, %s21
    %p30 = scmp.eq.s32.totalorder %s15, 0
    %p31 = por %p29, %p30
    %p32 = scmp.ne.s32.totalorder %s20, %s21
    %p33 = scmp.eq.s32.totalorder %s16, 1
    %p34 = por %p32, %p33
    %p36 = scmp.ne.s32.totalorder %s21, %s35
    %p37 = scmp.eq.s32.totalorder %s16, 0
    %p38 = por %p36, %p37
    %s39 = ssub.s32 %s10, %s17
    %p40 = scmp.eq.s32.totalorder %s39, 0
    %s42 = sadd.s32 %s41, 1
    %s43 = scalar_select %p40, %s41, %s42
    %p46 = pneg %p40
    %p47 = scmp.eq.s32.totalorder %s10, 1
    %p48 = por %p46, %p47
    %p49 = scmp.ne.s32.totalorder %s41, %s44
    %p50 = scmp.eq.s32.totalorder %s10, 0
    %p51 = por %p49, %p50
    %p52 = scmp.ne.s32.totalorder %s41, %s44
    %p53 = scmp.eq.s32.totalorder %s15, 1
    %p54 = por %p52, %p53
    %p55 = scmp.ne.s32.totalorder %s44, %s45
    %p56 = scmp.eq.s32.totalorder %s15, 0
    %p57 = por %p55, %p56
    %p58 = scmp.ne.s32.totalorder %s44, %s45
    %p59 = scmp.eq.s32.totalorder %s16, 1
    %p60 = por %p58, %p59
    %p62 = scmp.ne.s32.totalorder %s45, %s61
    %p63 = scmp.eq.s32.totalorder %s16, 0
    %p64 = por %p62, %p63
    %s65 = ssub.s32 %s10, %s17
    %p66 = scmp.eq.s32.totalorder %s65, 0
    %s68 = sadd.s32 %s67, 1
    %s69 = scalar_select %p66, %s67, %s68
    %p72 = pneg %p66
    %p73 = scmp.eq.s32.totalorder %s10, 1
    %p74 = por %p72, %p73
    %p75 = scmp.ne.s32.totalorder %s67, %s70
    %p76 = scmp.eq.s32.totalorder %s10, 0
    %p77 = por %p75, %p76
    %p78 = scmp.ne.s32.totalorder %s67, %s70
    %p79 = scmp.eq.s32.totalorder %s15, 1
    %p80 = por %p78, %p79
    %p81 = scmp.ne.s32.totalorder %s70, %s71
    %p82 = scmp.eq.s32.totalorder %s15, 0
    %p83 = por %p81, %p82
    %p84 = scmp.ne.s32.totalorder %s70, %s71
    %p85 = scmp.eq.s32.totalorder %s16, 1
    %p86 = por %p84, %p85
    %p88 = scmp.ne.s32.totalorder %s71, %s87
    %p89 = scmp.eq.s32.totalorder %s16, 0
    %p90 = por %p88, %p89
    %s91 = ssub.s32 %s10, %s17
    %p92 = scmp.eq.s32.totalorder %s91, 0
    %s94 = sadd.s32 %s93, 1
    %s95 = scalar_select %p92, %s93, %s94
    %p98 = pneg %p92
    %p99 = scmp.eq.s32.totalorder %s10, 1
    %p100 = por %p98, %p99
    %p101 = scmp.ne.s32.totalorder %s93, %s96
    %p102 = scmp.eq.s32.totalorder %s10, 0
    %p103 = por %p101, %p102
    %p104 = scmp.ne.s32.totalorder %s93, %s96
    %p105 = scmp.eq.s32.totalorder %s15, 1
    %p106 = por %p104, %p105
    %p107 = scmp.ne.s32.totalorder %s96, %s97
    %p108 = scmp.eq.s32.totalorder %s15, 0
    %p109 = por %p107, %p108
    %p110 = scmp.ne.s32.totalorder %s96, %s97
    %p111 = scmp.eq.s32.totalorder %s16, 1
    %p112 = por %p110, %p111
    %p114 = scmp.ne.s32.totalorder %s97, %s113
    %p115 = scmp.eq.s32.totalorder %s16, 0
    %p116 = por %p114, %p115
    %p117 = scmp.le.s32.totalorder 1, %s10
    %p118 = scmp.lt.s32.totalorder %s10, 3
    %p119 = pnand %p117, %p118
    %p120 = pneg %p119
    // Predicated region
    $region9: #{_lambda_.15} parent=5 // pred_check
      _
    $region10: #{_lambda_.15} parent=5 // pred_check_branch
      %122 = sbr.rel (%p119) target = $region12
    $region11: #{_lambda_.15} parent=5 // pred_region
      %s123 = ssub.s32 %s10, 1
      // Predicated region
      $region13: #{_lambda_.15} parent=11 // pred_check
        %p124 = pneg %p31
      $region14: #{_lambda_.15} parent=11 // pred_check_branch
        %126 = sbr.rel (%p124) target = $region16
      $region15: #{_lambda_.15} parent=11 // pred_region
        _
      $region16: #{_lambda_.15} parent=11 // pred_fallthru
        _
    $region12: #{_lambda_.15} parent=5 // pred_fallthru
      _
    %p127 = scmp.lt.s32.totalorder %s10, 2
    // Predicated region
    $region17: #{_lambda_.15} parent=5 // pred_check
      %p128 = pneg %p127
    $region18: #{_lambda_.15} parent=5 // pred_check_branch
      %130 = sbr.rel (%p128) target = $region20
    $region19: #{_lambda_.15} parent=5 // pred_region
      // Predicated region
      $region21: #{_lambda_.15} parent=19 // pred_check
        %p131 = pneg %p51
      $region22: #{_lambda_.15} parent=19 // pred_check_branch
        %133 = sbr.rel (%p131) target = $region24
      $region23: #{_lambda_.15} parent=19 // pred_region
        %p134 = scmp.lt.s32.totalorder %s10, 1
        %s135 = scalar_select %p134, %s10, 1
        %s136 = smul.addr %s135, 8
        %s137 = smul.addr %s136, 8
        %s138 = scalar_lea.vmem %s1, %s137
      $region24: #{_lambda_.15} parent=19 // pred_fallthru
        _
      // Predicated region
      $region25: #{_lambda_.15} parent=19 // pred_check
        %p139 = pneg %p77
      $region26: #{_lambda_.15} parent=19 // pred_check_branch
        %141 = sbr.rel (%p139) target = $region28
      $region27: #{_lambda_.15} parent=19 // pred_region
        %p142 = scmp.lt.s32.totalorder %s10, 1
        %s143 = scalar_select %p142, %s10, 1
        %s144 = smul.addr %s143, 8
        %s145 = smul.addr %s144, 8
        %s146 = scalar_lea.vmem %s2, %s145
      $region28: #{_lambda_.15} parent=19 // pred_fallthru
        _
    $region20: #{_lambda_.15} parent=5 // pred_fallthru
      _
    %p147 = scmp.le.s32.totalorder 1, %s10
    %p148 = scmp.lt.s32.totalorder %s10, 3
    %p149 = pnand %p147, %p148
    %p150 = pneg %p149
    // Predicated region
    $region29: #{_lambda_.15} parent=5 // pred_check
      _
    $region30: #{_lambda_.15} parent=5 // pred_check_branch
      %152 = sbr.rel (%p149) target = $region32
    $region31: #{_lambda_.15} parent=5 // pred_region
      %s153 = ssub.s32 %s10, 1
      %p154 = pneg %p31
      %p155 = pneg %p28
      %p156 = scmp.lt.s32.totalorder %s15, 1
      %s157 = scalar_select %p156, %s15, 1
      %s158 = smul.addr %s157, 8
      %s159 = smul.addr %s158, 8
      %s160 = scalar_lea.vmem %s1, %s159
      %p161 = pneg %p57
      %p162 = pneg %p54
      %p163 = scmp.lt.s32.totalorder %s15, 1
      %s164 = scalar_select %p163, %s15, 1
      %s165 = smul.addr %s164, 8
      %s166 = smul.addr %s165, 8
      %s167 = scalar_lea.vmem %s2, %s166
      %p168 = pneg %p83
      %p169 = pneg %p80
      %p170 = pneg %p109
      %p171 = pneg %p106
      %p172 = scmp.lt.s32.totalorder %s15, 1
      %s173 = scalar_select %p172, %s15, 1
      %s174 = smul.addr %s173, 8
      %s175 = smul.addr %s174, 8
      %s176 = scalar_lea.vmem %s3, %s175
      %p177 = scmp.lt.s32.totalorder %s15, 1
      %s178 = scalar_select %p177, %s15, 1
      %s179 = smul.addr %s178, 8
      %s180 = smul.addr %s179, 8
      %s181 = scalar_lea.vmem %s1, %s180
      %p182 = scmp.lt.s32.totalorder %s15, 1
      %s183 = scalar_select %p182, %s15, 1
      %s184 = smul.addr %s183, 8
      %s185 = smul.addr %s184, 8
      %s186 = scalar_lea.vmem %s2, %s185
      %p187 = scmp.lt.s32.totalorder %s15, 1
      %s188 = scalar_select %p187, %s15, 1
      %s189 = smul.addr %s188, 8
      %s190 = smul.addr %s189, 8
      %s191 = scalar_lea.vmem %s3, %s190
      %s192 = sld [smem:[#allocation2]]
      %v193 = vld [vmem:[%s181] sm:$0xff]
      %v194 = vld [vmem:[%s181 + $0x8] sm:$0xff]
      %v195 = vld [vmem:[%s181 + $0x10] sm:$0xff]
      %v196 = vld [vmem:[%s181 + $0x18] sm:$0xff]
      %v197 = vld [vmem:[%s181 + $0x20] sm:$0xff]
      %v198 = vld [vmem:[%s181 + $0x28] sm:$0xff]
      %v199 = vld [vmem:[%s181 + $0x30] sm:$0xff]
      %v200 = vld [vmem:[%s181 + $0x38] sm:$0xff]
      %v201 = vld [vmem:[%s186] sm:$0xff]
      %v202 = vld [vmem:[%s186 + $0x8] sm:$0xff]
      %v203 = vld [vmem:[%s186 + $0x10] sm:$0xff]
      %v204 = vld [vmem:[%s186 + $0x18] sm:$0xff]
      %v205 = vld [vmem:[%s186 + $0x20] sm:$0xff]
      %v206 = vld [vmem:[%s186 + $0x28] sm:$0xff]
      %v207 = vld [vmem:[%s186 + $0x30] sm:$0xff]
      %v208 = vld [vmem:[%s186 + $0x38] sm:$0xff]
      %v209 = vstv %s192
      %v210 = vmul.f32 %v201, %v209
      %v211 = vmul.f32 %v202, %v209
      %v212 = vmul.f32 %v203, %v209
      %v213 = vmul.f32 %v204, %v209
      %v214 = vmul.f32 %v205, %v209
      %v215 = vmul.f32 %v206, %v209
      %v216 = vmul.f32 %v207, %v209
      %v217 = vmul.f32 %v208, %v209
      %vm218 = vcmask 261120
      %v219 = vsel %vm218, %v210, 0.0
      %v220 = vsel %vm218, %v211, 0.0
      %v221 = vadd.f32 %v219, %v220
      %v222 = vsel %vm218, %v212, 0.0
      %v223 = vadd.f32 %v221, %v222
      %v224 = vsel %vm218, %v213, 0.0
      %v225 = vadd.f32 %v223, %v224
      %v226 = vsel %vm218, %v214, 0.0
      %v227 = vadd.f32 %v225, %v226
      %v228 = vsel %vm218, %v215, 0.0
      %v229 = vadd.f32 %v227, %v228
      %v230 = vsel %vm218, %v216, 0.0
      %v231 = vadd.f32 %v229, %v230
      %v232 = vsel %vm218, %v217, 0.0
      %v233 = vadd.f32 %v231, %v232
      %v234 = vrcp.pop 8.0
      %v235 = vmul.f32 %v233, %v234
      %v236 = vsel %vm218, %v235, 0.0
      %v237 = vrot.slane %v236, 4
      %v238 = vadd.f32 %v236, %v237
      %v239 = vrot.slane %v238, 2
      %v240 = vadd.f32 %v238, %v239
      %v241 = vrot.slane %v240, 1
      %v242 = vadd.f32 %v240, %v241
      %v243 = vmul.f32 %v242, %v234
      %v244 = vadd.f32 %v243, 1.0
      %v245 = vxor.u32 %v210, 2147483648
      %v246 = vxor.u32 %v211, 2147483648
      %v247 = vxor.u32 %v212, 2147483648
      %v248 = vxor.u32 %v213, 2147483648
      %v249 = vxor.u32 %v214, 2147483648
      %v250 = vxor.u32 %v215, 2147483648
      %v251 = vxor.u32 %v216, 2147483648
      %v252 = vxor.u32 %v217, 2147483648
      %v253 = vmul.f32 %v245, 1.442695
      %v254 = vpow.pop %v253
      %v255 = vmul.f32 %v246, 1.442695
      %v256 = vpow.pop %v255
      %v257 = vmul.f32 %v247, 1.442695
      %v258 = vpow.pop %v257
      %v259 = vmul.f32 %v248, 1.442695
      %v260 = vpow.pop %v259
      %v261 = vmul.f32 %v249, 1.442695
      %v262 = vpow.pop %v261
      %v263 = vmul.f32 %v250, 1.442695
      %v264 = vpow.pop %v263
      %v265 = vmul.f32 %v251, 1.442695
      %v266 = vpow.pop %v265
      %v267 = vmul.f32 %v252, 1.442695
      %v268 = vpow.pop %v267
      %v269 = vadd.f32 %v254, 1.0
      %v270 = vadd.f32 %v256, 1.0
      %v271 = vadd.f32 %v258, 1.0
      %v272 = vadd.f32 %v260, 1.0
      %v273 = vadd.f32 %v262, 1.0
      %v274 = vadd.f32 %v264, 1.0
      %v275 = vadd.f32 %v266, 1.0
      %v276 = vadd.f32 %v268, 1.0
      %v277 = vrcp.pop %v269
      %v278 = vmul.f32 1.0, %v277
      %v279 = vrcp.pop %v270
      %v280 = vmul.f32 1.0, %v279
      %v281 = vrcp.pop %v271
      %v282 = vmul.f32 1.0, %v281
      %v283 = vrcp.pop %v272
      %v284 = vmul.f32 1.0, %v283
      %v285 = vrcp.pop %v273
      %v286 = vmul.f32 1.0, %v285
      %v287 = vrcp.pop %v274
      %v288 = vmul.f32 1.0, %v287
      %v289 = vrcp.pop %v275
      %v290 = vmul.f32 1.0, %v289
      %v291 = vrcp.pop %v276
      %v292 = vmul.f32 1.0, %v291
      %v293 = vadd.f32 %v278, 1.0
      %v294 = vadd.f32 %v280, 1.0
      %v295 = vadd.f32 %v282, 1.0
      %v296 = vadd.f32 %v284, 1.0
      %v297 = vadd.f32 %v286, 1.0
      %v298 = vadd.f32 %v288, 1.0
      %v299 = vadd.f32 %v290, 1.0
      %v300 = vadd.f32 %v292, 1.0
      %v301 = vmul.f32 %v293, %v193
      %v302 = vmul.f32 %v294, %v194
      %v303 = vmul.f32 %v295, %v195
      %v304 = vmul.f32 %v296, %v196
      %v305 = vmul.f32 %v297, %v197
      %v306 = vmul.f32 %v298, %v198
      %v307 = vmul.f32 %v299, %v199
      %v308 = vmul.f32 %v300, %v200
      %v309 = vmul.f32 %v301, %v244
      %v310 = vmul.f32 %v302, %v244
      %v311 = vmul.f32 %v303, %v244
      %v312 = vmul.f32 %v304, %v244
      %v313 = vmul.f32 %v305, %v244
      %v314 = vmul.f32 %v306, %v244
      %v315 = vmul.f32 %v307, %v244
      %v316 = vmul.f32 %v308, %v244
      %317 = vst.msk [vmem:[%s191] sm:$0xff] %vm218, %v309
      %318 = vst.msk [vmem:[%s191 + $0x8] sm:$0xff] %vm218, %v310
      %319 = vst.msk [vmem:[%s191 + $0x10] sm:$0xff] %vm218, %v311
      %320 = vst.msk [vmem:[%s191 + $0x18] sm:$0xff] %vm218, %v312
      %321 = vst.msk [vmem:[%s191 + $0x20] sm:$0xff] %vm218, %v313
      %322 = vst.msk [vmem:[%s191 + $0x28] sm:$0xff] %vm218, %v314
      %323 = vst.msk [vmem:[%s191 + $0x30] sm:$0xff] %vm218, %v315
      %324 = vst.msk [vmem:[%s191 + $0x38] sm:$0xff] %vm218, %v316
      %p325 = scmp.lt.s32.totalorder %s15, 1
      %s326 = scalar_select %p325, %s15, 1
      %s327 = smul.addr %s326, 8
      %s328 = smul.addr %s327, 8
      %s329 = scalar_lea.vmem %s3, %s328
      // Predicated region
      $region33: #{_lambda_.15} parent=31 // pred_check
        %p330 = pneg %p106
      $region34: #{_lambda_.15} parent=31 // pred_check_branch
        %332 = sbr.rel (%p330) target = $region36
      $region35: #{_lambda_.15} parent=31 // pred_region
        _
      $region36: #{_lambda_.15} parent=31 // pred_fallthru
        _
    $region32: #{_lambda_.15} parent=5 // pred_fallthru
      _
    %p333 = scmp.le.s32.totalorder 2, %s10
    // Predicated region
    $region37: #{_lambda_.15} parent=5 // pred_check
      %p334 = pneg %p333
    $region38: #{_lambda_.15} parent=5 // pred_check_branch
      %336 = sbr.rel (%p334) target = $region40
    $region39: #{_lambda_.15} parent=5 // pred_region
      %s337 = ssub.s32 %s10, 2
      // Predicated region
      $region41: #{_lambda_.15} parent=39 // pred_check
        %p338 = pneg %p112
      $region42: #{_lambda_.15} parent=39 // pred_check_branch
        %340 = sbr.rel (%p338) target = $region44
      $region43: #{_lambda_.15} parent=39 // pred_region
        %p341 = scmp.lt.s32.totalorder %s16, 1
        %s342 = scalar_select %p341, %s16, 1
        %s343 = smul.addr %s342, 8
        %s344 = smul.addr %s343, 8
        %s345 = scalar_lea.vmem %s3, %s344
      $region44: #{_lambda_.15} parent=39 // pred_fallthru
        _
    $region40: #{_lambda_.15} parent=5 // pred_fallthru
      _
  $region6: #{_lambda_.15} parent=0 // loop_footer
    %s14 = sadd.s32 1, %s10
  $region7: #{_lambda_.15} parent=0 // loop_footer_branch
    %9 = sbr.rel target = $region3
  $region8: #{_lambda_.15} parent=0 // loop_exit
    _

// kernel: _lambda_.14
$region0: #{_lambda_.14}
  #allocation0 [shape = 'u32[]', space=smem, size = 0x4, offset = 0x4, fixed_abs, tag = 'smem constant byte address 0x4 - core index']
  #allocation1 [shape = 'u32[144,128]{1,0:T(1,128)}', space=vmem, size = 0x12000, scoped, tag = 'internal scratch']
  %s0 = inlined_call_operand.vmem [shape: f32[2,10,10,32], index: 0, kind: input, shape index: {}]
  %s1 = inlined_call_operand.vmem [shape: f32[2,8,8,32], index: 1, kind: output, shape index: {}]
  %s2 = sld [smem:[#allocation0]]
  $region37: #{_lambda_.14} parent=0
    _
  %s4 = ssub.s32 1, %s2
  %s5 = scalar_select 0, %s4, %s2
  loop: start=0, step=1, limit=4
  $region2: #{_lambda_.14} parent=0 // loop_pre_header
    _
  $region3: #{_lambda_.14} parent=0 // loop_header
    %s7 = sphi 0, %s11
    %p8 = scmp.ge.s32.totalorder %s7, 4
    %s17 = sphi 0, %s19
    %s20 = sphi 0, %s17
    %s21 = sphi 0, %s20
    %s37 = sphi 0, %s21
    %s43 = sphi 0, %s45
    %s46 = sphi 0, %s43
    %s47 = sphi 0, %s46
    %s63 = sphi 0, %s47
  $region4: #{_lambda_.14} parent=0 // loop_header_branch
    %10 = sbr.rel (%p8) target = $region8
  $region5: #{_lambda_.14} parent=0 // loop_body
    %s12 = ssub.s32 %s7, 1
    %s13 = ssub.s32 %s7, 2
    %s14 = sadd.s32 %s7, 1
    %s15 = ssub.s32 %s7, %s14
    %p16 = scmp.eq.s32.totalorder %s15, 0
    %s18 = sadd.s32 %s17, 1
    %s19 = scalar_select %p16, %s17, %s18
    %p22 = pneg %p16
    %p23 = scmp.eq.s32.totalorder %s7, 1
    %p24 = por %p22, %p23
    %p25 = scmp.ne.s32.totalorder %s17, %s20
    %p26 = scmp.eq.s32.totalorder %s7, 0
    %p27 = por %p25, %p26
    %p28 = scmp.ne.s32.totalorder %s17, %s20
    %p29 = scmp.eq.s32.totalorder %s12, 1
    %p30 = por %p28, %p29
    %p31 = scmp.ne.s32.totalorder %s20, %s21
    %p32 = scmp.eq.s32.totalorder %s12, 0
    %p33 = por %p31, %p32
    %p34 = scmp.ne.s32.totalorder %s20, %s21
    %p35 = scmp.eq.s32.totalorder %s13, 1
    %p36 = por %p34, %p35
    %p38 = scmp.ne.s32.totalorder %s21, %s37
    %p39 = scmp.eq.s32.totalorder %s13, 0
    %p40 = por %p38, %p39
    %s41 = ssub.s32 %s7, %s14
    %p42 = scmp.eq.s32.totalorder %s41, 0
    %s44 = sadd.s32 %s43, 1
    %s45 = scalar_select %p42, %s43, %s44
    %p48 = pneg %p42
    %p49 = scmp.eq.s32.totalorder %s7, 1
    %p50 = por %p48, %p49
    %p51 = scmp.ne.s32.totalorder %s43, %s46
    %p52 = scmp.eq.s32.totalorder %s7, 0
    %p53 = por %p51, %p52
    %p54 = scmp.ne.s32.totalorder %s43, %s46
    %p55 = scmp.eq.s32.totalorder %s12, 1
    %p56 = por %p54, %p55
    %p57 = scmp.ne.s32.totalorder %s46, %s47
    %p58 = scmp.eq.s32.totalorder %s12, 0
    %p59 = por %p57, %p58
    %p60 = scmp.ne.s32.totalorder %s46, %s47
    %p61 = scmp.eq.s32.totalorder %s13, 1
    %p62 = por %p60, %p61
    %p64 = scmp.ne.s32.totalorder %s47, %s63
    %p65 = scmp.eq.s32.totalorder %s13, 0
    %p66 = por %p64, %p65
    %p67 = scmp.le.s32.totalorder 1, %s7
    %p68 = scmp.lt.s32.totalorder %s7, 3
    %p69 = pnand %p67, %p68
    %p70 = pneg %p69
    // Predicated region
    $region9: #{_lambda_.14} parent=5 // pred_check
      _
    $region10: #{_lambda_.14} parent=5 // pred_check_branch
      %72 = sbr.rel (%p69) target = $region12
    $region11: #{_lambda_.14} parent=5 // pred_region
      %s73 = ssub.s32 %s7, 1
    $region12: #{_lambda_.14} parent=5 // pred_fallthru
      _
    %p74 = scmp.lt.s32.totalorder %s7, 2
    // Predicated region
    $region13: #{_lambda_.14} parent=5 // pred_check
      %p75 = pneg %p74
    $region14: #{_lambda_.14} parent=5 // pred_check_branch
      %77 = sbr.rel (%p75) target = $region16
    $region15: #{_lambda_.14} parent=5 // pred_region
      // Predicated region
      $region17: #{_lambda_.14} parent=15 // pred_check
        %p78 = pneg %p27
      $region18: #{_lambda_.14} parent=15 // pred_check_branch
        %80 = sbr.rel (%p78) target = $region20
      $region19: #{_lambda_.14} parent=15 // pred_region
        %p81 = scmp.lt.s32.totalorder %s7, 1
        %s82 = scalar_select %p81, %s7, 1
        %s83 = smul.addr %s82, 20
        %s84 = smul.addr %s83, 8
        %s85 = scalar_lea.vmem %s0, %s84
      $region20: #{_lambda_.14} parent=15 // pred_fallthru
        _
    $region16: #{_lambda_.14} parent=5 // pred_fallthru
      _
    %p86 = scmp.le.s32.totalorder 1, %s7
    %p87 = scmp.lt.s32.totalorder %s7, 3
    %p88 = pnand %p86, %p87
    %p89 = pneg %p88
    // Predicated region
    $region21: #{_lambda_.14} parent=5 // pred_check
      _
    $region22: #{_lambda_.14} parent=5 // pred_check_branch
      %91 = sbr.rel (%p88) target = $region24
    $region23: #{_lambda_.14} parent=5 // pred_region
      %s92 = ssub.s32 %s7, 1
      %p93 = scmp.lt.s32.totalorder %s12, 1
      %s94 = scalar_select %p93, %s12, 1
      %s95 = smul.addr %s94, 20
      %s96 = smul.addr %s95, 8
      %s97 = scalar_lea.vmem %s0, %s96
      %p98 = pneg %p33
      %p99 = pneg %p30
      %p100 = pneg %p59
      %p101 = pneg %p56
      %p102 = scmp.lt.s32.totalorder %s12, 1
      %s103 = scalar_select %p102, %s12, 1
      %s104 = smul.addr %s103, 8
      %s105 = smul.addr %s104, 8
      %s106 = scalar_lea.vmem %s1, %s105
      %p107 = scmp.lt.s32.totalorder %s12, 1
      %s108 = scalar_select %p107, %s12, 1
      %s109 = smul.addr %s108, 20
      %s110 = smul.addr %s109, 8
      %s111 = scalar_lea.vmem %s0, %s110
      %p112 = scmp.lt.s32.totalorder %s12, 1
      %s113 = scalar_select %p112, %s12, 1
      %s114 = smul.addr %s113, 8
      %s115 = smul.addr %s114, 8
      %s116 = scalar_lea.vmem %s1, %s115
      %v117 = vld [vmem:[%s111] sm:$0xff]
      %v118 = vld [vmem:[%s111 + $0x8] sm:$0x3]
      %v119 = vld [vmem:[%s111 + $0x10] sm:$0xff]
      %v120 = vld [vmem:[%s111 + $0x18] sm:$0x3]
      %v121 = vld [vmem:[%s111 + $0x20] sm:$0xff]
      %v122 = vld [vmem:[%s111 + $0x28] sm:$0x3]
      %v123 = vld [vmem:[%s111 + $0x30] sm:$0xff]
      %v124 = vld [vmem:[%s111 + $0x38] sm:$0x3]
      %v125 = vld [vmem:[%s111 + $0x40] sm:$0xff]
      %v126 = vld [vmem:[%s111 + $0x48] sm:$0x3]
      %v127 = vld [vmem:[%s111 + $0x50] sm:$0xff]
      %v128 = vld [vmem:[%s111 + $0x58] sm:$0x3]
      %v129 = vld [vmem:[%s111 + $0x60] sm:$0xff]
      %v130 = vld [vmem:[%s111 + $0x68] sm:$0x3]
      %v131 = vld [vmem:[%s111 + $0x70] sm:$0xff]
      %v132 = vld [vmem:[%s111 + $0x78] sm:$0x3]
      %v133 = vld [vmem:[%s111 + $0x80] sm:$0xff]
      %v134 = vld [vmem:[%s111 + $0x88] sm:$0x3]
      %v135 = vld [vmem:[%s111 + $0x90] sm:$0xff]
      %v136 = vld [vmem:[%s111 + $0x98] sm:$0x3]
      %v137 = vadd.f32 %v117, 0.0
      %v138 = vadd.f32 %v119, 0.0
      %v139 = vadd.f32 %v121, 0.0
      %v140 = vadd.f32 %v123, 0.0
      %v141 = vadd.f32 %v125, 0.0
      %v142 = vadd.f32 %v127, 0.0
      %v143 = vadd.f32 %v129, 0.0
      %v144 = vadd.f32 %v131, 0.0
      %vm161 = vcmask 1046528
      %v162 = vrot.slane %v117, 1
      %v163 = vrot.slane %v118, 1
      %v164 = vsel %vm161, %v162, %v163
      %v165 = vrot.slane %v119, 1
      %v166 = vrot.slane %v120, 1
      %v167 = vsel %vm161, %v165, %v166
      %v168 = vrot.slane %v121, 1
      %v169 = vrot.slane %v122, 1
      %v170 = vsel %vm161, %v168, %v169
      %v171 = vrot.slane %v123, 1
      %v172 = vrot.slane %v124, 1
      %v173 = vsel %vm161, %v171, %v172
      %v174 = vrot.slane %v125, 1
      %v175 = vrot.slane %v126, 1
      %v176 = vsel %vm161, %v174, %v175
      %v177 = vrot.slane %v127, 1
      %v178 = vrot.slane %v128, 1
      %v179 = vsel %vm161, %v177, %v178
      %v180 = vrot.slane %v129, 1
      %v181 = vrot.slane %v130, 1
      %v182 = vsel %vm161, %v180, %v181
      %v183 = vrot.slane %v131, 1
      %v184 = vrot.slane %v132, 1
      %v185 = vsel %vm161, %v183, %v184
      %v194 = vadd.f32 %v137, %v164
      %v195 = vadd.f32 %v138, %v167
      %v196 = vadd.f32 %v139, %v170
      %v197 = vadd.f32 %v140, %v173
      %v198 = vadd.f32 %v141, %v176
      %v199 = vadd.f32 %v142, %v179
      %v200 = vadd.f32 %v143, %v182
      %v201 = vadd.f32 %v144, %v185
      %vm202 = vcmask 1045504
      %v203 = vrot.slane %v117, 2
      %v204 = vrot.slane %v118, 2
      %v205 = vsel %vm202, %v203, %v204
      %v206 = vrot.slane %v119, 2
      %v207 = vrot.slane %v120, 2
      %v208 = vsel %vm202, %v206, %v207
      %v209 = vrot.slane %v121, 2
      %v210 = vrot.slane %v122, 2
      %v211 = vsel %vm202, %v209, %v210
      %v212 = vrot.slane %v123, 2
      %v213 = vrot.slane %v124, 2
      %v214 = vsel %vm202, %v212, %v213
      %v215 = vrot.slane %v125, 2
      %v216 = vrot.slane %v126, 2
      %v217 = vsel %vm202, %v215, %v216
      %v218 = vrot.slane %v127, 2
      %v219 = vrot.slane %v128, 2
      %v220 = vsel %vm202, %v218, %v219
      %v221 = vrot.slane %v129, 2
      %v222 = vrot.slane %v130, 2
      %v223 = vsel %vm202, %v221, %v222
      %v224 = vrot.slane %v131, 2
      %v225 = vrot.slane %v132, 2
      %v226 = vsel %vm202, %v224, %v225
      %v235 = vadd.f32 %v194, %v205
      %v236 = vadd.f32 %v195, %v208
      %v237 = vadd.f32 %v196, %v211
      %v238 = vadd.f32 %v197, %v214
      %v239 = vadd.f32 %v198, %v217
      %v240 = vadd.f32 %v199, %v220
      %v241 = vadd.f32 %v200, %v223
      %v242 = vadd.f32 %v201, %v226
      %v243 = vadd.f32 %v235, %v119
      %v244 = vadd.f32 %v236, %v121
      %v245 = vadd.f32 %v237, %v123
      %v246 = vadd.f32 %v238, %v125
      %v247 = vadd.f32 %v239, %v127
      %v248 = vadd.f32 %v240, %v129
      %v249 = vadd.f32 %v241, %v131
      %v250 = vadd.f32 %v242, %v133
      %v253 = vrot.slane %v133, 1
      %v254 = vrot.slane %v134, 1
      %v255 = vsel %vm161, %v253, %v254
      %v257 = vadd.f32 %v243, %v167
      %v258 = vadd.f32 %v244, %v170
      %v259 = vadd.f32 %v245, %v173
      %v260 = vadd.f32 %v246, %v176
      %v261 = vadd.f32 %v247, %v179
      %v262 = vadd.f32 %v248, %v182
      %v263 = vadd.f32 %v249, %v185
      %v264 = vadd.f32 %v250, %v255
      %v265 = vrot.slane %v133, 2
      %v266 = vrot.slane %v134, 2
      %v267 = vsel %vm202, %v265, %v266
      %v269 = vadd.f32 %v257, %v208
      %v270 = vadd.f32 %v258, %v211
      %v271 = vadd.f32 %v259, %v214
      %v272 = vadd.f32 %v260, %v217
      %v273 = vadd.f32 %v261, %v220
      %v274 = vadd.f32 %v262, %v223
      %v275 = vadd.f32 %v263, %v226
      %v276 = vadd.f32 %v264, %v267
      %v277 = vadd.f32 %v269, %v121
      %v278 = vadd.f32 %v270, %v123
      %v279 = vadd.f32 %v271, %v125
      %v280 = vadd.f32 %v272, %v127
      %v281 = vadd.f32 %v273, %v129
      %v282 = vadd.f32 %v274, %v131
      %v283 = vadd.f32 %v275, %v133
      %v284 = vadd.f32 %v276, %v135
      %v287 = vrot.slane %v135, 1
      %v288 = vrot.slane %v136, 1
      %v289 = vsel %vm161, %v287, %v288
      %v291 = vadd.f32 %v277, %v170
      %v292 = vadd.f32 %v278, %v173
      %v293 = vadd.f32 %v279, %v176
      %v294 = vadd.f32 %v280, %v179
      %v295 = vadd.f32 %v281, %v182
      %v296 = vadd.f32 %v282, %v185
      %v297 = vadd.f32 %v283, %v255
      %v298 = vadd.f32 %v284, %v289
      %v299 = vrot.slane %v135, 2
      %v300 = vrot.slane %v136, 2
      %v301 = vsel %vm202, %v299, %v300
      %v303 = vadd.f32 %v291, %v211
      %v304 = vadd.f32 %v292, %v214
      %v305 = vadd.f32 %v293, %v217
      %v306 = vadd.f32 %v294, %v220
      %v307 = vadd.f32 %v295, %v223
      %v308 = vadd.f32 %v296, %v226
      %v309 = vadd.f32 %v297, %v267
      %v310 = vadd.f32 %v298, %v301
      %v311 = vmul.f32 %v119, 9.0
      %v312 = vmul.f32 %v120, 9.0
      %v313 = vmul.f32 %v121, 9.0
      %v314 = vmul.f32 %v122, 9.0
      %v315 = vmul.f32 %v123, 9.0
      %v316 = vmul.f32 %v124, 9.0
      %v317 = vmul.f32 %v125, 9.0
      %v318 = vmul.f32 %v126, 9.0
      %v319 = vmul.f32 %v127, 9.0
      %v320 = vmul.f32 %v128, 9.0
      %v321 = vmul.f32 %v129, 9.0
      %v322 = vmul.f32 %v130, 9.0
      %v323 = vmul.f32 %v131, 9.0
      %v324 = vmul.f32 %v132, 9.0
      %v325 = vmul.f32 %v133, 9.0
      %v326 = vmul.f32 %v134, 9.0
      %v335 = vrot.slane %v303, 7
      %v336 = vrot.slane %v304, 7
      %v337 = vrot.slane %v305, 7
      %v338 = vrot.slane %v306, 7
      %v339 = vrot.slane %v307, 7
      %v340 = vrot.slane %v308, 7
      %v341 = vrot.slane %v309, 7
      %v342 = vrot.slane %v310, 7
      %v351 = vsub.f32 %v311, %v335
      %v352 = vsub.f32 %v312, %v335
      %v353 = vsub.f32 %v313, %v336
      %v354 = vsub.f32 %v314, %v336
      %v355 = vsub.f32 %v315, %v337
      %v356 = vsub.f32 %v316, %v337
      %v357 = vsub.f32 %v317, %v338
      %v358 = vsub.f32 %v318, %v338
      %v359 = vsub.f32 %v319, %v339
      %v360 = vsub.f32 %v320, %v339
      %v361 = vsub.f32 %v321, %v340
      %v362 = vsub.f32 %v322, %v340
      %v363 = vsub.f32 %v323, %v341
      %v364 = vsub.f32 %v324, %v341
      %v365 = vsub.f32 %v325, %v342
      %v366 = vsub.f32 %v326, %v342
      %v367 = vand.u32 2147483647, %v351
      %v368 = vand.u32 2147483647, %v352
      %v369 = vand.u32 2147483647, %v353
      %v370 = vand.u32 2147483647, %v354
      %v371 = vand.u32 2147483647, %v355
      %v372 = vand.u32 2147483647, %v356
      %v373 = vand.u32 2147483647, %v357
      %v374 = vand.u32 2147483647, %v358
      %v375 = vand.u32 2147483647, %v359
      %v376 = vand.u32 2147483647, %v360
      %v377 = vand.u32 2147483647, %v361
      %v378 = vand.u32 2147483647, %v362
      %v379 = vand.u32 2147483647, %v363
      %v380 = vand.u32 2147483647, %v364
      %v381 = vand.u32 2147483647, %v365
      %v382 = vand.u32 2147483647, %v366
      %vm383 = vcmask 261121
      %384 = vst.msk [vmem:[%s116 - $0x1] sm:$0xfe] %vm383, %v367
      %vm385 = vcmask 253952
      %386 = vst.msk [vmem:[%s116 + $0x7] sm:$0x1] %vm385, %v368
      %387 = vst.msk [vmem:[%s116 + $0x7] sm:$0xfe] %vm383, %v369
      %388 = vst.msk [vmem:[%s116 + $0xf] sm:$0x1] %vm385, %v370
      %389 = vst.msk [vmem:[%s116 + $0xf] sm:$0xfe] %vm383, %v371
      %390 = vst.msk [vmem:[%s116 + $0x17] sm:$0x1] %vm385, %v372
      %391 = vst.msk [vmem:[%s116 + $0x17] sm:$0xfe] %vm383, %v373
      %392 = vst.msk [vmem:[%s116 + $0x1f] sm:$0x1] %vm385, %v374
      %393 = vst.msk [vmem:[%s116 + $0x1f] sm:$0xfe] %vm383, %v375
      %394 = vst.msk [vmem:[%s116 + $0x27] sm:$0x1] %vm385, %v376
      %395 = vst.msk [vmem:[%s116 + $0x27] sm:$0xfe] %vm383, %v377
      %396 = vst.msk [vmem:[%s116 + $0x2f] sm:$0x1] %vm385, %v378
      %397 = vst.msk [vmem:[%s116 + $0x2f] sm:$0xfe] %vm383, %v379
      %398 = vst.msk [vmem:[%s116 + $0x37] sm:$0x1] %vm385, %v380
      %399 = vst.msk [vmem:[%s116 + $0x37] sm:$0xfe] %vm383, %v381
      %400 = vst.msk [vmem:[%s116 + $0x3f] sm:$0x1] %vm385, %v382
      %p401 = scmp.lt.s32.totalorder %s12, 1
      %s402 = scalar_select %p401, %s12, 1
      %s403 = smul.addr %s402, 8
      %s404 = smul.addr %s403, 8
      %s405 = scalar_lea.vmem %s1, %s404
      // Predicated region
      $region25: #{_lambda_.14} parent=23 // pred_check
        %p406 = pneg %p56
      $region26: #{_lambda_.14} parent=23 // pred_check_branch
        %408 = sbr.rel (%p406) target = $region28
      $region27: #{_lambda_.14} parent=23 // pred_region
        _
      $region28: #{_lambda_.14} parent=23 // pred_fallthru
        _
    $region24: #{_lambda_.14} parent=5 // pred_fallthru
      _
    %p409 = scmp.le.s32.totalorder 2, %s7
    // Predicated region
    $region29: #{_lambda_.14} parent=5 // pred_check
      %p410 = pneg %p409
    $region30: #{_lambda_.14} parent=5 // pred_check_branch
      %412 = sbr.rel (%p410) target = $region32
    $region31: #{_lambda_.14} parent=5 // pred_region
      %s413 = ssub.s32 %s7, 2
      // Predicated region
      $region33: #{_lambda_.14} parent=31 // pred_check
        %p414 = pneg %p62
      $region34: #{_lambda_.14} parent=31 // pred_check_branch
        %416 = sbr.rel (%p414) target = $region36
      $region35: #{_lambda_.14} parent=31 // pred_region
        %p417 = scmp.lt.s32.totalorder %s13, 1
        %s418 = scalar_select %p417, %s13, 1
        %s419 = smul.addr %s418, 8
        %s420 = smul.addr %s419, 8
        %s421 = scalar_lea.vmem %s1, %s420
      $region36: #{_lambda_.14} parent=31 // pred_fallthru
        _
    $region32: #{_lambda_.14} parent=5 // pred_fallthru
      _
  $region6: #{_lambda_.14} parent=0 // loop_footer
    %s11 = sadd.s32 1, %s7
  $region7: #{_lambda_.14} parent=0 // loop_footer_branch
    %6 = sbr.rel target = $region3
  $region8: #{_lambda_.14} parent=0 // loop_exit
    _

// kernel: _lambda_.13
$region0: #{_lambda_.13}
  #allocation0 [shape = 'u32[]', space=smem, size = 0x4, offset = 0x4, fixed_abs, tag = 'smem constant byte address 0x4 - core index']
  #allocation1 [shape = 'u32[144,128]{1,0:T(1,128)}', space=vmem, size = 0x12000, scoped, tag = 'internal scratch']
  %s0 = inlined_call_operand.vmem [shape: f32[2,10,10,8], index: 0, kind: input, shape index: {}]
  %s1 = inlined_call_operand.vmem [shape: f32[3,3,8,32], index: 1, kind: input, shape index: {}]
  %s2 = inlined_call_operand.vmem [shape: f32[1,32], index: 2, kind: input, shape index: {}]
  %s3 = inlined_call_operand.vmem [shape: f32[2,8,8,32], index: 3, kind: output, shape index: {}]
  %s4 = sld [smem:[#allocation0]]
  $region45: #{_lambda_.13} parent=0
    _
  %s6 = ssub.s32 1, %s4
  %s7 = scalar_select 0, %s6, %s4
  loop: start=0, step=1, limit=4
  $region2: #{_lambda_.13} parent=0 // loop_pre_header
    _
  $region3: #{_lambda_.13} parent=0 // loop_header
    %s9 = sphi 0, %s13
    %p10 = scmp.ge.s32.totalorder %s9, 4
    %s19 = sphi 0, %s21
    %s22 = sphi 0, %s19
    %s23 = sphi 0, %s22
    %s39 = sphi 0, %s23
    %s43 = sphi 0, %s43
    %s45 = sphi 0, %s43
    %s46 = sphi 0, %s45
    %s60 = sphi 0, %s46
    %s64 = sphi 0, %s64
    %s66 = sphi 0, %s64
    %s67 = sphi 0, %s66
    %s81 = sphi 0, %s67
    %s87 = sphi 0, %s89
    %s90 = sphi 0, %s87
    %s91 = sphi 0, %s90
    %s107 = sphi 0, %s91
  $region4: #{_lambda_.13} parent=0 // loop_header_branch
    %12 = sbr.rel (%p10) target = $region8
  $region5: #{_lambda_.13} parent=0 // loop_body
    %s14 = ssub.s32 %s9, 1
    %s15 = ssub.s32 %s9, 2
    %s16 = sadd.s32 %s9, 1
    %s17 = ssub.s32 %s9, %s16
    %p18 = scmp.eq.s32.totalorder %s17, 0
    %s20 = sadd.s32 %s19, 1
    %s21 = scalar_select %p18, %s19, %s20
    %p24 = pneg %p18
    %p25 = scmp.eq.s32.totalorder %s9, 1
    %p26 = por %p24, %p25
    %p27 = scmp.ne.s32.totalorder %s19, %s22
    %p28 = scmp.eq.s32.totalorder %s9, 0
    %p29 = por %p27, %p28
    %p30 = scmp.ne.s32.totalorder %s19, %s22
    %p31 = scmp.eq.s32.totalorder %s14, 1
    %p32 = por %p30, %p31
    %p33 = scmp.ne.s32.totalorder %s22, %s23
    %p34 = scmp.eq.s32.totalorder %s14, 0
    %p35 = por %p33, %p34
    %p36 = scmp.ne.s32.totalorder %s22, %s23
    %p37 = scmp.eq.s32.totalorder %s15, 1
    %p38 = por %p36, %p37
    %p40 = scmp.ne.s32.totalorder %s23, %s39
    %p41 = scmp.eq.s32.totalorder %s15, 0
    %p42 = por %p40, %p41
    %s44 = sadd.s32 %s43, 1
    %p47 = scmp.eq.s32.totalorder %s9, 1
    %p48 = scmp.ne.s32.totalorder %s43, %s45
    %p49 = scmp.eq.s32.totalorder %s9, 0
    %p50 = por %p48, %p49
    %p51 = scmp.ne.s32.totalorder %s43, %s45
    %p52 = scmp.eq.s32.totalorder %s14, 1
    %p53 = por %p51, %p52
    %p54 = scmp.ne.s32.totalorder %s45, %s46
    %p55 = scmp.eq.s32.totalorder %s14, 0
    %p56 = por %p54, %p55
    %p57 = scmp.ne.s32.totalorder %s45, %s46
    %p58 = scmp.eq.s32.totalorder %s15, 1
    %p59 = por %p57, %p58
    %p61 = scmp.ne.s32.totalorder %s46, %s60
    %p62 = scmp.eq.s32.totalorder %s15, 0
    %p63 = por %p61, %p62
    %s65 = sadd.s32 %s64, 1
    %p68 = scmp.eq.s32.totalorder %s9, 1
    %p69 = scmp.ne.s32.totalorder %s64, %s66
    %p70 = scmp.eq.s32.totalorder %s9, 0
    %p71 = por %p69, %p70
    %p72 = scmp.ne.s32.totalorder %s64, %s66
    %p73 = scmp.eq.s32.totalorder %s14, 1
    %p74 = por %p72, %p73
    %p75 = scmp.ne.s32.totalorder %s66, %s67
    %p76 = scmp.eq.s32.totalorder %s14, 0
    %p77 = por %p75, %p76
    %p78 = scmp.ne.s32.totalorder %s66, %s67
    %p79 = scmp.eq.s32.totalorder %s15, 1
    %p80 = por %p78, %p79
    %p82 = scmp.ne.s32.totalorder %s67, %s81
    %p83 = scmp.eq.s32.totalorder %s15, 0
    %p84 = por %p82, %p83
    %s85 = ssub.s32 %s9, %s16
    %p86 = scmp.eq.s32.totalorder %s85, 0
    %s88 = sadd.s32 %s87, 1
    %s89 = scalar_select %p86, %s87, %s88
    %p92 = pneg %p86
    %p93 = scmp.eq.s32.totalorder %s9, 1
    %p94 = por %p92, %p93
    %p95 = scmp.ne.s32.totalorder %s87, %s90
    %p96 = scmp.eq.s32.totalorder %s9, 0
    %p97 = por %p95, %p96
    %p98 = scmp.ne.s32.totalorder %s87, %s90
    %p99 = scmp.eq.s32.totalorder %s14, 1
    %p100 = por %p98, %p99
    %p101 = scmp.ne.s32.totalorder %s90, %s91
    %p102 = scmp.eq.s32.totalorder %s14, 0
    %p103 = por %p101, %p102
    %p104 = scmp.ne.s32.totalorder %s90, %s91
    %p105 = scmp.eq.s32.totalorder %s15, 1
    %p106 = por %p104, %p105
    %p108 = scmp.ne.s32.totalorder %s91, %s107
    %p109 = scmp.eq.s32.totalorder %s15, 0
    %p110 = por %p108, %p109
    %p111 = scmp.le.s32.totalorder 1, %s9
    %p112 = scmp.lt.s32.totalorder %s9, 3
    %p113 = pnand %p111, %p112
    %p114 = pneg %p113
    // Predicated region
    $region9: #{_lambda_.13} parent=5 // pred_check
      _
    $region10: #{_lambda_.13} parent=5 // pred_check_branch
      %116 = sbr.rel (%p113) target = $region12
    $region11: #{_lambda_.13} parent=5 // pred_region
      %s117 = ssub.s32 %s9, 1
      // Predicated region
      $region13: #{_lambda_.13} parent=11 // pred_check
        %p118 = pneg %p56
      $region14: #{_lambda_.13} parent=11 // pred_check_branch
        %120 = sbr.rel (%p118) target = $region16
      $region15: #{_lambda_.13} parent=11 // pred_region
        _
      $region16: #{_lambda_.13} parent=11 // pred_fallthru
        _
      // Predicated region
      $region17: #{_lambda_.13} parent=11 // pred_check
        %p121 = pneg %p77
      $region18: #{_lambda_.13} parent=11 // pred_check_branch
        %123 = sbr.rel (%p121) target = $region20
      $region19: #{_lambda_.13} parent=11 // pred_region
        _
      $region20: #{_lambda_.13} parent=11 // pred_fallthru
        _
    $region12: #{_lambda_.13} parent=5 // pred_fallthru
      _
    %p124 = scmp.lt.s32.totalorder %s9, 2
    // Predicated region
    $region21: #{_lambda_.13} parent=5 // pred_check
      %p125 = pneg %p124
    $region22: #{_lambda_.13} parent=5 // pred_check_branch
      %127 = sbr.rel (%p125) target = $region24
    $region23: #{_lambda_.13} parent=5 // pred_region
      // Predicated region
      $region25: #{_lambda_.13} parent=23 // pred_check
        %p128 = pneg %p29
      $region26: #{_lambda_.13} parent=23 // pred_check_branch
        %130 = sbr.rel (%p128) target = $region28
      $region27: #{_lambda_.13} parent=23 // pred_region
        %p131 = scmp.lt.s32.totalorder %s9, 1
        %s132 = scalar_select %p131, %s9, 1
        %s133 = smul.addr %s132, 20
        %s134 = smul.addr %s133, 8
        %s135 = scalar_lea.vmem %s0, %s134
      $region28: #{_lambda_.13} parent=23 // pred_fallthru
        _
    $region24: #{_lambda_.13} parent=5 // pred_fallthru
      _
    %p136 = scmp.le.s32.totalorder 1, %s9
    %p137 = scmp.lt.s32.totalorder %s9, 3
    %p138 = pnand %p136, %p137
    %p139 = pneg %p138
    // Predicated region
    $region29: #{_lambda_.13} parent=5 // pred_check
      _
    $region30: #{_lambda_.13} parent=5 // pred_check_branch
      %141 = sbr.rel (%p138) target = $region32
    $region31: #{_lambda_.13} parent=5 // pred_region
      %s142 = ssub.s32 %s9, 1
      %p143 = scmp.lt.s32.totalorder %s14, 1
      %s144 = scalar_select %p143, %s14, 1
      %s145 = smul.addr %s144, 20
      %s146 = smul.addr %s145, 8
      %s147 = scalar_lea.vmem %s0, %s146
      %p148 = pneg %p35
      %p149 = pneg %p32
      %p150 = pneg %p56
      %p151 = pneg %p53
      %p152 = pneg %p77
      %p153 = pneg %p74
      %p154 = pneg %p103
      %p155 = pneg %p100
      %p156 = scmp.lt.s32.totalorder %s14, 1
      %s157 = scalar_select %p156, %s14, 1
      %s158 = smul.addr %s157, 8
      %s159 = smul.addr %s158, 8
      %s160 = scalar_lea.vmem %s3, %s159
      %p161 = scmp.lt.s32.totalorder %s14, 1
      %s162 = scalar_select %p161, %s14, 1
      %s163 = smul.addr %s162, 20
      %s164 = smul.addr %s163, 8
      %s165 = scalar_lea.vmem %s0, %s164
      %p166 = scmp.lt.s32.totalorder %s14, 1
      %s167 = scalar_select %p166, %s14, 1
      %s168 = smul.addr %s167, 8
      %s169 = smul.addr %s168, 8
      %s170 = scalar_lea.vmem %s3, %s169
      %v171 = vld [vmem:[%s165] sm:$0xff]
      %v172 = vld [vmem:[%s165 + $0x8] sm:$0x3]
      %v173 = vld [vmem:[%s165 + $0x10] sm:$0xff]
      %v174 = vld [vmem:[%s165 + $0x18] sm:$0x3]
      %v175 = vld [vmem:[%s165 + $0x20] sm:$0xff]
      %v176 = vld [vmem:[%s165 + $0x28] sm:$0x3]
      %v177 = vld [vmem:[%s165 + $0x30] sm:$0xff]
      %v178 = vld [vmem:[%s165 + $0x38] sm:$0x3]
      %v179 = vld [vmem:[%s165 + $0x40] sm:$0xff]
      %v180 = vld [vmem:[%s165 + $0x48] sm:$0x3]
      %v181 = vld [vmem:[%s165 + $0x50] sm:$0xff]
      %v182 = vld [vmem:[%s165 + $0x58] sm:$0x3]
      %v183 = vld [vmem:[%s165 + $0x60] sm:$0xff]
      %v184 = vld [vmem:[%s165 + $0x68] sm:$0x3]
      %v185 = vld [vmem:[%s165 + $0x70] sm:$0xff]
      %v186 = vld [vmem:[%s165 + $0x78] sm:$0x3]
      %v187 = vld [vmem:[%s165 + $0x80] sm:$0xff]
      %v188 = vld [vmem:[%s165 + $0x88] sm:$0x3]
      %v189 = vld [vmem:[%s165 + $0x90] sm:$0xff]
      %v190 = vld [vmem:[%s165 + $0x98] sm:$0x3]
      %v191 = vld [vmem:[%s1] sm:$0xff]
      %vm208 = vcmask 1046528
      %v209 = vrot.slane %v171, 1
      %v210 = vrot.slane %v172, 1
      %v211 = vsel %vm208, %v209, %v210
      %v212 = vrot.slane %v173, 1
      %v213 = vrot.slane %v174, 1
      %v214 = vsel %vm208, %v212, %v213
      %v215 = vrot.slane %v175, 1
      %v216 = vrot.slane %v176, 1
      %v217 = vsel %vm208, %v215, %v216
      %v218 = vrot.slane %v177, 1
      %v219 = vrot.slane %v178, 1
      %v220 = vsel %vm208, %v218, %v219
      %v221 = vrot.slane %v179, 1
      %v222 = vrot.slane %v180, 1
      %v223 = vsel %vm208, %v221, %v222
      %v224 = vrot.slane %v181, 1
      %v225 = vrot.slane %v182, 1
      %v226 = vsel %vm208, %v224, %v225
      %v227 = vrot.slane %v183, 1
      %v228 = vrot.slane %v184, 1
      %v229 = vsel %vm208, %v227, %v228
      %v230 = vrot.slane %v185, 1
      %v231 = vrot.slane %v186, 1
      %v232 = vsel %vm208, %v230, %v231
      %s233 = scalar_lea.vmem %s1, 8
      %v234 = vld [vmem:[%s233] sm:$0xff]
      %vm235 = vcmask 64512
      %v236 = vsel %vm235, %v211, 0
      %v238 = vsel %vm235, %v214, 0
      %v240 = vsel %vm235, %v217, 0
      %v242 = vsel %vm235, %v220, 0
      %v244 = vsel %vm235, %v223, 0
      %v246 = vsel %vm235, %v226, 0
      %v248 = vsel %vm235, %v229, 0
      %v250 = vsel %vm235, %v232, 0
      %252 = vmatprep.subr.mxu0 0.0
      %253 = vmatpush1.msra.mxu0 %v234
      %254 = vmatprep.subr.mxu0 0.0
      %255 = vmatpush1.msra.mxu0 0.0
      %256 = vmatprep.subr.mxu0 0.0
      %257 = vmatpush1.msra.mxu0 0.0
      %258 = vmatprep.subr.mxu0 0.0
      %259 = vmatpush1.msra.mxu0 0.0
      %260 = vmatprep.subr.mxu0 0.0
      %261 = vmatpush1.msra.mxu0 0.0
      %262 = vmatprep.subr.mxu0 0.0
      %263 = vmatpush1.msra.mxu0 0.0
      %264 = vmatprep.subr.mxu0 0.0
      %265 = vmatpush1.msra.mxu0 0.0
      %266 = vmatprep.subr.mxu0 0.0
      %267 = vmatpush1.msra.mxu0 0.0
      %268 = vmatprep.subr.mxu0 0.0
      %269 = vmatpush1.msra.mxu0 0.0
      %270 = vmatprep.subr.mxu0 0.0
      %271 = vmatpush1.msra.mxu0 0.0
      %272 = vmatprep.subr.mxu0 0.0
      %273 = vmatpush1.msra.mxu0 0.0
      %274 = vmatprep.subr.mxu0 0.0
      %275 = vmatpush1.msra.mxu0 0.0
      %276 = vmatprep.subr.mxu0 0.0
      %277 = vmatpush1.msra.mxu0 0.0
      %278 = vmatprep.subr.mxu0 0.0
      %279 = vmatpush1.msra.mxu0 0.0
      %280 = vmatprep.subr.mxu0 0.0
      %281 = vmatpush1.msra.mxu0 0.0
      %282 = vmatprep.subr.mxu0 0.0
      %283 = vmatpush1.msra.mxu0 0.0
      %284 = vmatprep.subr.mxu0 0.0
      %285 = vmatpush1.msra.mxu0 0.0
      %286 = vmatprep.subr.mxu0 0.0
      %287 = vmatpush1.msra.mxu0 0.0
      %288 = vmatprep.subr.mxu0 0.0
      %289 = vmatpush1.msra.mxu0 0.0
      %290 = vmatprep.subr.mxu0 0.0
      %291 = vmatpush1.msra.mxu0 0.0
      %292 = vmatprep.subr.mxu0 0.0
      %293 = vmatpush1.msra.mxu0 0.0
      %294 = vmatprep.subr.mxu0 0.0
      %295 = vmatpush1.msra.mxu0 0.0
      %296 = vmatprep.subr.mxu0 0.0
      %297 = vmatpush1.msra.mxu0 0.0
      %298 = vmatprep.subr.mxu0 0.0
      %299 = vmatpush1.msra.mxu0 0.0
      %300 = vmatprep.subr.mxu0 0.0
      %301 = vmatpush1.msra.mxu0 0.0
      %302 = vmatprep.subr.mxu0 0.0
      %303 = vmatpush1.msra.mxu0 0.0
      %304 = vmatprep.subr.mxu0 0.0
      %305 = vmatpush1.msra.mxu0 0.0
      %306 = vmatprep.subr.mxu0 0.0
      %307 = vmatpush1.msra.mxu0 0.0
      %308 = vmatprep.subr.mxu0 0.0
      %309 = vmatpush1.msra.mxu0 0.0
      %310 = vmatprep.subr.mxu0 0.0
      %311 = vmatpush1.msra.mxu0 0.0
      %312 = vmatprep.subr.mxu0 0.0
      %313 = vmatpush1.msra.mxu0 0.0
      %314 = vmatprep.subr.mxu0 0.0
      %315 = vmatpush1.msra.mxu0 0.0
      %316 = vmatprep.mubr.f32.mxu0 0.0
      %317 = vmatmul.mubr.f32.gmra.mrb[0].mxu0 %v236
      %v318 = vpop.f32.mrb[0].mxu0
      %v319 = vadd.f32 0.0, %v318
      %v320 = vpop.f32.mrb[0].mxu0
      %321 = vmatprep.mubr.f32.mxu0 0.0
      %322 = vmatmul.mubr.f32.gmra.mrb[0].mxu0 %v238
      %v323 = vpop.f32.mrb[0].mxu0
      %v324 = vadd.f32 0.0, %v323
      %v325 = vpop.f32.mrb[0].mxu0
      %326 = vmatprep.mubr.f32.mxu0 0.0
      %327 = vmatmul.mubr.f32.gmra.mrb[0].mxu0 %v240
      %v328 = vpop.f32.mrb[0].mxu0
      %v329 = vadd.f32 0.0, %v328
      %v330 = vpop.f32.mrb[0].mxu0
      %331 = vmatprep.mubr.f32.mxu0 0.0
      %332 = vmatmul.mubr.f32.gmra.mrb[0].mxu0 %v242
      %v333 = vpop.f32.mrb[0].mxu0
      %v334 = vadd.f32 0.0, %v333
      %v335 = vpop.f32.mrb[0].mxu0
      %336 = vmatprep.mubr.f32.mxu0 0.0
      %337 = vmatmul.mubr.f32.gmra.mrb[0].mxu0 %v244
      %v338 = vpop.f32.mrb[0].mxu0
      %v339 = vadd.f32 0.0, %v338
      %v340 = vpop.f32.mrb[0].mxu0
      %341 = vmatprep.mubr.f32.mxu0 0.0
      %342 = vmatmul.mubr.f32.gmra.mrb[0].mxu0 %v246
      %v343 = vpop.f32.mrb[0].mxu0
      %v344 = vadd.f32 0.0, %v343
      %v345 = vpop.f32.mrb[0].mxu0
      %346 = vmatprep.mubr.f32.mxu0 0.0
      %347 = vmatmul.mubr.f32.gmra.mrb[0].mxu0 %v248
      %v348 = vpop.f32.mrb[0].mxu0
      %v349 = vadd.f32 0.0, %v348
      %v350 = vpop.f32.mrb[0].mxu0
      %351 = vmatprep.mubr.f32.mxu0 0.0
      %352 = vmatmul.mubr.f32.gmra.mrb[0].mxu0 %v250
      %v353 = vpop.f32.mrb[0].mxu0
      %v354 = vadd.f32 0.0, %v353
      %v355 = vpop.f32.mrb[0].mxu0
      %356 = vdwg.mxu0
      %v357 = vsel %vm235, %v171, 0
      %v359 = vsel %vm235, %v173, 0
      %v361 = vsel %vm235, %v175, 0
      %v363 = vsel %vm235, %v177, 0
      %v365 = vsel %vm235, %v179, 0
      %v367 = vsel %vm235, %v181, 0
      %v369 = vsel %vm235, %v183, 0
      %v371 = vsel %vm235, %v185, 0
      %373 = vmatprep.subr.mxu0 0.0
      %374 = vmatpush1.msra.mxu0 %v191
      %375 = vmatprep.subr.mxu0 0.0
      %376 = vmatpush1.msra.mxu0 0.0
      %377 = vmatprep.subr.mxu0 0.0
      %378 = vmatpush1.msra.mxu0 0.0
      %379 = vmatprep.subr.mxu0 0.0
      %380 = vmatpush1.msra.mxu0 0.0
      %381 = vmatprep.subr.mxu0 0.0
      %382 = vmatpush1.msra.mxu0 0.0
      %383 = vmatprep.subr.mxu0 0.0
      %384 = vmatpush1.msra.mxu0 0.0
      %385 = vmatprep.subr.mxu0 0.0
      %386 = vmatpush1.msra.mxu0 0.0
      %387 = vmatprep.subr.mxu0 0.0
      %388 = vmatpush1.msra.mxu0 0.0
      %389 = vmatprep.subr.mxu0 0.0
      %390 = vmatpush1.msra.mxu0 0.0
      %391 = vmatprep.subr.mxu0 0.0
      %392 = vmatpush1.msra.mxu0 0.0
      %393 = vmatprep.subr.mxu0 0.0
      %394 = vmatpush1.msra.mxu0 0.0
      %395 = vmatprep.subr.mxu0 0.0
      %396 = vmatpush1.msra.mxu0 0.0
      %397 = vmatprep.subr.mxu0 0.0
      %398 = vmatpush1.msra.mxu0 0.0
      %399 = vmatprep.subr.mxu0 0.0
      %400 = vmatpush1.msra.mxu0 0.0
      %401 = vmatprep.subr.mxu0 0.0
      %402 = vmatpush1.msra.mxu0 0.0
      %403 = vmatprep.subr.mxu0 0.0
      %404 = vmatpush1.msra.mxu0 0.0
      %405 = vmatprep.subr.mxu0 0.0
      %406 = vmatpush1.msra.mxu0 0.0
      %407 = vmatprep.subr.mxu0 0.0
      %408 = vmatpush1.msra.mxu0 0.0
      %409 = vmatprep.subr.mxu0 0.0
      %410 = vmatpush1.msra.mxu0 0.0
      %411 = vmatprep.subr.mxu0 0.0
      %412 = vmatpush1.msra.mxu0 0.0
      %413 = vmatprep.subr.mxu0 0.0
      %414 = vmatpush1.msra.mxu0 0.0
      %415 = vmatprep.subr.mxu0 0.0
      %416 = vmatpush1.msra.mxu0 0.0
      %417 = vmatprep.subr.mxu0 0.0
      %418 = vmatpush1.msra.mxu0 0.0
      %419 = vmatprep.subr.mxu0 0.0
      %420 = vmatpush1.msra.mxu0 0.0
      %421 = vmatprep.subr.mxu0 0.0
      %422 = vmatpush1.msra.mxu0 0.0
      %423 = vmatprep.subr.mxu0 0.0
      %424 = vmatpush1.msra.mxu0 0.0
      %425 = vmatprep.subr.mxu0 0.0
      %426 = vmatpush1.msra.mxu0 0.0
      %427 = vmatprep.subr.mxu0 0.0
      %428 = vmatpush1.msra.mxu0 0.0
      %429 = vmatprep.subr.mxu0 0.0
      %430 = vmatpush1.msra.mxu0 0.0
      %431 = vmatprep.subr.mxu0 0.0
      %432 = vmatpush1.msra.mxu0 0.0
      %433 = vmatprep.subr.mxu0 0.0
      %434 = vmatpush1.msra.mxu0 0.0
      %435 = vmatprep.subr.mxu0 0.0
      %436 = vmatpush1.msra.mxu0 0.0
      %437 = vmatprep.mubr.f32.mxu0 0.0
      %438 = vmatmul.mubr.f32.gmra.mrb[0].mxu0 %v357
      %v439 = vpop.f32.mrb[0].mxu0
      %v440 = vadd.f32 %v319, %v439
      %v441 = vpop.f32.mrb[0].mxu0
      %442 = vmatprep.mubr.f32.mxu0 0.0
      %443 = vmatmul.mubr.f32.gmra.mrb[0].mxu0 %v359
      %v444 = vpop.f32.mrb[0].mxu0
      %v445 = vadd.f32 %v324, %v444
      %v446 = vpop.f32.mrb[0].mxu0
      %447 = vmatprep.mubr.f32.mxu0 0.0
      %448 = vmatmul.mubr.f32.gmra.mrb[0].mxu0 %v361
      %v449 = vpop.f32.mrb[0].mxu0
      %v450 = vadd.f32 %v329, %v449
      %v451 = vpop.f32.mrb[0].mxu0
      %452 = vmatprep.mubr.f32.mxu0 0.0
      %453 = vmatmul.mubr.f32.gmra.mrb[0].mxu0 %v363
      %v454 = vpop.f32.mrb[0].mxu0
      %v455 = vadd.f32 %v334, %v454
      %v456 = vpop.f32.mrb[0].mxu0
      %457 = vmatprep.mubr.f32.mxu0 0.0
      %458 = vmatmul.mubr.f32.gmra.mrb[0].mxu0 %v365
      %v459 = vpop.f32.mrb[0].mxu0
      %v460 = vadd.f32 %v339, %v459
      %v461 = vpop.f32.mrb[0].mxu0
      %462 = vmatprep.mubr.f32.mxu0 0.0
      %463 = vmatmul.mubr.f32.gmra.mrb[0].mxu0 %v367
      %v464 = vpop.f32.mrb[0].mxu0
      %v465 = vadd.f32 %v344, %v464
      %v466 = vpop.f32.mrb[0].mxu0
      %467 = vmatprep.mubr.f32.mxu0 0.0
      %468 = vmatmul.mubr.f32.gmra.mrb[0].mxu0 %v369
      %v469 = vpop.f32.mrb[0].mxu0
      %v470 = vadd.f32 %v349, %v469
      %v471 = vpop.f32.mrb[0].mxu0
      %472 = vmatprep.mubr.f32.mxu0 0.0
      %473 = vmatmul.mubr.f32.gmra.mrb[0].mxu0 %v371
      %v474 = vpop.f32.mrb[0].mxu0
      %v475 = vadd.f32 %v354, %v474
      %v476 = vpop.f32.mrb[0].mxu0
      %477 = vdwg.mxu0
      %vm478 = vcmask 1045504
      %v479 = vrot.slane %v171, 2
      %v480 = vrot.slane %v172, 2
      %v481 = vsel %vm478, %v479, %v480
      %v482 = vrot.slane %v173, 2
      %v483 = vrot.slane %v174, 2
      %v484 = vsel %vm478, %v482, %v483
      %v485 = vrot.slane %v175, 2
      %v486 = vrot.slane %v176, 2
      %v487 = vsel %vm478, %v485, %v486
      %v488 = vrot.slane %v177, 2
      %v489 = vrot.slane %v178, 2
      %v490 = vsel %vm478, %v488, %v489
      %v491 = vrot.slane %v179, 2
      %v492 = vrot.slane %v180, 2
      %v493 = vsel %vm478, %v491, %v492
      %v494 = vrot.slane %v181, 2
      %v495 = vrot.slane %v182, 2
      %v496 = vsel %vm478, %v494, %v495
      %v497 = vrot.slane %v183, 2
      %v498 = vrot.slane %v184, 2
      %v499 = vsel %vm478, %v497, %v498
      %v500 = vrot.slane %v185, 2
      %v501 = vrot.slane %v186, 2
      %v502 = vsel %vm478, %v500, %v501
      %s503 = scalar_lea.vmem %s1, 16
      %v504 = vld [vmem:[%s503] sm:$0xff]
      %v505 = vsel %vm235, %v481, 0
      %v507 = vsel %vm235, %v484, 0
      %v509 = vsel %vm235, %v487, 0
      %v511 = vsel %vm235, %v490, 0
      %v513 = vsel %vm235, %v493, 0
      %v515 = vsel %vm235, %v496, 0
      %v517 = vsel %vm235, %v499, 0
      %v519 = vsel %vm235, %v502, 0
      %521 = vmatprep.subr.mxu0 0.0
      %522 = vmatpush1.msra.mxu0 %v504
      %523 = vmatprep.subr.mxu0 0.0
      %524 = vmatpush1.msra.mxu0 0.0
      %525 = vmatprep.subr.mxu0 0.0
      %526 = vmatpush1.msra.mxu0 0.0
      %527 = vmatprep.subr.mxu0 0.0
      %528 = vmatpush1.msra.mxu0 0.0
      %529 = vmatprep.subr.mxu0 0.0
      %530 = vmatpush1.msra.mxu0 0.0
      %531 = vmatprep.subr.mxu0 0.0
      %532 = vmatpush1.msra.mxu0 0.0
      %533 = vmatprep.subr.mxu0 0.0
      %534 = vmatpush1.msra.mxu0 0.0
      %535 = vmatprep.subr.mxu0 0.0
      %536 = vmatpush1.msra.mxu0 0.0
      %537 = vmatprep.subr.mxu0 0.0
      %538 = vmatpush1.msra.mxu0 0.0
      %539 = vmatprep.subr.mxu0 0.0
      %540 = vmatpush1.msra.mxu0 0.0
      %541 = vmatprep.subr.mxu0 0.0
      %542 = vmatpush1.msra.mxu0 0.0
      %543 = vmatprep.subr.mxu0 0.0
      %544 = vmatpush1.msra.mxu0 0.0
      %545 = vmatprep.subr.mxu0 0.0
      %546 = vmatpush1.msra.mxu0 0.0
      %547 = vmatprep.subr.mxu0 0.0
      %548 = vmatpush1.msra.mxu0 0.0
      %549 = vmatprep.subr.mxu0 0.0
      %550 = vmatpush1.msra.mxu0 0.0
      %551 = vmatprep.subr.mxu0 0.0
      %552 = vmatpush1.msra.mxu0 0.0
      %553 = vmatprep.subr.mxu0 0.0
      %554 = vmatpush1.msra.mxu0 0.0
      %555 = vmatprep.subr.mxu0 0.0
      %556 = vmatpush1.msra.mxu0 0.0
      %557 = vmatprep.subr.mxu0 0.0
      %558 = vmatpush1.msra.mxu0 0.0
      %559 = vmatprep.subr.mxu0 0.0
      %560 = vmatpush1.msra.mxu0 0.0
      %561 = vmatprep.subr.mxu0 0.0
      %562 = vmatpush1.msra.mxu0 0.0
      %563 = vmatprep.subr.mxu0 0.0
      %564 = vmatpush1.msra.mxu0 0.0
      %565 = vmatprep.subr.mxu0 0.0
      %566 = vmatpush1.msra.mxu0 0.0
      %567 = vmatprep.subr.mxu0 0.0
      %568 = vmatpush1.msra.mxu0 0.0
      %569 = vmatprep.subr.mxu0 0.0
      %570 = vmatpush1.msra.mxu0 0.0
      %571 = vmatprep.subr.mxu0 0.0
      %572 = vmatpush1.msra.mxu0 0.0
      %573 = vmatprep.subr.mxu0 0.0
      %574 = vmatpush1.msra.mxu0 0.0
      %575 = vmatprep.subr.mxu0 0.0
      %576 = vmatpush1.msra.mxu0 0.0
      %577 = vmatprep.subr.mxu0 0.0
      %578 = vmatpush1.msra.mxu0 0.0
      %579 = vmatprep.subr.mxu0 0.0
      %580 = vmatpush1.msra.mxu0 0.0
      %581 = vmatprep.subr.mxu0 0.0
      %582 = vmatpush1.msra.mxu0 0.0
      %583 = vmatprep.subr.mxu0 0.0
      %584 = vmatpush1.msra.mxu0 0.0
      %585 = vmatprep.mubr.f32.mxu0 0.0
      %586 = vmatmul.mubr.f32.gmra.mrb[0].mxu0 %v505
      %v587 = vpop.f32.mrb[0].mxu0
      %v588 = vadd.f32 0.0, %v587
      %v589 = vpop.f32.mrb[0].mxu0
      %590 = vmatprep.mubr.f32.mxu0 0.0
      %591 = vmatmul.mubr.f32.gmra.mrb[0].mxu0 %v507
      %v592 = vpop.f32.mrb[0].mxu0
      %v593 = vadd.f32 0.0, %v592
      %v594 = vpop.f32.mrb[0].mxu0
      %595 = vmatprep.mubr.f32.mxu0 0.0
      %596 = vmatmul.mubr.f32.gmra.mrb[0].mxu0 %v509
      %v597 = vpop.f32.mrb[0].mxu0
      %v598 = vadd.f32 0.0, %v597
      %v599 = vpop.f32.mrb[0].mxu0
      %600 = vmatprep.mubr.f32.mxu0 0.0
      %601 = vmatmul.mubr.f32.gmra.mrb[0].mxu0 %v511
      %v602 = vpop.f32.mrb[0].mxu0
      %v603 = vadd.f32 0.0, %v602
      %v604 = vpop.f32.mrb[0].mxu0
      %605 = vmatprep.mubr.f32.mxu0 0.0
      %606 = vmatmul.mubr.f32.gmra.mrb[0].mxu0 %v513
      %v607 = vpop.f32.mrb[0].mxu0
      %v608 = vadd.f32 0.0, %v607
      %v609 = vpop.f32.mrb[0].mxu0
      %610 = vmatprep.mubr.f32.mxu0 0.0
      %611 = vmatmul.mubr.f32.gmra.mrb[0].mxu0 %v515
      %v612 = vpop.f32.mrb[0].mxu0
      %v613 = vadd.f32 0.0, %v612
      %v614 = vpop.f32.mrb[0].mxu0
      %615 = vmatprep.mubr.f32.mxu0 0.0
      %616 = vmatmul.mubr.f32.gmra.mrb[0].mxu0 %v517
      %v617 = vpop.f32.mrb[0].mxu0
      %v618 = vadd.f32 0.0, %v617
      %v619 = vpop.f32.mrb[0].mxu0
      %620 = vmatprep.mubr.f32.mxu0 0.0
      %621 = vmatmul.mubr.f32.gmra.mrb[0].mxu0 %v519
      %v622 = vpop.f32.mrb[0].mxu0
      %v623 = vadd.f32 0.0, %v622
      %v624 = vpop.f32.mrb[0].mxu0
      %625 = vdwg.mxu0
      %v626 = vadd.f32 %v440, %v588
      %v627 = vadd.f32 %v445, %v593
      %v628 = vadd.f32 %v450, %v598
      %v629 = vadd.f32 %v455, %v603
      %v630 = vadd.f32 %v460, %v608
      %v631 = vadd.f32 %v465, %v613
      %v632 = vadd.f32 %v470, %v618
      %v633 = vadd.f32 %v475, %v623
      %s634 = scalar_lea.vmem %s1, 24
      %v635 = vld [vmem:[%s634] sm:$0xff]
      %v637 = vsel %vm235, %v187, 0
      %639 = vmatprep.subr.mxu0 0.0
      %640 = vmatpush1.msra.mxu0 %v635
      %641 = vmatprep.subr.mxu0 0.0
      %642 = vmatpush1.msra.mxu0 0.0
      %643 = vmatprep.subr.mxu0 0.0
      %644 = vmatpush1.msra.mxu0 0.0
      %645 = vmatprep.subr.mxu0 0.0
      %646 = vmatpush1.msra.mxu0 0.0
      %647 = vmatprep.subr.mxu0 0.0
      %648 = vmatpush1.msra.mxu0 0.0
      %649 = vmatprep.subr.mxu0 0.0
      %650 = vmatpush1.msra.mxu0 0.0
      %651 = vmatprep.subr.mxu0 0.0
      %652 = vmatpush1.msra.mxu0 0.0
      %653 = vmatprep.subr.mxu0 0.0
      %654 = vmatpush1.msra.mxu0 0.0
      %655 = vmatprep.subr.mxu0 0.0
      %656 = vmatpush1.msra.mxu0 0.0
      %657 = vmatprep.subr.mxu0 0.0
      %658 = vmatpush1.msra.mxu0 0.0
      %659 = vmatprep.subr.mxu0 0.0
      %660 = vmatpush1.msra.mxu0 0.0
      %661 = vmatprep.subr.mxu0 0.0
      %662 = vmatpush1.msra.mxu0 0.0
      %663 = vmatprep.subr.mxu0 0.0
      %664 = vmatpush1.msra.mxu0 0.0
      %665 = vmatprep.subr.mxu0 0.0
      %666 = vmatpush1.msra.mxu0 0.0
      %667 = vmatprep.subr.mxu0 0.0
      %668 = vmatpush1.msra.mxu0 0.0
      %669 = vmatprep.subr.mxu0 0.0
      %670 = vmatpush1.msra.mxu0 0.0
      %671 = vmatprep.subr.mxu0 0.0
      %672 = vmatpush1.msra.mxu0 0.0
      %673 = vmatprep.subr.mxu0 0.0
      %674 = vmatpush1.msra.mxu0 0.0
      %675 = vmatprep.subr.mxu0 0.0
      %676 = vmatpush1.msra.mxu0 0.0
      %677 = vmatprep.subr.mxu0 0.0
      %678 = vmatpush1.msra.mxu0 0.0
      %679 = vmatprep.subr.mxu0 0.0
      %680 = vmatpush1.msra.mxu0 0.0
      %681 = vmatprep.subr.mxu0 0.0
      %682 = vmatpush1.msra.mxu0 0.0
      %683 = vmatprep.subr.mxu0 0.0
      %684 = vmatpush1.msra.mxu0 0.0
      %685 = vmatprep.subr.mxu0 0.0
      %686 = vmatpush1.msra.mxu0 0.0
      %687 = vmatprep.subr.mxu0 0.0
      %688 = vmatpush1.msra.mxu0 0.0
      %689 = vmatprep.subr.mxu0 0.0
      %690 = vmatpush1.msra.mxu0 0.0
      %691 = vmatprep.subr.mxu0 0.0
      %692 = vmatpush1.msra.mxu0 0.0
      %693 = vmatprep.subr.mxu0 0.0
      %694 = vmatpush1.msra.mxu0 0.0
      %695 = vmatprep.subr.mxu0 0.0
      %696 = vmatpush1.msra.mxu0 0.0
      %697 = vmatprep.subr.mxu0 0.0
      %698 = vmatpush1.msra.mxu0 0.0
      %699 = vmatprep.subr.mxu0 0.0
      %700 = vmatpush1.msra.mxu0 0.0
      %701 = vmatprep.subr.mxu0 0.0
      %702 = vmatpush1.msra.mxu0 0.0
      %703 = vmatprep.mubr.f32.mxu0 0.0
      %704 = vmatmul.mubr.f32.gmra.mrb[0].mxu0 %v359
      %v705 = vpop.f32.mrb[0].mxu0
      %v706 = vadd.f32 0.0, %v705
      %v707 = vpop.f32.mrb[0].mxu0
      %708 = vmatprep.mubr.f32.mxu0 0.0
      %709 = vmatmul.mubr.f32.gmra.mrb[0].mxu0 %v361
      %v710 = vpop.f32.mrb[0].mxu0
      %v711 = vadd.f32 0.0, %v710
      %v712 = vpop.f32.mrb[0].mxu0
      %713 = vmatprep.mubr.f32.mxu0 0.0
      %714 = vmatmul.mubr.f32.gmra.mrb[0].mxu0 %v363
      %v715 = vpop.f32.mrb[0].mxu0
      %v716 = vadd.f32 0.0, %v715
      %v717 = vpop.f32.mrb[0].mxu0
      %718 = vmatprep.mubr.f32.mxu0 0.0
      %719 = vmatmul.mubr.f32.gmra.mrb[0].mxu0 %v365
      %v720 = vpop.f32.mrb[0].mxu0
      %v721 = vadd.f32 0.0, %v720
      %v722 = vpop.f32.mrb[0].mxu0
      %723 = vmatprep.mubr.f32.mxu0 0.0
      %724 = vmatmul.mubr.f32.gmra.mrb[0].mxu0 %v367
      %v725 = vpop.f32.mrb[0].mxu0
      %v726 = vadd.f32 0.0, %v725
      %v727 = vpop.f32.mrb[0].mxu0
      %728 = vmatprep.mubr.f32.mxu0 0.0
      %729 = vmatmul.mubr.f32.gmra.mrb[0].mxu0 %v369
      %v730 = vpop.f32.mrb[0].mxu0
      %v731 = vadd.f32 0.0, %v730
      %v732 = vpop.f32.mrb[0].mxu0
      %733 = vmatprep.mubr.f32.mxu0 0.0
      %734 = vmatmul.mubr.f32.gmra.mrb[0].mxu0 %v371
      %v735 = vpop.f32.mrb[0].mxu0
      %v736 = vadd.f32 0.0, %v735
      %v737 = vpop.f32.mrb[0].mxu0
      %738 = vmatprep.mubr.f32.mxu0 0.0
      %739 = vmatmul.mubr.f32.gmra.mrb[0].mxu0 %v637
      %v740 = vpop.f32.mrb[0].mxu0
      %v741 = vadd.f32 0.0, %v740
      %v742 = vpop.f32.mrb[0].mxu0
      %743 = vdwg.mxu0
      %v744 = vadd.f32 %v626, %v706
      %v745 = vadd.f32 %v627, %v711
      %v746 = vadd.f32 %v628, %v716
      %v747 = vadd.f32 %v629, %v721
      %v748 = vadd.f32 %v630, %v726
      %v749 = vadd.f32 %v631, %v731
      %v750 = vadd.f32 %v632, %v736
      %v751 = vadd.f32 %v633, %v741
      %v753 = vrot.slane %v187, 1
      %v754 = vrot.slane %v188, 1
      %v755 = vsel %vm208, %v753, %v754
      %s756 = scalar_lea.vmem %s1, 32
      %v757 = vld [vmem:[%s756] sm:$0xff]
      %v758 = vsel %vm235, %v755, 0
      %760 = vmatprep.subr.mxu0 0.0
      %761 = vmatpush1.msra.mxu0 %v757
      %762 = vmatprep.subr.mxu0 0.0
      %763 = vmatpush1.msra.mxu0 0.0
      %764 = vmatprep.subr.mxu0 0.0
      %765 = vmatpush1.msra.mxu0 0.0
      %766 = vmatprep.subr.mxu0 0.0
      %767 = vmatpush1.msra.mxu0 0.0
      %768 = vmatprep.subr.mxu0 0.0
      %769 = vmatpush1.msra.mxu0 0.0
      %770 = vmatprep.subr.mxu0 0.0
      %771 = vmatpush1.msra.mxu0 0.0
      %772 = vmatprep.subr.mxu0 0.0
      %773 = vmatpush1.msra.mxu0 0.0
      %774 = vmatprep.subr.mxu0 0.0
      %775 = vmatpush1.msra.mxu0 0.0
      %776 = vmatprep.subr.mxu0 0.0
      %777 = vmatpush1.msra.mxu0 0.0
      %778 = vmatprep.subr.mxu0 0.0
      %779 = vmatpush1.msra.mxu0 0.0
      %780 = vmatprep.subr.mxu0 0.0
      %781 = vmatpush1.msra.mxu0 0.0
      %782 = vmatprep.subr.mxu0 0.0
      %783 = vmatpush1.msra.mxu0 0.0
      %784 = vmatprep.subr.mxu0 0.0
      %785 = vmatpush1.msra.mxu0 0.0
      %786 = vmatprep.subr.mxu0 0.0
      %787 = vmatpush1.msra.mxu0 0.0
      %788 = vmatprep.subr.mxu0 0.0
      %789 = vmatpush1.msra.mxu0 0.0
      %790 = vmatprep.subr.mxu0 0.0
      %791 = vmatpush1.msra.mxu0 0.0
      %792 = vmatprep.subr.mxu0 0.0
      %793 = vmatpush1.msra.mxu0 0.0
      %794 = vmatprep.subr.mxu0 0.0
      %795 = vmatpush1.msra.mxu0 0.0
      %796 = vmatprep.subr.mxu0 0.0
      %797 = vmatpush1.msra.mxu0 0.0
      %798 = vmatprep.subr.mxu0 0.0
      %799 = vmatpush1.msra.mxu0 0.0
      %800 = vmatprep.subr.mxu0 0.0
      %801 = vmatpush1.msra.mxu0 0.0
      %802 = vmatprep.subr.mxu0 0.0
      %803 = vmatpush1.msra.mxu0 0.0
      %804 = vmatprep.subr.mxu0 0.0
      %805 = vmatpush1.msra.mxu0 0.0
      %806 = vmatprep.subr.mxu0 0.0
      %807 = vmatpush1.msra.mxu0 0.0
      %808 = vmatprep.subr.mxu0 0.0
      %809 = vmatpush1.msra.mxu0 0.0
      %810 = vmatprep.subr.mxu0 0.0
      %811 = vmatpush1.msra.mxu0 0.0
      %812 = vmatprep.subr.mxu0 0.0
      %813 = vmatpush1.msra.mxu0 0.0
      %814 = vmatprep.subr.mxu0 0.0
      %815 = vmatpush1.msra.mxu0 0.0
      %816 = vmatprep.subr.mxu0 0.0
      %817 = vmatpush1.msra.mxu0 0.0
      %818 = vmatprep.subr.mxu0 0.0
      %819 = vmatpush1.msra.mxu0 0.0
      %820 = vmatprep.subr.mxu0 0.0
      %821 = vmatpush1.msra.mxu0 0.0
      %822 = vmatprep.subr.mxu0 0.0
      %823 = vmatpush1.msra.mxu0 0.0
      %824 = vmatprep.mubr.f32.mxu0 0.0
      %825 = vmatmul.mubr.f32.gmra.mrb[0].mxu0 %v238
      %v826 = vpop.f32.mrb[0].mxu0
      %v827 = vadd.f32 0.0, %v826
      %v828 = vpop.f32.mrb[0].mxu0
      %829 = vmatprep.mubr.f32.mxu0 0.0
      %830 = vmatmul.mubr.f32.gmra.mrb[0].mxu0 %v240
      %v831 = vpop.f32.mrb[0].mxu0
      %v832 = vadd.f32 0.0, %v831
      %v833 = vpop.f32.mrb[0].mxu0
      %834 = vmatprep.mubr.f32.mxu0 0.0
      %835 = vmatmul.mubr.f32.gmra.mrb[0].mxu0 %v242
      %v836 = vpop.f32.mrb[0].mxu0
      %v837 = vadd.f32 0.0, %v836
      %v838 = vpop.f32.mrb[0].mxu0
      %839 = vmatprep.mubr.f32.mxu0 0.0
      %840 = vmatmul.mubr.f32.gmra.mrb[0].mxu0 %v244
      %v841 = vpop.f32.mrb[0].mxu0
      %v842 = vadd.f32 0.0, %v841
      %v843 = vpop.f32.mrb[0].mxu0
      %844 = vmatprep.mubr.f32.mxu0 0.0
      %845 = vmatmul.mubr.f32.gmra.mrb[0].mxu0 %v246
      %v846 = vpop.f32.mrb[0].mxu0
      %v847 = vadd.f32 0.0, %v846
      %v848 = vpop.f32.mrb[0].mxu0
      %849 = vmatprep.mubr.f32.mxu0 0.0
      %850 = vmatmul.mubr.f32.gmra.mrb[0].mxu0 %v248
      %v851 = vpop.f32.mrb[0].mxu0
      %v852 = vadd.f32 0.0, %v851
      %v853 = vpop.f32.mrb[0].mxu0
      %854 = vmatprep.mubr.f32.mxu0 0.0
      %855 = vmatmul.mubr.f32.gmra.mrb[0].mxu0 %v250
      %v856 = vpop.f32.mrb[0].mxu0
      %v857 = vadd.f32 0.0, %v856
      %v858 = vpop.f32.mrb[0].mxu0
      %859 = vmatprep.mubr.f32.mxu0 0.0
      %860 = vmatmul.mubr.f32.gmra.mrb[0].mxu0 %v758
      %v861 = vpop.f32.mrb[0].mxu0
      %v862 = vadd.f32 0.0, %v861
      %v863 = vpop.f32.mrb[0].mxu0
      %864 = vdwg.mxu0
      %v865 = vadd.f32 %v744, %v827
      %v866 = vadd.f32 %v745, %v832
      %v867 = vadd.f32 %v746, %v837
      %v868 = vadd.f32 %v747, %v842
      %v869 = vadd.f32 %v748, %v847
      %v870 = vadd.f32 %v749, %v852
      %v871 = vadd.f32 %v750, %v857
      %v872 = vadd.f32 %v751, %v862
      %v873 = vrot.slane %v187, 2
      %v874 = vrot.slane %v188, 2
      %v875 = vsel %vm478, %v873, %v874
      %s876 = scalar_lea.vmem %s1, 40
      %v877 = vld [vmem:[%s876] sm:$0xff]
      %v878 = vsel %vm235, %v875, 0
      %880 = vmatprep.subr.mxu0 0.0
      %881 = vmatpush1.msra.mxu0 %v877
      %882 = vmatprep.subr.mxu0 0.0
      %883 = vmatpush1.msra.mxu0 0.0
      %884 = vmatprep.subr.mxu0 0.0
      %885 = vmatpush1.msra.mxu0 0.0
      %886 = vmatprep.subr.mxu0 0.0
      %887 = vmatpush1.msra.mxu0 0.0
      %888 = vmatprep.subr.mxu0 0.0
      %889 = vmatpush1.msra.mxu0 0.0
      %890 = vmatprep.subr.mxu0 0.0
      %891 = vmatpush1.msra.mxu0 0.0
      %892 = vmatprep.subr.mxu0 0.0
      %893 = vmatpush1.msra.mxu0 0.0
      %894 = vmatprep.subr.mxu0 0.0
      %895 = vmatpush1.msra.mxu0 0.0
      %896 = vmatprep.subr.mxu0 0.0
      %897 = vmatpush1.msra.mxu0 0.0
      %898 = vmatprep.subr.mxu0 0.0
      %899 = vmatpush1.msra.mxu0 0.0
      %900 = vmatprep.subr.mxu0 0.0
      %901 = vmatpush1.msra.mxu0 0.0
      %902 = vmatprep.subr.mxu0 0.0
      %903 = vmatpush1.msra.mxu0 0.0
      %904 = vmatprep.subr.mxu0 0.0
      %905 = vmatpush1.msra.mxu0 0.0
      %906 = vmatprep.subr.mxu0 0.0
      %907 = vmatpush1.msra.mxu0 0.0
      %908 = vmatprep.subr.mxu0 0.0
      %909 = vmatpush1.msra.mxu0 0.0
      %910 = vmatprep.subr.mxu0 0.0
      %911 = vmatpush1.msra.mxu0 0.0
      %912 = vmatprep.subr.mxu0 0.0
      %913 = vmatpush1.msra.mxu0 0.0
      %914 = vmatprep.subr.mxu0 0.0
      %915 = vmatpush1.msra.mxu0 0.0
      %916 = vmatprep.subr.mxu0 0.0
      %917 = vmatpush1.msra.mxu0 0.0
      %918 = vmatprep.subr.mxu0 0.0
      %919 = vmatpush1.msra.mxu0 0.0
      %920 = vmatprep.subr.mxu0 0.0
      %921 = vmatpush1.msra.mxu0 0.0
      %922 = vmatprep.subr.mxu0 0.0
      %923 = vmatpush1.msra.mxu0 0.0
      %924 = vmatprep.subr.mxu0 0.0
      %925 = vmatpush1.msra.mxu0 0.0
      %926 = vmatprep.subr.mxu0 0.0
      %927 = vmatpush1.msra.mxu0 0.0
      %928 = vmatprep.subr.mxu0 0.0
      %929 = vmatpush1.msra.mxu0 0.0
      %930 = vmatprep.subr.mxu0 0.0
      %931 = vmatpush1.msra.mxu0 0.0
      %932 = vmatprep.subr.mxu0 0.0
      %933 = vmatpush1.msra.mxu0 0.0
      %934 = vmatprep.subr.mxu0 0.0
      %935 = vmatpush1.msra.mxu0 0.0
      %936 = vmatprep.subr.mxu0 0.0
      %937 = vmatpush1.msra.mxu0 0.0
      %938 = vmatprep.subr.mxu0 0.0
      %939 = vmatpush1.msra.mxu0 0.0
      %940 = vmatprep.subr.mxu0 0.0
      %941 = vmatpush1.msra.mxu0 0.0
      %942 = vmatprep.subr.mxu0 0.0
      %943 = vmatpush1.msra.mxu0 0.0
      %944 = vmatprep.mubr.f32.mxu0 0.0
      %945 = vmatmul.mubr.f32.gmra.mrb[0].mxu0 %v507
      %v946 = vpop.f32.mrb[0].mxu0
      %v947 = vadd.f32 0.0, %v946
      %v948 = vpop.f32.mrb[0].mxu0
      %949 = vmatprep.mubr.f32.mxu0 0.0
      %950 = vmatmul.mubr.f32.gmra.mrb[0].mxu0 %v509
      %v951 = vpop.f32.mrb[0].mxu0
      %v952 = vadd.f32 0.0, %v951
      %v953 = vpop.f32.mrb[0].mxu0
      %954 = vmatprep.mubr.f32.mxu0 0.0
      %955 = vmatmul.mubr.f32.gmra.mrb[0].mxu0 %v511
      %v956 = vpop.f32.mrb[0].mxu0
      %v957 = vadd.f32 0.0, %v956
      %v958 = vpop.f32.mrb[0].mxu0
      %959 = vmatprep.mubr.f32.mxu0 0.0
      %960 = vmatmul.mubr.f32.gmra.mrb[0].mxu0 %v513
      %v961 = vpop.f32.mrb[0].mxu0
      %v962 = vadd.f32 0.0, %v961
      %v963 = vpop.f32.mrb[0].mxu0
      %964 = vmatprep.mubr.f32.mxu0 0.0
      %965 = vmatmul.mubr.f32.gmra.mrb[0].mxu0 %v515
      %v966 = vpop.f32.mrb[0].mxu0
      %v967 = vadd.f32 0.0, %v966
      %v968 = vpop.f32.mrb[0].mxu0
      %969 = vmatprep.mubr.f32.mxu0 0.0
      %970 = vmatmul.mubr.f32.gmra.mrb[0].mxu0 %v517
      %v971 = vpop.f32.mrb[0].mxu0
      %v972 = vadd.f32 0.0, %v971
      %v973 = vpop.f32.mrb[0].mxu0
      %974 = vmatprep.mubr.f32.mxu0 0.0
      %975 = vmatmul.mubr.f32.gmra.mrb[0].mxu0 %v519
      %v976 = vpop.f32.mrb[0].mxu0
      %v977 = vadd.f32 0.0, %v976
      %v978 = vpop.f32.mrb[0].mxu0
      %979 = vmatprep.mubr.f32.mxu0 0.0
      %980 = vmatmul.mubr.f32.gmra.mrb[0].mxu0 %v878
      %v981 = vpop.f32.mrb[0].mxu0
      %v982 = vadd.f32 0.0, %v981
      %v983 = vpop.f32.mrb[0].mxu0
      %984 = vdwg.mxu0
      %v985 = vadd.f32 %v865, %v947
      %v986 = vadd.f32 %v866, %v952
      %v987 = vadd.f32 %v867, %v957
      %v988 = vadd.f32 %v868, %v962
      %v989 = vadd.f32 %v869, %v967
      %v990 = vadd.f32 %v870, %v972
      %v991 = vadd.f32 %v871, %v977
      %v992 = vadd.f32 %v872, %v982
      %s993 = scalar_lea.vmem %s1, 48
      %v994 = vld [vmem:[%s993] sm:$0xff]
      %v996 = vsel %vm235, %v189, 0
      %998 = vmatprep.subr.mxu0 0.0
      %999 = vmatpush1.msra.mxu0 %v994
      %1000 = vmatprep.subr.mxu0 0.0
      %1001 = vmatpush1.msra.mxu0 0.0
      %1002 = vmatprep.subr.mxu0 0.0
      %1003 = vmatpush1.msra.mxu0 0.0
      %1004 = vmatprep.subr.mxu0 0.0
      %1005 = vmatpush1.msra.mxu0 0.0
      %1006 = vmatprep.subr.mxu0 0.0
      %1007 = vmatpush1.msra.mxu0 0.0
      %1008 = vmatprep.subr.mxu0 0.0
      %1009 = vmatpush1.msra.mxu0 0.0
      %1010 = vmatprep.subr.mxu0 0.0
      %1011 = vmatpush1.msra.mxu0 0.0
      %1012 = vmatprep.subr.mxu0 0.0
      %1013 = vmatpush1.msra.mxu0 0.0
      %1014 = vmatprep.subr.mxu0 0.0
      %1015 = vmatpush1.msra.mxu0 0.0
      %1016 = vmatprep.subr.mxu0 0.0
      %1017 = vmatpush1.msra.mxu0 0.0
      %1018 = vmatprep.subr.mxu0 0.0
      %1019 = vmatpush1.msra.mxu0 0.0
      %1020 = vmatprep.subr.mxu0 0.0
      %1021 = vmatpush1.msra.mxu0 0.0
      %1022 = vmatprep.subr.mxu0 0.0
      %1023 = vmatpush1.msra.mxu0 0.0
      %1024 = vmatprep.subr.mxu0 0.0
      %1025 = vmatpush1.msra.mxu0 0.0
      %1026 = vmatprep.subr.mxu0 0.0
      %1027 = vmatpush1.msra.mxu0 0.0
      %1028 = vmatprep.subr.mxu0 0.0
      %1029 = vmatpush1.msra.mxu0 0.0
      %1030 = vmatprep.subr.mxu0 0.0
      %1031 = vmatpush1.msra.mxu0 0.0
      %1032 = vmatprep.subr.mxu0 0.0
      %1033 = vmatpush1.msra.mxu0 0.0
      %1034 = vmatprep.subr.mxu0 0.0
      %1035 = vmatpush1.msra.mxu0 0.0
      %1036 = vmatprep.subr.mxu0 0.0
      %1037 = vmatpush1.msra.mxu0 0.0
      %1038 = vmatprep.subr.mxu0 0.0
      %1039 = vmatpush1.msra.mxu0 0.0
      %1040 = vmatprep.subr.mxu0 0.0
      %1041 = vmatpush1.msra.mxu0 0.0
      %1042 = vmatprep.subr.mxu0 0.0
      %1043 = vmatpush1.msra.mxu0 0.0
      %1044 = vmatprep.subr.mxu0 0.0
      %1045 = vmatpush1.msra.mxu0 0.0
      %1046 = vmatprep.subr.mxu0 0.0
      %1047 = vmatpush1.msra.mxu0 0.0
      %1048 = vmatprep.subr.mxu0 0.0
      %1049 = vmatpush1.msra.mxu0 0.0
      %1050 = vmatprep.subr.mxu0 0.0
      %1051 = vmatpush1.msra.mxu0 0.0
      %1052 = vmatprep.subr.mxu0 0.0
      %1053 = vmatpush1.msra.mxu0 0.0
      %1054 = vmatprep.subr.mxu0 0.0
      %1055 = vmatpush1.msra.mxu0 0.0
      %1056 = vmatprep.subr.mxu0 0.0
      %1057 = vmatpush1.msra.mxu0 0.0
      %1058 = vmatprep.subr.mxu0 0.0
      %1059 = vmatpush1.msra.mxu0 0.0
      %1060 = vmatprep.subr.mxu0 0.0
      %1061 = vmatpush1.msra.mxu0 0.0
      %1062 = vmatprep.mubr.f32.mxu0 0.0
      %1063 = vmatmul.mubr.f32.gmra.mrb[0].mxu0 %v361
      %v1064 = vpop.f32.mrb[0].mxu0
      %v1065 = vadd.f32 0.0, %v1064
      %v1066 = vpop.f32.mrb[0].mxu0
      %1067 = vmatprep.mubr.f32.mxu0 0.0
      %1068 = vmatmul.mubr.f32.gmra.mrb[0].mxu0 %v363
      %v1069 = vpop.f32.mrb[0].mxu0
      %v1070 = vadd.f32 0.0, %v1069
      %v1071 = vpop.f32.mrb[0].mxu0
      %1072 = vmatprep.mubr.f32.mxu0 0.0
      %1073 = vmatmul.mubr.f32.gmra.mrb[0].mxu0 %v365
      %v1074 = vpop.f32.mrb[0].mxu0
      %v1075 = vadd.f32 0.0, %v1074
      %v1076 = vpop.f32.mrb[0].mxu0
      %1077 = vmatprep.mubr.f32.mxu0 0.0
      %1078 = vmatmul.mubr.f32.gmra.mrb[0].mxu0 %v367
      %v1079 = vpop.f32.mrb[0].mxu0
      %v1080 = vadd.f32 0.0, %v1079
      %v1081 = vpop.f32.mrb[0].mxu0
      %1082 = vmatprep.mubr.f32.mxu0 0.0
      %1083 = vmatmul.mubr.f32.gmra.mrb[0].mxu0 %v369
      %v1084 = vpop.f32.mrb[0].mxu0
      %v1085 = vadd.f32 0.0, %v1084
      %v1086 = vpop.f32.mrb[0].mxu0
      %1087 = vmatprep.mubr.f32.mxu0 0.0
      %1088 = vmatmul.mubr.f32.gmra.mrb[0].mxu0 %v371
      %v1089 = vpop.f32.mrb[0].mxu0
      %v1090 = vadd.f32 0.0, %v1089
      %v1091 = vpop.f32.mrb[0].mxu0
      %1092 = vmatprep.mubr.f32.mxu0 0.0
      %1093 = vmatmul.mubr.f32.gmra.mrb[0].mxu0 %v637
      %v1094 = vpop.f32.mrb[0].mxu0
      %v1095 = vadd.f32 0.0, %v1094
      %v1096 = vpop.f32.mrb[0].mxu0
      %1097 = vmatprep.mubr.f32.mxu0 0.0
      %1098 = vmatmul.mubr.f32.gmra.mrb[0].mxu0 %v996
      %v1099 = vpop.f32.mrb[0].mxu0
      %v1100 = vadd.f32 0.0, %v1099
      %v1101 = vpop.f32.mrb[0].mxu0
      %1102 = vdwg.mxu0
      %v1103 = vadd.f32 %v985, %v1065
      %v1104 = vadd.f32 %v986, %v1070
      %v1105 = vadd.f32 %v987, %v1075
      %v1106 = vadd.f32 %v988, %v1080
      %v1107 = vadd.f32 %v989, %v1085
      %v1108 = vadd.f32 %v990, %v1090
      %v1109 = vadd.f32 %v991, %v1095
      %v1110 = vadd.f32 %v992, %v1100
      %v1112 = vrot.slane %v189, 1
      %v1113 = vrot.slane %v190, 1
      %v1114 = vsel %vm208, %v1112, %v1113
      %s1115 = scalar_lea.vmem %s1, 56
      %v1116 = vld [vmem:[%s1115] sm:$0xff]
      %v1117 = vsel %vm235, %v1114, 0
      %1119 = vmatprep.subr.mxu0 0.0
      %1120 = vmatpush1.msra.mxu0 %v1116
      %1121 = vmatprep.subr.mxu0 0.0
      %1122 = vmatpush1.msra.mxu0 0.0
      %1123 = vmatprep.subr.mxu0 0.0
      %1124 = vmatpush1.msra.mxu0 0.0
      %1125 = vmatprep.subr.mxu0 0.0
      %1126 = vmatpush1.msra.mxu0 0.0
      %1127 = vmatprep.subr.mxu0 0.0
      %1128 = vmatpush1.msra.mxu0 0.0
      %1129 = vmatprep.subr.mxu0 0.0
      %1130 = vmatpush1.msra.mxu0 0.0
      %1131 = vmatprep.subr.mxu0 0.0
      %1132 = vmatpush1.msra.mxu0 0.0
      %1133 = vmatprep.subr.mxu0 0.0
      %1134 = vmatpush1.msra.mxu0 0.0
      %1135 = vmatprep.subr.mxu0 0.0
      %1136 = vmatpush1.msra.mxu0 0.0
      %1137 = vmatprep.subr.mxu0 0.0
      %1138 = vmatpush1.msra.mxu0 0.0
      %1139 = vmatprep.subr.mxu0 0.0
      %1140 = vmatpush1.msra.mxu0 0.0
      %1141 = vmatprep.subr.mxu0 0.0
      %1142 = vmatpush1.msra.mxu0 0.0
      %1143 = vmatprep.subr.mxu0 0.0
      %1144 = vmatpush1.msra.mxu0 0.0
      %1145 = vmatprep.subr.mxu0 0.0
      %1146 = vmatpush1.msra.mxu0 0.0
      %1147 = vmatprep.subr.mxu0 0.0
      %1148 = vmatpush1.msra.mxu0 0.0
      %1149 = vmatprep.subr.mxu0 0.0
      %1150 = vmatpush1.msra.mxu0 0.0
      %1151 = vmatprep.subr.mxu0 0.0
      %1152 = vmatpush1.msra.mxu0 0.0
      %1153 = vmatprep.subr.mxu0 0.0
      %1154 = vmatpush1.msra.mxu0 0.0
      %1155 = vmatprep.subr.mxu0 0.0
      %1156 = vmatpush1.msra.mxu0 0.0
      %1157 = vmatprep.subr.mxu0 0.0
      %1158 = vmatpush1.msra.mxu0 0.0
      %1159 = vmatprep.subr.mxu0 0.0
      %1160 = vmatpush1.msra.mxu0 0.0
      %1161 = vmatprep.subr.mxu0 0.0
      %1162 = vmatpush1.msra.mxu0 0.0
      %1163 = vmatprep.subr.mxu0 0.0
      %1164 = vmatpush1.msra.mxu0 0.0
      %1165 = vmatprep.subr.mxu0 0.0
      %1166 = vmatpush1.msra.mxu0 0.0
      %1167 = vmatprep.subr.mxu0 0.0
      %1168 = vmatpush1.msra.mxu0 0.0
      %1169 = vmatprep.subr.mxu0 0.0
      %1170 = vmatpush1.msra.mxu0 0.0
      %1171 = vmatprep.subr.mxu0 0.0
      %1172 = vmatpush1.msra.mxu0 0.0
      %1173 = vmatprep.subr.mxu0 0.0
      %1174 = vmatpush1.msra.mxu0 0.0
      %1175 = vmatprep.subr.mxu0 0.0
      %1176 = vmatpush1.msra.mxu0 0.0
      %1177 = vmatprep.subr.mxu0 0.0
      %1178 = vmatpush1.msra.mxu0 0.0
      %1179 = vmatprep.subr.mxu0 0.0
      %1180 = vmatpush1.msra.mxu0 0.0
      %1181 = vmatprep.subr.mxu0 0.0
      %1182 = vmatpush1.msra.mxu0 0.0
      %1183 = vmatprep.mubr.f32.mxu0 0.0
      %1184 = vmatmul.mubr.f32.gmra.mrb[0].mxu0 %v240
      %v1185 = vpop.f32.mrb[0].mxu0
      %v1186 = vadd.f32 0.0, %v1185
      %v1187 = vpop.f32.mrb[0].mxu0
      %1188 = vmatprep.mubr.f32.mxu0 0.0
      %1189 = vmatmul.mubr.f32.gmra.mrb[0].mxu0 %v242
      %v1190 = vpop.f32.mrb[0].mxu0
      %v1191 = vadd.f32 0.0, %v1190
      %v1192 = vpop.f32.mrb[0].mxu0
      %1193 = vmatprep.mubr.f32.mxu0 0.0
      %1194 = vmatmul.mubr.f32.gmra.mrb[0].mxu0 %v244
      %v1195 = vpop.f32.mrb[0].mxu0
      %v1196 = vadd.f32 0.0, %v1195
      %v1197 = vpop.f32.mrb[0].mxu0
      %1198 = vmatprep.mubr.f32.mxu0 0.0
      %1199 = vmatmul.mubr.f32.gmra.mrb[0].mxu0 %v246
      %v1200 = vpop.f32.mrb[0].mxu0
      %v1201 = vadd.f32 0.0, %v1200
      %v1202 = vpop.f32.mrb[0].mxu0
      %1203 = vmatprep.mubr.f32.mxu0 0.0
      %1204 = vmatmul.mubr.f32.gmra.mrb[0].mxu0 %v248
      %v1205 = vpop.f32.mrb[0].mxu0
      %v1206 = vadd.f32 0.0, %v1205
      %v1207 = vpop.f32.mrb[0].mxu0
      %1208 = vmatprep.mubr.f32.mxu0 0.0
      %1209 = vmatmul.mubr.f32.gmra.mrb[0].mxu0 %v250
      %v1210 = vpop.f32.mrb[0].mxu0
      %v1211 = vadd.f32 0.0, %v1210
      %v1212 = vpop.f32.mrb[0].mxu0
      %1213 = vmatprep.mubr.f32.mxu0 0.0
      %1214 = vmatmul.mubr.f32.gmra.mrb[0].mxu0 %v758
      %v1215 = vpop.f32.mrb[0].mxu0
      %v1216 = vadd.f32 0.0, %v1215
      %v1217 = vpop.f32.mrb[0].mxu0
      %1218 = vmatprep.mubr.f32.mxu0 0.0
      %1219 = vmatmul.mubr.f32.gmra.mrb[0].mxu0 %v1117
      %v1220 = vpop.f32.mrb[0].mxu0
      %v1221 = vadd.f32 0.0, %v1220
      %v1222 = vpop.f32.mrb[0].mxu0
      %1223 = vdwg.mxu0
      %v1224 = vadd.f32 %v1103, %v1186
      %v1225 = vadd.f32 %v1104, %v1191
      %v1226 = vadd.f32 %v1105, %v1196
      %v1227 = vadd.f32 %v1106, %v1201
      %v1228 = vadd.f32 %v1107, %v1206
      %v1229 = vadd.f32 %v1108, %v1211
      %v1230 = vadd.f32 %v1109, %v1216
      %v1231 = vadd.f32 %v1110, %v1221
      %v1232 = vrot.slane %v189, 2
      %v1233 = vrot.slane %v190, 2
      %v1234 = vsel %vm478, %v1232, %v1233
      %s1235 = scalar_lea.vmem %s1, 64
      %v1236 = vld [vmem:[%s1235] sm:$0xff]
      %v1237 = vsel %vm235, %v1234, 0
      %1239 = vmatprep.subr.mxu0 0.0
      %1240 = vmatpush1.msra.mxu0 %v1236
      %1241 = vmatprep.subr.mxu0 0.0
      %1242 = vmatpush1.msra.mxu0 0.0
      %1243 = vmatprep.subr.mxu0 0.0
      %1244 = vmatpush1.msra.mxu0 0.0
      %1245 = vmatprep.subr.mxu0 0.0
      %1246 = vmatpush1.msra.mxu0 0.0
      %1247 = vmatprep.subr.mxu0 0.0
      %1248 = vmatpush1.msra.mxu0 0.0
      %1249 = vmatprep.subr.mxu0 0.0
      %1250 = vmatpush1.msra.mxu0 0.0
      %1251 = vmatprep.subr.mxu0 0.0
      %1252 = vmatpush1.msra.mxu0 0.0
      %1253 = vmatprep.subr.mxu0 0.0
      %1254 = vmatpush1.msra.mxu0 0.0
      %1255 = vmatprep.subr.mxu0 0.0
      %1256 = vmatpush1.msra.mxu0 0.0
      %1257 = vmatprep.subr.mxu0 0.0
      %1258 = vmatpush1.msra.mxu0 0.0
      %1259 = vmatprep.subr.mxu0 0.0
      %1260 = vmatpush1.msra.mxu0 0.0
      %1261 = vmatprep.subr.mxu0 0.0
      %1262 = vmatpush1.msra.mxu0 0.0
      %1263 = vmatprep.subr.mxu0 0.0
      %1264 = vmatpush1.msra.mxu0 0.0
      %1265 = vmatprep.subr.mxu0 0.0
      %1266 = vmatpush1.msra.mxu0 0.0
      %1267 = vmatprep.subr.mxu0 0.0
      %1268 = vmatpush1.msra.mxu0 0.0
      %1269 = vmatprep.subr.mxu0 0.0
      %1270 = vmatpush1.msra.mxu0 0.0
      %1271 = vmatprep.subr.mxu0 0.0
      %1272 = vmatpush1.msra.mxu0 0.0
      %1273 = vmatprep.subr.mxu0 0.0
      %1274 = vmatpush1.msra.mxu0 0.0
      %1275 = vmatprep.subr.mxu0 0.0
      %1276 = vmatpush1.msra.mxu0 0.0
      %1277 = vmatprep.subr.mxu0 0.0
      %1278 = vmatpush1.msra.mxu0 0.0
      %1279 = vmatprep.subr.mxu0 0.0
      %1280 = vmatpush1.msra.mxu0 0.0
      %1281 = vmatprep.subr.mxu0 0.0
      %1282 = vmatpush1.msra.mxu0 0.0
      %1283 = vmatprep.subr.mxu0 0.0
      %1284 = vmatpush1.msra.mxu0 0.0
      %1285 = vmatprep.subr.mxu0 0.0
      %1286 = vmatpush1.msra.mxu0 0.0
      %1287 = vmatprep.subr.mxu0 0.0
      %1288 = vmatpush1.msra.mxu0 0.0
      %1289 = vmatprep.subr.mxu0 0.0
      %1290 = vmatpush1.msra.mxu0 0.0
      %1291 = vmatprep.subr.mxu0 0.0
      %1292 = vmatpush1.msra.mxu0 0.0
      %1293 = vmatprep.subr.mxu0 0.0
      %1294 = vmatpush1.msra.mxu0 0.0
      %1295 = vmatprep.subr.mxu0 0.0
      %1296 = vmatpush1.msra.mxu0 0.0
      %1297 = vmatprep.subr.mxu0 0.0
      %1298 = vmatpush1.msra.mxu0 0.0
      %1299 = vmatprep.subr.mxu0 0.0
      %1300 = vmatpush1.msra.mxu0 0.0
      %1301 = vmatprep.subr.mxu0 0.0
      %1302 = vmatpush1.msra.mxu0 0.0
      %1303 = vmatprep.mubr.f32.mxu0 0.0
      %1304 = vmatmul.mubr.f32.gmra.mrb[0].mxu0 %v509
      %v1305 = vpop.f32.mrb[0].mxu0
      %v1306 = vadd.f32 0.0, %v1305
      %v1307 = vpop.f32.mrb[0].mxu0
      %1308 = vmatprep.mubr.f32.mxu0 0.0
      %1309 = vmatmul.mubr.f32.gmra.mrb[0].mxu0 %v511
      %v1310 = vpop.f32.mrb[0].mxu0
      %v1311 = vadd.f32 0.0, %v1310
      %v1312 = vpop.f32.mrb[0].mxu0
      %1313 = vmatprep.mubr.f32.mxu0 0.0
      %1314 = vmatmul.mubr.f32.gmra.mrb[0].mxu0 %v513
      %v1315 = vpop.f32.mrb[0].mxu0
      %v1316 = vadd.f32 0.0, %v1315
      %v1317 = vpop.f32.mrb[0].mxu0
      %1318 = vmatprep.mubr.f32.mxu0 0.0
      %1319 = vmatmul.mubr.f32.gmra.mrb[0].mxu0 %v515
      %v1320 = vpop.f32.mrb[0].mxu0
      %v1321 = vadd.f32 0.0, %v1320
      %v1322 = vpop.f32.mrb[0].mxu0
      %1323 = vmatprep.mubr.f32.mxu0 0.0
      %1324 = vmatmul.mubr.f32.gmra.mrb[0].mxu0 %v517
      %v1325 = vpop.f32.mrb[0].mxu0
      %v1326 = vadd.f32 0.0, %v1325
      %v1327 = vpop.f32.mrb[0].mxu0
      %1328 = vmatprep.mubr.f32.mxu0 0.0
      %1329 = vmatmul.mubr.f32.gmra.mrb[0].mxu0 %v519
      %v1330 = vpop.f32.mrb[0].mxu0
      %v1331 = vadd.f32 0.0, %v1330
      %v1332 = vpop.f32.mrb[0].mxu0
      %1333 = vmatprep.mubr.f32.mxu0 0.0
      %1334 = vmatmul.mubr.f32.gmra.mrb[0].mxu0 %v878
      %v1335 = vpop.f32.mrb[0].mxu0
      %v1336 = vadd.f32 0.0, %v1335
      %v1337 = vpop.f32.mrb[0].mxu0
      %1338 = vmatprep.mubr.f32.mxu0 0.0
      %1339 = vmatmul.mubr.f32.gmra.mrb[0].mxu0 %v1237
      %v1340 = vpop.f32.mrb[0].mxu0
      %v1341 = vadd.f32 0.0, %v1340
      %v1342 = vpop.f32.mrb[0].mxu0
      %1343 = vdwg.mxu0
      %v1344 = vadd.f32 %v1224, %v1306
      %v1345 = vadd.f32 %v1225, %v1311
      %v1346 = vadd.f32 %v1226, %v1316
      %v1347 = vadd.f32 %v1227, %v1321
      %v1348 = vadd.f32 %v1228, %v1326
      %v1349 = vadd.f32 %v1229, %v1331
      %v1350 = vadd.f32 %v1230, %v1336
      %v1351 = vadd.f32 %v1231, %v1341
      %v1352 = vld [vmem:[%s2] sm:$0x1]
      %v1354 = vlaneseq
      %v1355 = vshrl.u32 %v1354, 7
      %v1356 = vsub.s32 0, %v1355
      %v1357 = vrot.slane %v1352, %v1356
      %v1359 = vadd.f32 %v1344, %v1357
      %v1360 = vadd.f32 %v1345, %v1357
      %v1361 = vadd.f32 %v1346, %v1357
      %v1362 = vadd.f32 %v1347, %v1357
      %v1363 = vadd.f32 %v1348, %v1357
      %v1364 = vadd.f32 %v1349, %v1357
      %v1365 = vadd.f32 %v1350, %v1357
      %v1366 = vadd.f32 %v1351, %v1357
      %vm1367 = vcmask 261120
      %1368 = vst.msk [vmem:[%s170] sm:$0xff] %vm1367, %v1359
      %1369 = vst.msk [vmem:[%s170 + $0x8] sm:$0xff] %vm1367, %v1360
      %1370 = vst.msk [vmem:[%s170 + $0x10] sm:$0xff] %vm1367, %v1361
      %1371 = vst.msk [vmem:[%s170 + $0x18] sm:$0xff] %vm1367, %v1362
      %1372 = vst.msk [vmem:[%s170 + $0x20] sm:$0xff] %vm1367, %v1363
      %1373 = vst.msk [vmem:[%s170 + $0x28] sm:$0xff] %vm1367, %v1364
      %1374 = vst.msk [vmem:[%s170 + $0x30] sm:$0xff] %vm1367, %v1365
      %1375 = vst.msk [vmem:[%s170 + $0x38] sm:$0xff] %vm1367, %v1366
      %p1376 = scmp.lt.s32.totalorder %s14, 1
      %s1377 = scalar_select %p1376, %s14, 1
      %s1378 = smul.addr %s1377, 8
      %s1379 = smul.addr %s1378, 8
      %s1380 = scalar_lea.vmem %s3, %s1379
      // Predicated region
      $region33: #{_lambda_.13} parent=31 // pred_check
        %p1381 = pneg %p100
      $region34: #{_lambda_.13} parent=31 // pred_check_branch
        %1383 = sbr.rel (%p1381) target = $region36
      $region35: #{_lambda_.13} parent=31 // pred_region
        _
      $region36: #{_lambda_.13} parent=31 // pred_fallthru
        _
    $region32: #{_lambda_.13} parent=5 // pred_fallthru
      _
    %p1384 = scmp.le.s32.totalorder 2, %s9
    // Predicated region
    $region37: #{_lambda_.13} parent=5 // pred_check
      %p1385 = pneg %p1384
    $region38: #{_lambda_.13} parent=5 // pred_check_branch
      %1387 = sbr.rel (%p1385) target = $region40
    $region39: #{_lambda_.13} parent=5 // pred_region
      %s1388 = ssub.s32 %s9, 2
      // Predicated region
      $region41: #{_lambda_.13} parent=39 // pred_check
        %p1389 = pneg %p106
      $region42: #{_lambda_.13} parent=39 // pred_check_branch
        %1391 = sbr.rel (%p1389) target = $region44
      $region43: #{_lambda_.13} parent=39 // pred_region
        %p1392 = scmp.lt.s32.totalorder %s15, 1
        %s1393 = scalar_select %p1392, %s15, 1
        %s1394 = smul.addr %s1393, 8
        %s1395 = smul.addr %s1394, 8
        %s1396 = scalar_lea.vmem %s3, %s1395
      $region44: #{_lambda_.13} parent=39 // pred_fallthru
        _
    $region40: #{_lambda_.13} parent=5 // pred_fallthru
      _
  $region6: #{_lambda_.13} parent=0 // loop_footer
    %s13 = sadd.s32 1, %s9
  $region7: #{_lambda_.13} parent=0 // loop_footer_branch
    %8 = sbr.rel target = $region3
  $region8: #{_lambda_.13} parent=0 // loop_exit
    _

// kernel: _lambda_.12
$region0: #{_lambda_.12}
  #allocation0 [shape = 'u32[]', space=smem, size = 0x4, offset = 0x4, fixed_abs, tag = 'smem constant byte address 0x4 - core index']
  #allocation1 [shape = 'u32[144,128]{1,0:T(1,128)}', space=vmem, size = 0x12000, scoped, tag = 'internal scratch']
  %s0 = inlined_call_operand.vmem [shape: f32[2,10,10,32], index: 0, kind: input, shape index: {}]
  %s1 = inlined_call_operand.vmem [shape: f32[3,3,32,8], index: 1, kind: input, shape index: {}]
  %s2 = inlined_call_operand.vmem [shape: f32[1,8], index: 2, kind: input, shape index: {}]
  %s3 = inlined_call_operand.vmem [shape: f32[2,8,8,8], index: 3, kind: output, shape index: {}]
  %s4 = sld [smem:[#allocation0]]
  $region45: #{_lambda_.12} parent=0
    _
  %s6 = ssub.s32 1, %s4
  %s7 = scalar_select 0, %s6, %s4
  loop: start=0, step=1, limit=4
  $region2: #{_lambda_.12} parent=0 // loop_pre_header
    _
  $region3: #{_lambda_.12} parent=0 // loop_header
    %s9 = sphi 0, %s13
    %p10 = scmp.ge.s32.totalorder %s9, 4
    %s19 = sphi 0, %s21
    %s22 = sphi 0, %s19
    %s23 = sphi 0, %s22
    %s39 = sphi 0, %s23
    %s43 = sphi 0, %s43
    %s45 = sphi 0, %s43
    %s46 = sphi 0, %s45
    %s60 = sphi 0, %s46
    %s64 = sphi 0, %s64
    %s66 = sphi 0, %s64
    %s67 = sphi 0, %s66
    %s81 = sphi 0, %s67
    %s87 = sphi 0, %s89
    %s90 = sphi 0, %s87
    %s91 = sphi 0, %s90
    %s107 = sphi 0, %s91
  $region4: #{_lambda_.12} parent=0 // loop_header_branch
    %12 = sbr.rel (%p10) target = $region8
  $region5: #{_lambda_.12} parent=0 // loop_body
    %s14 = ssub.s32 %s9, 1
    %s15 = ssub.s32 %s9, 2
    %s16 = sadd.s32 %s9, 1
    %s17 = ssub.s32 %s9, %s16
    %p18 = scmp.eq.s32.totalorder %s17, 0
    %s20 = sadd.s32 %s19, 1
    %s21 = scalar_select %p18, %s19, %s20
    %p24 = pneg %p18
    %p25 = scmp.eq.s32.totalorder %s9, 1
    %p26 = por %p24, %p25
    %p27 = scmp.ne.s32.totalorder %s19, %s22
    %p28 = scmp.eq.s32.totalorder %s9, 0
    %p29 = por %p27, %p28
    %p30 = scmp.ne.s32.totalorder %s19, %s22
    %p31 = scmp.eq.s32.totalorder %s14, 1
    %p32 = por %p30, %p31
    %p33 = scmp.ne.s32.totalorder %s22, %s23
    %p34 = scmp.eq.s32.totalorder %s14, 0
    %p35 = por %p33, %p34
    %p36 = scmp.ne.s32.totalorder %s22, %s23
    %p37 = scmp.eq.s32.totalorder %s15, 1
    %p38 = por %p36, %p37
    %p40 = scmp.ne.s32.totalorder %s23, %s39
    %p41 = scmp.eq.s32.totalorder %s15, 0
    %p42 = por %p40, %p41
    %s44 = sadd.s32 %s43, 1
    %p47 = scmp.eq.s32.totalorder %s9, 1
    %p48 = scmp.ne.s32.totalorder %s43, %s45
    %p49 = scmp.eq.s32.totalorder %s9, 0
    %p50 = por %p48, %p49
    %p51 = scmp.ne.s32.totalorder %s43, %s45
    %p52 = scmp.eq.s32.totalorder %s14, 1
    %p53 = por %p51, %p52
    %p54 = scmp.ne.s32.totalorder %s45, %s46
    %p55 = scmp.eq.s32.totalorder %s14, 0
    %p56 = por %p54, %p55
    %p57 = scmp.ne.s32.totalorder %s45, %s46
    %p58 = scmp.eq.s32.totalorder %s15, 1
    %p59 = por %p57, %p58
    %p61 = scmp.ne.s32.totalorder %s46, %s60
    %p62 = scmp.eq.s32.totalorder %s15, 0
    %p63 = por %p61, %p62
    %s65 = sadd.s32 %s64, 1
    %p68 = scmp.eq.s32.totalorder %s9, 1
    %p69 = scmp.ne.s32.totalorder %s64, %s66
    %p70 = scmp.eq.s32.totalorder %s9, 0
    %p71 = por %p69, %p70
    %p72 = scmp.ne.s32.totalorder %s64, %s66
    %p73 = scmp.eq.s32.totalorder %s14, 1
    %p74 = por %p72, %p73
    %p75 = scmp.ne.s32.totalorder %s66, %s67
    %p76 = scmp.eq.s32.totalorder %s14, 0
    %p77 = por %p75, %p76
    %p78 = scmp.ne.s32.totalorder %s66, %s67
    %p79 = scmp.eq.s32.totalorder %s15, 1
    %p80 = por %p78, %p79
    %p82 = scmp.ne.s32.totalorder %s67, %s81
    %p83 = scmp.eq.s32.totalorder %s15, 0
    %p84 = por %p82, %p83
    %s85 = ssub.s32 %s9, %s16
    %p86 = scmp.eq.s32.totalorder %s85, 0
    %s88 = sadd.s32 %s87, 1
    %s89 = scalar_select %p86, %s87, %s88
    %p92 = pneg %p86
    %p93 = scmp.eq.s32.totalorder %s9, 1
    %p94 = por %p92, %p93
    %p95 = scmp.ne.s32.totalorder %s87, %s90
    %p96 = scmp.eq.s32.totalorder %s9, 0
    %p97 = por %p95, %p96
    %p98 = scmp.ne.s32.totalorder %s87, %s90
    %p99 = scmp.eq.s32.totalorder %s14, 1
    %p100 = por %p98, %p99
    %p101 = scmp.ne.s32.totalorder %s90, %s91
    %p102 = scmp.eq.s32.totalorder %s14, 0
    %p103 = por %p101, %p102
    %p104 = scmp.ne.s32.totalorder %s90, %s91
    %p105 = scmp.eq.s32.totalorder %s15, 1
    %p106 = por %p104, %p105
    %p108 = scmp.ne.s32.totalorder %s91, %s107
    %p109 = scmp.eq.s32.totalorder %s15, 0
    %p110 = por %p108, %p109
    %p111 = scmp.le.s32.totalorder 1, %s9
    %p112 = scmp.lt.s32.totalorder %s9, 3
    %p113 = pnand %p111, %p112
    %p114 = pneg %p113
    // Predicated region
    $region9: #{_lambda_.12} parent=5 // pred_check
      _
    $region10: #{_lambda_.12} parent=5 // pred_check_branch
      %116 = sbr.rel (%p113) target = $region12
    $region11: #{_lambda_.12} parent=5 // pred_region
      %s117 = ssub.s32 %s9, 1
      // Predicated region
      $region13: #{_lambda_.12} parent=11 // pred_check
        %p118 = pneg %p56
      $region14: #{_lambda_.12} parent=11 // pred_check_branch
        %120 = sbr.rel (%p118) target = $region16
      $region15: #{_lambda_.12} parent=11 // pred_region
        _
      $region16: #{_lambda_.12} parent=11 // pred_fallthru
        _
      // Predicated region
      $region17: #{_lambda_.12} parent=11 // pred_check
        %p121 = pneg %p77
      $region18: #{_lambda_.12} parent=11 // pred_check_branch
        %123 = sbr.rel (%p121) target = $region20
      $region19: #{_lambda_.12} parent=11 // pred_region
        _
      $region20: #{_lambda_.12} parent=11 // pred_fallthru
        _
    $region12: #{_lambda_.12} parent=5 // pred_fallthru
      _
    %p124 = scmp.lt.s32.totalorder %s9, 2
    // Predicated region
    $region21: #{_lambda_.12} parent=5 // pred_check
      %p125 = pneg %p124
    $region22: #{_lambda_.12} parent=5 // pred_check_branch
      %127 = sbr.rel (%p125) target = $region24
    $region23: #{_lambda_.12} parent=5 // pred_region
      // Predicated region
      $region25: #{_lambda_.12} parent=23 // pred_check
        %p128 = pneg %p29
      $region26: #{_lambda_.12} parent=23 // pred_check_branch
        %130 = sbr.rel (%p128) target = $region28
      $region27: #{_lambda_.12} parent=23 // pred_region
        %p131 = scmp.lt.s32.totalorder %s9, 1
        %s132 = scalar_select %p131, %s9, 1
        %s133 = smul.addr %s132, 20
        %s134 = smul.addr %s133, 8
        %s135 = scalar_lea.vmem %s0, %s134
      $region28: #{_lambda_.12} parent=23 // pred_fallthru
        _
    $region24: #{_lambda_.12} parent=5 // pred_fallthru
      _
    %p136 = scmp.le.s32.totalorder 1, %s9
    %p137 = scmp.lt.s32.totalorder %s9, 3
    %p138 = pnand %p136, %p137
    %p139 = pneg %p138
    // Predicated region
    $region29: #{_lambda_.12} parent=5 // pred_check
      _
    $region30: #{_lambda_.12} parent=5 // pred_check_branch
      %141 = sbr.rel (%p138) target = $region32
    $region31: #{_lambda_.12} parent=5 // pred_region
      %s142 = ssub.s32 %s9, 1
      %p143 = scmp.lt.s32.totalorder %s14, 1
      %s144 = scalar_select %p143, %s14, 1
      %s145 = smul.addr %s144, 20
      %s146 = smul.addr %s145, 8
      %s147 = scalar_lea.vmem %s0, %s146
      %p148 = pneg %p35
      %p149 = pneg %p32
      %p150 = pneg %p56
      %p151 = pneg %p53
      %p152 = pneg %p77
      %p153 = pneg %p74
      %p154 = pneg %p103
      %p155 = pneg %p100
      %p156 = scmp.lt.s32.totalorder %s14, 1
      %s157 = scalar_select %p156, %s14, 1
      %s158 = smul.addr %s157, 8
      %s159 = smul.addr %s158, 8
      %s160 = scalar_lea.vmem %s3, %s159
      %p161 = scmp.lt.s32.totalorder %s14, 1
      %s162 = scalar_select %p161, %s14, 1
      %s163 = smul.addr %s162, 20
      %s164 = smul.addr %s163, 8
      %s165 = scalar_lea.vmem %s0, %s164
      %p166 = scmp.lt.s32.totalorder %s14, 1
      %s167 = scalar_select %p166, %s14, 1
      %s168 = smul.addr %s167, 8
      %s169 = smul.addr %s168, 8
      %s170 = scalar_lea.vmem %s3, %s169
      %v171 = vld [vmem:[%s165] sm:$0xff]
      %v172 = vld [vmem:[%s165 + $0x8] sm:$0x3]
      %v173 = vld [vmem:[%s165 + $0x10] sm:$0xff]
      %v174 = vld [vmem:[%s165 + $0x18] sm:$0x3]
      %v175 = vld [vmem:[%s165 + $0x20] sm:$0xff]
      %v176 = vld [vmem:[%s165 + $0x28] sm:$0x3]
      %v177 = vld [vmem:[%s165 + $0x30] sm:$0xff]
      %v178 = vld [vmem:[%s165 + $0x38] sm:$0x3]
      %v179 = vld [vmem:[%s165 + $0x40] sm:$0xff]
      %v180 = vld [vmem:[%s165 + $0x48] sm:$0x3]
      %v181 = vld [vmem:[%s165 + $0x50] sm:$0xff]
      %v182 = vld [vmem:[%s165 + $0x58] sm:$0x3]
      %v183 = vld [vmem:[%s165 + $0x60] sm:$0xff]
      %v184 = vld [vmem:[%s165 + $0x68] sm:$0x3]
      %v185 = vld [vmem:[%s165 + $0x70] sm:$0xff]
      %v186 = vld [vmem:[%s165 + $0x78] sm:$0x3]
      %v187 = vld [vmem:[%s165 + $0x80] sm:$0xff]
      %v188 = vld [vmem:[%s165 + $0x88] sm:$0x3]
      %v189 = vld [vmem:[%s165 + $0x90] sm:$0xff]
      %v190 = vld [vmem:[%s165 + $0x98] sm:$0x3]
      %v191 = vld [vmem:[%s1] sm:$0xff]
      %v192 = vld [vmem:[%s1 + $0x8] sm:$0xff]
      %v193 = vld [vmem:[%s1 + $0x10] sm:$0xff]
      %v194 = vld [vmem:[%s1 + $0x18] sm:$0xff]
      %vm211 = vcmask 1046528
      %v212 = vrot.slane %v171, 1
      %v213 = vrot.slane %v172, 1
      %v214 = vsel %vm211, %v212, %v213
      %v215 = vrot.slane %v173, 1
      %v216 = vrot.slane %v174, 1
      %v217 = vsel %vm211, %v215, %v216
      %v218 = vrot.slane %v175, 1
      %v219 = vrot.slane %v176, 1
      %v220 = vsel %vm211, %v218, %v219
      %v221 = vrot.slane %v177, 1
      %v222 = vrot.slane %v178, 1
      %v223 = vsel %vm211, %v221, %v222
      %v224 = vrot.slane %v179, 1
      %v225 = vrot.slane %v180, 1
      %v226 = vsel %vm211, %v224, %v225
      %v227 = vrot.slane %v181, 1
      %v228 = vrot.slane %v182, 1
      %v229 = vsel %vm211, %v227, %v228
      %v230 = vrot.slane %v183, 1
      %v231 = vrot.slane %v184, 1
      %v232 = vsel %vm211, %v230, %v231
      %v233 = vrot.slane %v185, 1
      %v234 = vrot.slane %v186, 1
      %v235 = vsel %vm211, %v233, %v234
      %s236 = scalar_lea.vmem %s1, 32
      %v237 = vld [vmem:[%s236] sm:$0xff]
      %v238 = vld [vmem:[%s236 + $0x8] sm:$0xff]
      %v239 = vld [vmem:[%s236 + $0x10] sm:$0xff]
      %v240 = vld [vmem:[%s236 + $0x18] sm:$0xff]
      %vm241 = vcmask 261120
      %v242 = vsel %vm241, %v214, 0
      %v244 = vsel %vm241, %v217, 0
      %v246 = vsel %vm241, %v220, 0
      %v248 = vsel %vm241, %v223, 0
      %v250 = vsel %vm241, %v226, 0
      %v252 = vsel %vm241, %v229, 0
      %v254 = vsel %vm241, %v232, 0
      %v256 = vsel %vm241, %v235, 0
      %258 = vmatprep.subr.mxu0 0.0
      %259 = vmatpush1.msra.mxu0 %v237
      %260 = vmatprep.subr.mxu0 0.0
      %261 = vmatpush1.msra.mxu0 %v238
      %262 = vmatprep.subr.mxu0 0.0
      %263 = vmatpush1.msra.mxu0 %v239
      %264 = vmatprep.subr.mxu0 0.0
      %265 = vmatpush1.msra.mxu0 %v240
      %266 = vmatprep.subr.mxu0 0.0
      %267 = vmatpush1.msra.mxu0 0.0
      %268 = vmatprep.subr.mxu0 0.0
      %269 = vmatpush1.msra.mxu0 0.0
      %270 = vmatprep.subr.mxu0 0.0
      %271 = vmatpush1.msra.mxu0 0.0
      %272 = vmatprep.subr.mxu0 0.0
      %273 = vmatpush1.msra.mxu0 0.0
      %274 = vmatprep.subr.mxu0 0.0
      %275 = vmatpush1.msra.mxu0 0.0
      %276 = vmatprep.subr.mxu0 0.0
      %277 = vmatpush1.msra.mxu0 0.0
      %278 = vmatprep.subr.mxu0 0.0
      %279 = vmatpush1.msra.mxu0 0.0
      %280 = vmatprep.subr.mxu0 0.0
      %281 = vmatpush1.msra.mxu0 0.0
      %282 = vmatprep.subr.mxu0 0.0
      %283 = vmatpush1.msra.mxu0 0.0
      %284 = vmatprep.subr.mxu0 0.0
      %285 = vmatpush1.msra.mxu0 0.0
      %286 = vmatprep.subr.mxu0 0.0
      %287 = vmatpush1.msra.mxu0 0.0
      %288 = vmatprep.subr.mxu0 0.0
      %289 = vmatpush1.msra.mxu0 0.0
      %290 = vmatprep.subr.mxu0 0.0
      %291 = vmatpush1.msra.mxu0 0.0
      %292 = vmatprep.subr.mxu0 0.0
      %293 = vmatpush1.msra.mxu0 0.0
      %294 = vmatprep.subr.mxu0 0.0
      %295 = vmatpush1.msra.mxu0 0.0
      %296 = vmatprep.subr.mxu0 0.0
      %297 = vmatpush1.msra.mxu0 0.0
      %298 = vmatprep.subr.mxu0 0.0
      %299 = vmatpush1.msra.mxu0 0.0
      %300 = vmatprep.subr.mxu0 0.0
      %301 = vmatpush1.msra.mxu0 0.0
      %302 = vmatprep.subr.mxu0 0.0
      %303 = vmatpush1.msra.mxu0 0.0
      %304 = vmatprep.subr.mxu0 0.0
      %305 = vmatpush1.msra.mxu0 0.0
      %306 = vmatprep.subr.mxu0 0.0
      %307 = vmatpush1.msra.mxu0 0.0
      %308 = vmatprep.subr.mxu0 0.0
      %309 = vmatpush1.msra.mxu0 0.0
      %310 = vmatprep.subr.mxu0 0.0
      %311 = vmatpush1.msra.mxu0 0.0
      %312 = vmatprep.subr.mxu0 0.0
      %313 = vmatpush1.msra.mxu0 0.0
      %314 = vmatprep.subr.mxu0 0.0
      %315 = vmatpush1.msra.mxu0 0.0
      %316 = vmatprep.subr.mxu0 0.0
      %317 = vmatpush1.msra.mxu0 0.0
      %318 = vmatprep.subr.mxu0 0.0
      %319 = vmatpush1.msra.mxu0 0.0
      %320 = vmatprep.subr.mxu0 0.0
      %321 = vmatpush1.msra.mxu0 0.0
      %322 = vmatprep.mubr.f32.mxu0 0.0
      %323 = vmatmul.mubr.f32.gmra.mrb[0].mxu0 %v242
      %v324 = vpop.f32.mrb[0].mxu0
      %v325 = vadd.f32 0.0, %v324
      %v326 = vpop.f32.mrb[0].mxu0
      %327 = vmatprep.mubr.f32.mxu0 0.0
      %328 = vmatmul.mubr.f32.gmra.mrb[0].mxu0 %v244
      %v329 = vpop.f32.mrb[0].mxu0
      %v330 = vadd.f32 0.0, %v329
      %v331 = vpop.f32.mrb[0].mxu0
      %332 = vmatprep.mubr.f32.mxu0 0.0
      %333 = vmatmul.mubr.f32.gmra.mrb[0].mxu0 %v246
      %v334 = vpop.f32.mrb[0].mxu0
      %v335 = vadd.f32 0.0, %v334
      %v336 = vpop.f32.mrb[0].mxu0
      %337 = vmatprep.mubr.f32.mxu0 0.0
      %338 = vmatmul.mubr.f32.gmra.mrb[0].mxu0 %v248
      %v339 = vpop.f32.mrb[0].mxu0
      %v340 = vadd.f32 0.0, %v339
      %v341 = vpop.f32.mrb[0].mxu0
      %342 = vmatprep.mubr.f32.mxu0 0.0
      %343 = vmatmul.mubr.f32.gmra.mrb[0].mxu0 %v250
      %v344 = vpop.f32.mrb[0].mxu0
      %v345 = vadd.f32 0.0, %v344
      %v346 = vpop.f32.mrb[0].mxu0
      %347 = vmatprep.mubr.f32.mxu0 0.0
      %348 = vmatmul.mubr.f32.gmra.mrb[0].mxu0 %v252
      %v349 = vpop.f32.mrb[0].mxu0
      %v350 = vadd.f32 0.0, %v349
      %v351 = vpop.f32.mrb[0].mxu0
      %352 = vmatprep.mubr.f32.mxu0 0.0
      %353 = vmatmul.mubr.f32.gmra.mrb[0].mxu0 %v254
      %v354 = vpop.f32.mrb[0].mxu0
      %v355 = vadd.f32 0.0, %v354
      %v356 = vpop.f32.mrb[0].mxu0
      %357 = vmatprep.mubr.f32.mxu0 0.0
      %358 = vmatmul.mubr.f32.gmra.mrb[0].mxu0 %v256
      %v359 = vpop.f32.mrb[0].mxu0
      %v360 = vadd.f32 0.0, %v359
      %v361 = vpop.f32.mrb[0].mxu0
      %362 = vdwg.mxu0
      %v363 = vsel %vm241, %v171, 0
      %v365 = vsel %vm241, %v173, 0
      %v367 = vsel %vm241, %v175, 0
      %v369 = vsel %vm241, %v177, 0
      %v371 = vsel %vm241, %v179, 0
      %v373 = vsel %vm241, %v181, 0
      %v375 = vsel %vm241, %v183, 0
      %v377 = vsel %vm241, %v185, 0
      %379 = vmatprep.subr.mxu0 0.0
      %380 = vmatpush1.msra.mxu0 %v191
      %381 = vmatprep.subr.mxu0 0.0
      %382 = vmatpush1.msra.mxu0 %v192
      %383 = vmatprep.subr.mxu0 0.0
      %384 = vmatpush1.msra.mxu0 %v193
      %385 = vmatprep.subr.mxu0 0.0
      %386 = vmatpush1.msra.mxu0 %v194
      %387 = vmatprep.subr.mxu0 0.0
      %388 = vmatpush1.msra.mxu0 0.0
      %389 = vmatprep.subr.mxu0 0.0
      %390 = vmatpush1.msra.mxu0 0.0
      %391 = vmatprep.subr.mxu0 0.0
      %392 = vmatpush1.msra.mxu0 0.0
      %393 = vmatprep.subr.mxu0 0.0
      %394 = vmatpush1.msra.mxu0 0.0
      %395 = vmatprep.subr.mxu0 0.0
      %396 = vmatpush1.msra.mxu0 0.0
      %397 = vmatprep.subr.mxu0 0.0
      %398 = vmatpush1.msra.mxu0 0.0
      %399 = vmatprep.subr.mxu0 0.0
      %400 = vmatpush1.msra.mxu0 0.0
      %401 = vmatprep.subr.mxu0 0.0
      %402 = vmatpush1.msra.mxu0 0.0
      %403 = vmatprep.subr.mxu0 0.0
      %404 = vmatpush1.msra.mxu0 0.0
      %405 = vmatprep.subr.mxu0 0.0
      %406 = vmatpush1.msra.mxu0 0.0
      %407 = vmatprep.subr.mxu0 0.0
      %408 = vmatpush1.msra.mxu0 0.0
      %409 = vmatprep.subr.mxu0 0.0
      %410 = vmatpush1.msra.mxu0 0.0
      %411 = vmatprep.subr.mxu0 0.0
      %412 = vmatpush1.msra.mxu0 0.0
      %413 = vmatprep.subr.mxu0 0.0
      %414 = vmatpush1.msra.mxu0 0.0
      %415 = vmatprep.subr.mxu0 0.0
      %416 = vmatpush1.msra.mxu0 0.0
      %417 = vmatprep.subr.mxu0 0.0
      %418 = vmatpush1.msra.mxu0 0.0
      %419 = vmatprep.subr.mxu0 0.0
      %420 = vmatpush1.msra.mxu0 0.0
      %421 = vmatprep.subr.mxu0 0.0
      %422 = vmatpush1.msra.mxu0 0.0
      %423 = vmatprep.subr.mxu0 0.0
      %424 = vmatpush1.msra.mxu0 0.0
      %425 = vmatprep.subr.mxu0 0.0
      %426 = vmatpush1.msra.mxu0 0.0
      %427 = vmatprep.subr.mxu0 0.0
      %428 = vmatpush1.msra.mxu0 0.0
      %429 = vmatprep.subr.mxu0 0.0
      %430 = vmatpush1.msra.mxu0 0.0
      %431 = vmatprep.subr.mxu0 0.0
      %432 = vmatpush1.msra.mxu0 0.0
      %433 = vmatprep.subr.mxu0 0.0
      %434 = vmatpush1.msra.mxu0 0.0
      %435 = vmatprep.subr.mxu0 0.0
      %436 = vmatpush1.msra.mxu0 0.0
      %437 = vmatprep.subr.mxu0 0.0
      %438 = vmatpush1.msra.mxu0 0.0
      %439 = vmatprep.subr.mxu0 0.0
      %440 = vmatpush1.msra.mxu0 0.0
      %441 = vmatprep.subr.mxu0 0.0
      %442 = vmatpush1.msra.mxu0 0.0
      %443 = vmatprep.mubr.f32.mxu0 0.0
      %444 = vmatmul.mubr.f32.gmra.mrb[0].mxu0 %v363
      %v445 = vpop.f32.mrb[0].mxu0
      %v446 = vadd.f32 %v325, %v445
      %v447 = vpop.f32.mrb[0].mxu0
      %448 = vmatprep.mubr.f32.mxu0 0.0
      %449 = vmatmul.mubr.f32.gmra.mrb[0].mxu0 %v365
      %v450 = vpop.f32.mrb[0].mxu0
      %v451 = vadd.f32 %v330, %v450
      %v452 = vpop.f32.mrb[0].mxu0
      %453 = vmatprep.mubr.f32.mxu0 0.0
      %454 = vmatmul.mubr.f32.gmra.mrb[0].mxu0 %v367
      %v455 = vpop.f32.mrb[0].mxu0
      %v456 = vadd.f32 %v335, %v455
      %v457 = vpop.f32.mrb[0].mxu0
      %458 = vmatprep.mubr.f32.mxu0 0.0
      %459 = vmatmul.mubr.f32.gmra.mrb[0].mxu0 %v369
      %v460 = vpop.f32.mrb[0].mxu0
      %v461 = vadd.f32 %v340, %v460
      %v462 = vpop.f32.mrb[0].mxu0
      %463 = vmatprep.mubr.f32.mxu0 0.0
      %464 = vmatmul.mubr.f32.gmra.mrb[0].mxu0 %v371
      %v465 = vpop.f32.mrb[0].mxu0
      %v466 = vadd.f32 %v345, %v465
      %v467 = vpop.f32.mrb[0].mxu0
      %468 = vmatprep.mubr.f32.mxu0 0.0
      %469 = vmatmul.mubr.f32.gmra.mrb[0].mxu0 %v373
      %v470 = vpop.f32.mrb[0].mxu0
      %v471 = vadd.f32 %v350, %v470
      %v472 = vpop.f32.mrb[0].mxu0
      %473 = vmatprep.mubr.f32.mxu0 0.0
      %474 = vmatmul.mubr.f32.gmra.mrb[0].mxu0 %v375
      %v475 = vpop.f32.mrb[0].mxu0
      %v476 = vadd.f32 %v355, %v475
      %v477 = vpop.f32.mrb[0].mxu0
      %478 = vmatprep.mubr.f32.mxu0 0.0
      %479 = vmatmul.mubr.f32.gmra.mrb[0].mxu0 %v377
      %v480 = vpop.f32.mrb[0].mxu0
      %v481 = vadd.f32 %v360, %v480
      %v482 = vpop.f32.mrb[0].mxu0
      %483 = vdwg.mxu0
      %vm484 = vcmask 1045504
      %v485 = vrot.slane %v171, 2
      %v486 = vrot.slane %v172, 2
      %v487 = vsel %vm484, %v485, %v486
      %v488 = vrot.slane %v173, 2
      %v489 = vrot.slane %v174, 2
      %v490 = vsel %vm484, %v488, %v489
      %v491 = vrot.slane %v175, 2
      %v492 = vrot.slane %v176, 2
      %v493 = vsel %vm484, %v491, %v492
      %v494 = vrot.slane %v177, 2
      %v495 = vrot.slane %v178, 2
      %v496 = vsel %vm484, %v494, %v495
      %v497 = vrot.slane %v179, 2
      %v498 = vrot.slane %v180, 2
      %v499 = vsel %vm484, %v497, %v498
      %v500 = vrot.slane %v181, 2
      %v501 = vrot.slane %v182, 2
      %v502 = vsel %vm484, %v500, %v501
      %v503 = vrot.slane %v183, 2
      %v504 = vrot.slane %v184, 2
      %v505 = vsel %vm484, %v503, %v504
      %v506 = vrot.slane %v185, 2
      %v507 = vrot.slane %v186, 2
      %v508 = vsel %vm484, %v506, %v507
      %s509 = scalar_lea.vmem %s1, 64
      %v510 = vld [vmem:[%s509] sm:$0xff]
      %v511 = vld [vmem:[%s509 + $0x8] sm:$0xff]
      %v512 = vld [vmem:[%s509 + $0x10] sm:$0xff]
      %v513 = vld [vmem:[%s509 + $0x18] sm:$0xff]
      %v514 = vsel %vm241, %v487, 0
      %v516 = vsel %vm241, %v490, 0
      %v518 = vsel %vm241, %v493, 0
      %v520 = vsel %vm241, %v496, 0
      %v522 = vsel %vm241, %v499, 0
      %v524 = vsel %vm241, %v502, 0
      %v526 = vsel %vm241, %v505, 0
      %v528 = vsel %vm241, %v508, 0
      %530 = vmatprep.subr.mxu0 0.0
      %531 = vmatpush1.msra.mxu0 %v510
      %532 = vmatprep.subr.mxu0 0.0
      %533 = vmatpush1.msra.mxu0 %v511
      %534 = vmatprep.subr.mxu0 0.0
      %535 = vmatpush1.msra.mxu0 %v512
      %536 = vmatprep.subr.mxu0 0.0
      %537 = vmatpush1.msra.mxu0 %v513
      %538 = vmatprep.subr.mxu0 0.0
      %539 = vmatpush1.msra.mxu0 0.0
      %540 = vmatprep.subr.mxu0 0.0
      %541 = vmatpush1.msra.mxu0 0.0
      %542 = vmatprep.subr.mxu0 0.0
      %543 = vmatpush1.msra.mxu0 0.0
      %544 = vmatprep.subr.mxu0 0.0
      %545 = vmatpush1.msra.mxu0 0.0
      %546 = vmatprep.subr.mxu0 0.0
      %547 = vmatpush1.msra.mxu0 0.0
      %548 = vmatprep.subr.mxu0 0.0
      %549 = vmatpush1.msra.mxu0 0.0
      %550 = vmatprep.subr.mxu0 0.0
      %551 = vmatpush1.msra.mxu0 0.0
      %552 = vmatprep.subr.mxu0 0.0
      %553 = vmatpush1.msra.mxu0 0.0
      %554 = vmatprep.subr.mxu0 0.0
      %555 = vmatpush1.msra.mxu0 0.0
      %556 = vmatprep.subr.mxu0 0.0
      %557 = vmatpush1.msra.mxu0 0.0
      %558 = vmatprep.subr.mxu0 0.0
      %559 = vmatpush1.msra.mxu0 0.0
      %560 = vmatprep.subr.mxu0 0.0
      %561 = vmatpush1.msra.mxu0 0.0
      %562 = vmatprep.subr.mxu0 0.0
      %563 = vmatpush1.msra.mxu0 0.0
      %564 = vmatprep.subr.mxu0 0.0
      %565 = vmatpush1.msra.mxu0 0.0
      %566 = vmatprep.subr.mxu0 0.0
      %567 = vmatpush1.msra.mxu0 0.0
      %568 = vmatprep.subr.mxu0 0.0
      %569 = vmatpush1.msra.mxu0 0.0
      %570 = vmatprep.subr.mxu0 0.0
      %571 = vmatpush1.msra.mxu0 0.0
      %572 = vmatprep.subr.mxu0 0.0
      %573 = vmatpush1.msra.mxu0 0.0
      %574 = vmatprep.subr.mxu0 0.0
      %575 = vmatpush1.msra.mxu0 0.0
      %576 = vmatprep.subr.mxu0 0.0
      %577 = vmatpush1.msra.mxu0 0.0
      %578 = vmatprep.subr.mxu0 0.0
      %579 = vmatpush1.msra.mxu0 0.0
      %580 = vmatprep.subr.mxu0 0.0
      %581 = vmatpush1.msra.mxu0 0.0
      %582 = vmatprep.subr.mxu0 0.0
      %583 = vmatpush1.msra.mxu0 0.0
      %584 = vmatprep.subr.mxu0 0.0
      %585 = vmatpush1.msra.mxu0 0.0
      %586 = vmatprep.subr.mxu0 0.0
      %587 = vmatpush1.msra.mxu0 0.0
      %588 = vmatprep.subr.mxu0 0.0
      %589 = vmatpush1.msra.mxu0 0.0
      %590 = vmatprep.subr.mxu0 0.0
      %591 = vmatpush1.msra.mxu0 0.0
      %592 = vmatprep.subr.mxu0 0.0
      %593 = vmatpush1.msra.mxu0 0.0
      %594 = vmatprep.mubr.f32.mxu0 0.0
      %595 = vmatmul.mubr.f32.gmra.mrb[0].mxu0 %v514
      %v596 = vpop.f32.mrb[0].mxu0
      %v597 = vadd.f32 0.0, %v596
      %v598 = vpop.f32.mrb[0].mxu0
      %599 = vmatprep.mubr.f32.mxu0 0.0
      %600 = vmatmul.mubr.f32.gmra.mrb[0].mxu0 %v516
      %v601 = vpop.f32.mrb[0].mxu0
      %v602 = vadd.f32 0.0, %v601
      %v603 = vpop.f32.mrb[0].mxu0
      %604 = vmatprep.mubr.f32.mxu0 0.0
      %605 = vmatmul.mubr.f32.gmra.mrb[0].mxu0 %v518
      %v606 = vpop.f32.mrb[0].mxu0
      %v607 = vadd.f32 0.0, %v606
      %v608 = vpop.f32.mrb[0].mxu0
      %609 = vmatprep.mubr.f32.mxu0 0.0
      %610 = vmatmul.mubr.f32.gmra.mrb[0].mxu0 %v520
      %v611 = vpop.f32.mrb[0].mxu0
      %v612 = vadd.f32 0.0, %v611
      %v613 = vpop.f32.mrb[0].mxu0
      %614 = vmatprep.mubr.f32.mxu0 0.0
      %615 = vmatmul.mubr.f32.gmra.mrb[0].mxu0 %v522
      %v616 = vpop.f32.mrb[0].mxu0
      %v617 = vadd.f32 0.0, %v616
      %v618 = vpop.f32.mrb[0].mxu0
      %619 = vmatprep.mubr.f32.mxu0 0.0
      %620 = vmatmul.mubr.f32.gmra.mrb[0].mxu0 %v524
      %v621 = vpop.f32.mrb[0].mxu0
      %v622 = vadd.f32 0.0, %v621
      %v623 = vpop.f32.mrb[0].mxu0
      %624 = vmatprep.mubr.f32.mxu0 0.0
      %625 = vmatmul.mubr.f32.gmra.mrb[0].mxu0 %v526
      %v626 = vpop.f32.mrb[0].mxu0
      %v627 = vadd.f32 0.0, %v626
      %v628 = vpop.f32.mrb[0].mxu0
      %629 = vmatprep.mubr.f32.mxu0 0.0
      %630 = vmatmul.mubr.f32.gmra.mrb[0].mxu0 %v528
      %v631 = vpop.f32.mrb[0].mxu0
      %v632 = vadd.f32 0.0, %v631
      %v633 = vpop.f32.mrb[0].mxu0
      %634 = vdwg.mxu0
      %v635 = vadd.f32 %v446, %v597
      %v636 = vadd.f32 %v451, %v602
      %v637 = vadd.f32 %v456, %v607
      %v638 = vadd.f32 %v461, %v612
      %v639 = vadd.f32 %v466, %v617
      %v640 = vadd.f32 %v471, %v622
      %v641 = vadd.f32 %v476, %v627
      %v642 = vadd.f32 %v481, %v632
      %s643 = scalar_lea.vmem %s1, 96
      %v644 = vld [vmem:[%s643] sm:$0xff]
      %v645 = vld [vmem:[%s643 + $0x8] sm:$0xff]
      %v646 = vld [vmem:[%s643 + $0x10] sm:$0xff]
      %v647 = vld [vmem:[%s643 + $0x18] sm:$0xff]
      %v649 = vsel %vm241, %v187, 0
      %651 = vmatprep.subr.mxu0 0.0
      %652 = vmatpush1.msra.mxu0 %v644
      %653 = vmatprep.subr.mxu0 0.0
      %654 = vmatpush1.msra.mxu0 %v645
      %655 = vmatprep.subr.mxu0 0.0
      %656 = vmatpush1.msra.mxu0 %v646
      %657 = vmatprep.subr.mxu0 0.0
      %658 = vmatpush1.msra.mxu0 %v647
      %659 = vmatprep.subr.mxu0 0.0
      %660 = vmatpush1.msra.mxu0 0.0
      %661 = vmatprep.subr.mxu0 0.0
      %662 = vmatpush1.msra.mxu0 0.0
      %663 = vmatprep.subr.mxu0 0.0
      %664 = vmatpush1.msra.mxu0 0.0
      %665 = vmatprep.subr.mxu0 0.0
      %666 = vmatpush1.msra.mxu0 0.0
      %667 = vmatprep.subr.mxu0 0.0
      %668 = vmatpush1.msra.mxu0 0.0
      %669 = vmatprep.subr.mxu0 0.0
      %670 = vmatpush1.msra.mxu0 0.0
      %671 = vmatprep.subr.mxu0 0.0
      %672 = vmatpush1.msra.mxu0 0.0
      %673 = vmatprep.subr.mxu0 0.0
      %674 = vmatpush1.msra.mxu0 0.0
      %675 = vmatprep.subr.mxu0 0.0
      %676 = vmatpush1.msra.mxu0 0.0
      %677 = vmatprep.subr.mxu0 0.0
      %678 = vmatpush1.msra.mxu0 0.0
      %679 = vmatprep.subr.mxu0 0.0
      %680 = vmatpush1.msra.mxu0 0.0
      %681 = vmatprep.subr.mxu0 0.0
      %682 = vmatpush1.msra.mxu0 0.0
      %683 = vmatprep.subr.mxu0 0.0
      %684 = vmatpush1.msra.mxu0 0.0
      %685 = vmatprep.subr.mxu0 0.0
      %686 = vmatpush1.msra.mxu0 0.0
      %687 = vmatprep.subr.mxu0 0.0
      %688 = vmatpush1.msra.mxu0 0.0
      %689 = vmatprep.subr.mxu0 0.0
      %690 = vmatpush1.msra.mxu0 0.0
      %691 = vmatprep.subr.mxu0 0.0
      %692 = vmatpush1.msra.mxu0 0.0
      %693 = vmatprep.subr.mxu0 0.0
      %694 = vmatpush1.msra.mxu0 0.0
      %695 = vmatprep.subr.mxu0 0.0
      %696 = vmatpush1.msra.mxu0 0.0
      %697 = vmatprep.subr.mxu0 0.0
      %698 = vmatpush1.msra.mxu0 0.0
      %699 = vmatprep.subr.mxu0 0.0
      %700 = vmatpush1.msra.mxu0 0.0
      %701 = vmatprep.subr.mxu0 0.0
      %702 = vmatpush1.msra.mxu0 0.0
      %703 = vmatprep.subr.mxu0 0.0
      %704 = vmatpush1.msra.mxu0 0.0
      %705 = vmatprep.subr.mxu0 0.0
      %706 = vmatpush1.msra.mxu0 0.0
      %707 = vmatprep.subr.mxu0 0.0
      %708 = vmatpush1.msra.mxu0 0.0
      %709 = vmatprep.subr.mxu0 0.0
      %710 = vmatpush1.msra.mxu0 0.0
      %711 = vmatprep.subr.mxu0 0.0
      %712 = vmatpush1.msra.mxu0 0.0
      %713 = vmatprep.subr.mxu0 0.0
      %714 = vmatpush1.msra.mxu0 0.0
      %715 = vmatprep.mubr.f32.mxu0 0.0
      %716 = vmatmul.mubr.f32.gmra.mrb[0].mxu0 %v365
      %v717 = vpop.f32.mrb[0].mxu0
      %v718 = vadd.f32 0.0, %v717
      %v719 = vpop.f32.mrb[0].mxu0
      %720 = vmatprep.mubr.f32.mxu0 0.0
      %721 = vmatmul.mubr.f32.gmra.mrb[0].mxu0 %v367
      %v722 = vpop.f32.mrb[0].mxu0
      %v723 = vadd.f32 0.0, %v722
      %v724 = vpop.f32.mrb[0].mxu0
      %725 = vmatprep.mubr.f32.mxu0 0.0
      %726 = vmatmul.mubr.f32.gmra.mrb[0].mxu0 %v369
      %v727 = vpop.f32.mrb[0].mxu0
      %v728 = vadd.f32 0.0, %v727
      %v729 = vpop.f32.mrb[0].mxu0
      %730 = vmatprep.mubr.f32.mxu0 0.0
      %731 = vmatmul.mubr.f32.gmra.mrb[0].mxu0 %v371
      %v732 = vpop.f32.mrb[0].mxu0
      %v733 = vadd.f32 0.0, %v732
      %v734 = vpop.f32.mrb[0].mxu0
      %735 = vmatprep.mubr.f32.mxu0 0.0
      %736 = vmatmul.mubr.f32.gmra.mrb[0].mxu0 %v373
      %v737 = vpop.f32.mrb[0].mxu0
      %v738 = vadd.f32 0.0, %v737
      %v739 = vpop.f32.mrb[0].mxu0
      %740 = vmatprep.mubr.f32.mxu0 0.0
      %741 = vmatmul.mubr.f32.gmra.mrb[0].mxu0 %v375
      %v742 = vpop.f32.mrb[0].mxu0
      %v743 = vadd.f32 0.0, %v742
      %v744 = vpop.f32.mrb[0].mxu0
      %745 = vmatprep.mubr.f32.mxu0 0.0
      %746 = vmatmul.mubr.f32.gmra.mrb[0].mxu0 %v377
      %v747 = vpop.f32.mrb[0].mxu0
      %v748 = vadd.f32 0.0, %v747
      %v749 = vpop.f32.mrb[0].mxu0
      %750 = vmatprep.mubr.f32.mxu0 0.0
      %751 = vmatmul.mubr.f32.gmra.mrb[0].mxu0 %v649
      %v752 = vpop.f32.mrb[0].mxu0
      %v753 = vadd.f32 0.0, %v752
      %v754 = vpop.f32.mrb[0].mxu0
      %755 = vdwg.mxu0
      %v756 = vadd.f32 %v635, %v718
      %v757 = vadd.f32 %v636, %v723
      %v758 = vadd.f32 %v637, %v728
      %v759 = vadd.f32 %v638, %v733
      %v760 = vadd.f32 %v639, %v738
      %v761 = vadd.f32 %v640, %v743
      %v762 = vadd.f32 %v641, %v748
      %v763 = vadd.f32 %v642, %v753
      %v765 = vrot.slane %v187, 1
      %v766 = vrot.slane %v188, 1
      %v767 = vsel %vm211, %v765, %v766
      %s768 = scalar_lea.vmem %s1, 128
      %v769 = vld [vmem:[%s768] sm:$0xff]
      %v770 = vld [vmem:[%s768 + $0x8] sm:$0xff]
      %v771 = vld [vmem:[%s768 + $0x10] sm:$0xff]
      %v772 = vld [vmem:[%s768 + $0x18] sm:$0xff]
      %v773 = vsel %vm241, %v767, 0
      %775 = vmatprep.subr.mxu0 0.0
      %776 = vmatpush1.msra.mxu0 %v769
      %777 = vmatprep.subr.mxu0 0.0
      %778 = vmatpush1.msra.mxu0 %v770
      %779 = vmatprep.subr.mxu0 0.0
      %780 = vmatpush1.msra.mxu0 %v771
      %781 = vmatprep.subr.mxu0 0.0
      %782 = vmatpush1.msra.mxu0 %v772
      %783 = vmatprep.subr.mxu0 0.0
      %784 = vmatpush1.msra.mxu0 0.0
      %785 = vmatprep.subr.mxu0 0.0
      %786 = vmatpush1.msra.mxu0 0.0
      %787 = vmatprep.subr.mxu0 0.0
      %788 = vmatpush1.msra.mxu0 0.0
      %789 = vmatprep.subr.mxu0 0.0
      %790 = vmatpush1.msra.mxu0 0.0
      %791 = vmatprep.subr.mxu0 0.0
      %792 = vmatpush1.msra.mxu0 0.0
      %793 = vmatprep.subr.mxu0 0.0
      %794 = vmatpush1.msra.mxu0 0.0
      %795 = vmatprep.subr.mxu0 0.0
      %796 = vmatpush1.msra.mxu0 0.0
      %797 = vmatprep.subr.mxu0 0.0
      %798 = vmatpush1.msra.mxu0 0.0
      %799 = vmatprep.subr.mxu0 0.0
      %800 = vmatpush1.msra.mxu0 0.0
      %801 = vmatprep.subr.mxu0 0.0
      %802 = vmatpush1.msra.mxu0 0.0
      %803 = vmatprep.subr.mxu0 0.0
      %804 = vmatpush1.msra.mxu0 0.0
      %805 = vmatprep.subr.mxu0 0.0
      %806 = vmatpush1.msra.mxu0 0.0
      %807 = vmatprep.subr.mxu0 0.0
      %808 = vmatpush1.msra.mxu0 0.0
      %809 = vmatprep.subr.mxu0 0.0
      %810 = vmatpush1.msra.mxu0 0.0
      %811 = vmatprep.subr.mxu0 0.0
      %812 = vmatpush1.msra.mxu0 0.0
      %813 = vmatprep.subr.mxu0 0.0
      %814 = vmatpush1.msra.mxu0 0.0
      %815 = vmatprep.subr.mxu0 0.0
      %816 = vmatpush1.msra.mxu0 0.0
      %817 = vmatprep.subr.mxu0 0.0
      %818 = vmatpush1.msra.mxu0 0.0
      %819 = vmatprep.subr.mxu0 0.0
      %820 = vmatpush1.msra.mxu0 0.0
      %821 = vmatprep.subr.mxu0 0.0
      %822 = vmatpush1.msra.mxu0 0.0
      %823 = vmatprep.subr.mxu0 0.0
      %824 = vmatpush1.msra.mxu0 0.0
      %825 = vmatprep.subr.mxu0 0.0
      %826 = vmatpush1.msra.mxu0 0.0
      %827 = vmatprep.subr.mxu0 0.0
      %828 = vmatpush1.msra.mxu0 0.0
      %829 = vmatprep.subr.mxu0 0.0
      %830 = vmatpush1.msra.mxu0 0.0
      %831 = vmatprep.subr.mxu0 0.0
      %832 = vmatpush1.msra.mxu0 0.0
      %833 = vmatprep.subr.mxu0 0.0
      %834 = vmatpush1.msra.mxu0 0.0
      %835 = vmatprep.subr.mxu0 0.0
      %836 = vmatpush1.msra.mxu0 0.0
      %837 = vmatprep.subr.mxu0 0.0
      %838 = vmatpush1.msra.mxu0 0.0
      %839 = vmatprep.mubr.f32.mxu0 0.0
      %840 = vmatmul.mubr.f32.gmra.mrb[0].mxu0 %v244
      %v841 = vpop.f32.mrb[0].mxu0
      %v842 = vadd.f32 0.0, %v841
      %v843 = vpop.f32.mrb[0].mxu0
      %844 = vmatprep.mubr.f32.mxu0 0.0
      %845 = vmatmul.mubr.f32.gmra.mrb[0].mxu0 %v246
      %v846 = vpop.f32.mrb[0].mxu0
      %v847 = vadd.f32 0.0, %v846
      %v848 = vpop.f32.mrb[0].mxu0
      %849 = vmatprep.mubr.f32.mxu0 0.0
      %850 = vmatmul.mubr.f32.gmra.mrb[0].mxu0 %v248
      %v851 = vpop.f32.mrb[0].mxu0
      %v852 = vadd.f32 0.0, %v851
      %v853 = vpop.f32.mrb[0].mxu0
      %854 = vmatprep.mubr.f32.mxu0 0.0
      %855 = vmatmul.mubr.f32.gmra.mrb[0].mxu0 %v250
      %v856 = vpop.f32.mrb[0].mxu0
      %v857 = vadd.f32 0.0, %v856
      %v858 = vpop.f32.mrb[0].mxu0
      %859 = vmatprep.mubr.f32.mxu0 0.0
      %860 = vmatmul.mubr.f32.gmra.mrb[0].mxu0 %v252
      %v861 = vpop.f32.mrb[0].mxu0
      %v862 = vadd.f32 0.0, %v861
      %v863 = vpop.f32.mrb[0].mxu0
      %864 = vmatprep.mubr.f32.mxu0 0.0
      %865 = vmatmul.mubr.f32.gmra.mrb[0].mxu0 %v254
      %v866 = vpop.f32.mrb[0].mxu0
      %v867 = vadd.f32 0.0, %v866
      %v868 = vpop.f32.mrb[0].mxu0
      %869 = vmatprep.mubr.f32.mxu0 0.0
      %870 = vmatmul.mubr.f32.gmra.mrb[0].mxu0 %v256
      %v871 = vpop.f32.mrb[0].mxu0
      %v872 = vadd.f32 0.0, %v871
      %v873 = vpop.f32.mrb[0].mxu0
      %874 = vmatprep.mubr.f32.mxu0 0.0
      %875 = vmatmul.mubr.f32.gmra.mrb[0].mxu0 %v773
      %v876 = vpop.f32.mrb[0].mxu0
      %v877 = vadd.f32 0.0, %v876
      %v878 = vpop.f32.mrb[0].mxu0
      %879 = vdwg.mxu0
      %v880 = vadd.f32 %v756, %v842
      %v881 = vadd.f32 %v757, %v847
      %v882 = vadd.f32 %v758, %v852
      %v883 = vadd.f32 %v759, %v857
      %v884 = vadd.f32 %v760, %v862
      %v885 = vadd.f32 %v761, %v867
      %v886 = vadd.f32 %v762, %v872
      %v887 = vadd.f32 %v763, %v877
      %v888 = vrot.slane %v187, 2
      %v889 = vrot.slane %v188, 2
      %v890 = vsel %vm484, %v888, %v889
      %s891 = scalar_lea.vmem %s1, 160
      %v892 = vld [vmem:[%s891] sm:$0xff]
      %v893 = vld [vmem:[%s891 + $0x8] sm:$0xff]
      %v894 = vld [vmem:[%s891 + $0x10] sm:$0xff]
      %v895 = vld [vmem:[%s891 + $0x18] sm:$0xff]
      %v896 = vsel %vm241, %v890, 0
      %898 = vmatprep.subr.mxu0 0.0
      %899 = vmatpush1.msra.mxu0 %v892
      %900 = vmatprep.subr.mxu0 0.0
      %901 = vmatpush1.msra.mxu0 %v893
      %902 = vmatprep.subr.mxu0 0.0
      %903 = vmatpush1.msra.mxu0 %v894
      %904 = vmatprep.subr.mxu0 0.0
      %905 = vmatpush1.msra.mxu0 %v895
      %906 = vmatprep.subr.mxu0 0.0
      %907 = vmatpush1.msra.mxu0 0.0
      %908 = vmatprep.subr.mxu0 0.0
      %909 = vmatpush1.msra.mxu0 0.0
      %910 = vmatprep.subr.mxu0 0.0
      %911 = vmatpush1.msra.mxu0 0.0
      %912 = vmatprep.subr.mxu0 0.0
      %913 = vmatpush1.msra.mxu0 0.0
      %914 = vmatprep.subr.mxu0 0.0
      %915 = vmatpush1.msra.mxu0 0.0
      %916 = vmatprep.subr.mxu0 0.0
      %917 = vmatpush1.msra.mxu0 0.0
      %918 = vmatprep.subr.mxu0 0.0
      %919 = vmatpush1.msra.mxu0 0.0
      %920 = vmatprep.subr.mxu0 0.0
      %921 = vmatpush1.msra.mxu0 0.0
      %922 = vmatprep.subr.mxu0 0.0
      %923 = vmatpush1.msra.mxu0 0.0
      %924 = vmatprep.subr.mxu0 0.0
      %925 = vmatpush1.msra.mxu0 0.0
      %926 = vmatprep.subr.mxu0 0.0
      %927 = vmatpush1.msra.mxu0 0.0
      %928 = vmatprep.subr.mxu0 0.0
      %929 = vmatpush1.msra.mxu0 0.0
      %930 = vmatprep.subr.mxu0 0.0
      %931 = vmatpush1.msra.mxu0 0.0
      %932 = vmatprep.subr.mxu0 0.0
      %933 = vmatpush1.msra.mxu0 0.0
      %934 = vmatprep.subr.mxu0 0.0
      %935 = vmatpush1.msra.mxu0 0.0
      %936 = vmatprep.subr.mxu0 0.0
      %937 = vmatpush1.msra.mxu0 0.0
      %938 = vmatprep.subr.mxu0 0.0
      %939 = vmatpush1.msra.mxu0 0.0
      %940 = vmatprep.subr.mxu0 0.0
      %941 = vmatpush1.msra.mxu0 0.0
      %942 = vmatprep.subr.mxu0 0.0
      %943 = vmatpush1.msra.mxu0 0.0
      %944 = vmatprep.subr.mxu0 0.0
      %945 = vmatpush1.msra.mxu0 0.0
      %946 = vmatprep.subr.mxu0 0.0
      %947 = vmatpush1.msra.mxu0 0.0
      %948 = vmatprep.subr.mxu0 0.0
      %949 = vmatpush1.msra.mxu0 0.0
      %950 = vmatprep.subr.mxu0 0.0
      %951 = vmatpush1.msra.mxu0 0.0
      %952 = vmatprep.subr.mxu0 0.0
      %953 = vmatpush1.msra.mxu0 0.0
      %954 = vmatprep.subr.mxu0 0.0
      %955 = vmatpush1.msra.mxu0 0.0
      %956 = vmatprep.subr.mxu0 0.0
      %957 = vmatpush1.msra.mxu0 0.0
      %958 = vmatprep.subr.mxu0 0.0
      %959 = vmatpush1.msra.mxu0 0.0
      %960 = vmatprep.subr.mxu0 0.0
      %961 = vmatpush1.msra.mxu0 0.0
      %962 = vmatprep.mubr.f32.mxu0 0.0
      %963 = vmatmul.mubr.f32.gmra.mrb[0].mxu0 %v516
      %v964 = vpop.f32.mrb[0].mxu0
      %v965 = vadd.f32 0.0, %v964
      %v966 = vpop.f32.mrb[0].mxu0
      %967 = vmatprep.mubr.f32.mxu0 0.0
      %968 = vmatmul.mubr.f32.gmra.mrb[0].mxu0 %v518
      %v969 = vpop.f32.mrb[0].mxu0
      %v970 = vadd.f32 0.0, %v969
      %v971 = vpop.f32.mrb[0].mxu0
      %972 = vmatprep.mubr.f32.mxu0 0.0
      %973 = vmatmul.mubr.f32.gmra.mrb[0].mxu0 %v520
      %v974 = vpop.f32.mrb[0].mxu0
      %v975 = vadd.f32 0.0, %v974
      %v976 = vpop.f32.mrb[0].mxu0
      %977 = vmatprep.mubr.f32.mxu0 0.0
      %978 = vmatmul.mubr.f32.gmra.mrb[0].mxu0 %v522
      %v979 = vpop.f32.mrb[0].mxu0
      %v980 = vadd.f32 0.0, %v979
      %v981 = vpop.f32.mrb[0].mxu0
      %982 = vmatprep.mubr.f32.mxu0 0.0
      %983 = vmatmul.mubr.f32.gmra.mrb[0].mxu0 %v524
      %v984 = vpop.f32.mrb[0].mxu0
      %v985 = vadd.f32 0.0, %v984
      %v986 = vpop.f32.mrb[0].mxu0
      %987 = vmatprep.mubr.f32.mxu0 0.0
      %988 = vmatmul.mubr.f32.gmra.mrb[0].mxu0 %v526
      %v989 = vpop.f32.mrb[0].mxu0
      %v990 = vadd.f32 0.0, %v989
      %v991 = vpop.f32.mrb[0].mxu0
      %992 = vmatprep.mubr.f32.mxu0 0.0
      %993 = vmatmul.mubr.f32.gmra.mrb[0].mxu0 %v528
      %v994 = vpop.f32.mrb[0].mxu0
      %v995 = vadd.f32 0.0, %v994
      %v996 = vpop.f32.mrb[0].mxu0
      %997 = vmatprep.mubr.f32.mxu0 0.0
      %998 = vmatmul.mubr.f32.gmra.mrb[0].mxu0 %v896
      %v999 = vpop.f32.mrb[0].mxu0
      %v1000 = vadd.f32 0.0, %v999
      %v1001 = vpop.f32.mrb[0].mxu0
      %1002 = vdwg.mxu0
      %v1003 = vadd.f32 %v880, %v965
      %v1004 = vadd.f32 %v881, %v970
      %v1005 = vadd.f32 %v882, %v975
      %v1006 = vadd.f32 %v883, %v980
      %v1007 = vadd.f32 %v884, %v985
      %v1008 = vadd.f32 %v885, %v990
      %v1009 = vadd.f32 %v886, %v995
      %v1010 = vadd.f32 %v887, %v1000
      %s1011 = scalar_lea.vmem %s1, 192
      %v1012 = vld [vmem:[%s1011] sm:$0xff]
      %v1013 = vld [vmem:[%s1011 + $0x8] sm:$0xff]
      %v1014 = vld [vmem:[%s1011 + $0x10] sm:$0xff]
      %v1015 = vld [vmem:[%s1011 + $0x18] sm:$0xff]
      %v1017 = vsel %vm241, %v189, 0
      %1019 = vmatprep.subr.mxu0 0.0
      %1020 = vmatpush1.msra.mxu0 %v1012
      %1021 = vmatprep.subr.mxu0 0.0
      %1022 = vmatpush1.msra.mxu0 %v1013
      %1023 = vmatprep.subr.mxu0 0.0
      %1024 = vmatpush1.msra.mxu0 %v1014
      %1025 = vmatprep.subr.mxu0 0.0
      %1026 = vmatpush1.msra.mxu0 %v1015
      %1027 = vmatprep.subr.mxu0 0.0
      %1028 = vmatpush1.msra.mxu0 0.0
      %1029 = vmatprep.subr.mxu0 0.0
      %1030 = vmatpush1.msra.mxu0 0.0
      %1031 = vmatprep.subr.mxu0 0.0
      %1032 = vmatpush1.msra.mxu0 0.0
      %1033 = vmatprep.subr.mxu0 0.0
      %1034 = vmatpush1.msra.mxu0 0.0
      %1035 = vmatprep.subr.mxu0 0.0
      %1036 = vmatpush1.msra.mxu0 0.0
      %1037 = vmatprep.subr.mxu0 0.0
      %1038 = vmatpush1.msra.mxu0 0.0
      %1039 = vmatprep.subr.mxu0 0.0
      %1040 = vmatpush1.msra.mxu0 0.0
      %1041 = vmatprep.subr.mxu0 0.0
      %1042 = vmatpush1.msra.mxu0 0.0
      %1043 = vmatprep.subr.mxu0 0.0
      %1044 = vmatpush1.msra.mxu0 0.0
      %1045 = vmatprep.subr.mxu0 0.0
      %1046 = vmatpush1.msra.mxu0 0.0
      %1047 = vmatprep.subr.mxu0 0.0
      %1048 = vmatpush1.msra.mxu0 0.0
      %1049 = vmatprep.subr.mxu0 0.0
      %1050 = vmatpush1.msra.mxu0 0.0
      %1051 = vmatprep.subr.mxu0 0.0
      %1052 = vmatpush1.msra.mxu0 0.0
      %1053 = vmatprep.subr.mxu0 0.0
      %1054 = vmatpush1.msra.mxu0 0.0
      %1055 = vmatprep.subr.mxu0 0.0
      %1056 = vmatpush1.msra.mxu0 0.0
      %1057 = vmatprep.subr.mxu0 0.0
      %1058 = vmatpush1.msra.mxu0 0.0
      %1059 = vmatprep.subr.mxu0 0.0
      %1060 = vmatpush1.msra.mxu0 0.0
      %1061 = vmatprep.subr.mxu0 0.0
      %1062 = vmatpush1.msra.mxu0 0.0
      %1063 = vmatprep.subr.mxu0 0.0
      %1064 = vmatpush1.msra.mxu0 0.0
      %1065 = vmatprep.subr.mxu0 0.0
      %1066 = vmatpush1.msra.mxu0 0.0
      %1067 = vmatprep.subr.mxu0 0.0
      %1068 = vmatpush1.msra.mxu0 0.0
      %1069 = vmatprep.subr.mxu0 0.0
      %1070 = vmatpush1.msra.mxu0 0.0
      %1071 = vmatprep.subr.mxu0 0.0
      %1072 = vmatpush1.msra.mxu0 0.0
      %1073 = vmatprep.subr.mxu0 0.0
      %1074 = vmatpush1.msra.mxu0 0.0
      %1075 = vmatprep.subr.mxu0 0.0
      %1076 = vmatpush1.msra.mxu0 0.0
      %1077 = vmatprep.subr.mxu0 0.0
      %1078 = vmatpush1.msra.mxu0 0.0
      %1079 = vmatprep.subr.mxu0 0.0
      %1080 = vmatpush1.msra.mxu0 0.0
      %1081 = vmatprep.subr.mxu0 0.0
      %1082 = vmatpush1.msra.mxu0 0.0
      %1083 = vmatprep.mubr.f32.mxu0 0.0
      %1084 = vmatmul.mubr.f32.gmra.mrb[0].mxu0 %v367
      %v1085 = vpop.f32.mrb[0].mxu0
      %v1086 = vadd.f32 0.0, %v1085
      %v1087 = vpop.f32.mrb[0].mxu0
      %1088 = vmatprep.mubr.f32.mxu0 0.0
      %1089 = vmatmul.mubr.f32.gmra.mrb[0].mxu0 %v369
      %v1090 = vpop.f32.mrb[0].mxu0
      %v1091 = vadd.f32 0.0, %v1090
      %v1092 = vpop.f32.mrb[0].mxu0
      %1093 = vmatprep.mubr.f32.mxu0 0.0
      %1094 = vmatmul.mubr.f32.gmra.mrb[0].mxu0 %v371
      %v1095 = vpop.f32.mrb[0].mxu0
      %v1096 = vadd.f32 0.0, %v1095
      %v1097 = vpop.f32.mrb[0].mxu0
      %1098 = vmatprep.mubr.f32.mxu0 0.0
      %1099 = vmatmul.mubr.f32.gmra.mrb[0].mxu0 %v373
      %v1100 = vpop.f32.mrb[0].mxu0
      %v1101 = vadd.f32 0.0, %v1100
      %v1102 = vpop.f32.mrb[0].mxu0
      %1103 = vmatprep.mubr.f32.mxu0 0.0
      %1104 = vmatmul.mubr.f32.gmra.mrb[0].mxu0 %v375
      %v1105 = vpop.f32.mrb[0].mxu0
      %v1106 = vadd.f32 0.0, %v1105
      %v1107 = vpop.f32.mrb[0].mxu0
      %1108 = vmatprep.mubr.f32.mxu0 0.0
      %1109 = vmatmul.mubr.f32.gmra.mrb[0].mxu0 %v377
      %v1110 = vpop.f32.mrb[0].mxu0
      %v1111 = vadd.f32 0.0, %v1110
      %v1112 = vpop.f32.mrb[0].mxu0
      %1113 = vmatprep.mubr.f32.mxu0 0.0
      %1114 = vmatmul.mubr.f32.gmra.mrb[0].mxu0 %v649
      %v1115 = vpop.f32.mrb[0].mxu0
      %v1116 = vadd.f32 0.0, %v1115
      %v1117 = vpop.f32.mrb[0].mxu0
      %1118 = vmatprep.mubr.f32.mxu0 0.0
      %1119 = vmatmul.mubr.f32.gmra.mrb[0].mxu0 %v1017
      %v1120 = vpop.f32.mrb[0].mxu0
      %v1121 = vadd.f32 0.0, %v1120
      %v1122 = vpop.f32.mrb[0].mxu0
      %1123 = vdwg.mxu0
      %v1124 = vadd.f32 %v1003, %v1086
      %v1125 = vadd.f32 %v1004, %v1091
      %v1126 = vadd.f32 %v1005, %v1096
      %v1127 = vadd.f32 %v1006, %v1101
      %v1128 = vadd.f32 %v1007, %v1106
      %v1129 = vadd.f32 %v1008, %v1111
      %v1130 = vadd.f32 %v1009, %v1116
      %v1131 = vadd.f32 %v1010, %v1121
      %v1133 = vrot.slane %v189, 1
      %v1134 = vrot.slane %v190, 1
      %v1135 = vsel %vm211, %v1133, %v1134
      %s1136 = scalar_lea.vmem %s1, 224
      %v1137 = vld [vmem:[%s1136] sm:$0xff]
      %v1138 = vld [vmem:[%s1136 + $0x8] sm:$0xff]
      %v1139 = vld [vmem:[%s1136 + $0x10] sm:$0xff]
      %v1140 = vld [vmem:[%s1136 + $0x18] sm:$0xff]
      %v1141 = vsel %vm241, %v1135, 0
      %1143 = vmatprep.subr.mxu0 0.0
      %1144 = vmatpush1.msra.mxu0 %v1137
      %1145 = vmatprep.subr.mxu0 0.0
      %1146 = vmatpush1.msra.mxu0 %v1138
      %1147 = vmatprep.subr.mxu0 0.0
      %1148 = vmatpush1.msra.mxu0 %v1139
      %1149 = vmatprep.subr.mxu0 0.0
      %1150 = vmatpush1.msra.mxu0 %v1140
      %1151 = vmatprep.subr.mxu0 0.0
      %1152 = vmatpush1.msra.mxu0 0.0
      %1153 = vmatprep.subr.mxu0 0.0
      %1154 = vmatpush1.msra.mxu0 0.0
      %1155 = vmatprep.subr.mxu0 0.0
      %1156 = vmatpush1.msra.mxu0 0.0
      %1157 = vmatprep.subr.mxu0 0.0
      %1158 = vmatpush1.msra.mxu0 0.0
      %1159 = vmatprep.subr.mxu0 0.0
      %1160 = vmatpush1.msra.mxu0 0.0
      %1161 = vmatprep.subr.mxu0 0.0
      %1162 = vmatpush1.msra.mxu0 0.0
      %1163 = vmatprep.subr.mxu0 0.0
      %1164 = vmatpush1.msra.mxu0 0.0
      %1165 = vmatprep.subr.mxu0 0.0
      %1166 = vmatpush1.msra.mxu0 0.0
      %1167 = vmatprep.subr.mxu0 0.0
      %1168 = vmatpush1.msra.mxu0 0.0
      %1169 = vmatprep.subr.mxu0 0.0
      %1170 = vmatpush1.msra.mxu0 0.0
      %1171 = vmatprep.subr.mxu0 0.0
      %1172 = vmatpush1.msra.mxu0 0.0
      %1173 = vmatprep.subr.mxu0 0.0
      %1174 = vmatpush1.msra.mxu0 0.0
      %1175 = vmatprep.subr.mxu0 0.0
      %1176 = vmatpush1.msra.mxu0 0.0
      %1177 = vmatprep.subr.mxu0 0.0
      %1178 = vmatpush1.msra.mxu0 0.0
      %1179 = vmatprep.subr.mxu0 0.0
      %1180 = vmatpush1.msra.mxu0 0.0
      %1181 = vmatprep.subr.mxu0 0.0
      %1182 = vmatpush1.msra.mxu0 0.0
      %1183 = vmatprep.subr.mxu0 0.0
      %1184 = vmatpush1.msra.mxu0 0.0
      %1185 = vmatprep.subr.mxu0 0.0
      %1186 = vmatpush1.msra.mxu0 0.0
      %1187 = vmatprep.subr.mxu0 0.0
      %1188 = vmatpush1.msra.mxu0 0.0
      %1189 = vmatprep.subr.mxu0 0.0
      %1190 = vmatpush1.msra.mxu0 0.0
      %1191 = vmatprep.subr.mxu0 0.0
      %1192 = vmatpush1.msra.mxu0 0.0
      %1193 = vmatprep.subr.mxu0 0.0
      %1194 = vmatpush1.msra.mxu0 0.0
      %1195 = vmatprep.subr.mxu0 0.0
      %1196 = vmatpush1.msra.mxu0 0.0
      %1197 = vmatprep.subr.mxu0 0.0
      %1198 = vmatpush1.msra.mxu0 0.0
      %1199 = vmatprep.subr.mxu0 0.0
      %1200 = vmatpush1.msra.mxu0 0.0
      %1201 = vmatprep.subr.mxu0 0.0
      %1202 = vmatpush1.msra.mxu0 0.0
      %1203 = vmatprep.subr.mxu0 0.0
      %1204 = vmatpush1.msra.mxu0 0.0
      %1205 = vmatprep.subr.mxu0 0.0
      %1206 = vmatpush1.msra.mxu0 0.0
      %1207 = vmatprep.mubr.f32.mxu0 0.0
      %1208 = vmatmul.mubr.f32.gmra.mrb[0].mxu0 %v246
      %v1209 = vpop.f32.mrb[0].mxu0
      %v1210 = vadd.f32 0.0, %v1209
      %v1211 = vpop.f32.mrb[0].mxu0
      %1212 = vmatprep.mubr.f32.mxu0 0.0
      %1213 = vmatmul.mubr.f32.gmra.mrb[0].mxu0 %v248
      %v1214 = vpop.f32.mrb[0].mxu0
      %v1215 = vadd.f32 0.0, %v1214
      %v1216 = vpop.f32.mrb[0].mxu0
      %1217 = vmatprep.mubr.f32.mxu0 0.0
      %1218 = vmatmul.mubr.f32.gmra.mrb[0].mxu0 %v250
      %v1219 = vpop.f32.mrb[0].mxu0
      %v1220 = vadd.f32 0.0, %v1219
      %v1221 = vpop.f32.mrb[0].mxu0
      %1222 = vmatprep.mubr.f32.mxu0 0.0
      %1223 = vmatmul.mubr.f32.gmra.mrb[0].mxu0 %v252
      %v1224 = vpop.f32.mrb[0].mxu0
      %v1225 = vadd.f32 0.0, %v1224
      %v1226 = vpop.f32.mrb[0].mxu0
      %1227 = vmatprep.mubr.f32.mxu0 0.0
      %1228 = vmatmul.mubr.f32.gmra.mrb[0].mxu0 %v254
      %v1229 = vpop.f32.mrb[0].mxu0
      %v1230 = vadd.f32 0.0, %v1229
      %v1231 = vpop.f32.mrb[0].mxu0
      %1232 = vmatprep.mubr.f32.mxu0 0.0
      %1233 = vmatmul.mubr.f32.gmra.mrb[0].mxu0 %v256
      %v1234 = vpop.f32.mrb[0].mxu0
      %v1235 = vadd.f32 0.0, %v1234
      %v1236 = vpop.f32.mrb[0].mxu0
      %1237 = vmatprep.mubr.f32.mxu0 0.0
      %1238 = vmatmul.mubr.f32.gmra.mrb[0].mxu0 %v773
      %v1239 = vpop.f32.mrb[0].mxu0
      %v1240 = vadd.f32 0.0, %v1239
      %v1241 = vpop.f32.mrb[0].mxu0
      %1242 = vmatprep.mubr.f32.mxu0 0.0
      %1243 = vmatmul.mubr.f32.gmra.mrb[0].mxu0 %v1141
      %v1244 = vpop.f32.mrb[0].mxu0
      %v1245 = vadd.f32 0.0, %v1244
      %v1246 = vpop.f32.mrb[0].mxu0
      %1247 = vdwg.mxu0
      %v1248 = vadd.f32 %v1124, %v1210
      %v1249 = vadd.f32 %v1125, %v1215
      %v1250 = vadd.f32 %v1126, %v1220
      %v1251 = vadd.f32 %v1127, %v1225
      %v1252 = vadd.f32 %v1128, %v1230
      %v1253 = vadd.f32 %v1129, %v1235
      %v1254 = vadd.f32 %v1130, %v1240
      %v1255 = vadd.f32 %v1131, %v1245
      %v1256 = vrot.slane %v189, 2
      %v1257 = vrot.slane %v190, 2
      %v1258 = vsel %vm484, %v1256, %v1257
      %s1259 = scalar_lea.vmem %s1, 256
      %v1260 = vld [vmem:[%s1259] sm:$0xff]
      %v1261 = vld [vmem:[%s1259 + $0x8] sm:$0xff]
      %v1262 = vld [vmem:[%s1259 + $0x10] sm:$0xff]
      %v1263 = vld [vmem:[%s1259 + $0x18] sm:$0xff]
      %v1264 = vsel %vm241, %v1258, 0
      %1266 = vmatprep.subr.mxu0 0.0
      %1267 = vmatpush1.msra.mxu0 %v1260
      %1268 = vmatprep.subr.mxu0 0.0
      %1269 = vmatpush1.msra.mxu0 %v1261
      %1270 = vmatprep.subr.mxu0 0.0
      %1271 = vmatpush1.msra.mxu0 %v1262
      %1272 = vmatprep.subr.mxu0 0.0
      %1273 = vmatpush1.msra.mxu0 %v1263
      %1274 = vmatprep.subr.mxu0 0.0
      %1275 = vmatpush1.msra.mxu0 0.0
      %1276 = vmatprep.subr.mxu0 0.0
      %1277 = vmatpush1.msra.mxu0 0.0
      %1278 = vmatprep.subr.mxu0 0.0
      %1279 = vmatpush1.msra.mxu0 0.0
      %1280 = vmatprep.subr.mxu0 0.0
      %1281 = vmatpush1.msra.mxu0 0.0
      %1282 = vmatprep.subr.mxu0 0.0
      %1283 = vmatpush1.msra.mxu0 0.0
      %1284 = vmatprep.subr.mxu0 0.0
      %1285 = vmatpush1.msra.mxu0 0.0
      %1286 = vmatprep.subr.mxu0 0.0
      %1287 = vmatpush1.msra.mxu0 0.0
      %1288 = vmatprep.subr.mxu0 0.0
      %1289 = vmatpush1.msra.mxu0 0.0
      %1290 = vmatprep.subr.mxu0 0.0
      %1291 = vmatpush1.msra.mxu0 0.0
      %1292 = vmatprep.subr.mxu0 0.0
      %1293 = vmatpush1.msra.mxu0 0.0
      %1294 = vmatprep.subr.mxu0 0.0
      %1295 = vmatpush1.msra.mxu0 0.0
      %1296 = vmatprep.subr.mxu0 0.0
      %1297 = vmatpush1.msra.mxu0 0.0
      %1298 = vmatprep.subr.mxu0 0.0
      %1299 = vmatpush1.msra.mxu0 0.0
      %1300 = vmatprep.subr.mxu0 0.0
      %1301 = vmatpush1.msra.mxu0 0.0
      %1302 = vmatprep.subr.mxu0 0.0
      %1303 = vmatpush1.msra.mxu0 0.0
      %1304 = vmatprep.subr.mxu0 0.0
      %1305 = vmatpush1.msra.mxu0 0.0
      %1306 = vmatprep.subr.mxu0 0.0
      %1307 = vmatpush1.msra.mxu0 0.0
      %1308 = vmatprep.subr.mxu0 0.0
      %1309 = vmatpush1.msra.mxu0 0.0
      %1310 = vmatprep.subr.mxu0 0.0
      %1311 = vmatpush1.msra.mxu0 0.0
      %1312 = vmatprep.subr.mxu0 0.0
      %1313 = vmatpush1.msra.mxu0 0.0
      %1314 = vmatprep.subr.mxu0 0.0
      %1315 = vmatpush1.msra.mxu0 0.0
      %1316 = vmatprep.subr.mxu0 0.0
      %1317 = vmatpush1.msra.mxu0 0.0
      %1318 = vmatprep.subr.mxu0 0.0
      %1319 = vmatpush1.msra.mxu0 0.0
      %1320 = vmatprep.subr.mxu0 0.0
      %1321 = vmatpush1.msra.mxu0 0.0
      %1322 = vmatprep.subr.mxu0 0.0
      %1323 = vmatpush1.msra.mxu0 0.0
      %1324 = vmatprep.subr.mxu0 0.0
      %1325 = vmatpush1.msra.mxu0 0.0
      %1326 = vmatprep.subr.mxu0 0.0
      %1327 = vmatpush1.msra.mxu0 0.0
      %1328 = vmatprep.subr.mxu0 0.0
      %1329 = vmatpush1.msra.mxu0 0.0
      %1330 = vmatprep.mubr.f32.mxu0 0.0
      %1331 = vmatmul.mubr.f32.gmra.mrb[0].mxu0 %v518
      %v1332 = vpop.f32.mrb[0].mxu0
      %v1333 = vadd.f32 0.0, %v1332
      %v1334 = vpop.f32.mrb[0].mxu0
      %1335 = vmatprep.mubr.f32.mxu0 0.0
      %1336 = vmatmul.mubr.f32.gmra.mrb[0].mxu0 %v520
      %v1337 = vpop.f32.mrb[0].mxu0
      %v1338 = vadd.f32 0.0, %v1337
      %v1339 = vpop.f32.mrb[0].mxu0
      %1340 = vmatprep.mubr.f32.mxu0 0.0
      %1341 = vmatmul.mubr.f32.gmra.mrb[0].mxu0 %v522
      %v1342 = vpop.f32.mrb[0].mxu0
      %v1343 = vadd.f32 0.0, %v1342
      %v1344 = vpop.f32.mrb[0].mxu0
      %1345 = vmatprep.mubr.f32.mxu0 0.0
      %1346 = vmatmul.mubr.f32.gmra.mrb[0].mxu0 %v524
      %v1347 = vpop.f32.mrb[0].mxu0
      %v1348 = vadd.f32 0.0, %v1347
      %v1349 = vpop.f32.mrb[0].mxu0
      %1350 = vmatprep.mubr.f32.mxu0 0.0
      %1351 = vmatmul.mubr.f32.gmra.mrb[0].mxu0 %v526
      %v1352 = vpop.f32.mrb[0].mxu0
      %v1353 = vadd.f32 0.0, %v1352
      %v1354 = vpop.f32.mrb[0].mxu0
      %1355 = vmatprep.mubr.f32.mxu0 0.0
      %1356 = vmatmul.mubr.f32.gmra.mrb[0].mxu0 %v528
      %v1357 = vpop.f32.mrb[0].mxu0
      %v1358 = vadd.f32 0.0, %v1357
      %v1359 = vpop.f32.mrb[0].mxu0
      %1360 = vmatprep.mubr.f32.mxu0 0.0
      %1361 = vmatmul.mubr.f32.gmra.mrb[0].mxu0 %v896
      %v1362 = vpop.f32.mrb[0].mxu0
      %v1363 = vadd.f32 0.0, %v1362
      %v1364 = vpop.f32.mrb[0].mxu0
      %1365 = vmatprep.mubr.f32.mxu0 0.0
      %1366 = vmatmul.mubr.f32.gmra.mrb[0].mxu0 %v1264
      %v1367 = vpop.f32.mrb[0].mxu0
      %v1368 = vadd.f32 0.0, %v1367
      %v1369 = vpop.f32.mrb[0].mxu0
      %1370 = vdwg.mxu0
      %v1371 = vadd.f32 %v1248, %v1333
      %v1372 = vadd.f32 %v1249, %v1338
      %v1373 = vadd.f32 %v1250, %v1343
      %v1374 = vadd.f32 %v1251, %v1348
      %v1375 = vadd.f32 %v1252, %v1353
      %v1376 = vadd.f32 %v1253, %v1358
      %v1377 = vadd.f32 %v1254, %v1363
      %v1378 = vadd.f32 %v1255, %v1368
      %v1379 = vld [vmem:[%s2] sm:$0x1]
      %v1381 = vlaneseq
      %v1382 = vshrl.u32 %v1381, 7
      %v1383 = vsub.s32 0, %v1382
      %v1384 = vrot.slane %v1379, %v1383
      %v1386 = vadd.f32 %v1371, %v1384
      %v1387 = vadd.f32 %v1372, %v1384
      %v1388 = vadd.f32 %v1373, %v1384
      %v1389 = vadd.f32 %v1374, %v1384
      %v1390 = vadd.f32 %v1375, %v1384
      %v1391 = vadd.f32 %v1376, %v1384
      %v1392 = vadd.f32 %v1377, %v1384
      %v1393 = vadd.f32 %v1378, %v1384
      %v1394 = vmul.f32 %v1386, %v1386
      %v1395 = vmul.f32 %v1387, %v1387
      %v1396 = vmul.f32 %v1388, %v1388
      %v1397 = vmul.f32 %v1389, %v1389
      %v1398 = vmul.f32 %v1390, %v1390
      %v1399 = vmul.f32 %v1391, %v1391
      %v1400 = vmul.f32 %v1392, %v1392
      %v1401 = vmul.f32 %v1393, %v1393
      %v1402 = vmul.f32 %v1386, %v1394
      %v1403 = vmul.f32 %v1387, %v1395
      %v1404 = vmul.f32 %v1388, %v1396
      %v1405 = vmul.f32 %v1389, %v1397
      %v1406 = vmul.f32 %v1390, %v1398
      %v1407 = vmul.f32 %v1391, %v1399
      %v1408 = vmul.f32 %v1392, %v1400
      %v1409 = vmul.f32 %v1393, %v1401
      %v1410 = vmul.f32 %v1402, 0.044715
      %v1411 = vmul.f32 %v1403, 0.044715
      %v1412 = vmul.f32 %v1404, 0.044715
      %v1413 = vmul.f32 %v1405, 0.044715
      %v1414 = vmul.f32 %v1406, 0.044715
      %v1415 = vmul.f32 %v1407, 0.044715
      %v1416 = vmul.f32 %v1408, 0.044715
      %v1417 = vmul.f32 %v1409, 0.044715
      %v1418 = vadd.f32 %v1386, %v1410
      %v1419 = vadd.f32 %v1387, %v1411
      %v1420 = vadd.f32 %v1388, %v1412
      %v1421 = vadd.f32 %v1389, %v1413
      %v1422 = vadd.f32 %v1390, %v1414
      %v1423 = vadd.f32 %v1391, %v1415
      %v1424 = vadd.f32 %v1392, %v1416
      %v1425 = vadd.f32 %v1393, %v1417
      %v1426 = vmul.f32 %v1418, 0.7978846
      %v1427 = vmul.f32 %v1419, 0.7978846
      %v1428 = vmul.f32 %v1420, 0.7978846
      %v1429 = vmul.f32 %v1421, 0.7978846
      %v1430 = vmul.f32 %v1422, 0.7978846
      %v1431 = vmul.f32 %v1423, 0.7978846
      %v1432 = vmul.f32 %v1424, 0.7978846
      %v1433 = vmul.f32 %v1425, 0.7978846
      %v1434 = vtanh.pop %v1426
      %v1435 = vtanh.pop %v1427
      %v1436 = vtanh.pop %v1428
      %v1437 = vtanh.pop %v1429
      %v1438 = vtanh.pop %v1430
      %v1439 = vtanh.pop %v1431
      %v1440 = vtanh.pop %v1432
      %v1441 = vtanh.pop %v1433
      %v1442 = vadd.f32 %v1434, 1.0
      %v1443 = vadd.f32 %v1435, 1.0
      %v1444 = vadd.f32 %v1436, 1.0
      %v1445 = vadd.f32 %v1437, 1.0
      %v1446 = vadd.f32 %v1438, 1.0
      %v1447 = vadd.f32 %v1439, 1.0
      %v1448 = vadd.f32 %v1440, 1.0
      %v1449 = vadd.f32 %v1441, 1.0
      %v1450 = vmul.f32 %v1442, 0.5
      %v1451 = vmul.f32 %v1443, 0.5
      %v1452 = vmul.f32 %v1444, 0.5
      %v1453 = vmul.f32 %v1445, 0.5
      %v1454 = vmul.f32 %v1446, 0.5
      %v1455 = vmul.f32 %v1447, 0.5
      %v1456 = vmul.f32 %v1448, 0.5
      %v1457 = vmul.f32 %v1449, 0.5
      %v1458 = vmul.f32 %v1386, %v1450
      %v1459 = vmul.f32 %v1387, %v1451
      %v1460 = vmul.f32 %v1388, %v1452
      %v1461 = vmul.f32 %v1389, %v1453
      %v1462 = vmul.f32 %v1390, %v1454
      %v1463 = vmul.f32 %v1391, %v1455
      %v1464 = vmul.f32 %v1392, %v1456
      %v1465 = vmul.f32 %v1393, %v1457
      %vm1466 = vcmask 64512
      %1467 = vst.msk [vmem:[%s170] sm:$0xff] %vm1466, %v1458
      %1468 = vst.msk [vmem:[%s170 + $0x8] sm:$0xff] %vm1466, %v1459
      %1469 = vst.msk [vmem:[%s170 + $0x10] sm:$0xff] %vm1466, %v1460
      %1470 = vst.msk [vmem:[%s170 + $0x18] sm:$0xff] %vm1466, %v1461
      %1471 = vst.msk [vmem:[%s170 + $0x20] sm:$0xff] %vm1466, %v1462
      %1472 = vst.msk [vmem:[%s170 + $0x28] sm:$0xff] %vm1466, %v1463
      %1473 = vst.msk [vmem:[%s170 + $0x30] sm:$0xff] %vm1466, %v1464
      %1474 = vst.msk [vmem:[%s170 + $0x38] sm:$0xff] %vm1466, %v1465
      %p1475 = scmp.lt.s32.totalorder %s14, 1
      %s1476 = scalar_select %p1475, %s14, 1
      %s1477 = smul.addr %s1476, 8
      %s1478 = smul.addr %s1477, 8
      %s1479 = scalar_lea.vmem %s3, %s1478
      // Predicated region
      $region33: #{_lambda_.12} parent=31 // pred_check
        %p1480 = pneg %p100
      $region34: #{_lambda_.12} parent=31 // pred_check_branch
        %1482 = sbr.rel (%p1480) target = $region36
      $region35: #{_lambda_.12} parent=31 // pred_region
        _
      $region36: #{_lambda_.12} parent=31 // pred_fallthru
        _
    $region32: #{_lambda_.12} parent=5 // pred_fallthru
      _
    %p1483 = scmp.le.s32.totalorder 2, %s9
    // Predicated region
    $region37: #{_lambda_.12} parent=5 // pred_check
      %p1484 = pneg %p1483
    $region38: #{_lambda_.12} parent=5 // pred_check_branch
      %1486 = sbr.rel (%p1484) target = $region40
    $region39: #{_lambda_.12} parent=5 // pred_region
      %s1487 = ssub.s32 %s9, 2
      // Predicated region
      $region41: #{_lambda_.12} parent=39 // pred_check
        %p1488 = pneg %p106
      $region42: #{_lambda_.12} parent=39 // pred_check_branch
        %1490 = sbr.rel (%p1488) target = $region44
      $region43: #{_lambda_.12} parent=39 // pred_region
        %p1491 = scmp.lt.s32.totalorder %s15, 1
        %s1492 = scalar_select %p1491, %s15, 1
        %s1493 = smul.addr %s1492, 8
        %s1494 = smul.addr %s1493, 8
        %s1495 = scalar_lea.vmem %s3, %s1494
      $region44: #{_lambda_.12} parent=39 // pred_fallthru
        _
    $region40: #{_lambda_.12} parent=5 // pred_fallthru
      _
  $region6: #{_lambda_.12} parent=0 // loop_footer
    %s13 = sadd.s32 1, %s9
  $region7: #{_lambda_.12} parent=0 // loop_footer_branch
    %8 = sbr.rel target = $region3
  $region8: #{_lambda_.12} parent=0 // loop_exit
    _

// kernel: _lambda_.20
$region0: #{_lambda_.20}
  #allocation0 [shape = 'u32[]', space=smem, size = 0x4, offset = 0x4, fixed_abs, tag = 'smem constant byte address 0x4 - core index']
  #allocation1 [shape = 'u32[144,128]{1,0:T(1,128)}', space=vmem, size = 0x12000, scoped, tag = 'internal scratch']
  #allocation2 [shape = 'f32[128,64]{1,0:T(8,128)}', space=vmem, size = 0x10000, scoped, tag = 'scratch operand']
  %s0 = inlined_call_operand.vmem [shape: f32[128,32], index: 0, kind: input, shape index: {}]
  %s1 = inlined_call_operand.vmem [shape: f32[32,64], index: 1, kind: input, shape index: {}]
  %s2 = inlined_call_operand.vmem [shape: f32[1,64], index: 2, kind: input, shape index: {}]
  %s3 = inlined_call_operand.vmem [shape: f32[128,64], index: 3, kind: output, shape index: {}]
  %s4 = sld [smem:[#allocation0]]
  $region30: #{_lambda_.20} parent=0
    _
  %s6 = ssub.s32 1, %s4
  %s7 = scalar_select 0, %s6, %s4
  // Predicated region
  $region2: #{_lambda_.20} parent=0 // pred_check
    _
  $region3: #{_lambda_.20} parent=0 // pred_check_branch
    %9 = sbr.rel (0) target = $region5
  $region4: #{_lambda_.20} parent=0 // pred_region
    _
  $region5: #{_lambda_.20} parent=0 // pred_fallthru
    _
  // Predicated region
  $region6: #{_lambda_.20} parent=0 // pred_check
    _
  $region7: #{_lambda_.20} parent=0 // pred_check_branch
    %11 = sbr.rel (0) target = $region9
  $region8: #{_lambda_.20} parent=0 // pred_region
    _
  $region9: #{_lambda_.20} parent=0 // pred_fallthru
    _
  // Predicated region
  $region10: #{_lambda_.20} parent=0 // pred_check
    _
  $region11: #{_lambda_.20} parent=0 // pred_check_branch
    %13 = sbr.rel (0) target = $region13
  $region12: #{_lambda_.20} parent=0 // pred_region
    _
  $region13: #{_lambda_.20} parent=0 // pred_fallthru
    _
  %p14 = scmp.eq.s32.totalorder 0, 0
  // Predicated region
  $region14: #{_lambda_.20} parent=0 // pred_check
    %p15 = pneg %p14
  $region15: #{_lambda_.20} parent=0 // pred_check_branch
    %17 = sbr.rel (%p15) target = $region17
  $region16: #{_lambda_.20} parent=0 // pred_region
    %vm18 = vcmask 523264
    %19 = vst.msk [vmem:[#allocation2] sm:$0xff] %vm18, 0.0
    %20 = vst.msk [vmem:[#allocation2 + $0x8] sm:$0xff] %vm18, 0.0
    %21 = vst.msk [vmem:[#allocation2 + $0x10] sm:$0xff] %vm18, 0.0
    %22 = vst.msk [vmem:[#allocation2 + $0x18] sm:$0xff] %vm18, 0.0
    %23 = vst.msk [vmem:[#allocation2 + $0x20] sm:$0xff] %vm18, 0.0
    %24 = vst.msk [vmem:[#allocation2 + $0x28] sm:$0xff] %vm18, 0.0
    %25 = vst.msk [vmem:[#allocation2 + $0x30] sm:$0xff] %vm18, 0.0
    %26 = vst.msk [vmem:[#allocation2 + $0x38] sm:$0xff] %vm18, 0.0
    %27 = vst.msk [vmem:[#allocation2 + $0x40] sm:$0xff] %vm18, 0.0
    %28 = vst.msk [vmem:[#allocation2 + $0x48] sm:$0xff] %vm18, 0.0
    %29 = vst.msk [vmem:[#allocation2 + $0x50] sm:$0xff] %vm18, 0.0
    %30 = vst.msk [vmem:[#allocation2 + $0x58] sm:$0xff] %vm18, 0.0
    %31 = vst.msk [vmem:[#allocation2 + $0x60] sm:$0xff] %vm18, 0.0
    %32 = vst.msk [vmem:[#allocation2 + $0x68] sm:$0xff] %vm18, 0.0
    %33 = vst.msk [vmem:[#allocation2 + $0x70] sm:$0xff] %vm18, 0.0
    %34 = vst.msk [vmem:[#allocation2 + $0x78] sm:$0xff] %vm18, 0.0
  $region17: #{_lambda_.20} parent=0 // pred_fallthru
    _
  %v35 = vld [vmem:[#allocation2] sm:$0xff]
  %v36 = vld [vmem:[#allocation2 + $0x8] sm:$0xff]
  %v37 = vld [vmem:[#allocation2 + $0x10] sm:$0xff]
  %v38 = vld [vmem:[#allocation2 + $0x18] sm:$0xff]
  %v39 = vld [vmem:[#allocation2 + $0x20] sm:$0xff]
  %v40 = vld [vmem:[#allocation2 + $0x28] sm:$0xff]
  %v41 = vld [vmem:[#allocation2 + $0x30] sm:$0xff]
  %v42 = vld [vmem:[#allocation2 + $0x38] sm:$0xff]
  %v43 = vld [vmem:[#allocation2 + $0x40] sm:$0xff]
  %v44 = vld [vmem:[#allocation2 + $0x48] sm:$0xff]
  %v45 = vld [vmem:[#allocation2 + $0x50] sm:$0xff]
  %v46 = vld [vmem:[#allocation2 + $0x58] sm:$0xff]
  %v47 = vld [vmem:[#allocation2 + $0x60] sm:$0xff]
  %v48 = vld [vmem:[#allocation2 + $0x68] sm:$0xff]
  %v49 = vld [vmem:[#allocation2 + $0x70] sm:$0xff]
  %v50 = vld [vmem:[#allocation2 + $0x78] sm:$0xff]
  %v51 = vld [vmem:[%s0] sm:$0xff]
  %v52 = vld [vmem:[%s0 + $0x8] sm:$0xff]
  %v53 = vld [vmem:[%s0 + $0x10] sm:$0xff]
  %v54 = vld [vmem:[%s0 + $0x18] sm:$0xff]
  %v55 = vld [vmem:[%s0 + $0x20] sm:$0xff]
  %v56 = vld [vmem:[%s0 + $0x28] sm:$0xff]
  %v57 = vld [vmem:[%s0 + $0x30] sm:$0xff]
  %v58 = vld [vmem:[%s0 + $0x38] sm:$0xff]
  %v59 = vld [vmem:[%s0 + $0x40] sm:$0xff]
  %v60 = vld [vmem:[%s0 + $0x48] sm:$0xff]
  %v61 = vld [vmem:[%s0 + $0x50] sm:$0xff]
  %v62 = vld [vmem:[%s0 + $0x58] sm:$0xff]
  %v63 = vld [vmem:[%s0 + $0x60] sm:$0xff]
  %v64 = vld [vmem:[%s0 + $0x68] sm:$0xff]
  %v65 = vld [vmem:[%s0 + $0x70] sm:$0xff]
  %v66 = vld [vmem:[%s0 + $0x78] sm:$0xff]
  %v67 = vld [vmem:[%s1] sm:$0xff]
  %v68 = vld [vmem:[%s1 + $0x8] sm:$0xff]
  %v69 = vld [vmem:[%s1 + $0x10] sm:$0xff]
  %v70 = vld [vmem:[%s1 + $0x18] sm:$0xff]
  %vm71 = vcmask 261120
  %v73 = vsel %vm71, %v51, 0
  %v76 = vsel %vm71, %v52, 0
  %v79 = vsel %vm71, %v53, 0
  %v82 = vsel %vm71, %v54, 0
  %v85 = vsel %vm71, %v55, 0
  %v88 = vsel %vm71, %v56, 0
  %v91 = vsel %vm71, %v57, 0
  %v94 = vsel %vm71, %v58, 0
  %v97 = vsel %vm71, %v59, 0
  %v100 = vsel %vm71, %v60, 0
  %v103 = vsel %vm71, %v61, 0
  %v106 = vsel %vm71, %v62, 0
  %v109 = vsel %vm71, %v63, 0
  %v112 = vsel %vm71, %v64, 0
  %v115 = vsel %vm71, %v65, 0
  %v118 = vsel %vm71, %v66, 0
  %120 = vmatprep.subr.mxu0 0.0
  %121 = vmatpush1.msra.mxu0 %v67
  %122 = vmatprep.subr.mxu0 0.0
  %123 = vmatpush1.msra.mxu0 %v68
  %124 = vmatprep.subr.mxu0 0.0
  %125 = vmatpush1.msra.mxu0 %v69
  %126 = vmatprep.subr.mxu0 0.0
  %127 = vmatpush1.msra.mxu0 %v70
  %128 = vmatprep.subr.mxu0 0.0
  %129 = vmatpush1.msra.mxu0 0.0
  %130 = vmatprep.subr.mxu0 0.0
  %131 = vmatpush1.msra.mxu0 0.0
  %132 = vmatprep.subr.mxu0 0.0
  %133 = vmatpush1.msra.mxu0 0.0
  %134 = vmatprep.subr.mxu0 0.0
  %135 = vmatpush1.msra.mxu0 0.0
  %136 = vmatprep.subr.mxu0 0.0
  %137 = vmatpush1.msra.mxu0 0.0
  %138 = vmatprep.subr.mxu0 0.0
  %139 = vmatpush1.msra.mxu0 0.0
  %140 = vmatprep.subr.mxu0 0.0
  %141 = vmatpush1.msra.mxu0 0.0
  %142 = vmatprep.subr.mxu0 0.0
  %143 = vmatpush1.msra.mxu0 0.0
  %144 = vmatprep.subr.mxu0 0.0
  %145 = vmatpush1.msra.mxu0 0.0
  %146 = vmatprep.subr.mxu0 0.0
  %147 = vmatpush1.msra.mxu0 0.0
  %148 = vmatprep.subr.mxu0 0.0
  %149 = vmatpush1.msra.mxu0 0.0
  %150 = vmatprep.subr.mxu0 0.0
  %151 = vmatpush1.msra.mxu0 0.0
  %152 = vmatprep.subr.mxu0 0.0
  %153 = vmatpush1.msra.mxu0 0.0
  %154 = vmatprep.subr.mxu0 0.0
  %155 = vmatpush1.msra.mxu0 0.0
  %156 = vmatprep.subr.mxu0 0.0
  %157 = vmatpush1.msra.mxu0 0.0
  %158 = vmatprep.subr.mxu0 0.0
  %159 = vmatpush1.msra.mxu0 0.0
  %160 = vmatprep.subr.mxu0 0.0
  %161 = vmatpush1.msra.mxu0 0.0
  %162 = vmatprep.subr.mxu0 0.0
  %163 = vmatpush1.msra.mxu0 0.0
  %164 = vmatprep.subr.mxu0 0.0
  %165 = vmatpush1.msra.mxu0 0.0
  %166 = vmatprep.subr.mxu0 0.0
  %167 = vmatpush1.msra.mxu0 0.0
  %168 = vmatprep.subr.mxu0 0.0
  %169 = vmatpush1.msra.mxu0 0.0
  %170 = vmatprep.subr.mxu0 0.0
  %171 = vmatpush1.msra.mxu0 0.0
  %172 = vmatprep.subr.mxu0 0.0
  %173 = vmatpush1.msra.mxu0 0.0
  %174 = vmatprep.subr.mxu0 0.0
  %175 = vmatpush1.msra.mxu0 0.0
  %176 = vmatprep.subr.mxu0 0.0
  %177 = vmatpush1.msra.mxu0 0.0
  %178 = vmatprep.subr.mxu0 0.0
  %179 = vmatpush1.msra.mxu0 0.0
  %180 = vmatprep.subr.mxu0 0.0
  %181 = vmatpush1.msra.mxu0 0.0
  %182 = vmatprep.subr.mxu0 0.0
  %183 = vmatpush1.msra.mxu0 0.0
  %184 = vmatprep.mubr.f32.mxu0 0.0
  %185 = vmatmul.mubr.f32.gmra.mrb[0].mxu0 %v73
  %v186 = vpop.f32.mrb[0].mxu0
  %v187 = vadd.f32 0.0, %v186
  %v188 = vpop.f32.mrb[0].mxu0
  %189 = vmatprep.mubr.f32.mxu0 0.0
  %190 = vmatmul.mubr.f32.gmra.mrb[0].mxu0 %v76
  %v191 = vpop.f32.mrb[0].mxu0
  %v192 = vadd.f32 0.0, %v191
  %v193 = vpop.f32.mrb[0].mxu0
  %194 = vmatprep.mubr.f32.mxu0 0.0
  %195 = vmatmul.mubr.f32.gmra.mrb[0].mxu0 %v79
  %v196 = vpop.f32.mrb[0].mxu0
  %v197 = vadd.f32 0.0, %v196
  %v198 = vpop.f32.mrb[0].mxu0
  %199 = vmatprep.mubr.f32.mxu0 0.0
  %200 = vmatmul.mubr.f32.gmra.mrb[0].mxu0 %v82
  %v201 = vpop.f32.mrb[0].mxu0
  %v202 = vadd.f32 0.0, %v201
  %v203 = vpop.f32.mrb[0].mxu0
  %204 = vmatprep.mubr.f32.mxu0 0.0
  %205 = vmatmul.mubr.f32.gmra.mrb[0].mxu0 %v85
  %v206 = vpop.f32.mrb[0].mxu0
  %v207 = vadd.f32 0.0, %v206
  %v208 = vpop.f32.mrb[0].mxu0
  %209 = vmatprep.mubr.f32.mxu0 0.0
  %210 = vmatmul.mubr.f32.gmra.mrb[0].mxu0 %v88
  %v211 = vpop.f32.mrb[0].mxu0
  %v212 = vadd.f32 0.0, %v211
  %v213 = vpop.f32.mrb[0].mxu0
  %214 = vmatprep.mubr.f32.mxu0 0.0
  %215 = vmatmul.mubr.f32.gmra.mrb[0].mxu0 %v91
  %v216 = vpop.f32.mrb[0].mxu0
  %v217 = vadd.f32 0.0, %v216
  %v218 = vpop.f32.mrb[0].mxu0
  %219 = vmatprep.mubr.f32.mxu0 0.0
  %220 = vmatmul.mubr.f32.gmra.mrb[0].mxu0 %v94
  %v221 = vpop.f32.mrb[0].mxu0
  %v222 = vadd.f32 0.0, %v221
  %v223 = vpop.f32.mrb[0].mxu0
  %224 = vmatprep.mubr.f32.mxu0 0.0
  %225 = vmatmul.mubr.f32.gmra.mrb[0].mxu0 %v97
  %v226 = vpop.f32.mrb[0].mxu0
  %v227 = vadd.f32 0.0, %v226
  %v228 = vpop.f32.mrb[0].mxu0
  %229 = vmatprep.mubr.f32.mxu0 0.0
  %230 = vmatmul.mubr.f32.gmra.mrb[0].mxu0 %v100
  %v231 = vpop.f32.mrb[0].mxu0
  %v232 = vadd.f32 0.0, %v231
  %v233 = vpop.f32.mrb[0].mxu0
  %234 = vmatprep.mubr.f32.mxu0 0.0
  %235 = vmatmul.mubr.f32.gmra.mrb[0].mxu0 %v103
  %v236 = vpop.f32.mrb[0].mxu0
  %v237 = vadd.f32 0.0, %v236
  %v238 = vpop.f32.mrb[0].mxu0
  %239 = vmatprep.mubr.f32.mxu0 0.0
  %240 = vmatmul.mubr.f32.gmra.mrb[0].mxu0 %v106
  %v241 = vpop.f32.mrb[0].mxu0
  %v242 = vadd.f32 0.0, %v241
  %v243 = vpop.f32.mrb[0].mxu0
  %244 = vmatprep.mubr.f32.mxu0 0.0
  %245 = vmatmul.mubr.f32.gmra.mrb[0].mxu0 %v109
  %v246 = vpop.f32.mrb[0].mxu0
  %v247 = vadd.f32 0.0, %v246
  %v248 = vpop.f32.mrb[0].mxu0
  %249 = vmatprep.mubr.f32.mxu0 0.0
  %250 = vmatmul.mubr.f32.gmra.mrb[0].mxu0 %v112
  %v251 = vpop.f32.mrb[0].mxu0
  %v252 = vadd.f32 0.0, %v251
  %v253 = vpop.f32.mrb[0].mxu0
  %254 = vmatprep.mubr.f32.mxu0 0.0
  %255 = vmatmul.mubr.f32.gmra.mrb[0].mxu0 %v115
  %v256 = vpop.f32.mrb[0].mxu0
  %v257 = vadd.f32 0.0, %v256
  %v258 = vpop.f32.mrb[0].mxu0
  %259 = vmatprep.mubr.f32.mxu0 0.0
  %260 = vmatmul.mubr.f32.gmra.mrb[0].mxu0 %v118
  %v261 = vpop.f32.mrb[0].mxu0
  %v262 = vadd.f32 0.0, %v261
  %v263 = vpop.f32.mrb[0].mxu0
  %264 = vdwg.mxu0
  %v265 = vadd.f32 %v35, %v187
  %v266 = vadd.f32 %v36, %v192
  %v267 = vadd.f32 %v37, %v197
  %v268 = vadd.f32 %v38, %v202
  %v269 = vadd.f32 %v39, %v207
  %v270 = vadd.f32 %v40, %v212
  %v271 = vadd.f32 %v41, %v217
  %v272 = vadd.f32 %v42, %v222
  %v273 = vadd.f32 %v43, %v227
  %v274 = vadd.f32 %v44, %v232
  %v275 = vadd.f32 %v45, %v237
  %v276 = vadd.f32 %v46, %v242
  %v277 = vadd.f32 %v47, %v247
  %v278 = vadd.f32 %v48, %v252
  %v279 = vadd.f32 %v49, %v257
  %v280 = vadd.f32 %v50, %v262
  %vm281 = vcmask 523264
  %282 = vst.msk [vmem:[#allocation2] sm:$0xff] %vm281, %v265
  %283 = vst.msk [vmem:[#allocation2 + $0x8] sm:$0xff] %vm281, %v266
  %284 = vst.msk [vmem:[#allocation2 + $0x10] sm:$0xff] %vm281, %v267
  %285 = vst.msk [vmem:[#allocation2 + $0x18] sm:$0xff] %vm281, %v268
  %286 = vst.msk [vmem:[#allocation2 + $0x20] sm:$0xff] %vm281, %v269
  %287 = vst.msk [vmem:[#allocation2 + $0x28] sm:$0xff] %vm281, %v270
  %288 = vst.msk [vmem:[#allocation2 + $0x30] sm:$0xff] %vm281, %v271
  %289 = vst.msk [vmem:[#allocation2 + $0x38] sm:$0xff] %vm281, %v272
  %290 = vst.msk [vmem:[#allocation2 + $0x40] sm:$0xff] %vm281, %v273
  %291 = vst.msk [vmem:[#allocation2 + $0x48] sm:$0xff] %vm281, %v274
  %292 = vst.msk [vmem:[#allocation2 + $0x50] sm:$0xff] %vm281, %v275
  %293 = vst.msk [vmem:[#allocation2 + $0x58] sm:$0xff] %vm281, %v276
  %294 = vst.msk [vmem:[#allocation2 + $0x60] sm:$0xff] %vm281, %v277
  %295 = vst.msk [vmem:[#allocation2 + $0x68] sm:$0xff] %vm281, %v278
  %296 = vst.msk [vmem:[#allocation2 + $0x70] sm:$0xff] %vm281, %v279
  %297 = vst.msk [vmem:[#allocation2 + $0x78] sm:$0xff] %vm281, %v280
  // Predicated region
  $region18: #{_lambda_.20} parent=0 // pred_check
    %p298 = pneg %p14
  $region19: #{_lambda_.20} parent=0 // pred_check_branch
    %300 = sbr.rel (%p298) target = $region21
  $region20: #{_lambda_.20} parent=0 // pred_region
    %v301 = vld [vmem:[#allocation2] sm:$0xff]
    %v302 = vld [vmem:[#allocation2 + $0x8] sm:$0xff]
    %v303 = vld [vmem:[#allocation2 + $0x10] sm:$0xff]
    %v304 = vld [vmem:[#allocation2 + $0x18] sm:$0xff]
    %v305 = vld [vmem:[#allocation2 + $0x20] sm:$0xff]
    %v306 = vld [vmem:[#allocation2 + $0x28] sm:$0xff]
    %v307 = vld [vmem:[#allocation2 + $0x30] sm:$0xff]
    %v308 = vld [vmem:[#allocation2 + $0x38] sm:$0xff]
    %v309 = vld [vmem:[#allocation2 + $0x40] sm:$0xff]
    %v310 = vld [vmem:[#allocation2 + $0x48] sm:$0xff]
    %v311 = vld [vmem:[#allocation2 + $0x50] sm:$0xff]
    %v312 = vld [vmem:[#allocation2 + $0x58] sm:$0xff]
    %v313 = vld [vmem:[#allocation2 + $0x60] sm:$0xff]
    %v314 = vld [vmem:[#allocation2 + $0x68] sm:$0xff]
    %v315 = vld [vmem:[#allocation2 + $0x70] sm:$0xff]
    %v316 = vld [vmem:[#allocation2 + $0x78] sm:$0xff]
    %v317 = vld [vmem:[%s2] sm:$0x1]
    %v319 = vlaneseq
    %v320 = vshrl.u32 %v319, 7
    %v321 = vsub.s32 0, %v320
    %v322 = vrot.slane %v317, %v321
    %v324 = vadd.f32 %v301, %v322
    %v325 = vadd.f32 %v302, %v322
    %v326 = vadd.f32 %v303, %v322
    %v327 = vadd.f32 %v304, %v322
    %v328 = vadd.f32 %v305, %v322
    %v329 = vadd.f32 %v306, %v322
    %v330 = vadd.f32 %v307, %v322
    %v331 = vadd.f32 %v308, %v322
    %v332 = vadd.f32 %v309, %v322
    %v333 = vadd.f32 %v310, %v322
    %v334 = vadd.f32 %v311, %v322
    %v335 = vadd.f32 %v312, %v322
    %v336 = vadd.f32 %v313, %v322
    %v337 = vadd.f32 %v314, %v322
    %v338 = vadd.f32 %v315, %v322
    %v339 = vadd.f32 %v316, %v322
    %v340 = vmul.f32 %v324, %v324
    %v341 = vmul.f32 %v325, %v325
    %v342 = vmul.f32 %v326, %v326
    %v343 = vmul.f32 %v327, %v327
    %v344 = vmul.f32 %v328, %v328
    %v345 = vmul.f32 %v329, %v329
    %v346 = vmul.f32 %v330, %v330
    %v347 = vmul.f32 %v331, %v331
    %v348 = vmul.f32 %v332, %v332
    %v349 = vmul.f32 %v333, %v333
    %v350 = vmul.f32 %v334, %v334
    %v351 = vmul.f32 %v335, %v335
    %v352 = vmul.f32 %v336, %v336
    %v353 = vmul.f32 %v337, %v337
    %v354 = vmul.f32 %v338, %v338
    %v355 = vmul.f32 %v339, %v339
    %v356 = vmul.f32 %v324, %v340
    %v357 = vmul.f32 %v325, %v341
    %v358 = vmul.f32 %v326, %v342
    %v359 = vmul.f32 %v327, %v343
    %v360 = vmul.f32 %v328, %v344
    %v361 = vmul.f32 %v329, %v345
    %v362 = vmul.f32 %v330, %v346
    %v363 = vmul.f32 %v331, %v347
    %v364 = vmul.f32 %v332, %v348
    %v365 = vmul.f32 %v333, %v349
    %v366 = vmul.f32 %v334, %v350
    %v367 = vmul.f32 %v335, %v351
    %v368 = vmul.f32 %v336, %v352
    %v369 = vmul.f32 %v337, %v353
    %v370 = vmul.f32 %v338, %v354
    %v371 = vmul.f32 %v339, %v355
    %v372 = vmul.f32 %v356, 0.044715
    %v373 = vmul.f32 %v357, 0.044715
    %v374 = vmul.f32 %v358, 0.044715
    %v375 = vmul.f32 %v359, 0.044715
    %v376 = vmul.f32 %v360, 0.044715
    %v377 = vmul.f32 %v361, 0.044715
    %v378 = vmul.f32 %v362, 0.044715
    %v379 = vmul.f32 %v363, 0.044715
    %v380 = vmul.f32 %v364, 0.044715
    %v381 = vmul.f32 %v365, 0.044715
    %v382 = vmul.f32 %v366, 0.044715
    %v383 = vmul.f32 %v367, 0.044715
    %v384 = vmul.f32 %v368, 0.044715
    %v385 = vmul.f32 %v369, 0.044715
    %v386 = vmul.f32 %v370, 0.044715
    %v387 = vmul.f32 %v371, 0.044715
    %v388 = vadd.f32 %v324, %v372
    %v389 = vadd.f32 %v325, %v373
    %v390 = vadd.f32 %v326, %v374
    %v391 = vadd.f32 %v327, %v375
    %v392 = vadd.f32 %v328, %v376
    %v393 = vadd.f32 %v329, %v377
    %v394 = vadd.f32 %v330, %v378
    %v395 = vadd.f32 %v331, %v379
    %v396 = vadd.f32 %v332, %v380
    %v397 = vadd.f32 %v333, %v381
    %v398 = vadd.f32 %v334, %v382
    %v399 = vadd.f32 %v335, %v383
    %v400 = vadd.f32 %v336, %v384
    %v401 = vadd.f32 %v337, %v385
    %v402 = vadd.f32 %v338, %v386
    %v403 = vadd.f32 %v339, %v387
    %v404 = vmul.f32 %v388, 0.7978846
    %v405 = vmul.f32 %v389, 0.7978846
    %v406 = vmul.f32 %v390, 0.7978846
    %v407 = vmul.f32 %v391, 0.7978846
    %v408 = vmul.f32 %v392, 0.7978846
    %v409 = vmul.f32 %v393, 0.7978846
    %v410 = vmul.f32 %v394, 0.7978846
    %v411 = vmul.f32 %v395, 0.7978846
    %v412 = vmul.f32 %v396, 0.7978846
    %v413 = vmul.f32 %v397, 0.7978846
    %v414 = vmul.f32 %v398, 0.7978846
    %v415 = vmul.f32 %v399, 0.7978846
    %v416 = vmul.f32 %v400, 0.7978846
    %v417 = vmul.f32 %v401, 0.7978846
    %v418 = vmul.f32 %v402, 0.7978846
    %v419 = vmul.f32 %v403, 0.7978846
    %v420 = vtanh.pop %v404
    %v421 = vtanh.pop %v405
    %v422 = vtanh.pop %v406
    %v423 = vtanh.pop %v407
    %v424 = vtanh.pop %v408
    %v425 = vtanh.pop %v409
    %v426 = vtanh.pop %v410
    %v427 = vtanh.pop %v411
    %v428 = vtanh.pop %v412
    %v429 = vtanh.pop %v413
    %v430 = vtanh.pop %v414
    %v431 = vtanh.pop %v415
    %v432 = vtanh.pop %v416
    %v433 = vtanh.pop %v417
    %v434 = vtanh.pop %v418
    %v435 = vtanh.pop %v419
    %v436 = vadd.f32 %v420, 1.0
    %v437 = vadd.f32 %v421, 1.0
    %v438 = vadd.f32 %v422, 1.0
    %v439 = vadd.f32 %v423, 1.0
    %v440 = vadd.f32 %v424, 1.0
    %v441 = vadd.f32 %v425, 1.0
    %v442 = vadd.f32 %v426, 1.0
    %v443 = vadd.f32 %v427, 1.0
    %v444 = vadd.f32 %v428, 1.0
    %v445 = vadd.f32 %v429, 1.0
    %v446 = vadd.f32 %v430, 1.0
    %v447 = vadd.f32 %v431, 1.0
    %v448 = vadd.f32 %v432, 1.0
    %v449 = vadd.f32 %v433, 1.0
    %v450 = vadd.f32 %v434, 1.0
    %v451 = vadd.f32 %v435, 1.0
    %v452 = vmul.f32 %v436, 0.5
    %v453 = vmul.f32 %v437, 0.5
    %v454 = vmul.f32 %v438, 0.5
    %v455 = vmul.f32 %v439, 0.5
    %v456 = vmul.f32 %v440, 0.5
    %v457 = vmul.f32 %v441, 0.5
    %v458 = vmul.f32 %v442, 0.5
    %v459 = vmul.f32 %v443, 0.5
    %v460 = vmul.f32 %v444, 0.5
    %v461 = vmul.f32 %v445, 0.5
    %v462 = vmul.f32 %v446, 0.5
    %v463 = vmul.f32 %v447, 0.5
    %v464 = vmul.f32 %v448, 0.5
    %v465 = vmul.f32 %v449, 0.5
    %v466 = vmul.f32 %v450, 0.5
    %v467 = vmul.f32 %v451, 0.5
    %v468 = vmul.f32 %v324, %v452
    %v469 = vmul.f32 %v325, %v453
    %v470 = vmul.f32 %v326, %v454
    %v471 = vmul.f32 %v327, %v455
    %v472 = vmul.f32 %v328, %v456
    %v473 = vmul.f32 %v329, %v457
    %v474 = vmul.f32 %v330, %v458
    %v475 = vmul.f32 %v331, %v459
    %v476 = vmul.f32 %v332, %v460
    %v477 = vmul.f32 %v333, %v461
    %v478 = vmul.f32 %v334, %v462
    %v479 = vmul.f32 %v335, %v463
    %v480 = vmul.f32 %v336, %v464
    %v481 = vmul.f32 %v337, %v465
    %v482 = vmul.f32 %v338, %v466
    %v483 = vmul.f32 %v339, %v467
    %484 = vst.msk [vmem:[%s3] sm:$0xff] %vm281, %v468
    %485 = vst.msk [vmem:[%s3 + $0x8] sm:$0xff] %vm281, %v469
    %486 = vst.msk [vmem:[%s3 + $0x10] sm:$0xff] %vm281, %v470
    %487 = vst.msk [vmem:[%s3 + $0x18] sm:$0xff] %vm281, %v471
    %488 = vst.msk [vmem:[%s3 + $0x20] sm:$0xff] %vm281, %v472
    %489 = vst.msk [vmem:[%s3 + $0x28] sm:$0xff] %vm281, %v473
    %490 = vst.msk [vmem:[%s3 + $0x30] sm:$0xff] %vm281, %v474
    %491 = vst.msk [vmem:[%s3 + $0x38] sm:$0xff] %vm281, %v475
    %492 = vst.msk [vmem:[%s3 + $0x40] sm:$0xff] %vm281, %v476
    %493 = vst.msk [vmem:[%s3 + $0x48] sm:$0xff] %vm281, %v477
    %494 = vst.msk [vmem:[%s3 + $0x50] sm:$0xff] %vm281, %v478
    %495 = vst.msk [vmem:[%s3 + $0x58] sm:$0xff] %vm281, %v479
    %496 = vst.msk [vmem:[%s3 + $0x60] sm:$0xff] %vm281, %v480
    %497 = vst.msk [vmem:[%s3 + $0x68] sm:$0xff] %vm281, %v481
    %498 = vst.msk [vmem:[%s3 + $0x70] sm:$0xff] %vm281, %v482
    %499 = vst.msk [vmem:[%s3 + $0x78] sm:$0xff] %vm281, %v483
  $region21: #{_lambda_.20} parent=0 // pred_fallthru
    _
  // Predicated region
  $region22: #{_lambda_.20} parent=0 // pred_check
    _
  $region23: #{_lambda_.20} parent=0 // pred_check_branch
    %501 = sbr.rel (0) target = $region25
  $region24: #{_lambda_.20} parent=0 // pred_region
    _
  $region25: #{_lambda_.20} parent=0 // pred_fallthru
    _
  // Predicated region
  $region26: #{_lambda_.20} parent=0 // pred_check
    _
  $region27: #{_lambda_.20} parent=0 // pred_check_branch
    %503 = sbr.rel (0) target = $region29
  $region28: #{_lambda_.20} parent=0 // pred_region
    _
  $region29: #{_lambda_.20} parent=0 // pred_fallthru
    _

// kernel: _lambda_.21
$region0: #{_lambda_.21}
  #allocation0 [shape = 'u32[]', space=smem, size = 0x4, offset = 0x4, fixed_abs, tag = 'smem constant byte address 0x4 - core index']
  #allocation1 [shape = 'u32[144,128]{1,0:T(1,128)}', space=vmem, size = 0x12000, scoped, tag = 'internal scratch']
  #allocation2 [shape = 'f32[128,32]{1,0:T(8,128)}', space=vmem, size = 0x10000, scoped, tag = 'scratch operand']
  %s0 = inlined_call_operand.vmem [shape: f32[128,64], index: 0, kind: input, shape index: {}]
  %s1 = inlined_call_operand.vmem [shape: f32[64,32], index: 1, kind: input, shape index: {}]
  %s2 = inlined_call_operand.vmem [shape: f32[1,32], index: 2, kind: input, shape index: {}]
  %s3 = inlined_call_operand.vmem [shape: f32[128,32], index: 3, kind: output, shape index: {}]
  %s4 = sld [smem:[#allocation0]]
  $region30: #{_lambda_.21} parent=0
    _
  %s6 = ssub.s32 1, %s4
  %s7 = scalar_select 0, %s6, %s4
  // Predicated region
  $region2: #{_lambda_.21} parent=0 // pred_check
    _
  $region3: #{_lambda_.21} parent=0 // pred_check_branch
    %9 = sbr.rel (0) target = $region5
  $region4: #{_lambda_.21} parent=0 // pred_region
    _
  $region5: #{_lambda_.21} parent=0 // pred_fallthru
    _
  // Predicated region
  $region6: #{_lambda_.21} parent=0 // pred_check
    _
  $region7: #{_lambda_.21} parent=0 // pred_check_branch
    %11 = sbr.rel (0) target = $region9
  $region8: #{_lambda_.21} parent=0 // pred_region
    _
  $region9: #{_lambda_.21} parent=0 // pred_fallthru
    _
  // Predicated region
  $region10: #{_lambda_.21} parent=0 // pred_check
    _
  $region11: #{_lambda_.21} parent=0 // pred_check_branch
    %13 = sbr.rel (0) target = $region13
  $region12: #{_lambda_.21} parent=0 // pred_region
    _
  $region13: #{_lambda_.21} parent=0 // pred_fallthru
    _
  %p14 = scmp.eq.s32.totalorder 0, 0
  // Predicated region
  $region14: #{_lambda_.21} parent=0 // pred_check
    %p15 = pneg %p14
  $region15: #{_lambda_.21} parent=0 // pred_check_branch
    %17 = sbr.rel (%p15) target = $region17
  $region16: #{_lambda_.21} parent=0 // pred_region
    %vm18 = vcmask 261120
    %19 = vst.msk [vmem:[#allocation2] sm:$0xff] %vm18, 0.0
    %20 = vst.msk [vmem:[#allocation2 + $0x8] sm:$0xff] %vm18, 0.0
    %21 = vst.msk [vmem:[#allocation2 + $0x10] sm:$0xff] %vm18, 0.0
    %22 = vst.msk [vmem:[#allocation2 + $0x18] sm:$0xff] %vm18, 0.0
    %23 = vst.msk [vmem:[#allocation2 + $0x20] sm:$0xff] %vm18, 0.0
    %24 = vst.msk [vmem:[#allocation2 + $0x28] sm:$0xff] %vm18, 0.0
    %25 = vst.msk [vmem:[#allocation2 + $0x30] sm:$0xff] %vm18, 0.0
    %26 = vst.msk [vmem:[#allocation2 + $0x38] sm:$0xff] %vm18, 0.0
    %27 = vst.msk [vmem:[#allocation2 + $0x40] sm:$0xff] %vm18, 0.0
    %28 = vst.msk [vmem:[#allocation2 + $0x48] sm:$0xff] %vm18, 0.0
    %29 = vst.msk [vmem:[#allocation2 + $0x50] sm:$0xff] %vm18, 0.0
    %30 = vst.msk [vmem:[#allocation2 + $0x58] sm:$0xff] %vm18, 0.0
    %31 = vst.msk [vmem:[#allocation2 + $0x60] sm:$0xff] %vm18, 0.0
    %32 = vst.msk [vmem:[#allocation2 + $0x68] sm:$0xff] %vm18, 0.0
    %33 = vst.msk [vmem:[#allocation2 + $0x70] sm:$0xff] %vm18, 0.0
    %34 = vst.msk [vmem:[#allocation2 + $0x78] sm:$0xff] %vm18, 0.0
  $region17: #{_lambda_.21} parent=0 // pred_fallthru
    _
  %v35 = vld [vmem:[#allocation2] sm:$0xff]
  %v36 = vld [vmem:[#allocation2 + $0x8] sm:$0xff]
  %v37 = vld [vmem:[#allocation2 + $0x10] sm:$0xff]
  %v38 = vld [vmem:[#allocation2 + $0x18] sm:$0xff]
  %v39 = vld [vmem:[#allocation2 + $0x20] sm:$0xff]
  %v40 = vld [vmem:[#allocation2 + $0x28] sm:$0xff]
  %v41 = vld [vmem:[#allocation2 + $0x30] sm:$0xff]
  %v42 = vld [vmem:[#allocation2 + $0x38] sm:$0xff]
  %v43 = vld [vmem:[#allocation2 + $0x40] sm:$0xff]
  %v44 = vld [vmem:[#allocation2 + $0x48] sm:$0xff]
  %v45 = vld [vmem:[#allocation2 + $0x50] sm:$0xff]
  %v46 = vld [vmem:[#allocation2 + $0x58] sm:$0xff]
  %v47 = vld [vmem:[#allocation2 + $0x60] sm:$0xff]
  %v48 = vld [vmem:[#allocation2 + $0x68] sm:$0xff]
  %v49 = vld [vmem:[#allocation2 + $0x70] sm:$0xff]
  %v50 = vld [vmem:[#allocation2 + $0x78] sm:$0xff]
  %v51 = vld [vmem:[%s0] sm:$0xff]
  %v52 = vld [vmem:[%s0 + $0x8] sm:$0xff]
  %v53 = vld [vmem:[%s0 + $0x10] sm:$0xff]
  %v54 = vld [vmem:[%s0 + $0x18] sm:$0xff]
  %v55 = vld [vmem:[%s0 + $0x20] sm:$0xff]
  %v56 = vld [vmem:[%s0 + $0x28] sm:$0xff]
  %v57 = vld [vmem:[%s0 + $0x30] sm:$0xff]
  %v58 = vld [vmem:[%s0 + $0x38] sm:$0xff]
  %v59 = vld [vmem:[%s0 + $0x40] sm:$0xff]
  %v60 = vld [vmem:[%s0 + $0x48] sm:$0xff]
  %v61 = vld [vmem:[%s0 + $0x50] sm:$0xff]
  %v62 = vld [vmem:[%s0 + $0x58] sm:$0xff]
  %v63 = vld [vmem:[%s0 + $0x60] sm:$0xff]
  %v64 = vld [vmem:[%s0 + $0x68] sm:$0xff]
  %v65 = vld [vmem:[%s0 + $0x70] sm:$0xff]
  %v66 = vld [vmem:[%s0 + $0x78] sm:$0xff]
  %v67 = vld [vmem:[%s1] sm:$0xff]
  %v68 = vld [vmem:[%s1 + $0x8] sm:$0xff]
  %v69 = vld [vmem:[%s1 + $0x10] sm:$0xff]
  %v70 = vld [vmem:[%s1 + $0x18] sm:$0xff]
  %v71 = vld [vmem:[%s1 + $0x20] sm:$0xff]
  %v72 = vld [vmem:[%s1 + $0x28] sm:$0xff]
  %v73 = vld [vmem:[%s1 + $0x30] sm:$0xff]
  %v74 = vld [vmem:[%s1 + $0x38] sm:$0xff]
  %vm75 = vcmask 523264
  %v77 = vsel %vm75, %v51, 0
  %v80 = vsel %vm75, %v52, 0
  %v83 = vsel %vm75, %v53, 0
  %v86 = vsel %vm75, %v54, 0
  %v89 = vsel %vm75, %v55, 0
  %v92 = vsel %vm75, %v56, 0
  %v95 = vsel %vm75, %v57, 0
  %v98 = vsel %vm75, %v58, 0
  %v101 = vsel %vm75, %v59, 0
  %v104 = vsel %vm75, %v60, 0
  %v107 = vsel %vm75, %v61, 0
  %v110 = vsel %vm75, %v62, 0
  %v113 = vsel %vm75, %v63, 0
  %v116 = vsel %vm75, %v64, 0
  %v119 = vsel %vm75, %v65, 0
  %v122 = vsel %vm75, %v66, 0
  %124 = vmatprep.subr.mxu0 0.0
  %125 = vmatpush1.msra.mxu0 %v67
  %126 = vmatprep.subr.mxu0 0.0
  %127 = vmatpush1.msra.mxu0 %v68
  %128 = vmatprep.subr.mxu0 0.0
  %129 = vmatpush1.msra.mxu0 %v69
  %130 = vmatprep.subr.mxu0 0.0
  %131 = vmatpush1.msra.mxu0 %v70
  %132 = vmatprep.subr.mxu0 0.0
  %133 = vmatpush1.msra.mxu0 %v71
  %134 = vmatprep.subr.mxu0 0.0
  %135 = vmatpush1.msra.mxu0 %v72
  %136 = vmatprep.subr.mxu0 0.0
  %137 = vmatpush1.msra.mxu0 %v73
  %138 = vmatprep.subr.mxu0 0.0
  %139 = vmatpush1.msra.mxu0 %v74
  %140 = vmatprep.subr.mxu0 0.0
  %141 = vmatpush1.msra.mxu0 0.0
  %142 = vmatprep.subr.mxu0 0.0
  %143 = vmatpush1.msra.mxu0 0.0
  %144 = vmatprep.subr.mxu0 0.0
  %145 = vmatpush1.msra.mxu0 0.0
  %146 = vmatprep.subr.mxu0 0.0
  %147 = vmatpush1.msra.mxu0 0.0
  %148 = vmatprep.subr.mxu0 0.0
  %149 = vmatpush1.msra.mxu0 0.0
  %150 = vmatprep.subr.mxu0 0.0
  %151 = vmatpush1.msra.mxu0 0.0
  %152 = vmatprep.subr.mxu0 0.0
  %153 = vmatpush1.msra.mxu0 0.0
  %154 = vmatprep.subr.mxu0 0.0
  %155 = vmatpush1.msra.mxu0 0.0
  %156 = vmatprep.subr.mxu0 0.0
  %157 = vmatpush1.msra.mxu0 0.0
  %158 = vmatprep.subr.mxu0 0.0
  %159 = vmatpush1.msra.mxu0 0.0
  %160 = vmatprep.subr.mxu0 0.0
  %161 = vmatpush1.msra.mxu0 0.0
  %162 = vmatprep.subr.mxu0 0.0
  %163 = vmatpush1.msra.mxu0 0.0
  %164 = vmatprep.subr.mxu0 0.0
  %165 = vmatpush1.msra.mxu0 0.0
  %166 = vmatprep.subr.mxu0 0.0
  %167 = vmatpush1.msra.mxu0 0.0
  %168 = vmatprep.subr.mxu0 0.0
  %169 = vmatpush1.msra.mxu0 0.0
  %170 = vmatprep.subr.mxu0 0.0
  %171 = vmatpush1.msra.mxu0 0.0
  %172 = vmatprep.subr.mxu0 0.0
  %173 = vmatpush1.msra.mxu0 0.0
  %174 = vmatprep.subr.mxu0 0.0
  %175 = vmatpush1.msra.mxu0 0.0
  %176 = vmatprep.subr.mxu0 0.0
  %177 = vmatpush1.msra.mxu0 0.0
  %178 = vmatprep.subr.mxu0 0.0
  %179 = vmatpush1.msra.mxu0 0.0
  %180 = vmatprep.subr.mxu0 0.0
  %181 = vmatpush1.msra.mxu0 0.0
  %182 = vmatprep.subr.mxu0 0.0
  %183 = vmatpush1.msra.mxu0 0.0
  %184 = vmatprep.subr.mxu0 0.0
  %185 = vmatpush1.msra.mxu0 0.0
  %186 = vmatprep.subr.mxu0 0.0
  %187 = vmatpush1.msra.mxu0 0.0
  %188 = vmatprep.mubr.f32.mxu0 0.0
  %189 = vmatmul.mubr.f32.gmra.mrb[0].mxu0 %v77
  %v190 = vpop.f32.mrb[0].mxu0
  %v191 = vadd.f32 0.0, %v190
  %v192 = vpop.f32.mrb[0].mxu0
  %193 = vmatprep.mubr.f32.mxu0 0.0
  %194 = vmatmul.mubr.f32.gmra.mrb[0].mxu0 %v80
  %v195 = vpop.f32.mrb[0].mxu0
  %v196 = vadd.f32 0.0, %v195
  %v197 = vpop.f32.mrb[0].mxu0
  %198 = vmatprep.mubr.f32.mxu0 0.0
  %199 = vmatmul.mubr.f32.gmra.mrb[0].mxu0 %v83
  %v200 = vpop.f32.mrb[0].mxu0
  %v201 = vadd.f32 0.0, %v200
  %v202 = vpop.f32.mrb[0].mxu0
  %203 = vmatprep.mubr.f32.mxu0 0.0
  %204 = vmatmul.mubr.f32.gmra.mrb[0].mxu0 %v86
  %v205 = vpop.f32.mrb[0].mxu0
  %v206 = vadd.f32 0.0, %v205
  %v207 = vpop.f32.mrb[0].mxu0
  %208 = vmatprep.mubr.f32.mxu0 0.0
  %209 = vmatmul.mubr.f32.gmra.mrb[0].mxu0 %v89
  %v210 = vpop.f32.mrb[0].mxu0
  %v211 = vadd.f32 0.0, %v210
  %v212 = vpop.f32.mrb[0].mxu0
  %213 = vmatprep.mubr.f32.mxu0 0.0
  %214 = vmatmul.mubr.f32.gmra.mrb[0].mxu0 %v92
  %v215 = vpop.f32.mrb[0].mxu0
  %v216 = vadd.f32 0.0, %v215
  %v217 = vpop.f32.mrb[0].mxu0
  %218 = vmatprep.mubr.f32.mxu0 0.0
  %219 = vmatmul.mubr.f32.gmra.mrb[0].mxu0 %v95
  %v220 = vpop.f32.mrb[0].mxu0
  %v221 = vadd.f32 0.0, %v220
  %v222 = vpop.f32.mrb[0].mxu0
  %223 = vmatprep.mubr.f32.mxu0 0.0
  %224 = vmatmul.mubr.f32.gmra.mrb[0].mxu0 %v98
  %v225 = vpop.f32.mrb[0].mxu0
  %v226 = vadd.f32 0.0, %v225
  %v227 = vpop.f32.mrb[0].mxu0
  %228 = vmatprep.mubr.f32.mxu0 0.0
  %229 = vmatmul.mubr.f32.gmra.mrb[0].mxu0 %v101
  %v230 = vpop.f32.mrb[0].mxu0
  %v231 = vadd.f32 0.0, %v230
  %v232 = vpop.f32.mrb[0].mxu0
  %233 = vmatprep.mubr.f32.mxu0 0.0
  %234 = vmatmul.mubr.f32.gmra.mrb[0].mxu0 %v104
  %v235 = vpop.f32.mrb[0].mxu0
  %v236 = vadd.f32 0.0, %v235
  %v237 = vpop.f32.mrb[0].mxu0
  %238 = vmatprep.mubr.f32.mxu0 0.0
  %239 = vmatmul.mubr.f32.gmra.mrb[0].mxu0 %v107
  %v240 = vpop.f32.mrb[0].mxu0
  %v241 = vadd.f32 0.0, %v240
  %v242 = vpop.f32.mrb[0].mxu0
  %243 = vmatprep.mubr.f32.mxu0 0.0
  %244 = vmatmul.mubr.f32.gmra.mrb[0].mxu0 %v110
  %v245 = vpop.f32.mrb[0].mxu0
  %v246 = vadd.f32 0.0, %v245
  %v247 = vpop.f32.mrb[0].mxu0
  %248 = vmatprep.mubr.f32.mxu0 0.0
  %249 = vmatmul.mubr.f32.gmra.mrb[0].mxu0 %v113
  %v250 = vpop.f32.mrb[0].mxu0
  %v251 = vadd.f32 0.0, %v250
  %v252 = vpop.f32.mrb[0].mxu0
  %253 = vmatprep.mubr.f32.mxu0 0.0
  %254 = vmatmul.mubr.f32.gmra.mrb[0].mxu0 %v116
  %v255 = vpop.f32.mrb[0].mxu0
  %v256 = vadd.f32 0.0, %v255
  %v257 = vpop.f32.mrb[0].mxu0
  %258 = vmatprep.mubr.f32.mxu0 0.0
  %259 = vmatmul.mubr.f32.gmra.mrb[0].mxu0 %v119
  %v260 = vpop.f32.mrb[0].mxu0
  %v261 = vadd.f32 0.0, %v260
  %v262 = vpop.f32.mrb[0].mxu0
  %263 = vmatprep.mubr.f32.mxu0 0.0
  %264 = vmatmul.mubr.f32.gmra.mrb[0].mxu0 %v122
  %v265 = vpop.f32.mrb[0].mxu0
  %v266 = vadd.f32 0.0, %v265
  %v267 = vpop.f32.mrb[0].mxu0
  %268 = vdwg.mxu0
  %v269 = vadd.f32 %v35, %v191
  %v270 = vadd.f32 %v36, %v196
  %v271 = vadd.f32 %v37, %v201
  %v272 = vadd.f32 %v38, %v206
  %v273 = vadd.f32 %v39, %v211
  %v274 = vadd.f32 %v40, %v216
  %v275 = vadd.f32 %v41, %v221
  %v276 = vadd.f32 %v42, %v226
  %v277 = vadd.f32 %v43, %v231
  %v278 = vadd.f32 %v44, %v236
  %v279 = vadd.f32 %v45, %v241
  %v280 = vadd.f32 %v46, %v246
  %v281 = vadd.f32 %v47, %v251
  %v282 = vadd.f32 %v48, %v256
  %v283 = vadd.f32 %v49, %v261
  %v284 = vadd.f32 %v50, %v266
  %vm285 = vcmask 261120
  %286 = vst.msk [vmem:[#allocation2] sm:$0xff] %vm285, %v269
  %287 = vst.msk [vmem:[#allocation2 + $0x8] sm:$0xff] %vm285, %v270
  %288 = vst.msk [vmem:[#allocation2 + $0x10] sm:$0xff] %vm285, %v271
  %289 = vst.msk [vmem:[#allocation2 + $0x18] sm:$0xff] %vm285, %v272
  %290 = vst.msk [vmem:[#allocation2 + $0x20] sm:$0xff] %vm285, %v273
  %291 = vst.msk [vmem:[#allocation2 + $0x28] sm:$0xff] %vm285, %v274
  %292 = vst.msk [vmem:[#allocation2 + $0x30] sm:$0xff] %vm285, %v275
  %293 = vst.msk [vmem:[#allocation2 + $0x38] sm:$0xff] %vm285, %v276
  %294 = vst.msk [vmem:[#allocation2 + $0x40] sm:$0xff] %vm285, %v277
  %295 = vst.msk [vmem:[#allocation2 + $0x48] sm:$0xff] %vm285, %v278
  %296 = vst.msk [vmem:[#allocation2 + $0x50] sm:$0xff] %vm285, %v279
  %297 = vst.msk [vmem:[#allocation2 + $0x58] sm:$0xff] %vm285, %v280
  %298 = vst.msk [vmem:[#allocation2 + $0x60] sm:$0xff] %vm285, %v281
  %299 = vst.msk [vmem:[#allocation2 + $0x68] sm:$0xff] %vm285, %v282
  %300 = vst.msk [vmem:[#allocation2 + $0x70] sm:$0xff] %vm285, %v283
  %301 = vst.msk [vmem:[#allocation2 + $0x78] sm:$0xff] %vm285, %v284
  // Predicated region
  $region18: #{_lambda_.21} parent=0 // pred_check
    %p302 = pneg %p14
  $region19: #{_lambda_.21} parent=0 // pred_check_branch
    %304 = sbr.rel (%p302) target = $region21
  $region20: #{_lambda_.21} parent=0 // pred_region
    %v305 = vld [vmem:[#allocation2] sm:$0xff]
    %v306 = vld [vmem:[#allocation2 + $0x8] sm:$0xff]
    %v307 = vld [vmem:[#allocation2 + $0x10] sm:$0xff]
    %v308 = vld [vmem:[#allocation2 + $0x18] sm:$0xff]
    %v309 = vld [vmem:[#allocation2 + $0x20] sm:$0xff]
    %v310 = vld [vmem:[#allocation2 + $0x28] sm:$0xff]
    %v311 = vld [vmem:[#allocation2 + $0x30] sm:$0xff]
    %v312 = vld [vmem:[#allocation2 + $0x38] sm:$0xff]
    %v313 = vld [vmem:[#allocation2 + $0x40] sm:$0xff]
    %v314 = vld [vmem:[#allocation2 + $0x48] sm:$0xff]
    %v315 = vld [vmem:[#allocation2 + $0x50] sm:$0xff]
    %v316 = vld [vmem:[#allocation2 + $0x58] sm:$0xff]
    %v317 = vld [vmem:[#allocation2 + $0x60] sm:$0xff]
    %v318 = vld [vmem:[#allocation2 + $0x68] sm:$0xff]
    %v319 = vld [vmem:[#allocation2 + $0x70] sm:$0xff]
    %v320 = vld [vmem:[#allocation2 + $0x78] sm:$0xff]
    %v321 = vld [vmem:[%s2] sm:$0x1]
    %v323 = vlaneseq
    %v324 = vshrl.u32 %v323, 7
    %v325 = vsub.s32 0, %v324
    %v326 = vrot.slane %v321, %v325
    %v328 = vadd.f32 %v305, %v326
    %v329 = vadd.f32 %v306, %v326
    %v330 = vadd.f32 %v307, %v326
    %v331 = vadd.f32 %v308, %v326
    %v332 = vadd.f32 %v309, %v326
    %v333 = vadd.f32 %v310, %v326
    %v334 = vadd.f32 %v311, %v326
    %v335 = vadd.f32 %v312, %v326
    %v336 = vadd.f32 %v313, %v326
    %v337 = vadd.f32 %v314, %v326
    %v338 = vadd.f32 %v315, %v326
    %v339 = vadd.f32 %v316, %v326
    %v340 = vadd.f32 %v317, %v326
    %v341 = vadd.f32 %v318, %v326
    %v342 = vadd.f32 %v319, %v326
    %v343 = vadd.f32 %v320, %v326
    %344 = vst.msk [vmem:[%s3] sm:$0xff] %vm285, %v328
    %345 = vst.msk [vmem:[%s3 + $0x8] sm:$0xff] %vm285, %v329
    %346 = vst.msk [vmem:[%s3 + $0x10] sm:$0xff] %vm285, %v330
    %347 = vst.msk [vmem:[%s3 + $0x18] sm:$0xff] %vm285, %v331
    %348 = vst.msk [vmem:[%s3 + $0x20] sm:$0xff] %vm285, %v332
    %349 = vst.msk [vmem:[%s3 + $0x28] sm:$0xff] %vm285, %v333
    %350 = vst.msk [vmem:[%s3 + $0x30] sm:$0xff] %vm285, %v334
    %351 = vst.msk [vmem:[%s3 + $0x38] sm:$0xff] %vm285, %v335
    %352 = vst.msk [vmem:[%s3 + $0x40] sm:$0xff] %vm285, %v336
    %353 = vst.msk [vmem:[%s3 + $0x48] sm:$0xff] %vm285, %v337
    %354 = vst.msk [vmem:[%s3 + $0x50] sm:$0xff] %vm285, %v338
    %355 = vst.msk [vmem:[%s3 + $0x58] sm:$0xff] %vm285, %v339
    %356 = vst.msk [vmem:[%s3 + $0x60] sm:$0xff] %vm285, %v340
    %357 = vst.msk [vmem:[%s3 + $0x68] sm:$0xff] %vm285, %v341
    %358 = vst.msk [vmem:[%s3 + $0x70] sm:$0xff] %vm285, %v342
    %359 = vst.msk [vmem:[%s3 + $0x78] sm:$0xff] %vm285, %v343
  $region21: #{_lambda_.21} parent=0 // pred_fallthru
    _
  // Predicated region
  $region22: #{_lambda_.21} parent=0 // pred_check
    _
  $region23: #{_lambda_.21} parent=0 // pred_check_branch
    %361 = sbr.rel (0) target = $region25
  $region24: #{_lambda_.21} parent=0 // pred_region
    _
  $region25: #{_lambda_.21} parent=0 // pred_fallthru
    _
  // Predicated region
  $region26: #{_lambda_.21} parent=0 // pred_check
    _
  $region27: #{_lambda_.21} parent=0 // pred_check_branch
    %363 = sbr.rel (0) target = $region29
  $region28: #{_lambda_.21} parent=0 // pred_region
    _
  $region29: #{_lambda_.21} parent=0 // pred_fallthru
    _

</llo_original>
